<compile_context>
chip_gen: v6e
topology: v6e:2x2x1
jax: 0.10.0
libtpu: 0.0.40
codegen_flags: <defaults>
</compile_context>

<pallas_src>
import math
import functools

import numpy as np
import jax
import jax.numpy as jnp
from jax import lax
from jax.experimental import pallas as pl
from jax.experimental.pallas import tpu as pltpu

NUM_CLASSES = 10
NUM_ANCHORS = 9
C = 256                    # pyramid / head channel width
GN_GROUPS = 32
GN_EPS = 1e-5
HEAD_TOWER_LAYERS = 4      # conv3x3+GN+ReLU layers before the final head conv


# ----------------------------------------------------------------------------
# In-kernel helpers
# ----------------------------------------------------------------------------

def _group_norm(y, rmat, gmat, gamma, beta, eps):
    """Per-sample GroupNorm(32) on a merged (B*HW, C) block.

    rmat: (M, M) bf16 block-diagonal per-sample row-averaging matrix (1/HW).
    gmat: (C, C) bf16 block-diagonal per-group channel-averaging matrix (1/cg).
    Statistics run as bf16 x bf16 MXU matmuls with f32 accumulation.
    """
    yb = y.astype(jnp.bfloat16)
    mean = jnp.dot(
        jnp.dot(rmat, yb, preferred_element_type=jnp.float32).astype(jnp.bfloat16),
        gmat, preferred_element_type=jnp.float32)
    xc = y - mean
    sq = (xc * xc).astype(jnp.bfloat16)
    var = jnp.dot(
        jnp.dot(rmat, sq, preferred_element_type=jnp.float32).astype(jnp.bfloat16),
        gmat, preferred_element_type=jnp.float32)
    return xc * lax.rsqrt(var + eps) * gamma + beta


def _conv3x3(x_bf16, smat_ref, w_ref):
    """3x3 / stride 1 / pad 1 conv on a merged (B*HW, C) activation.

    Spatial shifts (zero padding and batch boundaries included) are constant 0/1
    matrices -> 9 small MXU matmuls; each shifted tap hits its (C, C) weight
    chunk (weight rows ordered (di, dj, cin)).  Everything stays on the MXU,
    no lane/sublane relayouts.
    """
    acc = None
    for t in range(9):
        xt = jnp.dot(smat_ref[t], x_bf16,
                     preferred_element_type=jnp.float32).astype(jnp.bfloat16)
        yt = jnp.dot(xt, w_ref[t * C:(t + 1) * C, :],
                     preferred_element_type=jnp.float32)
        acc = yt if acc is None else acc + yt
    return acc


# ----------------------------------------------------------------------------
# Pallas kernels
# ----------------------------------------------------------------------------

def _p5_kernel(x_ref, w1_ref, w2_ref, par_ref, smat_ref, rmat_ref, gmat_ref,
               o_ref, *, eps):
    """Fused p5 pyramid block: conv1x1(2048->256)+GN -> conv3x3(256->256)+GN."""
    rmat = rmat_ref[...]
    gmat = gmat_ref[...]
    # layer 0: 1x1 conv + GroupNorm (no ReLU)
    y = jnp.dot(x_ref[...], w1_ref[...],
                preferred_element_type=jnp.float32) + par_ref[0:1, :]
    y = _group_norm(y, rmat, gmat, par_ref[1:2, :], par_ref[2:3, :], eps)
    # layer 1: 3x3 conv + GroupNorm (no ReLU)
    y = _conv3x3(y.astype(jnp.bfloat16), smat_ref, w2_ref) + par_ref[8:9, :]
    y = _group_norm(y, rmat, gmat, par_ref[9:10, :], par_ref[10:11, :], eps)
    o_ref[...] = y.astype(o_ref.dtype)


def _heads_kernel(x0_ref, w_ref, par_ref, smat_ref, rmat_ref, gmat_ref,
                  o_ref, act_ref, *, num_layers, eps):
    """Both detection heads, all layers, one kernel.

    grid = (head, layer); head is the megacore-parallel axis.  The activation
    lives in a VMEM scratch across the layer axis; layers 0..num_layers-2 are
    conv3x3+GN+ReLU, the last layer is conv3x3+bias written to the output.
    """
    l = pl.program_id(1)

    @pl.when(l == 0)
    def _():
        act_ref[...] = x0_ref[...]          # fresh p5 activation for this head

    y = _conv3x3(act_ref[...], smat_ref, w_ref) + par_ref[0:1, :]

    @pl.when(l < num_layers - 1)
    def _():
        out = _group_norm(y, rmat_ref[...], gmat_ref[...],
                          par_ref[1:2, :], par_ref[2:3, :], eps)
        act_ref[...] = jnp.maximum(out, 0.0).astype(act_ref.dtype)

    @pl.when(l == num_layers - 1)
    def _():
        o_ref[...] = y.astype(o_ref.dtype)  # final conv: bias only, no GN/ReLU


# ----------------------------------------------------------------------------
# Kernel wrappers
# ----------------------------------------------------------------------------

def p5_block(conv5, w1, w2, par, smat, rmat, gmat):
    """conv5:(M,2048) bf16 -> p5:(M,256) bf16, single launch, everything in VMEM."""
    M = conv5.shape[0]
    vmem = lambda: pl.BlockSpec(memory_space=pltpu.MemorySpace.VMEM)
    return pl.pallas_call(
        functools.partial(_p5_kernel, eps=GN_EPS),
        out_shape=jax.ShapeDtypeStruct((M, C), jnp.bfloat16),
        in_specs=[vmem() for _ in range(7)],
        out_specs=vmem(),
    )(conv5, w1, w2, par, smat, rmat, gmat)


def heads_block(p5, w_stack, par_stack, smat, rmat, gmat):
    """p5:(M,256) bf16, w_stack:(2,L,9C,C) bf16, par_stack:(2,L,8,C) f32
    -> (2, M, 256) f32 head outputs (cls = head 0, bbox = head 1)."""
    M = p5.shape[0]
    num_heads, num_layers = w_stack.shape[0], w_stack.shape[1]
    return pl.pallas_call(
        functools.partial(_heads_kernel, num_layers=num_layers, eps=GN_EPS),
        out_shape=jax.ShapeDtypeStruct((num_heads, M, C), jnp.float32),
        grid=(num_heads, num_layers),
        in_specs=[
            pl.BlockSpec((M, C), lambda h, l: (0, 0)),                      # p5
            pl.BlockSpec((None, None, 9 * C, C), lambda h, l: (h, l, 0, 0)),  # weights
            pl.BlockSpec((None, None, 8, C), lambda h, l: (h, l, 0, 0)),    # bias/gamma/beta
            pl.BlockSpec((9, M, M), lambda h, l: (0, 0, 0)),                # shift mats
            pl.BlockSpec((M, M), lambda h, l: (0, 0)),                      # per-sample mean
            pl.BlockSpec((C, C), lambda h, l: (0, 0)),                      # per-group mean
        ],
        out_specs=pl.BlockSpec((None, M, C), lambda h, l: (h, 0, 0)),
        scratch_shapes=[pltpu.VMEM((M, C), jnp.bfloat16)],                  # resident act
        compiler_params=pltpu.CompilerParams(
            dimension_semantics=("parallel", "arbitrary")),
    )(p5, w_stack, par_stack, smat, rmat, gmat)


# ----------------------------------------------------------------------------
# Constant structure matrices (built once at trace time from static shapes)
# ----------------------------------------------------------------------------

def _make_spatial_mats(B, H, W):
    """smat[t]: (M,M) 0/1 shift matrix for tap t=(di*3+dj) of a 3x3/pad-1 conv on a
    merged (B*HW) row axis; rmat: per-sample row-averaging matrix (1/HW)."""
    HW = H * W
    M = B * HW
    smat = np.zeros((9, M, M), np.float32)
    for di in range(3):
        for dj in range(3):
            t = di * 3 + dj
            for b in range(B):
                for h in range(H):
                    hi = h + di - 1
                    if not (0 <= hi < H):
                        continue
                    for w in range(W):
                        wi = w + dj - 1
                        if 0 <= wi < W:
                            smat[t, b * HW + h * W + w, b * HW + hi * W + wi] = 1.0
    rmat = np.zeros((M, M), np.float32)
    for b in range(B):
        rmat[b * HW:(b + 1) * HW, b * HW:(b + 1) * HW] = 1.0 / HW
    return jnp.asarray(smat, jnp.bfloat16), jnp.asarray(rmat, jnp.bfloat16)


def _make_group_mat(channels, groups):
    cg = channels // groups
    g = np.arange(channels) // cg
    gmat = (g[:, None] == g[None, :]).astype(np.float32) / cg
    return jnp.asarray(gmat, jnp.bfloat16)


# ----------------------------------------------------------------------------
# Anchors (pure index math; plain JAX glue)
# ----------------------------------------------------------------------------

def make_anchor_deltas(stride,
                       scales=(4.0, 4.0 * 2 ** (1 / 3), 4.0 * 2 ** (2 / 3)),
                       aspect_ratios=(0.5, 1.0, 2.0)):
    deltas = []
    for s in scales:
        for ar in aspect_ratios:
            w = s * stride * math.sqrt(1.0 / ar)
            h = s * stride * math.sqrt(ar)
            deltas.append([-w / 2, -h / 2, w / 2, h / 2])
    return jnp.array(deltas, jnp.float32)            # (A, 4)


def anchors_forward(B, H, W, stride, deltas):
    ys = jnp.arange(H, dtype=jnp.float32) * stride
    xs = jnp.arange(W, dtype=jnp.float32) * stride
    yg, xg = jnp.meshgrid(ys, xs, indexing="ij")
    centers = jnp.stack([xg, yg], axis=-1).reshape(-1, 2)         # (HW, 2)
    a = jnp.concatenate(
        [centers[:, None, :] + deltas[None, :, :2],
         centers[:, None, :] + deltas[None, :, 2:]], axis=-1)     # (HW, A, 4)
    a = a.reshape(H, W, -1).transpose(2, 0, 1)                    # (A*4, H, W)
    return jnp.broadcast_to(a[None], (B,) + a.shape)              # (B, A*4, H, W)


# ----------------------------------------------------------------------------
# Parameter initialization (deterministic, matching the module's shapes)
# ----------------------------------------------------------------------------

def _kaiming_uniform(key, shape, fan_in, a=1.0):
    gain = math.sqrt(2.0 / (1.0 + a * a))
    bound = gain * math.sqrt(3.0 / fan_in)
    return jax.random.uniform(key, shape, jnp.float32, -bound, bound)


def _pack_par(bias, gamma, beta):
    # One (8, C) f32 tile per layer: row 0 = bias, 1 = gamma, 2 = beta, rest zero.
    zeros = jnp.zeros_like(bias)
    return jnp.stack([bias, gamma, beta, zeros, zeros, zeros, zeros, zeros], axis=0)


def _init_head(key, n_out, final_bias, num_layers=HEAD_TOWER_LAYERS):
    ws, pars = [], []
    for _ in range(num_layers):
        key, k1 = jax.random.split(key)
        ws.append(jax.random.normal(k1, (9 * C, C), jnp.float32) * 0.01)
        pars.append(_pack_par(jnp.zeros((C,)), jnp.ones((C,)), jnp.zeros((C,))))
    key, k1 = jax.random.split(key)
    wf = jax.random.normal(k1, (9 * C, n_out), jnp.float32) * 0.01
    ws.append(jnp.pad(wf, ((0, 0), (0, C - n_out))))              # lane-pad to 256
    bf = jnp.pad(jnp.full((n_out,), final_bias, jnp.float32), (0, C - n_out))
    pars.append(_pack_par(bf, jnp.ones((C,)), jnp.zeros((C,))))
    w = jnp.stack(ws, axis=0).astype(jnp.bfloat16)                # (L+1, 2304, 256)
    par = jnp.stack(pars, axis=0).astype(jnp.float32)             # (L+1, 8, 256)
    return w, par


def init_params(key, num_classes=NUM_CLASSES, num_anchors=NUM_ANCHORS):
    keys = jax.random.split(key, 8)
    p = {}
    # TODO(synk): synthetic backbone stub in place of the pretrained ResNet50.
    p["stub_w"] = jax.random.normal(keys[0], (3, 2048), jnp.float32) * 0.1
    p["stub_b"] = jnp.zeros((2048,), jnp.float32)
    # p5: Conv1x1(2048->256)+GN(32) -> Conv3x3(256->256)+GN(32)
    # NOTE: if real torchvision (O,I,kH,kW) weights are ever loaded, they must be
    # reshaped/transposed to rows ordered (kh, kw, cin) to match _conv3x3.
    p["p5_w1"] = _kaiming_uniform(keys[1], (2048, C), fan_in=2048).astype(jnp.bfloat16)
    p["p5_w2"] = _kaiming_uniform(keys[2], (9 * C, C), fan_in=9 * C).astype(jnp.bfloat16)
    p["p5_par"] = jnp.concatenate(
        [_pack_par(jnp.zeros((C,)), jnp.ones((C,)), jnp.zeros((C,))),
         _pack_par(jnp.zeros((C,)), jnp.ones((C,)), jnp.zeros((C,)))],
        axis=0).astype(jnp.float32)                               # (16, 256)
    # heads: cls & bbox stacked on a leading "head" axis (v7x parallel axis)
    prior_prob = 0.01
    cls_bias = -math.log((1 - prior_prob) / prior_prob)
    cls_w, cls_par = _init_head(keys[3], num_anchors * num_classes, cls_bias)
    bbox_w, bbox_par = _init_head(keys[4], num_anchors * 4, 0.0)
    p["head_w"] = jnp.stack([cls_w, bbox_w], axis=0)              # (2, 5, 2304, 256)
    p["head_par"] = jnp.stack([cls_par, bbox_par], axis=0)        # (2, 5, 8, 256)
    # anchors (stride 32 only: p67=False, fpn=False)
    p["anchor_deltas"] = make_anchor_deltas(32)
    return p


# ----------------------------------------------------------------------------
# Forward pass
# ----------------------------------------------------------------------------

def retinanet_forward(x_nchw, params):
    B, Cin, H, W = x_nchw.shape
    assert H % 32 == 0 and W % 32 == 0 and Cin == 3
    Hf, Wf = H // 32, W // 32
    HW = Hf * Wf
    M = B * HW
    x = x_nchw.transpose(0, 2, 3, 1).astype(jnp.float32)          # NCHW -> NHWC

    # --- backbone stub (plain XLA; a K=3 matmul is not worth a kernel launch) ---
    x5 = x.reshape(B, Hf, 32, Wf, 32, Cin).mean(axis=(2, 4))      # (B,Hf,Wf,3)
    conv5 = jax.nn.relu(jnp.einsum("bhwc,cd->bhwd", x5, params["stub_w"])
                        + params["stub_b"])
    conv5 = conv5.reshape(M, 2048).astype(jnp.bfloat16)

    # --- constant structure matrices (shift / per-sample mean / per-group mean) ---
    smat, rmat = _make_spatial_mats(B, Hf, Wf)
    gmat = _make_group_mat(C, GN_GROUPS)

    # --- p5 pyramid level: fused conv1x1+GN -> conv3x3+GN (one launch) ---
    p5 = p5_block(conv5, params["p5_w1"], params["p5_w2"], params["p5_par"],
                  smat, rmat, gmat)                                # (M, 256) bf16

    # --- both heads, all layers, one launch ---
    out = heads_block(p5, params["head_w"], params["head_par"], smat, rmat, gmat)
    cls = out[0, :, :NUM_ANCHORS * NUM_CLASSES].reshape(B, Hf, Wf, -1)
    bbox = out[1, :, :NUM_ANCHORS * 4].reshape(B, Hf, Wf, -1)

    anc = anchors_forward(B, Hf, Wf, 32, params["anchor_deltas"])
    to_nchw = lambda t: t.transpose(0, 3, 1, 2)
    return [(to_nchw(cls), to_nchw(bbox), anc)]


# ----------------------------------------------------------------------------

if __name__ == "__main__":
    key = jax.random.PRNGKey(0)
    params = init_params(key)
    x = jax.random.normal(jax.random.PRNGKey(0), (2, 3, 128, 128), jnp.float32)

    fwd = jax.jit(retinanet_forward)
    outs = jax.block_until_ready(fwd(x, params))

    cls, bbox, anc = outs[0]
    assert cls.shape == (2, 90, 4, 4), cls.shape     # (B, A*num_classes, H/32, W/32)
    assert bbox.shape == (2, 36, 4, 4), bbox.shape   # (B, A*4, H/32, W/32)
    assert anc.shape == (2, 36, 4, 4), anc.shape     # (B, A*4, H/32, W/32)
    assert jnp.all(jnp.isfinite(cls)) and jnp.all(jnp.isfinite(bbox))
    print("KERNEL_OK")
</pallas_src>

<mosaic_0001>
module attributes {stable_mosaic.version = 11 : i64} {
  func.func @_p5_kernel(%arg0: memref<32x2048xbf16, #tpu.memory_space<vmem>>, %arg1: memref<2048x256xbf16, #tpu.memory_space<vmem>>, %arg2: memref<2304x256xbf16, #tpu.memory_space<vmem>>, %arg3: memref<16x256xf32, #tpu.memory_space<vmem>>, %arg4: memref<9x32x32xbf16, #tpu.memory_space<vmem>>, %arg5: memref<32x32xbf16, #tpu.memory_space<vmem>>, %arg6: memref<256x256xbf16, #tpu.memory_space<vmem>>, %arg7: memref<32x256xbf16, #tpu.memory_space<vmem>>) attributes {dimension_semantics = [], scalar_prefetch = 0 : i64, scratch_operands = 0 : i64, tpu.core_type = #tpu.core_type<tc>} {
    %c0 = arith.constant 0 : index
    %c0_0 = arith.constant 0 : index
    %0 = vector.load %arg5[%c0, %c0_0] : memref<32x32xbf16, #tpu.memory_space<vmem>>, vector<32x32xbf16>
    %c0_1 = arith.constant 0 : index
    %c0_2 = arith.constant 0 : index
    %1 = vector.load %arg6[%c0_1, %c0_2] : memref<256x256xbf16, #tpu.memory_space<vmem>>, vector<256x256xbf16>
    %c0_3 = arith.constant 0 : index
    %c0_4 = arith.constant 0 : index
    %2 = vector.load %arg0[%c0_3, %c0_4] : memref<32x2048xbf16, #tpu.memory_space<vmem>>, vector<32x2048xbf16>
    %c0_5 = arith.constant 0 : index
    %c0_6 = arith.constant 0 : index
    %3 = vector.load %arg1[%c0_5, %c0_6] : memref<2048x256xbf16, #tpu.memory_space<vmem>>, vector<2048x256xbf16>
    %cst = arith.constant dense<0.000000e+00> : vector<32x256xf32>
    %4 = tpu.matmul %2, %3, %cst {dimension_numbers = #tpu.dot_dimension_numbers<[1], [0], [0], [1], [0, 0, 1, 1], [], []>} : vector<32x2048xbf16>, vector<2048x256xbf16>, vector<32x256xf32> -> vector<32x256xf32>
    %c0_7 = arith.constant 0 : index
    %c0_8 = arith.constant 0 : index
    %5 = vector.load %arg3[%c0_7, %c0_8] : memref<16x256xf32, #tpu.memory_space<vmem>>, vector<1x256xf32>
    %6 = vector.broadcast %5 : vector<1x256xf32> to vector<32x256xf32>
    %7 = arith.addf %4, %6 : vector<32x256xf32>
    %c1 = arith.constant 1 : index
    %c0_9 = arith.constant 0 : index
    %8 = vector.load %arg3[%c1, %c0_9] : memref<16x256xf32, #tpu.memory_space<vmem>>, vector<1x256xf32>
    %c2 = arith.constant 2 : index
    %c0_10 = arith.constant 0 : index
    %9 = vector.load %arg3[%c2, %c0_10] : memref<16x256xf32, #tpu.memory_space<vmem>>, vector<1x256xf32>
    %10 = arith.truncf %7 : vector<32x256xf32> to vector<32x256xbf16>
    %cst_11 = arith.constant dense<0.000000e+00> : vector<32x256xf32>
    %11 = tpu.matmul %0, %10, %cst_11 {dimension_numbers = #tpu.dot_dimension_numbers<[1], [0], [0], [1], [0, 0, 1, 1], [], []>} : vector<32x32xbf16>, vector<32x256xbf16>, vector<32x256xf32> -> vector<32x256xf32>
    %12 = arith.truncf %11 : vector<32x256xf32> to vector<32x256xbf16>
    %cst_12 = arith.constant dense<0.000000e+00> : vector<32x256xf32>
    %13 = tpu.matmul %12, %1, %cst_12 {dimension_numbers = #tpu.dot_dimension_numbers<[1], [0], [0], [1], [0, 0, 1, 1], [], []>} : vector<32x256xbf16>, vector<256x256xbf16>, vector<32x256xf32> -> vector<32x256xf32>
    %14 = arith.subf %7, %13 : vector<32x256xf32>
    %15 = arith.mulf %14, %14 : vector<32x256xf32>
    %16 = arith.truncf %15 : vector<32x256xf32> to vector<32x256xbf16>
    %cst_13 = arith.constant dense<0.000000e+00> : vector<32x256xf32>
    %17 = tpu.matmul %0, %16, %cst_13 {dimension_numbers = #tpu.dot_dimension_numbers<[1], [0], [0], [1], [0, 0, 1, 1], [], []>} : vector<32x32xbf16>, vector<32x256xbf16>, vector<32x256xf32> -> vector<32x256xf32>
    %18 = arith.truncf %17 : vector<32x256xf32> to vector<32x256xbf16>
    %cst_14 = arith.constant dense<0.000000e+00> : vector<32x256xf32>
    %19 = tpu.matmul %18, %1, %cst_14 {dimension_numbers = #tpu.dot_dimension_numbers<[1], [0], [0], [1], [0, 0, 1, 1], [], []>} : vector<32x256xbf16>, vector<256x256xbf16>, vector<32x256xf32> -> vector<32x256xf32>
    %cst_15 = arith.constant 9.99999974E-6 : f32
    %20 = vector.broadcast %cst_15 : f32 to vector<32x256xf32>
    %21 = arith.addf %19, %20 : vector<32x256xf32>
    %22 = math.rsqrt %21 : vector<32x256xf32>
    %23 = arith.mulf %14, %22 : vector<32x256xf32>
    %24 = vector.broadcast %8 : vector<1x256xf32> to vector<32x256xf32>
    %25 = arith.mulf %23, %24 : vector<32x256xf32>
    %26 = vector.broadcast %9 : vector<1x256xf32> to vector<32x256xf32>
    %27 = arith.addf %25, %26 : vector<32x256xf32>
    %28 = arith.truncf %27 : vector<32x256xf32> to vector<32x256xbf16>
    %c0_16 = arith.constant 0 : index
    %c0_17 = arith.constant 0 : index
    %c0_18 = arith.constant 0 : index
    %29 = vector.load %arg4[%c0_16, %c0_17, %c0_18] : memref<9x32x32xbf16, #tpu.memory_space<vmem>>, vector<1x32x32xbf16>
    %30 = vector.shape_cast %29 : vector<1x32x32xbf16> to vector<32x32xbf16>
    %cst_19 = arith.constant dense<0.000000e+00> : vector<32x256xf32>
    %31 = tpu.matmul %30, %28, %cst_19 {dimension_numbers = #tpu.dot_dimension_numbers<[1], [0], [0], [1], [0, 0, 1, 1], [], []>} : vector<32x32xbf16>, vector<32x256xbf16>, vector<32x256xf32> -> vector<32x256xf32>
    %32 = arith.truncf %31 : vector<32x256xf32> to vector<32x256xbf16>
    %c0_20 = arith.constant 0 : index
    %c0_21 = arith.constant 0 : index
    %33 = vector.load %arg2[%c0_20, %c0_21] : memref<2304x256xbf16, #tpu.memory_space<vmem>>, vector<256x256xbf16>
    %cst_22 = arith.constant dense<0.000000e+00> : vector<32x256xf32>
    %34 = tpu.matmul %32, %33, %cst_22 {dimension_numbers = #tpu.dot_dimension_numbers<[1], [0], [0], [1], [0, 0, 1, 1], [], []>} : vector<32x256xbf16>, vector<256x256xbf16>, vector<32x256xf32> -> vector<32x256xf32>
    %c1_23 = arith.constant 1 : index
    %c0_24 = arith.constant 0 : index
    %c0_25 = arith.constant 0 : index
    %35 = vector.load %arg4[%c1_23, %c0_24, %c0_25] : memref<9x32x32xbf16, #tpu.memory_space<vmem>>, vector<1x32x32xbf16>
    %36 = vector.shape_cast %35 : vector<1x32x32xbf16> to vector<32x32xbf16>
    %cst_26 = arith.constant dense<0.000000e+00> : vector<32x256xf32>
    %37 = tpu.matmul %36, %28, %cst_26 {dimension_numbers = #tpu.dot_dimension_numbers<[1], [0], [0], [1], [0, 0, 1, 1], [], []>} : vector<32x32xbf16>, vector<32x256xbf16>, vector<32x256xf32> -> vector<32x256xf32>
    %38 = arith.truncf %37 : vector<32x256xf32> to vector<32x256xbf16>
    %c256 = arith.constant 256 : index
    %c0_27 = arith.constant 0 : index
    %39 = vector.load %arg2[%c256, %c0_27] : memref<2304x256xbf16, #tpu.memory_space<vmem>>, vector<256x256xbf16>
    %cst_28 = arith.constant dense<0.000000e+00> : vector<32x256xf32>
    %40 = tpu.matmul %38, %39, %cst_28 {dimension_numbers = #tpu.dot_dimension_numbers<[1], [0], [0], [1], [0, 0, 1, 1], [], []>} : vector<32x256xbf16>, vector<256x256xbf16>, vector<32x256xf32> -> vector<32x256xf32>
    %41 = arith.addf %34, %40 : vector<32x256xf32>
    %c2_29 = arith.constant 2 : index
    %c0_30 = arith.constant 0 : index
    %c0_31 = arith.constant 0 : index
    %42 = vector.load %arg4[%c2_29, %c0_30, %c0_31] : memref<9x32x32xbf16, #tpu.memory_space<vmem>>, vector<1x32x32xbf16>
    %43 = vector.shape_cast %42 : vector<1x32x32xbf16> to vector<32x32xbf16>
    %cst_32 = arith.constant dense<0.000000e+00> : vector<32x256xf32>
    %44 = tpu.matmul %43, %28, %cst_32 {dimension_numbers = #tpu.dot_dimension_numbers<[1], [0], [0], [1], [0, 0, 1, 1], [], []>} : vector<32x32xbf16>, vector<32x256xbf16>, vector<32x256xf32> -> vector<32x256xf32>
    %45 = arith.truncf %44 : vector<32x256xf32> to vector<32x256xbf16>
    %c512 = arith.constant 512 : index
    %c0_33 = arith.constant 0 : index
    %46 = vector.load %arg2[%c512, %c0_33] : memref<2304x256xbf16, #tpu.memory_space<vmem>>, vector<256x256xbf16>
    %cst_34 = arith.constant dense<0.000000e+00> : vector<32x256xf32>
    %47 = tpu.matmul %45, %46, %cst_34 {dimension_numbers = #tpu.dot_dimension_numbers<[1], [0], [0], [1], [0, 0, 1, 1], [], []>} : vector<32x256xbf16>, vector<256x256xbf16>, vector<32x256xf32> -> vector<32x256xf32>
    %48 = arith.addf %41, %47 : vector<32x256xf32>
    %c3 = arith.constant 3 : index
    %c0_35 = arith.constant 0 : index
    %c0_36 = arith.constant 0 : index
    %49 = vector.load %arg4[%c3, %c0_35, %c0_36] : memref<9x32x32xbf16, #tpu.memory_space<vmem>>, vector<1x32x32xbf16>
    %50 = vector.shape_cast %49 : vector<1x32x32xbf16> to vector<32x32xbf16>
    %cst_37 = arith.constant dense<0.000000e+00> : vector<32x256xf32>
    %51 = tpu.matmul %50, %28, %cst_37 {dimension_numbers = #tpu.dot_dimension_numbers<[1], [0], [0], [1], [0, 0, 1, 1], [], []>} : vector<32x32xbf16>, vector<32x256xbf16>, vector<32x256xf32> -> vector<32x256xf32>
    %52 = arith.truncf %51 : vector<32x256xf32> to vector<32x256xbf16>
    %c768 = arith.constant 768 : index
    %c0_38 = arith.constant 0 : index
    %53 = vector.load %arg2[%c768, %c0_38] : memref<2304x256xbf16, #tpu.memory_space<vmem>>, vector<256x256xbf16>
    %cst_39 = arith.constant dense<0.000000e+00> : vector<32x256xf32>
    %54 = tpu.matmul %52, %53, %cst_39 {dimension_numbers = #tpu.dot_dimension_numbers<[1], [0], [0], [1], [0, 0, 1, 1], [], []>} : vector<32x256xbf16>, vector<256x256xbf16>, vector<32x256xf32> -> vector<32x256xf32>
    %55 = arith.addf %48, %54 : vector<32x256xf32>
    %c4 = arith.constant 4 : index
    %c0_40 = arith.constant 0 : index
    %c0_41 = arith.constant 0 : index
    %56 = vector.load %arg4[%c4, %c0_40, %c0_41] : memref<9x32x32xbf16, #tpu.memory_space<vmem>>, vector<1x32x32xbf16>
    %57 = vector.shape_cast %56 : vector<1x32x32xbf16> to vector<32x32xbf16>
    %cst_42 = arith.constant dense<0.000000e+00> : vector<32x256xf32>
    %58 = tpu.matmul %57, %28, %cst_42 {dimension_numbers = #tpu.dot_dimension_numbers<[1], [0], [0], [1], [0, 0, 1, 1], [], []>} : vector<32x32xbf16>, vector<32x256xbf16>, vector<32x256xf32> -> vector<32x256xf32>
    %59 = arith.truncf %58 : vector<32x256xf32> to vector<32x256xbf16>
    %c1024 = arith.constant 1024 : index
    %c0_43 = arith.constant 0 : index
    %60 = vector.load %arg2[%c1024, %c0_43] : memref<2304x256xbf16, #tpu.memory_space<vmem>>, vector<256x256xbf16>
    %cst_44 = arith.constant dense<0.000000e+00> : vector<32x256xf32>
    %61 = tpu.matmul %59, %60, %cst_44 {dimension_numbers = #tpu.dot_dimension_numbers<[1], [0], [0], [1], [0, 0, 1, 1], [], []>} : vector<32x256xbf16>, vector<256x256xbf16>, vector<32x256xf32> -> vector<32x256xf32>
    %62 = arith.addf %55, %61 : vector<32x256xf32>
    %c5 = arith.constant 5 : index
    %c0_45 = arith.constant 0 : index
    %c0_46 = arith.constant 0 : index
    %63 = vector.load %arg4[%c5, %c0_45, %c0_46] : memref<9x32x32xbf16, #tpu.memory_space<vmem>>, vector<1x32x32xbf16>
    %64 = vector.shape_cast %63 : vector<1x32x32xbf16> to vector<32x32xbf16>
    %cst_47 = arith.constant dense<0.000000e+00> : vector<32x256xf32>
    %65 = tpu.matmul %64, %28, %cst_47 {dimension_numbers = #tpu.dot_dimension_numbers<[1], [0], [0], [1], [0, 0, 1, 1], [], []>} : vector<32x32xbf16>, vector<32x256xbf16>, vector<32x256xf32> -> vector<32x256xf32>
    %66 = arith.truncf %65 : vector<32x256xf32> to vector<32x256xbf16>
    %c1280 = arith.constant 1280 : index
    %c0_48 = arith.constant 0 : index
    %67 = vector.load %arg2[%c1280, %c0_48] : memref<2304x256xbf16, #tpu.memory_space<vmem>>, vector<256x256xbf16>
    %cst_49 = arith.constant dense<0.000000e+00> : vector<32x256xf32>
    %68 = tpu.matmul %66, %67, %cst_49 {dimension_numbers = #tpu.dot_dimension_numbers<[1], [0], [0], [1], [0, 0, 1, 1], [], []>} : vector<32x256xbf16>, vector<256x256xbf16>, vector<32x256xf32> -> vector<32x256xf32>
    %69 = arith.addf %62, %68 : vector<32x256xf32>
    %c6 = arith.constant 6 : index
    %c0_50 = arith.constant 0 : index
    %c0_51 = arith.constant 0 : index
    %70 = vector.load %arg4[%c6, %c0_50, %c0_51] : memref<9x32x32xbf16, #tpu.memory_space<vmem>>, vector<1x32x32xbf16>
    %71 = vector.shape_cast %70 : vector<1x32x32xbf16> to vector<32x32xbf16>
    %cst_52 = arith.constant dense<0.000000e+00> : vector<32x256xf32>
    %72 = tpu.matmul %71, %28, %cst_52 {dimension_numbers = #tpu.dot_dimension_numbers<[1], [0], [0], [1], [0, 0, 1, 1], [], []>} : vector<32x32xbf16>, vector<32x256xbf16>, vector<32x256xf32> -> vector<32x256xf32>
    %73 = arith.truncf %72 : vector<32x256xf32> to vector<32x256xbf16>
    %c1536 = arith.constant 1536 : index
    %c0_53 = arith.constant 0 : index
    %74 = vector.load %arg2[%c1536, %c0_53] : memref<2304x256xbf16, #tpu.memory_space<vmem>>, vector<256x256xbf16>
    %cst_54 = arith.constant dense<0.000000e+00> : vector<32x256xf32>
    %75 = tpu.matmul %73, %74, %cst_54 {dimension_numbers = #tpu.dot_dimension_numbers<[1], [0], [0], [1], [0, 0, 1, 1], [], []>} : vector<32x256xbf16>, vector<256x256xbf16>, vector<32x256xf32> -> vector<32x256xf32>
    %76 = arith.addf %69, %75 : vector<32x256xf32>
    %c7 = arith.constant 7 : index
    %c0_55 = arith.constant 0 : index
    %c0_56 = arith.constant 0 : index
    %77 = vector.load %arg4[%c7, %c0_55, %c0_56] : memref<9x32x32xbf16, #tpu.memory_space<vmem>>, vector<1x32x32xbf16>
    %78 = vector.shape_cast %77 : vector<1x32x32xbf16> to vector<32x32xbf16>
    %cst_57 = arith.constant dense<0.000000e+00> : vector<32x256xf32>
    %79 = tpu.matmul %78, %28, %cst_57 {dimension_numbers = #tpu.dot_dimension_numbers<[1], [0], [0], [1], [0, 0, 1, 1], [], []>} : vector<32x32xbf16>, vector<32x256xbf16>, vector<32x256xf32> -> vector<32x256xf32>
    %80 = arith.truncf %79 : vector<32x256xf32> to vector<32x256xbf16>
    %c1792 = arith.constant 1792 : index
    %c0_58 = arith.constant 0 : index
    %81 = vector.load %arg2[%c1792, %c0_58] : memref<2304x256xbf16, #tpu.memory_space<vmem>>, vector<256x256xbf16>
    %cst_59 = arith.constant dense<0.000000e+00> : vector<32x256xf32>
    %82 = tpu.matmul %80, %81, %cst_59 {dimension_numbers = #tpu.dot_dimension_numbers<[1], [0], [0], [1], [0, 0, 1, 1], [], []>} : vector<32x256xbf16>, vector<256x256xbf16>, vector<32x256xf32> -> vector<32x256xf32>
    %83 = arith.addf %76, %82 : vector<32x256xf32>
    %c8 = arith.constant 8 : index
    %c0_60 = arith.constant 0 : index
    %c0_61 = arith.constant 0 : index
    %84 = vector.load %arg4[%c8, %c0_60, %c0_61] : memref<9x32x32xbf16, #tpu.memory_space<vmem>>, vector<1x32x32xbf16>
    %85 = vector.shape_cast %84 : vector<1x32x32xbf16> to vector<32x32xbf16>
    %cst_62 = arith.constant dense<0.000000e+00> : vector<32x256xf32>
    %86 = tpu.matmul %85, %28, %cst_62 {dimension_numbers = #tpu.dot_dimension_numbers<[1], [0], [0], [1], [0, 0, 1, 1], [], []>} : vector<32x32xbf16>, vector<32x256xbf16>, vector<32x256xf32> -> vector<32x256xf32>
    %87 = arith.truncf %86 : vector<32x256xf32> to vector<32x256xbf16>
    %c2048 = arith.constant 2048 : index
    %c0_63 = arith.constant 0 : index
    %88 = vector.load %arg2[%c2048, %c0_63] : memref<2304x256xbf16, #tpu.memory_space<vmem>>, vector<256x256xbf16>
    %cst_64 = arith.constant dense<0.000000e+00> : vector<32x256xf32>
    %89 = tpu.matmul %87, %88, %cst_64 {dimension_numbers = #tpu.dot_dimension_numbers<[1], [0], [0], [1], [0, 0, 1, 1], [], []>} : vector<32x256xbf16>, vector<256x256xbf16>, vector<32x256xf32> -> vector<32x256xf32>
    %90 = arith.addf %83, %89 : vector<32x256xf32>
    %c8_65 = arith.constant 8 : index
    %c0_66 = arith.constant 0 : index
    %91 = vector.load %arg3[%c8_65, %c0_66] : memref<16x256xf32, #tpu.memory_space<vmem>>, vector<1x256xf32>
    %92 = vector.broadcast %91 : vector<1x256xf32> to vector<32x256xf32>
    %93 = arith.addf %90, %92 : vector<32x256xf32>
    %c9 = arith.constant 9 : index
    %c0_67 = arith.constant 0 : index
    %94 = vector.load %arg3[%c9, %c0_67] : memref<16x256xf32, #tpu.memory_space<vmem>>, vector<1x256xf32>
    %c10 = arith.constant 10 : index
    %c0_68 = arith.constant 0 : index
    %95 = vector.load %arg3[%c10, %c0_68] : memref<16x256xf32, #tpu.memory_space<vmem>>, vector<1x256xf32>
    %96 = arith.truncf %93 : vector<32x256xf32> to vector<32x256xbf16>
    %cst_69 = arith.constant dense<0.000000e+00> : vector<32x256xf32>
    %97 = tpu.matmul %0, %96, %cst_69 {dimension_numbers = #tpu.dot_dimension_numbers<[1], [0], [0], [1], [0, 0, 1, 1], [], []>} : vector<32x32xbf16>, vector<32x256xbf16>, vector<32x256xf32> -> vector<32x256xf32>
    %98 = arith.truncf %97 : vector<32x256xf32> to vector<32x256xbf16>
    %cst_70 = arith.constant dense<0.000000e+00> : vector<32x256xf32>
    %99 = tpu.matmul %98, %1, %cst_70 {dimension_numbers = #tpu.dot_dimension_numbers<[1], [0], [0], [1], [0, 0, 1, 1], [], []>} : vector<32x256xbf16>, vector<256x256xbf16>, vector<32x256xf32> -> vector<32x256xf32>
    %100 = arith.subf %93, %99 : vector<32x256xf32>
    %101 = arith.mulf %100, %100 : vector<32x256xf32>
    %102 = arith.truncf %101 : vector<32x256xf32> to vector<32x256xbf16>
    %cst_71 = arith.constant dense<0.000000e+00> : vector<32x256xf32>
    %103 = tpu.matmul %0, %102, %cst_71 {dimension_numbers = #tpu.dot_dimension_numbers<[1], [0], [0], [1], [0, 0, 1, 1], [], []>} : vector<32x32xbf16>, vector<32x256xbf16>, vector<32x256xf32> -> vector<32x256xf32>
    %104 = arith.truncf %103 : vector<32x256xf32> to vector<32x256xbf16>
    %cst_72 = arith.constant dense<0.000000e+00> : vector<32x256xf32>
    %105 = tpu.matmul %104, %1, %cst_72 {dimension_numbers = #tpu.dot_dimension_numbers<[1], [0], [0], [1], [0, 0, 1, 1], [], []>} : vector<32x256xbf16>, vector<256x256xbf16>, vector<32x256xf32> -> vector<32x256xf32>
    %cst_73 = arith.constant 9.99999974E-6 : f32
    %106 = vector.broadcast %cst_73 : f32 to vector<32x256xf32>
    %107 = arith.addf %105, %106 : vector<32x256xf32>
    %108 = math.rsqrt %107 : vector<32x256xf32>
    %109 = arith.mulf %100, %108 : vector<32x256xf32>
    %110 = vector.broadcast %94 : vector<1x256xf32> to vector<32x256xf32>
    %111 = arith.mulf %109, %110 : vector<32x256xf32>
    %112 = vector.broadcast %95 : vector<1x256xf32> to vector<32x256xf32>
    %113 = arith.addf %111, %112 : vector<32x256xf32>
    %114 = arith.truncf %113 : vector<32x256xf32> to vector<32x256xbf16>
    %c0_74 = arith.constant 0 : index
    %c0_75 = arith.constant 0 : index
    %115 = vector.load %arg7[%c0_74, %c0_75] : memref<32x256xbf16, #tpu.memory_space<vmem>>, vector<32x256xbf16>
    tpu.vector_store %arg7[%c0_74, %c0_75], %114 {strides = array<i32>} : memref<32x256xbf16, #tpu.memory_space<vmem>>, vector<32x256xbf16>,
    return
  }
}

module attributes {stable_mosaic.version = 11 : i64} {
  func.func @_heads_kernel(%arg0: i32, %arg1: i32, %arg2: memref<32x256xbf16, #tpu.memory_space<vmem>>, %arg3: memref<1x1x2304x256xbf16, #tpu.memory_space<vmem>>, %arg4: memref<1x1x8x256xf32, #tpu.memory_space<vmem>>, %arg5: memref<9x32x32xbf16, #tpu.memory_space<vmem>>, %arg6: memref<32x32xbf16, #tpu.memory_space<vmem>>, %arg7: memref<256x256xbf16, #tpu.memory_space<vmem>>, %arg8: memref<1x32x256xf32, #tpu.memory_space<vmem>>, %arg9: memref<32x256xbf16, #tpu.memory_space<vmem>>) attributes {dimension_semantics = [#tpu.dimension_semantics<parallel>, #tpu.dimension_semantics<arbitrary>], iteration_bounds = array<i64: 2, 5>, scalar_prefetch = 0 : i64, scratch_operands = 1 : i64, tpu.core_type = #tpu.core_type<tc>, window_params = [{pipeline_mode = #tpu.pipeline_mode<synchronous>, transform_indices = @transform_0, window_bounds = array<i64: 32, 256>}, {transform_indices = @transform_1, window_bounds = array<i64: 1, 1, 2304, 256>}, {transform_indices = @transform_2, window_bounds = array<i64: 1, 1, 8, 256>}, {pipeline_mode = #tpu.pipeline_mode<synchronous>, transform_indices = @transform_3, window_bounds = array<i64: 9, 32, 32>}, {pipeline_mode = #tpu.pipeline_mode<synchronous>, transform_indices = @transform_4, window_bounds = array<i64: 32, 32>}, {pipeline_mode = #tpu.pipeline_mode<synchronous>, transform_indices = @transform_5, window_bounds = array<i64: 256, 256>}, {transform_indices = @transform_6, window_bounds = array<i64: 1, 32, 256>}]} {
    %c0_i32 = arith.constant 0 : i32
    %0 = arith.cmpi eq, %arg1, %c0_i32 : i32
    %1 = arith.extui %0 : i1 to i32
    %c0_i32_0 = arith.constant 0 : i32
    %2 = arith.cmpi ne, %1, %c0_i32_0 : i32
    scf.if %2 {
      %c0_73 = arith.constant 0 : index
      %c0_74 = arith.constant 0 : index
      %85 = vector.load %arg2[%c0_73, %c0_74] : memref<32x256xbf16, #tpu.memory_space<vmem>>, vector<32x256xbf16>
      %c0_75 = arith.constant 0 : index
      %c0_76 = arith.constant 0 : index
      %86 = vector.load %arg9[%c0_75, %c0_76] : memref<32x256xbf16, #tpu.memory_space<vmem>>, vector<32x256xbf16>
      tpu.vector_store %arg9[%c0_75, %c0_76], %85 {strides = array<i32>} : memref<32x256xbf16, #tpu.memory_space<vmem>>, vector<32x256xbf16>,
    } else {
    }
    %c0 = arith.constant 0 : index
    %c0_1 = arith.constant 0 : index
    %3 = vector.load %arg9[%c0, %c0_1] : memref<32x256xbf16, #tpu.memory_space<vmem>>, vector<32x256xbf16>
    %c0_2 = arith.constant 0 : index
    %c0_3 = arith.constant 0 : index
    %c0_4 = arith.constant 0 : index
    %4 = vector.load %arg5[%c0_2, %c0_3, %c0_4] : memref<9x32x32xbf16, #tpu.memory_space<vmem>>, vector<1x32x32xbf16>
    %5 = vector.shape_cast %4 : vector<1x32x32xbf16> to vector<32x32xbf16>
    %cst = arith.constant dense<0.000000e+00> : vector<32x256xf32>
    %6 = tpu.matmul %5, %3, %cst {dimension_numbers = #tpu.dot_dimension_numbers<[1], [0], [0], [1], [0, 0, 1, 1], [], []>} : vector<32x32xbf16>, vector<32x256xbf16>, vector<32x256xf32> -> vector<32x256xf32>
    %7 = arith.truncf %6 : vector<32x256xf32> to vector<32x256xbf16>
    %c0_5 = arith.constant 0 : index
    %c0_6 = arith.constant 0 : index
    %c0_7 = arith.constant 0 : index
    %c0_8 = arith.constant 0 : index
    %8 = vector.load %arg3[%c0_5, %c0_6, %c0_7, %c0_8] : memref<1x1x2304x256xbf16, #tpu.memory_space<vmem>>, vector<1x1x256x256xbf16>
    %9 = vector.shape_cast %8 : vector<1x1x256x256xbf16> to vector<256x256xbf16>
    %cst_9 = arith.constant dense<0.000000e+00> : vector<32x256xf32>
    %10 = tpu.matmul %7, %9, %cst_9 {dimension_numbers = #tpu.dot_dimension_numbers<[1], [0], [0], [1], [0, 0, 1, 1], [], []>} : vector<32x256xbf16>, vector<256x256xbf16>, vector<32x256xf32> -> vector<32x256xf32>
    %c1 = arith.constant 1 : index
    %c0_10 = arith.constant 0 : index
    %c0_11 = arith.constant 0 : index
    %11 = vector.load %arg5[%c1, %c0_10, %c0_11] : memref<9x32x32xbf16, #tpu.memory_space<vmem>>, vector<1x32x32xbf16>
    %12 = vector.shape_cast %11 : vector<1x32x32xbf16> to vector<32x32xbf16>
    %cst_12 = arith.constant dense<0.000000e+00> : vector<32x256xf32>
    %13 = tpu.matmul %12, %3, %cst_12 {dimension_numbers = #tpu.dot_dimension_numbers<[1], [0], [0], [1], [0, 0, 1, 1], [], []>} : vector<32x32xbf16>, vector<32x256xbf16>, vector<32x256xf32> -> vector<32x256xf32>
    %14 = arith.truncf %13 : vector<32x256xf32> to vector<32x256xbf16>
    %c0_13 = arith.constant 0 : index
    %c0_14 = arith.constant 0 : index
    %c256 = arith.constant 256 : index
    %c0_15 = arith.constant 0 : index
    %15 = vector.load %arg3[%c0_13, %c0_14, %c256, %c0_15] : memref<1x1x2304x256xbf16, #tpu.memory_space<vmem>>, vector<1x1x256x256xbf16>
    %16 = vector.shape_cast %15 : vector<1x1x256x256xbf16> to vector<256x256xbf16>
    %cst_16 = arith.constant dense<0.000000e+00> : vector<32x256xf32>
    %17 = tpu.matmul %14, %16, %cst_16 {dimension_numbers = #tpu.dot_dimension_numbers<[1], [0], [0], [1], [0, 0, 1, 1], [], []>} : vector<32x256xbf16>, vector<256x256xbf16>, vector<32x256xf32> -> vector<32x256xf32>
    %18 = arith.addf %10, %17 : vector<32x256xf32>
    %c2 = arith.constant 2 : index
    %c0_17 = arith.constant 0 : index
    %c0_18 = arith.constant 0 : index
    %19 = vector.load %arg5[%c2, %c0_17, %c0_18] : memref<9x32x32xbf16, #tpu.memory_space<vmem>>, vector<1x32x32xbf16>
    %20 = vector.shape_cast %19 : vector<1x32x32xbf16> to vector<32x32xbf16>
    %cst_19 = arith.constant dense<0.000000e+00> : vector<32x256xf32>
    %21 = tpu.matmul %20, %3, %cst_19 {dimension_numbers = #tpu.dot_dimension_numbers<[1], [0], [0], [1], [0, 0, 1, 1], [], []>} : vector<32x32xbf16>, vector<32x256xbf16>, vector<32x256xf32> -> vector<32x256xf32>
    %22 = arith.truncf %21 : vector<32x256xf32> to vector<32x256xbf16>
    %c0_20 = arith.constant 0 : index
    %c0_21 = arith.constant 0 : index
    %c512 = arith.constant 512 : index
    %c0_22 = arith.constant 0 : index
    %23 = vector.load %arg3[%c0_20, %c0_21, %c512, %c0_22] : memref<1x1x2304x256xbf16, #tpu.memory_space<vmem>>, vector<1x1x256x256xbf16>
    %24 = vector.shape_cast %23 : vector<1x1x256x256xbf16> to vector<256x256xbf16>
    %cst_23 = arith.constant dense<0.000000e+00> : vector<32x256xf32>
    %25 = tpu.matmul %22, %24, %cst_23 {dimension_numbers = #tpu.dot_dimension_numbers<[1], [0], [0], [1], [0, 0, 1, 1], [], []>} : vector<32x256xbf16>, vector<256x256xbf16>, vector<32x256xf32> -> vector<32x256xf32>
    %26 = arith.addf %18, %25 : vector<32x256xf32>
    %c3 = arith.constant 3 : index
    %c0_24 = arith.constant 0 : index
    %c0_25 = arith.constant 0 : index
    %27 = vector.load %arg5[%c3, %c0_24, %c0_25] : memref<9x32x32xbf16, #tpu.memory_space<vmem>>, vector<1x32x32xbf16>
    %28 = vector.shape_cast %27 : vector<1x32x32xbf16> to vector<32x32xbf16>
    %cst_26 = arith.constant dense<0.000000e+00> : vector<32x256xf32>
    %29 = tpu.matmul %28, %3, %cst_26 {dimension_numbers = #tpu.dot_dimension_numbers<[1], [0], [0], [1], [0, 0, 1, 1], [], []>} : vector<32x32xbf16>, vector<32x256xbf16>, vector<32x256xf32> -> vector<32x256xf32>
    %30 = arith.truncf %29 : vector<32x256xf32> to vector<32x256xbf16>
    %c0_27 = arith.constant 0 : index
    %c0_28 = arith.constant 0 : index
    %c768 = arith.constant 768 : index
    %c0_29 = arith.constant 0 : index
    %31 = vector.load %arg3[%c0_27, %c0_28, %c768, %c0_29] : memref<1x1x2304x256xbf16, #tpu.memory_space<vmem>>, vector<1x1x256x256xbf16>
    %32 = vector.shape_cast %31 : vector<1x1x256x256xbf16> to vector<256x256xbf16>
    %cst_30 = arith.constant dense<0.000000e+00> : vector<32x256xf32>
    %33 = tpu.matmul %30, %32, %cst_30 {dimension_numbers = #tpu.dot_dimension_numbers<[1], [0], [0], [1], [0, 0, 1, 1], [], []>} : vector<32x256xbf16>, vector<256x256xbf16>, vector<32x256xf32> -> vector<32x256xf32>
    %34 = arith.addf %26, %33 : vector<32x256xf32>
    %c4 = arith.constant 4 : index
    %c0_31 = arith.constant 0 : index
    %c0_32 = arith.constant 0 : index
    %35 = vector.load %arg5[%c4, %c0_31, %c0_32] : memref<9x32x32xbf16, #tpu.memory_space<vmem>>, vector<1x32x32xbf16>
    %36 = vector.shape_cast %35 : vector<1x32x32xbf16> to vector<32x32xbf16>
    %cst_33 = arith.constant dense<0.000000e+00> : vector<32x256xf32>
    %37 = tpu.matmul %36, %3, %cst_33 {dimension_numbers = #tpu.dot_dimension_numbers<[1], [0], [0], [1], [0, 0, 1, 1], [], []>} : vector<32x32xbf16>, vector<32x256xbf16>, vector<32x256xf32> -> vector<32x256xf32>
    %38 = arith.truncf %37 : vector<32x256xf32> to vector<32x256xbf16>
    %c0_34 = arith.constant 0 : index
    %c0_35 = arith.constant 0 : index
    %c1024 = arith.constant 1024 : index
    %c0_36 = arith.constant 0 : index
    %39 = vector.load %arg3[%c0_34, %c0_35, %c1024, %c0_36] : memref<1x1x2304x256xbf16, #tpu.memory_space<vmem>>, vector<1x1x256x256xbf16>
    %40 = vector.shape_cast %39 : vector<1x1x256x256xbf16> to vector<256x256xbf16>
    %cst_37 = arith.constant dense<0.000000e+00> : vector<32x256xf32>
    %41 = tpu.matmul %38, %40, %cst_37 {dimension_numbers = #tpu.dot_dimension_numbers<[1], [0], [0], [1], [0, 0, 1, 1], [], []>} : vector<32x256xbf16>, vector<256x256xbf16>, vector<32x256xf32> -> vector<32x256xf32>
    %42 = arith.addf %34, %41 : vector<32x256xf32>
    %c5 = arith.constant 5 : index
    %c0_38 = arith.constant 0 : index
    %c0_39 = arith.constant 0 : index
    %43 = vector.load %arg5[%c5, %c0_38, %c0_39] : memref<9x32x32xbf16, #tpu.memory_space<vmem>>, vector<1x32x32xbf16>
    %44 = vector.shape_cast %43 : vector<1x32x32xbf16> to vector<32x32xbf16>
    %cst_40 = arith.constant dense<0.000000e+00> : vector<32x256xf32>
    %45 = tpu.matmul %44, %3, %cst_40 {dimension_numbers = #tpu.dot_dimension_numbers<[1], [0], [0], [1], [0, 0, 1, 1], [], []>} : vector<32x32xbf16>, vector<32x256xbf16>, vector<32x256xf32> -> vector<32x256xf32>
    %46 = arith.truncf %45 : vector<32x256xf32> to vector<32x256xbf16>
    %c0_41 = arith.constant 0 : index
    %c0_42 = arith.constant 0 : index
    %c1280 = arith.constant 1280 : index
    %c0_43 = arith.constant 0 : index
    %47 = vector.load %arg3[%c0_41, %c0_42, %c1280, %c0_43] : memref<1x1x2304x256xbf16, #tpu.memory_space<vmem>>, vector<1x1x256x256xbf16>
    %48 = vector.shape_cast %47 : vector<1x1x256x256xbf16> to vector<256x256xbf16>
    %cst_44 = arith.constant dense<0.000000e+00> : vector<32x256xf32>
    %49 = tpu.matmul %46, %48, %cst_44 {dimension_numbers = #tpu.dot_dimension_numbers<[1], [0], [0], [1], [0, 0, 1, 1], [], []>} : vector<32x256xbf16>, vector<256x256xbf16>, vector<32x256xf32> -> vector<32x256xf32>
    %50 = arith.addf %42, %49 : vector<32x256xf32>
    %c6 = arith.constant 6 : index
    %c0_45 = arith.constant 0 : index
    %c0_46 = arith.constant 0 : index
    %51 = vector.load %arg5[%c6, %c0_45, %c0_46] : memref<9x32x32xbf16, #tpu.memory_space<vmem>>, vector<1x32x32xbf16>
    %52 = vector.shape_cast %51 : vector<1x32x32xbf16> to vector<32x32xbf16>
    %cst_47 = arith.constant dense<0.000000e+00> : vector<32x256xf32>
    %53 = tpu.matmul %52, %3, %cst_47 {dimension_numbers = #tpu.dot_dimension_numbers<[1], [0], [0], [1], [0, 0, 1, 1], [], []>} : vector<32x32xbf16>, vector<32x256xbf16>, vector<32x256xf32> -> vector<32x256xf32>
    %54 = arith.truncf %53 : vector<32x256xf32> to vector<32x256xbf16>
    %c0_48 = arith.constant 0 : index
    %c0_49 = arith.constant 0 : index
    %c1536 = arith.constant 1536 : index
    %c0_50 = arith.constant 0 : index
    %55 = vector.load %arg3[%c0_48, %c0_49, %c1536, %c0_50] : memref<1x1x2304x256xbf16, #tpu.memory_space<vmem>>, vector<1x1x256x256xbf16>
    %56 = vector.shape_cast %55 : vector<1x1x256x256xbf16> to vector<256x256xbf16>
    %cst_51 = arith.constant dense<0.000000e+00> : vector<32x256xf32>
    %57 = tpu.matmul %54, %56, %cst_51 {dimension_numbers = #tpu.dot_dimension_numbers<[1], [0], [0], [1], [0, 0, 1, 1], [], []>} : vector<32x256xbf16>, vector<256x256xbf16>, vector<32x256xf32> -> vector<32x256xf32>
    %58 = arith.addf %50, %57 : vector<32x256xf32>
    %c7 = arith.constant 7 : index
    %c0_52 = arith.constant 0 : index
    %c0_53 = arith.constant 0 : index
    %59 = vector.load %arg5[%c7, %c0_52, %c0_53] : memref<9x32x32xbf16, #tpu.memory_space<vmem>>, vector<1x32x32xbf16>
    %60 = vector.shape_cast %59 : vector<1x32x32xbf16> to vector<32x32xbf16>
    %cst_54 = arith.constant dense<0.000000e+00> : vector<32x256xf32>
    %61 = tpu.matmul %60, %3, %cst_54 {dimension_numbers = #tpu.dot_dimension_numbers<[1], [0], [0], [1], [0, 0, 1, 1], [], []>} : vector<32x32xbf16>, vector<32x256xbf16>, vector<32x256xf32> -> vector<32x256xf32>
    %62 = arith.truncf %61 : vector<32x256xf32> to vector<32x256xbf16>
    %c0_55 = arith.constant 0 : index
    %c0_56 = arith.constant 0 : index
    %c1792 = arith.constant 1792 : index
    %c0_57 = arith.constant 0 : index
    %63 = vector.load %arg3[%c0_55, %c0_56, %c1792, %c0_57] : memref<1x1x2304x256xbf16, #tpu.memory_space<vmem>>, vector<1x1x256x256xbf16>
    %64 = vector.shape_cast %63 : vector<1x1x256x256xbf16> to vector<256x256xbf16>
    %cst_58 = arith.constant dense<0.000000e+00> : vector<32x256xf32>
    %65 = tpu.matmul %62, %64, %cst_58 {dimension_numbers = #tpu.dot_dimension_numbers<[1], [0], [0], [1], [0, 0, 1, 1], [], []>} : vector<32x256xbf16>, vector<256x256xbf16>, vector<32x256xf32> -> vector<32x256xf32>
    %66 = arith.addf %58, %65 : vector<32x256xf32>
    %c8 = arith.constant 8 : index
    %c0_59 = arith.constant 0 : index
    %c0_60 = arith.constant 0 : index
    %67 = vector.load %arg5[%c8, %c0_59, %c0_60] : memref<9x32x32xbf16, #tpu.memory_space<vmem>>, vector<1x32x32xbf16>
    %68 = vector.shape_cast %67 : vector<1x32x32xbf16> to vector<32x32xbf16>
    %cst_61 = arith.constant dense<0.000000e+00> : vector<32x256xf32>
    %69 = tpu.matmul %68, %3, %cst_61 {dimension_numbers = #tpu.dot_dimension_numbers<[1], [0], [0], [1], [0, 0, 1, 1], [], []>} : vector<32x32xbf16>, vector<32x256xbf16>, vector<32x256xf32> -> vector<32x256xf32>
    %70 = arith.truncf %69 : vector<32x256xf32> to vector<32x256xbf16>
    %c0_62 = arith.constant 0 : index
    %c0_63 = arith.constant 0 : index
    %c2048 = arith.constant 2048 : index
    %c0_64 = arith.constant 0 : index
    %71 = vector.load %arg3[%c0_62, %c0_63, %c2048, %c0_64] : memref<1x1x2304x256xbf16, #tpu.memory_space<vmem>>, vector<1x1x256x256xbf16>
    %72 = vector.shape_cast %71 : vector<1x1x256x256xbf16> to vector<256x256xbf16>
    %cst_65 = arith.constant dense<0.000000e+00> : vector<32x256xf32>
    %73 = tpu.matmul %70, %72, %cst_65 {dimension_numbers = #tpu.dot_dimension_numbers<[1], [0], [0], [1], [0, 0, 1, 1], [], []>} : vector<32x256xbf16>, vector<256x256xbf16>, vector<32x256xf32> -> vector<32x256xf32>
    %74 = arith.addf %66, %73 : vector<32x256xf32>
    %c0_66 = arith.constant 0 : index
    %c0_67 = arith.constant 0 : index
    %c0_68 = arith.constant 0 : index
    %c0_69 = arith.constant 0 : index
    %75 = vector.load %arg4[%c0_66, %c0_67, %c0_68, %c0_69] : memref<1x1x8x256xf32, #tpu.memory_space<vmem>>, vector<1x1x1x256xf32>
    %76 = vector.shape_cast %75 : vector<1x1x1x256xf32> to vector<1x256xf32>
    %77 = vector.broadcast %76 : vector<1x256xf32> to vector<32x256xf32>
    %78 = arith.addf %74, %77 : vector<32x256xf32>
    %c4_i32 = arith.constant 4 : i32
    %79 = arith.cmpi slt, %arg1, %c4_i32 : i32
    %80 = arith.extui %79 : i1 to i32
    %c0_i32_70 = arith.constant 0 : i32
    %81 = arith.cmpi ne, %80, %c0_i32_70 : i32
    scf.if %81 {
      %c0_73 = arith.constant 0 : index
      %c0_74 = arith.constant 0 : index
      %85 = vector.load %arg6[%c0_73, %c0_74] : memref<32x32xbf16, #tpu.memory_space<vmem>>, vector<32x32xbf16>
      %c0_75 = arith.constant 0 : index
      %c0_76 = arith.constant 0 : index
      %86 = vector.load %arg7[%c0_75, %c0_76] : memref<256x256xbf16, #tpu.memory_space<vmem>>, vector<256x256xbf16>
      %c0_77 = arith.constant 0 : index
      %c0_78 = arith.constant 0 : index
      %c1_79 = arith.constant 1 : index
      %c0_80 = arith.constant 0 : index
      %87 = vector.load %arg4[%c0_77, %c0_78, %c1_79, %c0_80] : memref<1x1x8x256xf32, #tpu.memory_space<vmem>>, vector<1x1x1x256xf32>
      %88 = vector.shape_cast %87 : vector<1x1x1x256xf32> to vector<1x256xf32>
      %c0_81 = arith.constant 0 : index
      %c0_82 = arith.constant 0 : index
      %c2_83 = arith.constant 2 : index
      %c0_84 = arith.constant 0 : index
      %89 = vector.load %arg4[%c0_81, %c0_82, %c2_83, %c0_84] : memref<1x1x8x256xf32, #tpu.memory_space<vmem>>, vector<1x1x1x256xf32>
      %90 = vector.shape_cast %89 : vector<1x1x1x256xf32> to vector<1x256xf32>
      %91 = arith.truncf %78 : vector<32x256xf32> to vector<32x256xbf16>
      %cst_85 = arith.constant dense<0.000000e+00> : vector<32x256xf32>
      %92 = tpu.matmul %85, %91, %cst_85 {dimension_numbers = #tpu.dot_dimension_numbers<[1], [0], [0], [1], [0, 0, 1, 1], [], []>} : vector<32x32xbf16>, vector<32x256xbf16>, vector<32x256xf32> -> vector<32x256xf32>
      %93 = arith.truncf %92 : vector<32x256xf32> to vector<32x256xbf16>
      %cst_86 = arith.constant dense<0.000000e+00> : vector<32x256xf32>
      %94 = tpu.matmul %93, %86, %cst_86 {dimension_numbers = #tpu.dot_dimension_numbers<[1], [0], [0], [1], [0, 0, 1, 1], [], []>} : vector<32x256xbf16>, vector<256x256xbf16>, vector<32x256xf32> -> vector<32x256xf32>
      %95 = arith.subf %78, %94 : vector<32x256xf32>
      %96 = arith.mulf %95, %95 : vector<32x256xf32>
      %97 = arith.truncf %96 : vector<32x256xf32> to vector<32x256xbf16>
      %cst_87 = arith.constant dense<0.000000e+00> : vector<32x256xf32>
      %98 = tpu.matmul %85, %97, %cst_87 {dimension_numbers = #tpu.dot_dimension_numbers<[1], [0], [0], [1], [0, 0, 1, 1], [], []>} : vector<32x32xbf16>, vector<32x256xbf16>, vector<32x256xf32> -> vector<32x256xf32>
      %99 = arith.truncf %98 : vector<32x256xf32> to vector<32x256xbf16>
      %cst_88 = arith.constant dense<0.000000e+00> : vector<32x256xf32>
      %100 = tpu.matmul %99, %86, %cst_88 {dimension_numbers = #tpu.dot_dimension_numbers<[1], [0], [0], [1], [0, 0, 1, 1], [], []>} : vector<32x256xbf16>, vector<256x256xbf16>, vector<32x256xf32> -> vector<32x256xf32>
      %cst_89 = arith.constant 9.99999974E-6 : f32
      %101 = vector.broadcast %cst_89 : f32 to vector<32x256xf32>
      %102 = arith.addf %100, %101 : vector<32x256xf32>
      %103 = math.rsqrt %102 : vector<32x256xf32>
      %104 = arith.mulf %95, %103 : vector<32x256xf32>
      %105 = vector.broadcast %88 : vector<1x256xf32> to vector<32x256xf32>
      %106 = arith.mulf %104, %105 : vector<32x256xf32>
      %107 = vector.broadcast %90 : vector<1x256xf32> to vector<32x256xf32>
      %108 = arith.addf %106, %107 : vector<32x256xf32>
      %cst_90 = arith.constant 0.000000e+00 : f32
      %109 = vector.broadcast %cst_90 : f32 to vector<32x256xf32>
      %110 = arith.maximumf %108, %109 : vector<32x256xf32>
      %111 = arith.truncf %110 : vector<32x256xf32> to vector<32x256xbf16>
      %c0_91 = arith.constant 0 : index
      %c0_92 = arith.constant 0 : index
      %112 = vector.load %arg9[%c0_91, %c0_92] : memref<32x256xbf16, #tpu.memory_space<vmem>>, vector<32x256xbf16>
      tpu.vector_store %arg9[%c0_91, %c0_92], %111 {strides = array<i32>} : memref<32x256xbf16, #tpu.memory_space<vmem>>, vector<32x256xbf16>,
    } else {
    }
    %c4_i32_71 = arith.constant 4 : i32
    %82 = arith.cmpi eq, %arg1, %c4_i32_71 : i32
    %83 = arith.extui %82 : i1 to i32
    %c0_i32_72 = arith.constant 0 : i32
    %84 = arith.cmpi ne, %83, %c0_i32_72 : i32
    scf.if %84 {
      %c0_73 = arith.constant 0 : index
      %c0_74 = arith.constant 0 : index
      %c0_75 = arith.constant 0 : index
      %85 = vector.load %arg8[%c0_73, %c0_74, %c0_75] : memref<1x32x256xf32, #tpu.memory_space<vmem>>, vector<1x32x256xf32>
      %86 = vector.shape_cast %85 : vector<1x32x256xf32> to vector<32x256xf32>
      %87 = vector.shape_cast %78 : vector<32x256xf32> to vector<1x32x256xf32>
      tpu.vector_store %arg8[%c0_73, %c0_74, %c0_75], %87 {strides = array<i32>} : memref<1x32x256xf32, #tpu.memory_space<vmem>>, vector<1x32x256xf32>,
    } else {
    }
    return
  }
  func.func @transform_0(%arg0: i32, %arg1: i32) -> (i32, i32) {
    %c0_i32 = arith.constant 0 : i32
    %c0_i32_0 = arith.constant 0 : i32
    %c0_i32_1 = arith.constant 0 : i32
    return %c0_i32, %c0_i32_0 : i32, i32
  }
  func.func @transform_1(%arg0: i32, %arg1: i32) -> (i32, i32, i32, i32) {
    %c0_i32 = arith.constant 0 : i32
    %c0_i32_0 = arith.constant 0 : i32
    %c0_i32_1 = arith.constant 0 : i32
    return %arg0, %arg1, %c0_i32, %c0_i32_0 : i32, i32, i32, i32
  }
  func.func @transform_2(%arg0: i32, %arg1: i32) -> (i32, i32, i32, i32) {
    %c0_i32 = arith.constant 0 : i32
    %c0_i32_0 = arith.constant 0 : i32
    %c0_i32_1 = arith.constant 0 : i32
    return %arg0, %arg1, %c0_i32, %c0_i32_0 : i32, i32, i32, i32
  }
  func.func @transform_3(%arg0: i32, %arg1: i32) -> (i32, i32, i32) {
    %c0_i32 = arith.constant 0 : i32
    %c0_i32_0 = arith.constant 0 : i32
    %c0_i32_1 = arith.constant 0 : i32
    %c0_i32_2 = arith.constant 0 : i32
    return %c0_i32, %c0_i32_0, %c0_i32_1 : i32, i32, i32
  }
  func.func @transform_4(%arg0: i32, %arg1: i32) -> (i32, i32) {
    %c0_i32 = arith.constant 0 : i32
    %c0_i32_0 = arith.constant 0 : i32
    %c0_i32_1 = arith.constant 0 : i32
    return %c0_i32, %c0_i32_0 : i32, i32
  }
  func.func @transform_5(%arg0: i32, %arg1: i32) -> (i32, i32) {
    %c0_i32 = arith.constant 0 : i32
    %c0_i32_0 = arith.constant 0 : i32
    %c0_i32_1 = arith.constant 0 : i32
    return %c0_i32, %c0_i32_0 : i32, i32
  }
  func.func @transform_6(%arg0: i32, %arg1: i32) -> (i32, i32, i32) {
    %c0_i32 = arith.constant 0 : i32
    %c0_i32_0 = arith.constant 0 : i32
    %c0_i32_1 = arith.constant 0 : i32
    return %arg0, %c0_i32, %c0_i32_0 : i32, i32, i32
  }
}

</mosaic_0001>

<llo_original>
// kernel: retinanet_forward.3
$region0: #{retinanet_forward.3}
  #allocation0 [shape = 'u32[]', space=smem, size = 0x4, offset = 0x4, fixed_abs, tag = 'smem constant byte address 0x4 - core index']
  #allocation1 [shape = 'u32[144,128]{1,0:T(1,128)}', space=vmem, size = 0x12000, scoped, tag = 'internal scratch']
  #allocation2 [shape = 'bf16[32,256]{1,0:T(8,128)(2,1)}', space=vmem, size = 0x4000, scoped, tag = 'scratch operand']
  %s0 = inlined_call_operand.vmem [shape: bf16[32,256], index: 0, kind: input, shape index: {}]
  %s1 = inlined_call_operand.hbm [shape: bf16[2,5,2304,256], index: 1, kind: input, shape index: {}]
  %s2 = inlined_call_operand.vmem [shape: f32[2,5,8,256], index: 2, kind: input, shape index: {}]
  %s3 = inlined_call_operand.vmem [shape: bf16[9,32,32], index: 3, kind: input, shape index: {}]
  %s4 = inlined_call_operand.vmem [shape: bf16[32,32], index: 4, kind: input, shape index: {}]
  %s5 = inlined_call_operand.vmem [shape: bf16[256,256], index: 5, kind: input, shape index: {}]
  %s6 = inlined_call_operand.vmem [shape: f32[2,32,256], index: 6, kind: output, shape index: {}]
  %s7 = sld [smem:[#allocation0]]
  $region73: #{retinanet_forward.3} parent=0
    _
  %s9 = ssub.s32 1, %s7
  %s10 = scalar_select 0, %s9, %s7
  $region1: #{retinanet_forward.3} parent=0
    #allocation3 [shape = 'u8[2359296]{0}', space=vmem, size = 0x240000, scoped, tag = 'input window, operand 1']
    #allocation4 [shape = 's32[2]{0}', space=sflag, size = 0x8, scoped, tag = 'scoped memory for retinanet_forward.3']
    %11 = vsyncpa [#allocation4], 0
    %s12 = scalar_lea.sflag [#allocation4], 1
    %13 = vsyncpa %s12, 0
    loop: start=0, step=1, limit=12
    $region2: #{retinanet_forward.3} parent=1 // loop_pre_header
      _
    $region3: #{retinanet_forward.3} parent=1 // loop_header
      %s15 = sphi 0, %s19
      %p16 = scmp.ge.s32.totalorder %s15, 12
      %s22 = sphi 0, %s34
      %s23 = sphi 0, %s30
      %s24 = sphi 0, %s22
      %s25 = sphi 0, %s23
      %s26 = sphi 0, %s24
      %s27 = sphi 0, %s25
      %s35 = sphi 0, %s35
      %s37 = sphi 0, %s35
      %s38 = sphi 0, %s37
      %s52 = sphi 0, %s38
      %s60 = sphi 0, %s62
      %s63 = sphi 0, %s60
      %s64 = sphi 0, %s63
      %s80 = sphi 0, %s64
      %s88 = sphi 0, %s90
      %s91 = sphi 0, %s88
      %s92 = sphi 0, %s91
      %s108 = sphi 0, %s92
      %s112 = sphi 0, %s112
      %s114 = sphi 0, %s112
      %s115 = sphi 0, %s114
      %s129 = sphi 0, %s115
      %s133 = sphi 0, %s133
      %s135 = sphi 0, %s133
      %s136 = sphi 0, %s135
      %s150 = sphi 0, %s136
      %s154 = sphi 0, %s154
      %s156 = sphi 0, %s154
      %s157 = sphi 0, %s156
      %s171 = sphi 0, %s157
      %s177 = sphi 0, %s179
      %s180 = sphi 0, %s177
      %s181 = sphi 0, %s180
      %s197 = sphi 0, %s181
    $region4: #{retinanet_forward.3} parent=1 // loop_header_branch
      %18 = sbr.rel (%p16) target = $region8
    $region5: #{retinanet_forward.3} parent=1 // loop_body
      %s20 = ssub.s32 %s15, 1
      %s21 = ssub.s32 %s15, 2
      %s28 = sadd.s32 1, %s23
      %p29 = scmp.ge.s32.totalorder %s28, 5
      %s30 = scalar_select %p29, 0, %s28
      %s31 = sadd.s32 1, %s22
      %s32 = scalar_select %p29, %s31, %s22
      %p33 = scmp.ge.s32.totalorder %s32, 2
      %s34 = scalar_select %p33, 0, %s32
      %s36 = sadd.s32 %s35, 1
      %p39 = scmp.eq.s32.totalorder %s15, 9
      %p40 = scmp.ne.s32.totalorder %s35, %s37
      %p41 = scmp.eq.s32.totalorder %s15, 0
      %p42 = por %p40, %p41
      %p43 = scmp.ne.s32.totalorder %s35, %s37
      %p44 = scmp.eq.s32.totalorder %s20, 9
      %p45 = por %p43, %p44
      %p46 = scmp.ne.s32.totalorder %s37, %s38
      %p47 = scmp.eq.s32.totalorder %s20, 0
      %p48 = por %p46, %p47
      %p49 = scmp.ne.s32.totalorder %s37, %s38
      %p50 = scmp.eq.s32.totalorder %s21, 9
      %p51 = por %p49, %p50
      %p53 = scmp.ne.s32.totalorder %s38, %s52
      %p54 = scmp.eq.s32.totalorder %s21, 0
      %p55 = por %p53, %p54
      %s56 = ssub.s32 %s22, %s34
      %s57 = ssub.s32 %s23, %s30
      %s58 = sor.u32 %s56, %s57
      %p59 = scmp.eq.s32.totalorder %s58, 0
      %s61 = sadd.s32 %s60, 1
      %s62 = scalar_select %p59, %s60, %s61
      %p65 = pneg %p59
      %p66 = scmp.eq.s32.totalorder %s15, 9
      %p67 = por %p65, %p66
      %p68 = scmp.ne.s32.totalorder %s60, %s63
      %p69 = scmp.eq.s32.totalorder %s15, 0
      %p70 = por %p68, %p69
      %p71 = scmp.ne.s32.totalorder %s60, %s63
      %p72 = scmp.eq.s32.totalorder %s20, 9
      %p73 = por %p71, %p72
      %p74 = scmp.ne.s32.totalorder %s63, %s64
      %p75 = scmp.eq.s32.totalorder %s20, 0
      %p76 = por %p74, %p75
      %p77 = scmp.ne.s32.totalorder %s63, %s64
      %p78 = scmp.eq.s32.totalorder %s21, 9
      %p79 = por %p77, %p78
      %p81 = scmp.ne.s32.totalorder %s64, %s80
      %p82 = scmp.eq.s32.totalorder %s21, 0
      %p83 = por %p81, %p82
      %s84 = ssub.s32 %s22, %s34
      %s85 = ssub.s32 %s23, %s30
      %s86 = sor.u32 %s84, %s85
      %p87 = scmp.eq.s32.totalorder %s86, 0
      %s89 = sadd.s32 %s88, 1
      %s90 = scalar_select %p87, %s88, %s89
      %p93 = pneg %p87
      %p94 = scmp.eq.s32.totalorder %s15, 9
      %p95 = por %p93, %p94
      %p96 = scmp.ne.s32.totalorder %s88, %s91
      %p97 = scmp.eq.s32.totalorder %s15, 0
      %p98 = por %p96, %p97
      %p99 = scmp.ne.s32.totalorder %s88, %s91
      %p100 = scmp.eq.s32.totalorder %s20, 9
      %p101 = por %p99, %p100
      %p102 = scmp.ne.s32.totalorder %s91, %s92
      %p103 = scmp.eq.s32.totalorder %s20, 0
      %p104 = por %p102, %p103
      %p105 = scmp.ne.s32.totalorder %s91, %s92
      %p106 = scmp.eq.s32.totalorder %s21, 9
      %p107 = por %p105, %p106
      %p109 = scmp.ne.s32.totalorder %s92, %s108
      %p110 = scmp.eq.s32.totalorder %s21, 0
      %p111 = por %p109, %p110
      %s113 = sadd.s32 %s112, 1
      %p116 = scmp.eq.s32.totalorder %s15, 9
      %p117 = scmp.ne.s32.totalorder %s112, %s114
      %p118 = scmp.eq.s32.totalorder %s15, 0
      %p119 = por %p117, %p118
      %p120 = scmp.ne.s32.totalorder %s112, %s114
      %p121 = scmp.eq.s32.totalorder %s20, 9
      %p122 = por %p120, %p121
      %p123 = scmp.ne.s32.totalorder %s114, %s115
      %p124 = scmp.eq.s32.totalorder %s20, 0
      %p125 = por %p123, %p124
      %p126 = scmp.ne.s32.totalorder %s114, %s115
      %p127 = scmp.eq.s32.totalorder %s21, 9
      %p128 = por %p126, %p127
      %p130 = scmp.ne.s32.totalorder %s115, %s129
      %p131 = scmp.eq.s32.totalorder %s21, 0
      %p132 = por %p130, %p131
      %s134 = sadd.s32 %s133, 1
      %p137 = scmp.eq.s32.totalorder %s15, 9
      %p138 = scmp.ne.s32.totalorder %s133, %s135
      %p139 = scmp.eq.s32.totalorder %s15, 0
      %p140 = por %p138, %p139
      %p141 = scmp.ne.s32.totalorder %s133, %s135
      %p142 = scmp.eq.s32.totalorder %s20, 9
      %p143 = por %p141, %p142
      %p144 = scmp.ne.s32.totalorder %s135, %s136
      %p145 = scmp.eq.s32.totalorder %s20, 0
      %p146 = por %p144, %p145
      %p147 = scmp.ne.s32.totalorder %s135, %s136
      %p148 = scmp.eq.s32.totalorder %s21, 9
      %p149 = por %p147, %p148
      %p151 = scmp.ne.s32.totalorder %s136, %s150
      %p152 = scmp.eq.s32.totalorder %s21, 0
      %p153 = por %p151, %p152
      %s155 = sadd.s32 %s154, 1
      %p158 = scmp.eq.s32.totalorder %s15, 9
      %p159 = scmp.ne.s32.totalorder %s154, %s156
      %p160 = scmp.eq.s32.totalorder %s15, 0
      %p161 = por %p159, %p160
      %p162 = scmp.ne.s32.totalorder %s154, %s156
      %p163 = scmp.eq.s32.totalorder %s20, 9
      %p164 = por %p162, %p163
      %p165 = scmp.ne.s32.totalorder %s156, %s157
      %p166 = scmp.eq.s32.totalorder %s20, 0
      %p167 = por %p165, %p166
      %p168 = scmp.ne.s32.totalorder %s156, %s157
      %p169 = scmp.eq.s32.totalorder %s21, 9
      %p170 = por %p168, %p169
      %p172 = scmp.ne.s32.totalorder %s157, %s171
      %p173 = scmp.eq.s32.totalorder %s21, 0
      %p174 = por %p172, %p173
      %s175 = ssub.s32 %s22, %s34
      %p176 = scmp.eq.s32.totalorder %s175, 0
      %s178 = sadd.s32 %s177, 1
      %s179 = scalar_select %p176, %s177, %s178
      %p182 = pneg %p176
      %p183 = scmp.eq.s32.totalorder %s15, 9
      %p184 = por %p182, %p183
      %p185 = scmp.ne.s32.totalorder %s177, %s180
      %p186 = scmp.eq.s32.totalorder %s15, 0
      %p187 = por %p185, %p186
      %p188 = scmp.ne.s32.totalorder %s177, %s180
      %p189 = scmp.eq.s32.totalorder %s20, 9
      %p190 = por %p188, %p189
      %p191 = scmp.ne.s32.totalorder %s180, %s181
      %p192 = scmp.eq.s32.totalorder %s20, 0
      %p193 = por %p191, %p192
      %p194 = scmp.ne.s32.totalorder %s180, %s181
      %p195 = scmp.eq.s32.totalorder %s21, 9
      %p196 = por %p194, %p195
      %p198 = scmp.ne.s32.totalorder %s181, %s197
      %p199 = scmp.eq.s32.totalorder %s21, 0
      %p200 = por %p198, %p199
      %p201 = scmp.le.s32.totalorder 1, %s15
      %p202 = scmp.lt.s32.totalorder %s15, 11
      %p203 = pnand %p201, %p202
      %p204 = pneg %p203
      // Predicated region
      $region9: #{retinanet_forward.3} parent=5 // pred_check
        _
      $region10: #{retinanet_forward.3} parent=5 // pred_check_branch
        %206 = sbr.rel (%p203) target = $region12
      $region11: #{retinanet_forward.3} parent=5 // pred_region
        %s207 = ssub.s32 %s15, 1
        // Predicated region
        $region13: #{retinanet_forward.3} parent=11 // pred_check
          %p208 = pneg %p48
        $region14: #{retinanet_forward.3} parent=11 // pred_check_branch
          %210 = sbr.rel (%p208) target = $region16
        $region15: #{retinanet_forward.3} parent=11 // pred_region
          _
        $region16: #{retinanet_forward.3} parent=11 // pred_fallthru
          _
        // Predicated region
        $region17: #{retinanet_forward.3} parent=11 // pred_check
          %p211 = pneg %p125
        $region18: #{retinanet_forward.3} parent=11 // pred_check_branch
          %213 = sbr.rel (%p211) target = $region20
        $region19: #{retinanet_forward.3} parent=11 // pred_region
          _
        $region20: #{retinanet_forward.3} parent=11 // pred_fallthru
          _
        // Predicated region
        $region21: #{retinanet_forward.3} parent=11 // pred_check
          %p214 = pneg %p146
        $region22: #{retinanet_forward.3} parent=11 // pred_check_branch
          %216 = sbr.rel (%p214) target = $region24
        $region23: #{retinanet_forward.3} parent=11 // pred_region
          _
        $region24: #{retinanet_forward.3} parent=11 // pred_fallthru
          _
        // Predicated region
        $region25: #{retinanet_forward.3} parent=11 // pred_check
          %p217 = pneg %p167
        $region26: #{retinanet_forward.3} parent=11 // pred_check_branch
          %219 = sbr.rel (%p217) target = $region28
        $region27: #{retinanet_forward.3} parent=11 // pred_region
          _
        $region28: #{retinanet_forward.3} parent=11 // pred_fallthru
          _
      $region12: #{retinanet_forward.3} parent=5 // pred_fallthru
        _
      %p220 = scmp.lt.s32.totalorder %s15, 10
      // Predicated region
      $region29: #{retinanet_forward.3} parent=5 // pred_check
        %p221 = pneg %p220
      $region30: #{retinanet_forward.3} parent=5 // pred_check_branch
        %223 = sbr.rel (%p221) target = $region32
      $region31: #{retinanet_forward.3} parent=5 // pred_region
        // Predicated region
        $region33: #{retinanet_forward.3} parent=31 // pred_check
          %p224 = pneg %p70
        $region34: #{retinanet_forward.3} parent=31 // pred_check_branch
          %226 = sbr.rel (%p224) target = $region36
        $region35: #{retinanet_forward.3} parent=31 // pred_region
          %s227 = sand.u32 %s60, 1
          %s228 = scalar_lea.sflag [#allocation4], %s227
          %s229 = sand.u32 %s60, 1
          %s230 = smul.addr %s229, 2304
          %s231 = scalar_lea.vmem [#allocation3], %s230
          %s233 = ssub.s32 36864, 36864
          %234 = vsyncadd %s228, %s233
          %s235 = smul.addr %s23, 576
          %s236 = smul.addr %s22, 2880
          %s237 = sadd.s32 %s235, %s236
          %s238 = smul.addr %s237, 64
          %s239 = scalar_lea.hbm %s1, %s238
          %s240 = sshll.u32 %s231, 4
          %s241 = int_to_ptr.vmem [resolvable:$true] %s240
          %246 = dma.hbm_to_vmem [thread:$0]  %s239, 36864, %s241, %s228, 128, 128, 8
        $region36: #{retinanet_forward.3} parent=31 // pred_fallthru
          _
        // Predicated region
        $region37: #{retinanet_forward.3} parent=31 // pred_check
          %p247 = pneg %p98
        $region38: #{retinanet_forward.3} parent=31 // pred_check_branch
          %249 = sbr.rel (%p247) target = $region40
        $region39: #{retinanet_forward.3} parent=31 // pred_region
          %p250 = scmp.lt.s32.totalorder %s22, 1
          %s251 = scalar_select %p250, %s22, 1
          %p252 = scmp.lt.s32.totalorder %s23, 4
          %s253 = scalar_select %p252, %s23, 4
          %s254 = smul.addr %s253, 2
          %s255 = smul.addr %s251, 10
          %s256 = sadd.s32 %s254, %s255
          %s257 = smul.addr %s256, 8
          %s258 = scalar_lea.vmem %s2, %s257
        $region40: #{retinanet_forward.3} parent=31 // pred_fallthru
          _
      $region32: #{retinanet_forward.3} parent=5 // pred_fallthru
        _
      %p259 = scmp.le.s32.totalorder 1, %s15
      %p260 = scmp.lt.s32.totalorder %s15, 11
      %p261 = pnand %p259, %p260
      %p262 = pneg %p261
      // Predicated region
      $region41: #{retinanet_forward.3} parent=5 // pred_check
        _
      $region42: #{retinanet_forward.3} parent=5 // pred_check_branch
        %264 = sbr.rel (%p261) target = $region44
      $region43: #{retinanet_forward.3} parent=5 // pred_region
        %s265 = ssub.s32 %s15, 1
        %s266 = sand.u32 %s63, 1
        %s267 = scalar_lea.sflag [#allocation4], %s266
        %s268 = sand.u32 %s63, 1
        %s269 = smul.addr %s268, 2304
        %s270 = scalar_lea.vmem [#allocation3], %s269
        // Predicated region
        $region45: #{retinanet_forward.3} parent=43 // pred_check
          %p271 = pneg %p76
        $region46: #{retinanet_forward.3} parent=43 // pred_check_branch
          %273 = sbr.rel (%p271) target = $region48
        $region47: #{retinanet_forward.3} parent=43 // pred_region
          %274 = dma.done %s267, 36864
        $region48: #{retinanet_forward.3} parent=43 // pred_fallthru
          _
        %p275 = pneg %p48
        %p276 = pneg %p45
        %s277 = sand.u32 %s63, 1
        %s278 = scalar_lea.sflag [#allocation4], %s277
        %s279 = sand.u32 %s63, 1
        %s280 = smul.addr %s279, 2304
        %s281 = scalar_lea.vmem [#allocation3], %s280
        %p282 = pneg %p76
        %p283 = pneg %p73
        %p284 = scmp.lt.s32.totalorder %s24, 1
        %s285 = scalar_select %p284, %s24, 1
        %p286 = scmp.lt.s32.totalorder %s25, 4
        %s287 = scalar_select %p286, %s25, 4
        %s288 = smul.addr %s287, 2
        %s289 = smul.addr %s285, 10
        %s290 = sadd.s32 %s288, %s289
        %s291 = smul.addr %s290, 8
        %s292 = scalar_lea.vmem %s2, %s291
        %p293 = pneg %p104
        %p294 = pneg %p101
        %p295 = pneg %p125
        %p296 = pneg %p122
        %p297 = pneg %p146
        %p298 = pneg %p143
        %p299 = pneg %p167
        %p300 = pneg %p164
        %p301 = pneg %p193
        %p302 = pneg %p190
        %p303 = scmp.lt.s32.totalorder %s24, 1
        %s304 = scalar_select %p303, %s24, 1
        %s305 = smul.addr %s304, 8
        %s306 = smul.addr %s305, 8
        %s307 = scalar_lea.vmem %s6, %s306
        %p308 = scmp.lt.s32.totalorder %s24, 1
        %s309 = scalar_select %p308, %s24, 1
        %p310 = scmp.lt.s32.totalorder %s25, 4
        %s311 = scalar_select %p310, %s25, 4
        %s312 = smul.addr %s311, 2
        %s313 = smul.addr %s309, 10
        %s314 = sadd.s32 %s312, %s313
        %s315 = smul.addr %s314, 8
        %s316 = scalar_lea.vmem %s2, %s315
        %p317 = scmp.lt.s32.totalorder %s24, 1
        %s318 = scalar_select %p317, %s24, 1
        %s319 = smul.addr %s318, 8
        %s320 = smul.addr %s319, 8
        %s321 = scalar_lea.vmem %s6, %s320
        %p323 = scmp.eq.s32.totalorder %s25, 0
        // Predicated region
        $region49: #{retinanet_forward.3} parent=43 // pred_check
          %p324 = pneg %p323
        $region50: #{retinanet_forward.3} parent=43 // pred_check_branch
          %326 = sbr.rel (%p324) target = $region52
        $region51: #{retinanet_forward.3} parent=43 // pred_region
          %v327 = vld [vmem:[%s0] sm:$0xff]
          %v328 = vld [vmem:[%s0 + $0x8] sm:$0xff]
          %v329 = vld [vmem:[%s0 + $0x10] sm:$0xff]
          %v330 = vld [vmem:[%s0 + $0x18] sm:$0xff]
          %331 = vst [vmem:[#allocation2] sm:$0xff] %v327
          %332 = vst [vmem:[#allocation2 + $0x8] sm:$0xff] %v328
          %333 = vst [vmem:[#allocation2 + $0x10] sm:$0xff] %v329
          %334 = vst [vmem:[#allocation2 + $0x18] sm:$0xff] %v330
        $region52: #{retinanet_forward.3} parent=43 // pred_fallthru
          _
        %v335 = vld [vmem:[#allocation2] sm:$0xff]
        %v336 = vld [vmem:[#allocation2 + $0x8] sm:$0xff]
        %v337 = vld [vmem:[#allocation2 + $0x10] sm:$0xff]
        %v338 = vld [vmem:[#allocation2 + $0x18] sm:$0xff]
        %v339 = vld [vmem:[%s3] sm:$0xf]
        %v340 = vld [vmem:[%s3 + $0x4] sm:$0xf]
        %v341 = vld [vmem:[%s3 + $0x8] sm:$0xf]
        %v342 = vld [vmem:[%s3 + $0xc] sm:$0xf]
        %v347 = vunpack.c.l.b16 %v339
        %v348 = vunpack.c.l.b16 %v340
        %v349 = vunpack.c.l.b16 %v341
        %v350 = vunpack.c.l.b16 %v342
        %v351 = vpack.c.b16 %v348, %v347
        %v352 = vpack.c.b16 %v350, %v349
        %v357 = vunpack.c.l.b16 %v335
        %v358 = vunpack.c.h.b16 %v335
        %v359 = vunpack.c.l.b16 %v336
        %v360 = vunpack.c.h.b16 %v336
        %v361 = vunpack.c.l.b16 %v337
        %v362 = vunpack.c.h.b16 %v337
        %v363 = vunpack.c.l.b16 %v338
        %v364 = vunpack.c.h.b16 %v338
        %v365 = vpack.c.b16 %v359, %v357
        %v366 = vpack.c.b16 %v360, %v358
        %v367 = vpack.c.b16 %v363, %v361
        %v368 = vpack.c.b16 %v364, %v362
        %vm373 = vcmask 261120
        %v375 = vsel %vm373, %v351, 0
        %v378 = vsel %vm373, %v352, 0
        %380 = vmatprep.subr.bf16.mxu0 0
        %381 = vmatpush1.bf16.msra.mxu0 0
        %382 = vmatprep.subr.bf16.mxu0 0
        %383 = vmatpush1.bf16.msra.mxu0 0
        %384 = vmatprep.subr.bf16.mxu0 0
        %385 = vmatpush1.bf16.msra.mxu0 0
        %386 = vmatprep.subr.bf16.mxu0 0
        %387 = vmatpush1.bf16.msra.mxu0 0
        %388 = vmatprep.subr.bf16.mxu0 0
        %389 = vmatpush1.bf16.msra.mxu0 0
        %390 = vmatprep.subr.bf16.mxu0 0
        %391 = vmatpush1.bf16.msra.mxu0 0
        %392 = vmatprep.subr.bf16.mxu0 %v368
        %393 = vmatpush1.bf16.msra.mxu0 %v367
        %394 = vmatprep.subr.bf16.mxu0 %v366
        %395 = vmatpush1.bf16.msra.mxu0 %v365
        %396 = vmatprep.subr.bf16.mxu0 0
        %397 = vmatpush2.bf16.msra.mxu0 0
        %398 = vmatprep.subr.bf16.mxu0 0
        %399 = vmatpush2.bf16.msra.mxu0 0
        %400 = vmatprep.subr.bf16.mxu0 0
        %401 = vmatpush2.bf16.msra.mxu0 0
        %402 = vmatprep.subr.bf16.mxu0 0
        %403 = vmatpush2.bf16.msra.mxu0 0
        %404 = vmatprep.subr.bf16.mxu0 0
        %405 = vmatpush2.bf16.msra.mxu0 0
        %406 = vmatprep.subr.bf16.mxu0 0
        %407 = vmatpush2.bf16.msra.mxu0 0
        %408 = vmatprep.subr.bf16.mxu0 0
        %409 = vmatpush2.bf16.msra.mxu0 0
        %410 = vmatprep.subr.bf16.mxu0 0
        %411 = vmatpush2.bf16.msra.mxu0 0
        %412 = vmatprep.mubr.bf16.mxu0 0
        %413 = vmatmul.mubr.bf16.gmra.mxu0 %v375
        %v414 = vpop.f32.mrf.mxu0
        %v415 = vadd.f32 0.0, %v414
        %v416 = vpop.f32.mrf.mxu0
        %v417 = vadd.f32 0.0, %v416
        %v418 = vpop.f32.mrf.mxu0
        %v419 = vadd.f32 0.0, %v418
        %v420 = vpop.f32.mrf.mxu0
        %v421 = vadd.f32 0.0, %v420
        %422 = vmatprep.mubr.bf16.mxu0 0
        %423 = vmatmul.mubr.bf16.gmra.mxu0 %v378
        %v424 = vpop.f32.mrf.mxu0
        %v425 = vadd.f32 0.0, %v424
        %v426 = vpop.f32.mrf.mxu0
        %v427 = vadd.f32 0.0, %v426
        %v428 = vpop.f32.mrf.mxu0
        %v429 = vadd.f32 0.0, %v428
        %v430 = vpop.f32.mrf.mxu0
        %v431 = vadd.f32 0.0, %v430
        %432 = vdwg.mxu0
        %v433 = vpack.c.bf16 %v419, %v415
        %v434 = vpack.c.bf16 %v421, %v417
        %v435 = vpack.c.bf16 %v429, %v425
        %v436 = vpack.c.bf16 %v431, %v427
        %v437 = vld [vmem:[%s270] sm:$0xff]
        %v438 = vld [vmem:[%s270 + $0x8] sm:$0xff]
        %v439 = vld [vmem:[%s270 + $0x10] sm:$0xff]
        %v440 = vld [vmem:[%s270 + $0x18] sm:$0xff]
        %v441 = vld [vmem:[%s270 + $0x20] sm:$0xff]
        %v442 = vld [vmem:[%s270 + $0x28] sm:$0xff]
        %v443 = vld [vmem:[%s270 + $0x30] sm:$0xff]
        %v444 = vld [vmem:[%s270 + $0x38] sm:$0xff]
        %v445 = vld [vmem:[%s270 + $0x40] sm:$0xff]
        %v446 = vld [vmem:[%s270 + $0x48] sm:$0xff]
        %v447 = vld [vmem:[%s270 + $0x50] sm:$0xff]
        %v448 = vld [vmem:[%s270 + $0x58] sm:$0xff]
        %v449 = vld [vmem:[%s270 + $0x60] sm:$0xff]
        %v450 = vld [vmem:[%s270 + $0x68] sm:$0xff]
        %v451 = vld [vmem:[%s270 + $0x70] sm:$0xff]
        %v452 = vld [vmem:[%s270 + $0x78] sm:$0xff]
        %v453 = vld [vmem:[%s270 + $0x80] sm:$0xff]
        %v454 = vld [vmem:[%s270 + $0x88] sm:$0xff]
        %v455 = vld [vmem:[%s270 + $0x90] sm:$0xff]
        %v456 = vld [vmem:[%s270 + $0x98] sm:$0xff]
        %v457 = vld [vmem:[%s270 + $0xa0] sm:$0xff]
        %v458 = vld [vmem:[%s270 + $0xa8] sm:$0xff]
        %v459 = vld [vmem:[%s270 + $0xb0] sm:$0xff]
        %v460 = vld [vmem:[%s270 + $0xb8] sm:$0xff]
        %v461 = vld [vmem:[%s270 + $0xc0] sm:$0xff]
        %v462 = vld [vmem:[%s270 + $0xc8] sm:$0xff]
        %v463 = vld [vmem:[%s270 + $0xd0] sm:$0xff]
        %v464 = vld [vmem:[%s270 + $0xd8] sm:$0xff]
        %v465 = vld [vmem:[%s270 + $0xe0] sm:$0xff]
        %v466 = vld [vmem:[%s270 + $0xe8] sm:$0xff]
        %v467 = vld [vmem:[%s270 + $0xf0] sm:$0xff]
        %v468 = vld [vmem:[%s270 + $0xf8] sm:$0xff]
        %s469 = scalar_lea.vmem %s3, 16
        %v470 = vld [vmem:[%s469] sm:$0xf]
        %v471 = vld [vmem:[%s469 + $0x4] sm:$0xf]
        %v472 = vld [vmem:[%s469 + $0x8] sm:$0xf]
        %v473 = vld [vmem:[%s469 + $0xc] sm:$0xf]
        %v478 = vunpack.c.l.b16 %v470
        %v479 = vunpack.c.l.b16 %v471
        %v480 = vunpack.c.l.b16 %v472
        %v481 = vunpack.c.l.b16 %v473
        %v482 = vpack.c.b16 %v479, %v478
        %v483 = vpack.c.b16 %v481, %v480
        %v485 = vsel %vm373, %v482, 0
        %v488 = vsel %vm373, %v483, 0
        %490 = vmatprep.subr.bf16.mxu0 0
        %491 = vmatpush1.bf16.msra.mxu0 0
        %492 = vmatprep.subr.bf16.mxu0 0
        %493 = vmatpush1.bf16.msra.mxu0 0
        %494 = vmatprep.subr.bf16.mxu0 0
        %495 = vmatpush1.bf16.msra.mxu0 0
        %496 = vmatprep.subr.bf16.mxu0 0
        %497 = vmatpush1.bf16.msra.mxu0 0
        %498 = vmatprep.subr.bf16.mxu0 0
        %499 = vmatpush1.bf16.msra.mxu0 0
        %500 = vmatprep.subr.bf16.mxu0 0
        %501 = vmatpush1.bf16.msra.mxu0 0
        %502 = vmatprep.subr.bf16.mxu0 %v368
        %503 = vmatpush1.bf16.msra.mxu0 %v367
        %504 = vmatprep.subr.bf16.mxu0 %v366
        %505 = vmatpush1.bf16.msra.mxu0 %v365
        %506 = vmatprep.subr.bf16.mxu0 0
        %507 = vmatpush2.bf16.msra.mxu0 0
        %508 = vmatprep.subr.bf16.mxu0 0
        %509 = vmatpush2.bf16.msra.mxu0 0
        %510 = vmatprep.subr.bf16.mxu0 0
        %511 = vmatpush2.bf16.msra.mxu0 0
        %512 = vmatprep.subr.bf16.mxu0 0
        %513 = vmatpush2.bf16.msra.mxu0 0
        %514 = vmatprep.subr.bf16.mxu0 0
        %515 = vmatpush2.bf16.msra.mxu0 0
        %516 = vmatprep.subr.bf16.mxu0 0
        %517 = vmatpush2.bf16.msra.mxu0 0
        %518 = vmatprep.subr.bf16.mxu0 0
        %519 = vmatpush2.bf16.msra.mxu0 0
        %520 = vmatprep.subr.bf16.mxu0 0
        %521 = vmatpush2.bf16.msra.mxu0 0
        %522 = vmatprep.mubr.bf16.mxu0 0
        %523 = vmatmul.mubr.bf16.gmra.mxu0 %v485
        %v524 = vpop.f32.mrf.mxu0
        %v525 = vadd.f32 0.0, %v524
        %v526 = vpop.f32.mrf.mxu0
        %v527 = vadd.f32 0.0, %v526
        %v528 = vpop.f32.mrf.mxu0
        %v529 = vadd.f32 0.0, %v528
        %v530 = vpop.f32.mrf.mxu0
        %v531 = vadd.f32 0.0, %v530
        %532 = vmatprep.mubr.bf16.mxu0 0
        %533 = vmatmul.mubr.bf16.gmra.mxu0 %v488
        %v534 = vpop.f32.mrf.mxu0
        %v535 = vadd.f32 0.0, %v534
        %v536 = vpop.f32.mrf.mxu0
        %v537 = vadd.f32 0.0, %v536
        %v538 = vpop.f32.mrf.mxu0
        %v539 = vadd.f32 0.0, %v538
        %v540 = vpop.f32.mrf.mxu0
        %v541 = vadd.f32 0.0, %v540
        %542 = vdwg.mxu0
        %v543 = vpack.c.bf16 %v529, %v525
        %v544 = vpack.c.bf16 %v531, %v527
        %v545 = vpack.c.bf16 %v539, %v535
        %v546 = vpack.c.bf16 %v541, %v537
        %v547 = vld [vmem:[%s270 + $0x100] sm:$0xff]
        %v548 = vld [vmem:[%s270 + $0x108] sm:$0xff]
        %v549 = vld [vmem:[%s270 + $0x110] sm:$0xff]
        %v550 = vld [vmem:[%s270 + $0x118] sm:$0xff]
        %v551 = vld [vmem:[%s270 + $0x120] sm:$0xff]
        %v552 = vld [vmem:[%s270 + $0x128] sm:$0xff]
        %v553 = vld [vmem:[%s270 + $0x130] sm:$0xff]
        %v554 = vld [vmem:[%s270 + $0x138] sm:$0xff]
        %v555 = vld [vmem:[%s270 + $0x140] sm:$0xff]
        %v556 = vld [vmem:[%s270 + $0x148] sm:$0xff]
        %v557 = vld [vmem:[%s270 + $0x150] sm:$0xff]
        %v558 = vld [vmem:[%s270 + $0x158] sm:$0xff]
        %v559 = vld [vmem:[%s270 + $0x160] sm:$0xff]
        %v560 = vld [vmem:[%s270 + $0x168] sm:$0xff]
        %v561 = vld [vmem:[%s270 + $0x170] sm:$0xff]
        %v562 = vld [vmem:[%s270 + $0x178] sm:$0xff]
        %v563 = vld [vmem:[%s270 + $0x180] sm:$0xff]
        %v564 = vld [vmem:[%s270 + $0x188] sm:$0xff]
        %v565 = vld [vmem:[%s270 + $0x190] sm:$0xff]
        %v566 = vld [vmem:[%s270 + $0x198] sm:$0xff]
        %v567 = vld [vmem:[%s270 + $0x1a0] sm:$0xff]
        %v568 = vld [vmem:[%s270 + $0x1a8] sm:$0xff]
        %v569 = vld [vmem:[%s270 + $0x1b0] sm:$0xff]
        %v570 = vld [vmem:[%s270 + $0x1b8] sm:$0xff]
        %v571 = vld [vmem:[%s270 + $0x1c0] sm:$0xff]
        %v572 = vld [vmem:[%s270 + $0x1c8] sm:$0xff]
        %v573 = vld [vmem:[%s270 + $0x1d0] sm:$0xff]
        %v574 = vld [vmem:[%s270 + $0x1d8] sm:$0xff]
        %v575 = vld [vmem:[%s270 + $0x1e0] sm:$0xff]
        %v576 = vld [vmem:[%s270 + $0x1e8] sm:$0xff]
        %v577 = vld [vmem:[%s270 + $0x1f0] sm:$0xff]
        %v578 = vld [vmem:[%s270 + $0x1f8] sm:$0xff]
        %v611 = vunpack.c.l.b16 %v547
        %v612 = vunpack.c.h.b16 %v547
        %v613 = vunpack.c.l.b16 %v548
        %v614 = vunpack.c.h.b16 %v548
        %v615 = vunpack.c.l.b16 %v549
        %v616 = vunpack.c.h.b16 %v549
        %v617 = vunpack.c.l.b16 %v550
        %v618 = vunpack.c.h.b16 %v550
        %v619 = vunpack.c.l.b16 %v551
        %v620 = vunpack.c.h.b16 %v551
        %v621 = vunpack.c.l.b16 %v552
        %v622 = vunpack.c.h.b16 %v552
        %v623 = vunpack.c.l.b16 %v553
        %v624 = vunpack.c.h.b16 %v553
        %v625 = vunpack.c.l.b16 %v554
        %v626 = vunpack.c.h.b16 %v554
        %v627 = vunpack.c.l.b16 %v555
        %v628 = vunpack.c.h.b16 %v555
        %v629 = vunpack.c.l.b16 %v556
        %v630 = vunpack.c.h.b16 %v556
        %v631 = vunpack.c.l.b16 %v557
        %v632 = vunpack.c.h.b16 %v557
        %v633 = vunpack.c.l.b16 %v558
        %v634 = vunpack.c.h.b16 %v558
        %v635 = vunpack.c.l.b16 %v559
        %v636 = vunpack.c.h.b16 %v559
        %v637 = vunpack.c.l.b16 %v560
        %v638 = vunpack.c.h.b16 %v560
        %v639 = vunpack.c.l.b16 %v561
        %v640 = vunpack.c.h.b16 %v561
        %v641 = vunpack.c.l.b16 %v562
        %v642 = vunpack.c.h.b16 %v562
        %v643 = vunpack.c.l.b16 %v563
        %v644 = vunpack.c.h.b16 %v563
        %v645 = vunpack.c.l.b16 %v564
        %v646 = vunpack.c.h.b16 %v564
        %v647 = vunpack.c.l.b16 %v565
        %v648 = vunpack.c.h.b16 %v565
        %v649 = vunpack.c.l.b16 %v566
        %v650 = vunpack.c.h.b16 %v566
        %v651 = vunpack.c.l.b16 %v567
        %v652 = vunpack.c.h.b16 %v567
        %v653 = vunpack.c.l.b16 %v568
        %v654 = vunpack.c.h.b16 %v568
        %v655 = vunpack.c.l.b16 %v569
        %v656 = vunpack.c.h.b16 %v569
        %v657 = vunpack.c.l.b16 %v570
        %v658 = vunpack.c.h.b16 %v570
        %v659 = vunpack.c.l.b16 %v571
        %v660 = vunpack.c.h.b16 %v571
        %v661 = vunpack.c.l.b16 %v572
        %v662 = vunpack.c.h.b16 %v572
        %v663 = vunpack.c.l.b16 %v573
        %v664 = vunpack.c.h.b16 %v573
        %v665 = vunpack.c.l.b16 %v574
        %v666 = vunpack.c.h.b16 %v574
        %v667 = vunpack.c.l.b16 %v575
        %v668 = vunpack.c.h.b16 %v575
        %v669 = vunpack.c.l.b16 %v576
        %v670 = vunpack.c.h.b16 %v576
        %v671 = vunpack.c.l.b16 %v577
        %v672 = vunpack.c.h.b16 %v577
        %v673 = vunpack.c.l.b16 %v578
        %v674 = vunpack.c.h.b16 %v578
        %v675 = vpack.c.b16 %v613, %v611
        %v676 = vpack.c.b16 %v614, %v612
        %v677 = vpack.c.b16 %v617, %v615
        %v678 = vpack.c.b16 %v618, %v616
        %v679 = vpack.c.b16 %v621, %v619
        %v680 = vpack.c.b16 %v622, %v620
        %v681 = vpack.c.b16 %v625, %v623
        %v682 = vpack.c.b16 %v626, %v624
        %v683 = vpack.c.b16 %v629, %v627
        %v684 = vpack.c.b16 %v630, %v628
        %v685 = vpack.c.b16 %v633, %v631
        %v686 = vpack.c.b16 %v634, %v632
        %v687 = vpack.c.b16 %v637, %v635
        %v688 = vpack.c.b16 %v638, %v636
        %v689 = vpack.c.b16 %v641, %v639
        %v690 = vpack.c.b16 %v642, %v640
        %v691 = vpack.c.b16 %v645, %v643
        %v692 = vpack.c.b16 %v646, %v644
        %v693 = vpack.c.b16 %v649, %v647
        %v694 = vpack.c.b16 %v650, %v648
        %v695 = vpack.c.b16 %v653, %v651
        %v696 = vpack.c.b16 %v654, %v652
        %v697 = vpack.c.b16 %v657, %v655
        %v698 = vpack.c.b16 %v658, %v656
        %v699 = vpack.c.b16 %v661, %v659
        %v700 = vpack.c.b16 %v662, %v660
        %v701 = vpack.c.b16 %v665, %v663
        %v702 = vpack.c.b16 %v666, %v664
        %v703 = vpack.c.b16 %v669, %v667
        %v704 = vpack.c.b16 %v670, %v668
        %v705 = vpack.c.b16 %v673, %v671
        %v706 = vpack.c.b16 %v674, %v672
        %739 = vmatprep.subr.bf16.mxu0 %v690
        %740 = vmatpush1.bf16.msra.mxu0 %v689
        %741 = vmatprep.subr.bf16.mxu0 %v688
        %742 = vmatpush1.bf16.msra.mxu0 %v687
        %743 = vmatprep.subr.bf16.mxu0 %v686
        %744 = vmatpush1.bf16.msra.mxu0 %v685
        %745 = vmatprep.subr.bf16.mxu0 %v684
        %746 = vmatpush1.bf16.msra.mxu0 %v683
        %747 = vmatprep.subr.bf16.mxu0 %v682
        %748 = vmatpush1.bf16.msra.mxu0 %v681
        %749 = vmatprep.subr.bf16.mxu0 %v680
        %750 = vmatpush1.bf16.msra.mxu0 %v679
        %751 = vmatprep.subr.bf16.mxu0 %v678
        %752 = vmatpush1.bf16.msra.mxu0 %v677
        %753 = vmatprep.subr.bf16.mxu0 %v676
        %754 = vmatpush1.bf16.msra.mxu0 %v675
        %755 = vmatprep.subr.bf16.mxu0 %v706
        %756 = vmatpush2.bf16.msra.mxu0 %v705
        %757 = vmatprep.subr.bf16.mxu0 %v704
        %758 = vmatpush2.bf16.msra.mxu0 %v703
        %759 = vmatprep.subr.bf16.mxu0 %v702
        %760 = vmatpush2.bf16.msra.mxu0 %v701
        %761 = vmatprep.subr.bf16.mxu0 %v700
        %762 = vmatpush2.bf16.msra.mxu0 %v699
        %763 = vmatprep.subr.bf16.mxu0 %v698
        %764 = vmatpush2.bf16.msra.mxu0 %v697
        %765 = vmatprep.subr.bf16.mxu0 %v696
        %766 = vmatpush2.bf16.msra.mxu0 %v695
        %767 = vmatprep.subr.bf16.mxu0 %v694
        %768 = vmatpush2.bf16.msra.mxu0 %v693
        %769 = vmatprep.subr.bf16.mxu0 %v692
        %770 = vmatpush2.bf16.msra.mxu0 %v691
        %771 = vmatprep.mubr.bf16.mxu0 %v544
        %772 = vmatmul.mubr.bf16.gmra.mxu0 %v543
        %v773 = vpop.f32.mrf.mxu0
        %v774 = vadd.f32 0.0, %v773
        %v775 = vpop.f32.mrf.mxu0
        %v776 = vadd.f32 0.0, %v775
        %v777 = vpop.f32.mrf.mxu0
        %v778 = vadd.f32 0.0, %v777
        %v779 = vpop.f32.mrf.mxu0
        %v780 = vadd.f32 0.0, %v779
        %781 = vmatprep.mubr.bf16.mxu0 %v546
        %782 = vmatmul.mubr.bf16.gmra.mxu0 %v545
        %v783 = vpop.f32.mrf.mxu0
        %v784 = vadd.f32 0.0, %v783
        %v785 = vpop.f32.mrf.mxu0
        %v786 = vadd.f32 0.0, %v785
        %v787 = vpop.f32.mrf.mxu0
        %v788 = vadd.f32 0.0, %v787
        %v789 = vpop.f32.mrf.mxu0
        %v790 = vadd.f32 0.0, %v789
        %791 = vdwg.mxu0
        %v824 = vunpack.c.l.b16 %v437
        %v825 = vunpack.c.h.b16 %v437
        %v826 = vunpack.c.l.b16 %v438
        %v827 = vunpack.c.h.b16 %v438
        %v828 = vunpack.c.l.b16 %v439
        %v829 = vunpack.c.h.b16 %v439
        %v830 = vunpack.c.l.b16 %v440
        %v831 = vunpack.c.h.b16 %v440
        %v832 = vunpack.c.l.b16 %v441
        %v833 = vunpack.c.h.b16 %v441
        %v834 = vunpack.c.l.b16 %v442
        %v835 = vunpack.c.h.b16 %v442
        %v836 = vunpack.c.l.b16 %v443
        %v837 = vunpack.c.h.b16 %v443
        %v838 = vunpack.c.l.b16 %v444
        %v839 = vunpack.c.h.b16 %v444
        %v840 = vunpack.c.l.b16 %v445
        %v841 = vunpack.c.h.b16 %v445
        %v842 = vunpack.c.l.b16 %v446
        %v843 = vunpack.c.h.b16 %v446
        %v844 = vunpack.c.l.b16 %v447
        %v845 = vunpack.c.h.b16 %v447
        %v846 = vunpack.c.l.b16 %v448
        %v847 = vunpack.c.h.b16 %v448
        %v848 = vunpack.c.l.b16 %v449
        %v849 = vunpack.c.h.b16 %v449
        %v850 = vunpack.c.l.b16 %v450
        %v851 = vunpack.c.h.b16 %v450
        %v852 = vunpack.c.l.b16 %v451
        %v853 = vunpack.c.h.b16 %v451
        %v854 = vunpack.c.l.b16 %v452
        %v855 = vunpack.c.h.b16 %v452
        %v856 = vunpack.c.l.b16 %v453
        %v857 = vunpack.c.h.b16 %v453
        %v858 = vunpack.c.l.b16 %v454
        %v859 = vunpack.c.h.b16 %v454
        %v860 = vunpack.c.l.b16 %v455
        %v861 = vunpack.c.h.b16 %v455
        %v862 = vunpack.c.l.b16 %v456
        %v863 = vunpack.c.h.b16 %v456
        %v864 = vunpack.c.l.b16 %v457
        %v865 = vunpack.c.h.b16 %v457
        %v866 = vunpack.c.l.b16 %v458
        %v867 = vunpack.c.h.b16 %v458
        %v868 = vunpack.c.l.b16 %v459
        %v869 = vunpack.c.h.b16 %v459
        %v870 = vunpack.c.l.b16 %v460
        %v871 = vunpack.c.h.b16 %v460
        %v872 = vunpack.c.l.b16 %v461
        %v873 = vunpack.c.h.b16 %v461
        %v874 = vunpack.c.l.b16 %v462
        %v875 = vunpack.c.h.b16 %v462
        %v876 = vunpack.c.l.b16 %v463
        %v877 = vunpack.c.h.b16 %v463
        %v878 = vunpack.c.l.b16 %v464
        %v879 = vunpack.c.h.b16 %v464
        %v880 = vunpack.c.l.b16 %v465
        %v881 = vunpack.c.h.b16 %v465
        %v882 = vunpack.c.l.b16 %v466
        %v883 = vunpack.c.h.b16 %v466
        %v884 = vunpack.c.l.b16 %v467
        %v885 = vunpack.c.h.b16 %v467
        %v886 = vunpack.c.l.b16 %v468
        %v887 = vunpack.c.h.b16 %v468
        %v888 = vpack.c.b16 %v826, %v824
        %v889 = vpack.c.b16 %v827, %v825
        %v890 = vpack.c.b16 %v830, %v828
        %v891 = vpack.c.b16 %v831, %v829
        %v892 = vpack.c.b16 %v834, %v832
        %v893 = vpack.c.b16 %v835, %v833
        %v894 = vpack.c.b16 %v838, %v836
        %v895 = vpack.c.b16 %v839, %v837
        %v896 = vpack.c.b16 %v842, %v840
        %v897 = vpack.c.b16 %v843, %v841
        %v898 = vpack.c.b16 %v846, %v844
        %v899 = vpack.c.b16 %v847, %v845
        %v900 = vpack.c.b16 %v850, %v848
        %v901 = vpack.c.b16 %v851, %v849
        %v902 = vpack.c.b16 %v854, %v852
        %v903 = vpack.c.b16 %v855, %v853
        %v904 = vpack.c.b16 %v858, %v856
        %v905 = vpack.c.b16 %v859, %v857
        %v906 = vpack.c.b16 %v862, %v860
        %v907 = vpack.c.b16 %v863, %v861
        %v908 = vpack.c.b16 %v866, %v864
        %v909 = vpack.c.b16 %v867, %v865
        %v910 = vpack.c.b16 %v870, %v868
        %v911 = vpack.c.b16 %v871, %v869
        %v912 = vpack.c.b16 %v874, %v872
        %v913 = vpack.c.b16 %v875, %v873
        %v914 = vpack.c.b16 %v878, %v876
        %v915 = vpack.c.b16 %v879, %v877
        %v916 = vpack.c.b16 %v882, %v880
        %v917 = vpack.c.b16 %v883, %v881
        %v918 = vpack.c.b16 %v886, %v884
        %v919 = vpack.c.b16 %v887, %v885
        %952 = vmatprep.subr.bf16.mxu0 %v903
        %953 = vmatpush1.bf16.msra.mxu0 %v902
        %954 = vmatprep.subr.bf16.mxu0 %v901
        %955 = vmatpush1.bf16.msra.mxu0 %v900
        %956 = vmatprep.subr.bf16.mxu0 %v899
        %957 = vmatpush1.bf16.msra.mxu0 %v898
        %958 = vmatprep.subr.bf16.mxu0 %v897
        %959 = vmatpush1.bf16.msra.mxu0 %v896
        %960 = vmatprep.subr.bf16.mxu0 %v895
        %961 = vmatpush1.bf16.msra.mxu0 %v894
        %962 = vmatprep.subr.bf16.mxu0 %v893
        %963 = vmatpush1.bf16.msra.mxu0 %v892
        %964 = vmatprep.subr.bf16.mxu0 %v891
        %965 = vmatpush1.bf16.msra.mxu0 %v890
        %966 = vmatprep.subr.bf16.mxu0 %v889
        %967 = vmatpush1.bf16.msra.mxu0 %v888
        %968 = vmatprep.subr.bf16.mxu0 %v919
        %969 = vmatpush2.bf16.msra.mxu0 %v918
        %970 = vmatprep.subr.bf16.mxu0 %v917
        %971 = vmatpush2.bf16.msra.mxu0 %v916
        %972 = vmatprep.subr.bf16.mxu0 %v915
        %973 = vmatpush2.bf16.msra.mxu0 %v914
        %974 = vmatprep.subr.bf16.mxu0 %v913
        %975 = vmatpush2.bf16.msra.mxu0 %v912
        %976 = vmatprep.subr.bf16.mxu0 %v911
        %977 = vmatpush2.bf16.msra.mxu0 %v910
        %978 = vmatprep.subr.bf16.mxu0 %v909
        %979 = vmatpush2.bf16.msra.mxu0 %v908
        %980 = vmatprep.subr.bf16.mxu0 %v907
        %981 = vmatpush2.bf16.msra.mxu0 %v906
        %982 = vmatprep.subr.bf16.mxu0 %v905
        %983 = vmatpush2.bf16.msra.mxu0 %v904
        %984 = vmatprep.mubr.bf16.mxu0 %v434
        %985 = vmatmul.mubr.bf16.gmra.mxu0 %v433
        %v986 = vpop.f32.mrf.mxu0
        %v987 = vadd.f32 %v774, %v986
        %v988 = vpop.f32.mrf.mxu0
        %v989 = vadd.f32 %v776, %v988
        %v990 = vpop.f32.mrf.mxu0
        %v991 = vadd.f32 %v778, %v990
        %v992 = vpop.f32.mrf.mxu0
        %v993 = vadd.f32 %v780, %v992
        %994 = vmatprep.mubr.bf16.mxu0 %v436
        %995 = vmatmul.mubr.bf16.gmra.mxu0 %v435
        %v996 = vpop.f32.mrf.mxu0
        %v997 = vadd.f32 %v784, %v996
        %v998 = vpop.f32.mrf.mxu0
        %v999 = vadd.f32 %v786, %v998
        %v1000 = vpop.f32.mrf.mxu0
        %v1001 = vadd.f32 %v788, %v1000
        %v1002 = vpop.f32.mrf.mxu0
        %v1003 = vadd.f32 %v790, %v1002
        %1004 = vdwg.mxu0
        %s1005 = scalar_lea.vmem %s3, 32
        %v1006 = vld [vmem:[%s1005] sm:$0xf]
        %v1007 = vld [vmem:[%s1005 + $0x4] sm:$0xf]
        %v1008 = vld [vmem:[%s1005 + $0x8] sm:$0xf]
        %v1009 = vld [vmem:[%s1005 + $0xc] sm:$0xf]
        %v1014 = vunpack.c.l.b16 %v1006
        %v1015 = vunpack.c.l.b16 %v1007
        %v1016 = vunpack.c.l.b16 %v1008
        %v1017 = vunpack.c.l.b16 %v1009
        %v1018 = vpack.c.b16 %v1015, %v1014
        %v1019 = vpack.c.b16 %v1017, %v1016
        %v1021 = vsel %vm373, %v1018, 0
        %v1024 = vsel %vm373, %v1019, 0
        %1026 = vmatprep.subr.bf16.mxu0 0
        %1027 = vmatpush1.bf16.msra.mxu0 0
        %1028 = vmatprep.subr.bf16.mxu0 0
        %1029 = vmatpush1.bf16.msra.mxu0 0
        %1030 = vmatprep.subr.bf16.mxu0 0
        %1031 = vmatpush1.bf16.msra.mxu0 0
        %1032 = vmatprep.subr.bf16.mxu0 0
        %1033 = vmatpush1.bf16.msra.mxu0 0
        %1034 = vmatprep.subr.bf16.mxu0 0
        %1035 = vmatpush1.bf16.msra.mxu0 0
        %1036 = vmatprep.subr.bf16.mxu0 0
        %1037 = vmatpush1.bf16.msra.mxu0 0
        %1038 = vmatprep.subr.bf16.mxu0 %v368
        %1039 = vmatpush1.bf16.msra.mxu0 %v367
        %1040 = vmatprep.subr.bf16.mxu0 %v366
        %1041 = vmatpush1.bf16.msra.mxu0 %v365
        %1042 = vmatprep.subr.bf16.mxu0 0
        %1043 = vmatpush2.bf16.msra.mxu0 0
        %1044 = vmatprep.subr.bf16.mxu0 0
        %1045 = vmatpush2.bf16.msra.mxu0 0
        %1046 = vmatprep.subr.bf16.mxu0 0
        %1047 = vmatpush2.bf16.msra.mxu0 0
        %1048 = vmatprep.subr.bf16.mxu0 0
        %1049 = vmatpush2.bf16.msra.mxu0 0
        %1050 = vmatprep.subr.bf16.mxu0 0
        %1051 = vmatpush2.bf16.msra.mxu0 0
        %1052 = vmatprep.subr.bf16.mxu0 0
        %1053 = vmatpush2.bf16.msra.mxu0 0
        %1054 = vmatprep.subr.bf16.mxu0 0
        %1055 = vmatpush2.bf16.msra.mxu0 0
        %1056 = vmatprep.subr.bf16.mxu0 0
        %1057 = vmatpush2.bf16.msra.mxu0 0
        %1058 = vmatprep.mubr.bf16.mxu0 0
        %1059 = vmatmul.mubr.bf16.gmra.mxu0 %v1021
        %v1060 = vpop.f32.mrf.mxu0
        %v1061 = vadd.f32 0.0, %v1060
        %v1062 = vpop.f32.mrf.mxu0
        %v1063 = vadd.f32 0.0, %v1062
        %v1064 = vpop.f32.mrf.mxu0
        %v1065 = vadd.f32 0.0, %v1064
        %v1066 = vpop.f32.mrf.mxu0
        %v1067 = vadd.f32 0.0, %v1066
        %1068 = vmatprep.mubr.bf16.mxu0 0
        %1069 = vmatmul.mubr.bf16.gmra.mxu0 %v1024
        %v1070 = vpop.f32.mrf.mxu0
        %v1071 = vadd.f32 0.0, %v1070
        %v1072 = vpop.f32.mrf.mxu0
        %v1073 = vadd.f32 0.0, %v1072
        %v1074 = vpop.f32.mrf.mxu0
        %v1075 = vadd.f32 0.0, %v1074
        %v1076 = vpop.f32.mrf.mxu0
        %v1077 = vadd.f32 0.0, %v1076
        %1078 = vdwg.mxu0
        %v1079 = vpack.c.bf16 %v1065, %v1061
        %v1080 = vpack.c.bf16 %v1067, %v1063
        %v1081 = vpack.c.bf16 %v1075, %v1071
        %v1082 = vpack.c.bf16 %v1077, %v1073
        %v1083 = vld [vmem:[%s270 + $0x200] sm:$0xff]
        %v1084 = vld [vmem:[%s270 + $0x208] sm:$0xff]
        %v1085 = vld [vmem:[%s270 + $0x210] sm:$0xff]
        %v1086 = vld [vmem:[%s270 + $0x218] sm:$0xff]
        %v1087 = vld [vmem:[%s270 + $0x220] sm:$0xff]
        %v1088 = vld [vmem:[%s270 + $0x228] sm:$0xff]
        %v1089 = vld [vmem:[%s270 + $0x230] sm:$0xff]
        %v1090 = vld [vmem:[%s270 + $0x238] sm:$0xff]
        %v1091 = vld [vmem:[%s270 + $0x240] sm:$0xff]
        %v1092 = vld [vmem:[%s270 + $0x248] sm:$0xff]
        %v1093 = vld [vmem:[%s270 + $0x250] sm:$0xff]
        %v1094 = vld [vmem:[%s270 + $0x258] sm:$0xff]
        %v1095 = vld [vmem:[%s270 + $0x260] sm:$0xff]
        %v1096 = vld [vmem:[%s270 + $0x268] sm:$0xff]
        %v1097 = vld [vmem:[%s270 + $0x270] sm:$0xff]
        %v1098 = vld [vmem:[%s270 + $0x278] sm:$0xff]
        %v1099 = vld [vmem:[%s270 + $0x280] sm:$0xff]
        %v1100 = vld [vmem:[%s270 + $0x288] sm:$0xff]
        %v1101 = vld [vmem:[%s270 + $0x290] sm:$0xff]
        %v1102 = vld [vmem:[%s270 + $0x298] sm:$0xff]
        %v1103 = vld [vmem:[%s270 + $0x2a0] sm:$0xff]
        %v1104 = vld [vmem:[%s270 + $0x2a8] sm:$0xff]
        %v1105 = vld [vmem:[%s270 + $0x2b0] sm:$0xff]
        %v1106 = vld [vmem:[%s270 + $0x2b8] sm:$0xff]
        %v1107 = vld [vmem:[%s270 + $0x2c0] sm:$0xff]
        %v1108 = vld [vmem:[%s270 + $0x2c8] sm:$0xff]
        %v1109 = vld [vmem:[%s270 + $0x2d0] sm:$0xff]
        %v1110 = vld [vmem:[%s270 + $0x2d8] sm:$0xff]
        %v1111 = vld [vmem:[%s270 + $0x2e0] sm:$0xff]
        %v1112 = vld [vmem:[%s270 + $0x2e8] sm:$0xff]
        %v1113 = vld [vmem:[%s270 + $0x2f0] sm:$0xff]
        %v1114 = vld [vmem:[%s270 + $0x2f8] sm:$0xff]
        %v1147 = vunpack.c.l.b16 %v1083
        %v1148 = vunpack.c.h.b16 %v1083
        %v1149 = vunpack.c.l.b16 %v1084
        %v1150 = vunpack.c.h.b16 %v1084
        %v1151 = vunpack.c.l.b16 %v1085
        %v1152 = vunpack.c.h.b16 %v1085
        %v1153 = vunpack.c.l.b16 %v1086
        %v1154 = vunpack.c.h.b16 %v1086
        %v1155 = vunpack.c.l.b16 %v1087
        %v1156 = vunpack.c.h.b16 %v1087
        %v1157 = vunpack.c.l.b16 %v1088
        %v1158 = vunpack.c.h.b16 %v1088
        %v1159 = vunpack.c.l.b16 %v1089
        %v1160 = vunpack.c.h.b16 %v1089
        %v1161 = vunpack.c.l.b16 %v1090
        %v1162 = vunpack.c.h.b16 %v1090
        %v1163 = vunpack.c.l.b16 %v1091
        %v1164 = vunpack.c.h.b16 %v1091
        %v1165 = vunpack.c.l.b16 %v1092
        %v1166 = vunpack.c.h.b16 %v1092
        %v1167 = vunpack.c.l.b16 %v1093
        %v1168 = vunpack.c.h.b16 %v1093
        %v1169 = vunpack.c.l.b16 %v1094
        %v1170 = vunpack.c.h.b16 %v1094
        %v1171 = vunpack.c.l.b16 %v1095
        %v1172 = vunpack.c.h.b16 %v1095
        %v1173 = vunpack.c.l.b16 %v1096
        %v1174 = vunpack.c.h.b16 %v1096
        %v1175 = vunpack.c.l.b16 %v1097
        %v1176 = vunpack.c.h.b16 %v1097
        %v1177 = vunpack.c.l.b16 %v1098
        %v1178 = vunpack.c.h.b16 %v1098
        %v1179 = vunpack.c.l.b16 %v1099
        %v1180 = vunpack.c.h.b16 %v1099
        %v1181 = vunpack.c.l.b16 %v1100
        %v1182 = vunpack.c.h.b16 %v1100
        %v1183 = vunpack.c.l.b16 %v1101
        %v1184 = vunpack.c.h.b16 %v1101
        %v1185 = vunpack.c.l.b16 %v1102
        %v1186 = vunpack.c.h.b16 %v1102
        %v1187 = vunpack.c.l.b16 %v1103
        %v1188 = vunpack.c.h.b16 %v1103
        %v1189 = vunpack.c.l.b16 %v1104
        %v1190 = vunpack.c.h.b16 %v1104
        %v1191 = vunpack.c.l.b16 %v1105
        %v1192 = vunpack.c.h.b16 %v1105
        %v1193 = vunpack.c.l.b16 %v1106
        %v1194 = vunpack.c.h.b16 %v1106
        %v1195 = vunpack.c.l.b16 %v1107
        %v1196 = vunpack.c.h.b16 %v1107
        %v1197 = vunpack.c.l.b16 %v1108
        %v1198 = vunpack.c.h.b16 %v1108
        %v1199 = vunpack.c.l.b16 %v1109
        %v1200 = vunpack.c.h.b16 %v1109
        %v1201 = vunpack.c.l.b16 %v1110
        %v1202 = vunpack.c.h.b16 %v1110
        %v1203 = vunpack.c.l.b16 %v1111
        %v1204 = vunpack.c.h.b16 %v1111
        %v1205 = vunpack.c.l.b16 %v1112
        %v1206 = vunpack.c.h.b16 %v1112
        %v1207 = vunpack.c.l.b16 %v1113
        %v1208 = vunpack.c.h.b16 %v1113
        %v1209 = vunpack.c.l.b16 %v1114
        %v1210 = vunpack.c.h.b16 %v1114
        %v1211 = vpack.c.b16 %v1149, %v1147
        %v1212 = vpack.c.b16 %v1150, %v1148
        %v1213 = vpack.c.b16 %v1153, %v1151
        %v1214 = vpack.c.b16 %v1154, %v1152
        %v1215 = vpack.c.b16 %v1157, %v1155
        %v1216 = vpack.c.b16 %v1158, %v1156
        %v1217 = vpack.c.b16 %v1161, %v1159
        %v1218 = vpack.c.b16 %v1162, %v1160
        %v1219 = vpack.c.b16 %v1165, %v1163
        %v1220 = vpack.c.b16 %v1166, %v1164
        %v1221 = vpack.c.b16 %v1169, %v1167
        %v1222 = vpack.c.b16 %v1170, %v1168
        %v1223 = vpack.c.b16 %v1173, %v1171
        %v1224 = vpack.c.b16 %v1174, %v1172
        %v1225 = vpack.c.b16 %v1177, %v1175
        %v1226 = vpack.c.b16 %v1178, %v1176
        %v1227 = vpack.c.b16 %v1181, %v1179
        %v1228 = vpack.c.b16 %v1182, %v1180
        %v1229 = vpack.c.b16 %v1185, %v1183
        %v1230 = vpack.c.b16 %v1186, %v1184
        %v1231 = vpack.c.b16 %v1189, %v1187
        %v1232 = vpack.c.b16 %v1190, %v1188
        %v1233 = vpack.c.b16 %v1193, %v1191
        %v1234 = vpack.c.b16 %v1194, %v1192
        %v1235 = vpack.c.b16 %v1197, %v1195
        %v1236 = vpack.c.b16 %v1198, %v1196
        %v1237 = vpack.c.b16 %v1201, %v1199
        %v1238 = vpack.c.b16 %v1202, %v1200
        %v1239 = vpack.c.b16 %v1205, %v1203
        %v1240 = vpack.c.b16 %v1206, %v1204
        %v1241 = vpack.c.b16 %v1209, %v1207
        %v1242 = vpack.c.b16 %v1210, %v1208
        %1275 = vmatprep.subr.bf16.mxu0 %v1226
        %1276 = vmatpush1.bf16.msra.mxu0 %v1225
        %1277 = vmatprep.subr.bf16.mxu0 %v1224
        %1278 = vmatpush1.bf16.msra.mxu0 %v1223
        %1279 = vmatprep.subr.bf16.mxu0 %v1222
        %1280 = vmatpush1.bf16.msra.mxu0 %v1221
        %1281 = vmatprep.subr.bf16.mxu0 %v1220
        %1282 = vmatpush1.bf16.msra.mxu0 %v1219
        %1283 = vmatprep.subr.bf16.mxu0 %v1218
        %1284 = vmatpush1.bf16.msra.mxu0 %v1217
        %1285 = vmatprep.subr.bf16.mxu0 %v1216
        %1286 = vmatpush1.bf16.msra.mxu0 %v1215
        %1287 = vmatprep.subr.bf16.mxu0 %v1214
        %1288 = vmatpush1.bf16.msra.mxu0 %v1213
        %1289 = vmatprep.subr.bf16.mxu0 %v1212
        %1290 = vmatpush1.bf16.msra.mxu0 %v1211
        %1291 = vmatprep.subr.bf16.mxu0 %v1242
        %1292 = vmatpush2.bf16.msra.mxu0 %v1241
        %1293 = vmatprep.subr.bf16.mxu0 %v1240
        %1294 = vmatpush2.bf16.msra.mxu0 %v1239
        %1295 = vmatprep.subr.bf16.mxu0 %v1238
        %1296 = vmatpush2.bf16.msra.mxu0 %v1237
        %1297 = vmatprep.subr.bf16.mxu0 %v1236
        %1298 = vmatpush2.bf16.msra.mxu0 %v1235
        %1299 = vmatprep.subr.bf16.mxu0 %v1234
        %1300 = vmatpush2.bf16.msra.mxu0 %v1233
        %1301 = vmatprep.subr.bf16.mxu0 %v1232
        %1302 = vmatpush2.bf16.msra.mxu0 %v1231
        %1303 = vmatprep.subr.bf16.mxu0 %v1230
        %1304 = vmatpush2.bf16.msra.mxu0 %v1229
        %1305 = vmatprep.subr.bf16.mxu0 %v1228
        %1306 = vmatpush2.bf16.msra.mxu0 %v1227
        %1307 = vmatprep.mubr.bf16.mxu0 %v1080
        %1308 = vmatmul.mubr.bf16.gmra.mxu0 %v1079
        %v1309 = vpop.f32.mrf.mxu0
        %v1310 = vadd.f32 0.0, %v1309
        %v1311 = vpop.f32.mrf.mxu0
        %v1312 = vadd.f32 0.0, %v1311
        %v1313 = vpop.f32.mrf.mxu0
        %v1314 = vadd.f32 0.0, %v1313
        %v1315 = vpop.f32.mrf.mxu0
        %v1316 = vadd.f32 0.0, %v1315
        %1317 = vmatprep.mubr.bf16.mxu0 %v1082
        %1318 = vmatmul.mubr.bf16.gmra.mxu0 %v1081
        %v1319 = vpop.f32.mrf.mxu0
        %v1320 = vadd.f32 0.0, %v1319
        %v1321 = vpop.f32.mrf.mxu0
        %v1322 = vadd.f32 0.0, %v1321
        %v1323 = vpop.f32.mrf.mxu0
        %v1324 = vadd.f32 0.0, %v1323
        %v1325 = vpop.f32.mrf.mxu0
        %v1326 = vadd.f32 0.0, %v1325
        %1327 = vdwg.mxu0
        %v1328 = vadd.f32 %v987, %v1310
        %v1329 = vadd.f32 %v989, %v1312
        %v1330 = vadd.f32 %v991, %v1314
        %v1331 = vadd.f32 %v993, %v1316
        %v1332 = vadd.f32 %v997, %v1320
        %v1333 = vadd.f32 %v999, %v1322
        %v1334 = vadd.f32 %v1001, %v1324
        %v1335 = vadd.f32 %v1003, %v1326
        %s1336 = scalar_lea.vmem %s3, 48
        %v1337 = vld [vmem:[%s1336] sm:$0xf]
        %v1338 = vld [vmem:[%s1336 + $0x4] sm:$0xf]
        %v1339 = vld [vmem:[%s1336 + $0x8] sm:$0xf]
        %v1340 = vld [vmem:[%s1336 + $0xc] sm:$0xf]
        %v1345 = vunpack.c.l.b16 %v1337
        %v1346 = vunpack.c.l.b16 %v1338
        %v1347 = vunpack.c.l.b16 %v1339
        %v1348 = vunpack.c.l.b16 %v1340
        %v1349 = vpack.c.b16 %v1346, %v1345
        %v1350 = vpack.c.b16 %v1348, %v1347
        %v1352 = vsel %vm373, %v1349, 0
        %v1355 = vsel %vm373, %v1350, 0
        %1357 = vmatprep.subr.bf16.mxu0 0
        %1358 = vmatpush1.bf16.msra.mxu0 0
        %1359 = vmatprep.subr.bf16.mxu0 0
        %1360 = vmatpush1.bf16.msra.mxu0 0
        %1361 = vmatprep.subr.bf16.mxu0 0
        %1362 = vmatpush1.bf16.msra.mxu0 0
        %1363 = vmatprep.subr.bf16.mxu0 0
        %1364 = vmatpush1.bf16.msra.mxu0 0
        %1365 = vmatprep.subr.bf16.mxu0 0
        %1366 = vmatpush1.bf16.msra.mxu0 0
        %1367 = vmatprep.subr.bf16.mxu0 0
        %1368 = vmatpush1.bf16.msra.mxu0 0
        %1369 = vmatprep.subr.bf16.mxu0 %v368
        %1370 = vmatpush1.bf16.msra.mxu0 %v367
        %1371 = vmatprep.subr.bf16.mxu0 %v366
        %1372 = vmatpush1.bf16.msra.mxu0 %v365
        %1373 = vmatprep.subr.bf16.mxu0 0
        %1374 = vmatpush2.bf16.msra.mxu0 0
        %1375 = vmatprep.subr.bf16.mxu0 0
        %1376 = vmatpush2.bf16.msra.mxu0 0
        %1377 = vmatprep.subr.bf16.mxu0 0
        %1378 = vmatpush2.bf16.msra.mxu0 0
        %1379 = vmatprep.subr.bf16.mxu0 0
        %1380 = vmatpush2.bf16.msra.mxu0 0
        %1381 = vmatprep.subr.bf16.mxu0 0
        %1382 = vmatpush2.bf16.msra.mxu0 0
        %1383 = vmatprep.subr.bf16.mxu0 0
        %1384 = vmatpush2.bf16.msra.mxu0 0
        %1385 = vmatprep.subr.bf16.mxu0 0
        %1386 = vmatpush2.bf16.msra.mxu0 0
        %1387 = vmatprep.subr.bf16.mxu0 0
        %1388 = vmatpush2.bf16.msra.mxu0 0
        %1389 = vmatprep.mubr.bf16.mxu0 0
        %1390 = vmatmul.mubr.bf16.gmra.mxu0 %v1352
        %v1391 = vpop.f32.mrf.mxu0
        %v1392 = vadd.f32 0.0, %v1391
        %v1393 = vpop.f32.mrf.mxu0
        %v1394 = vadd.f32 0.0, %v1393
        %v1395 = vpop.f32.mrf.mxu0
        %v1396 = vadd.f32 0.0, %v1395
        %v1397 = vpop.f32.mrf.mxu0
        %v1398 = vadd.f32 0.0, %v1397
        %1399 = vmatprep.mubr.bf16.mxu0 0
        %1400 = vmatmul.mubr.bf16.gmra.mxu0 %v1355
        %v1401 = vpop.f32.mrf.mxu0
        %v1402 = vadd.f32 0.0, %v1401
        %v1403 = vpop.f32.mrf.mxu0
        %v1404 = vadd.f32 0.0, %v1403
        %v1405 = vpop.f32.mrf.mxu0
        %v1406 = vadd.f32 0.0, %v1405
        %v1407 = vpop.f32.mrf.mxu0
        %v1408 = vadd.f32 0.0, %v1407
        %1409 = vdwg.mxu0
        %v1410 = vpack.c.bf16 %v1396, %v1392
        %v1411 = vpack.c.bf16 %v1398, %v1394
        %v1412 = vpack.c.bf16 %v1406, %v1402
        %v1413 = vpack.c.bf16 %v1408, %v1404
        %v1414 = vld [vmem:[%s270 + $0x300] sm:$0xff]
        %v1415 = vld [vmem:[%s270 + $0x308] sm:$0xff]
        %v1416 = vld [vmem:[%s270 + $0x310] sm:$0xff]
        %v1417 = vld [vmem:[%s270 + $0x318] sm:$0xff]
        %v1418 = vld [vmem:[%s270 + $0x320] sm:$0xff]
        %v1419 = vld [vmem:[%s270 + $0x328] sm:$0xff]
        %v1420 = vld [vmem:[%s270 + $0x330] sm:$0xff]
        %v1421 = vld [vmem:[%s270 + $0x338] sm:$0xff]
        %v1422 = vld [vmem:[%s270 + $0x340] sm:$0xff]
        %v1423 = vld [vmem:[%s270 + $0x348] sm:$0xff]
        %v1424 = vld [vmem:[%s270 + $0x350] sm:$0xff]
        %v1425 = vld [vmem:[%s270 + $0x358] sm:$0xff]
        %v1426 = vld [vmem:[%s270 + $0x360] sm:$0xff]
        %v1427 = vld [vmem:[%s270 + $0x368] sm:$0xff]
        %v1428 = vld [vmem:[%s270 + $0x370] sm:$0xff]
        %v1429 = vld [vmem:[%s270 + $0x378] sm:$0xff]
        %v1430 = vld [vmem:[%s270 + $0x380] sm:$0xff]
        %v1431 = vld [vmem:[%s270 + $0x388] sm:$0xff]
        %v1432 = vld [vmem:[%s270 + $0x390] sm:$0xff]
        %v1433 = vld [vmem:[%s270 + $0x398] sm:$0xff]
        %v1434 = vld [vmem:[%s270 + $0x3a0] sm:$0xff]
        %v1435 = vld [vmem:[%s270 + $0x3a8] sm:$0xff]
        %v1436 = vld [vmem:[%s270 + $0x3b0] sm:$0xff]
        %v1437 = vld [vmem:[%s270 + $0x3b8] sm:$0xff]
        %v1438 = vld [vmem:[%s270 + $0x3c0] sm:$0xff]
        %v1439 = vld [vmem:[%s270 + $0x3c8] sm:$0xff]
        %v1440 = vld [vmem:[%s270 + $0x3d0] sm:$0xff]
        %v1441 = vld [vmem:[%s270 + $0x3d8] sm:$0xff]
        %v1442 = vld [vmem:[%s270 + $0x3e0] sm:$0xff]
        %v1443 = vld [vmem:[%s270 + $0x3e8] sm:$0xff]
        %v1444 = vld [vmem:[%s270 + $0x3f0] sm:$0xff]
        %v1445 = vld [vmem:[%s270 + $0x3f8] sm:$0xff]
        %v1478 = vunpack.c.l.b16 %v1414
        %v1479 = vunpack.c.h.b16 %v1414
        %v1480 = vunpack.c.l.b16 %v1415
        %v1481 = vunpack.c.h.b16 %v1415
        %v1482 = vunpack.c.l.b16 %v1416
        %v1483 = vunpack.c.h.b16 %v1416
        %v1484 = vunpack.c.l.b16 %v1417
        %v1485 = vunpack.c.h.b16 %v1417
        %v1486 = vunpack.c.l.b16 %v1418
        %v1487 = vunpack.c.h.b16 %v1418
        %v1488 = vunpack.c.l.b16 %v1419
        %v1489 = vunpack.c.h.b16 %v1419
        %v1490 = vunpack.c.l.b16 %v1420
        %v1491 = vunpack.c.h.b16 %v1420
        %v1492 = vunpack.c.l.b16 %v1421
        %v1493 = vunpack.c.h.b16 %v1421
        %v1494 = vunpack.c.l.b16 %v1422
        %v1495 = vunpack.c.h.b16 %v1422
        %v1496 = vunpack.c.l.b16 %v1423
        %v1497 = vunpack.c.h.b16 %v1423
        %v1498 = vunpack.c.l.b16 %v1424
        %v1499 = vunpack.c.h.b16 %v1424
        %v1500 = vunpack.c.l.b16 %v1425
        %v1501 = vunpack.c.h.b16 %v1425
        %v1502 = vunpack.c.l.b16 %v1426
        %v1503 = vunpack.c.h.b16 %v1426
        %v1504 = vunpack.c.l.b16 %v1427
        %v1505 = vunpack.c.h.b16 %v1427
        %v1506 = vunpack.c.l.b16 %v1428
        %v1507 = vunpack.c.h.b16 %v1428
        %v1508 = vunpack.c.l.b16 %v1429
        %v1509 = vunpack.c.h.b16 %v1429
        %v1510 = vunpack.c.l.b16 %v1430
        %v1511 = vunpack.c.h.b16 %v1430
        %v1512 = vunpack.c.l.b16 %v1431
        %v1513 = vunpack.c.h.b16 %v1431
        %v1514 = vunpack.c.l.b16 %v1432
        %v1515 = vunpack.c.h.b16 %v1432
        %v1516 = vunpack.c.l.b16 %v1433
        %v1517 = vunpack.c.h.b16 %v1433
        %v1518 = vunpack.c.l.b16 %v1434
        %v1519 = vunpack.c.h.b16 %v1434
        %v1520 = vunpack.c.l.b16 %v1435
        %v1521 = vunpack.c.h.b16 %v1435
        %v1522 = vunpack.c.l.b16 %v1436
        %v1523 = vunpack.c.h.b16 %v1436
        %v1524 = vunpack.c.l.b16 %v1437
        %v1525 = vunpack.c.h.b16 %v1437
        %v1526 = vunpack.c.l.b16 %v1438
        %v1527 = vunpack.c.h.b16 %v1438
        %v1528 = vunpack.c.l.b16 %v1439
        %v1529 = vunpack.c.h.b16 %v1439
        %v1530 = vunpack.c.l.b16 %v1440
        %v1531 = vunpack.c.h.b16 %v1440
        %v1532 = vunpack.c.l.b16 %v1441
        %v1533 = vunpack.c.h.b16 %v1441
        %v1534 = vunpack.c.l.b16 %v1442
        %v1535 = vunpack.c.h.b16 %v1442
        %v1536 = vunpack.c.l.b16 %v1443
        %v1537 = vunpack.c.h.b16 %v1443
        %v1538 = vunpack.c.l.b16 %v1444
        %v1539 = vunpack.c.h.b16 %v1444
        %v1540 = vunpack.c.l.b16 %v1445
        %v1541 = vunpack.c.h.b16 %v1445
        %v1542 = vpack.c.b16 %v1480, %v1478
        %v1543 = vpack.c.b16 %v1481, %v1479
        %v1544 = vpack.c.b16 %v1484, %v1482
        %v1545 = vpack.c.b16 %v1485, %v1483
        %v1546 = vpack.c.b16 %v1488, %v1486
        %v1547 = vpack.c.b16 %v1489, %v1487
        %v1548 = vpack.c.b16 %v1492, %v1490
        %v1549 = vpack.c.b16 %v1493, %v1491
        %v1550 = vpack.c.b16 %v1496, %v1494
        %v1551 = vpack.c.b16 %v1497, %v1495
        %v1552 = vpack.c.b16 %v1500, %v1498
        %v1553 = vpack.c.b16 %v1501, %v1499
        %v1554 = vpack.c.b16 %v1504, %v1502
        %v1555 = vpack.c.b16 %v1505, %v1503
        %v1556 = vpack.c.b16 %v1508, %v1506
        %v1557 = vpack.c.b16 %v1509, %v1507
        %v1558 = vpack.c.b16 %v1512, %v1510
        %v1559 = vpack.c.b16 %v1513, %v1511
        %v1560 = vpack.c.b16 %v1516, %v1514
        %v1561 = vpack.c.b16 %v1517, %v1515
        %v1562 = vpack.c.b16 %v1520, %v1518
        %v1563 = vpack.c.b16 %v1521, %v1519
        %v1564 = vpack.c.b16 %v1524, %v1522
        %v1565 = vpack.c.b16 %v1525, %v1523
        %v1566 = vpack.c.b16 %v1528, %v1526
        %v1567 = vpack.c.b16 %v1529, %v1527
        %v1568 = vpack.c.b16 %v1532, %v1530
        %v1569 = vpack.c.b16 %v1533, %v1531
        %v1570 = vpack.c.b16 %v1536, %v1534
        %v1571 = vpack.c.b16 %v1537, %v1535
        %v1572 = vpack.c.b16 %v1540, %v1538
        %v1573 = vpack.c.b16 %v1541, %v1539
        %1606 = vmatprep.subr.bf16.mxu0 %v1557
        %1607 = vmatpush1.bf16.msra.mxu0 %v1556
        %1608 = vmatprep.subr.bf16.mxu0 %v1555
        %1609 = vmatpush1.bf16.msra.mxu0 %v1554
        %1610 = vmatprep.subr.bf16.mxu0 %v1553
        %1611 = vmatpush1.bf16.msra.mxu0 %v1552
        %1612 = vmatprep.subr.bf16.mxu0 %v1551
        %1613 = vmatpush1.bf16.msra.mxu0 %v1550
        %1614 = vmatprep.subr.bf16.mxu0 %v1549
        %1615 = vmatpush1.bf16.msra.mxu0 %v1548
        %1616 = vmatprep.subr.bf16.mxu0 %v1547
        %1617 = vmatpush1.bf16.msra.mxu0 %v1546
        %1618 = vmatprep.subr.bf16.mxu0 %v1545
        %1619 = vmatpush1.bf16.msra.mxu0 %v1544
        %1620 = vmatprep.subr.bf16.mxu0 %v1543
        %1621 = vmatpush1.bf16.msra.mxu0 %v1542
        %1622 = vmatprep.subr.bf16.mxu0 %v1573
        %1623 = vmatpush2.bf16.msra.mxu0 %v1572
        %1624 = vmatprep.subr.bf16.mxu0 %v1571
        %1625 = vmatpush2.bf16.msra.mxu0 %v1570
        %1626 = vmatprep.subr.bf16.mxu0 %v1569
        %1627 = vmatpush2.bf16.msra.mxu0 %v1568
        %1628 = vmatprep.subr.bf16.mxu0 %v1567
        %1629 = vmatpush2.bf16.msra.mxu0 %v1566
        %1630 = vmatprep.subr.bf16.mxu0 %v1565
        %1631 = vmatpush2.bf16.msra.mxu0 %v1564
        %1632 = vmatprep.subr.bf16.mxu0 %v1563
        %1633 = vmatpush2.bf16.msra.mxu0 %v1562
        %1634 = vmatprep.subr.bf16.mxu0 %v1561
        %1635 = vmatpush2.bf16.msra.mxu0 %v1560
        %1636 = vmatprep.subr.bf16.mxu0 %v1559
        %1637 = vmatpush2.bf16.msra.mxu0 %v1558
        %1638 = vmatprep.mubr.bf16.mxu0 %v1411
        %1639 = vmatmul.mubr.bf16.gmra.mxu0 %v1410
        %v1640 = vpop.f32.mrf.mxu0
        %v1641 = vadd.f32 0.0, %v1640
        %v1642 = vpop.f32.mrf.mxu0
        %v1643 = vadd.f32 0.0, %v1642
        %v1644 = vpop.f32.mrf.mxu0
        %v1645 = vadd.f32 0.0, %v1644
        %v1646 = vpop.f32.mrf.mxu0
        %v1647 = vadd.f32 0.0, %v1646
        %1648 = vmatprep.mubr.bf16.mxu0 %v1413
        %1649 = vmatmul.mubr.bf16.gmra.mxu0 %v1412
        %v1650 = vpop.f32.mrf.mxu0
        %v1651 = vadd.f32 0.0, %v1650
        %v1652 = vpop.f32.mrf.mxu0
        %v1653 = vadd.f32 0.0, %v1652
        %v1654 = vpop.f32.mrf.mxu0
        %v1655 = vadd.f32 0.0, %v1654
        %v1656 = vpop.f32.mrf.mxu0
        %v1657 = vadd.f32 0.0, %v1656
        %1658 = vdwg.mxu0
        %v1659 = vadd.f32 %v1328, %v1641
        %v1660 = vadd.f32 %v1329, %v1643
        %v1661 = vadd.f32 %v1330, %v1645
        %v1662 = vadd.f32 %v1331, %v1647
        %v1663 = vadd.f32 %v1332, %v1651
        %v1664 = vadd.f32 %v1333, %v1653
        %v1665 = vadd.f32 %v1334, %v1655
        %v1666 = vadd.f32 %v1335, %v1657
        %s1667 = scalar_lea.vmem %s3, 64
        %v1668 = vld [vmem:[%s1667] sm:$0xf]
        %v1669 = vld [vmem:[%s1667 + $0x4] sm:$0xf]
        %v1670 = vld [vmem:[%s1667 + $0x8] sm:$0xf]
        %v1671 = vld [vmem:[%s1667 + $0xc] sm:$0xf]
        %v1676 = vunpack.c.l.b16 %v1668
        %v1677 = vunpack.c.l.b16 %v1669
        %v1678 = vunpack.c.l.b16 %v1670
        %v1679 = vunpack.c.l.b16 %v1671
        %v1680 = vpack.c.b16 %v1677, %v1676
        %v1681 = vpack.c.b16 %v1679, %v1678
        %v1683 = vsel %vm373, %v1680, 0
        %v1686 = vsel %vm373, %v1681, 0
        %1688 = vmatprep.subr.bf16.mxu0 0
        %1689 = vmatpush1.bf16.msra.mxu0 0
        %1690 = vmatprep.subr.bf16.mxu0 0
        %1691 = vmatpush1.bf16.msra.mxu0 0
        %1692 = vmatprep.subr.bf16.mxu0 0
        %1693 = vmatpush1.bf16.msra.mxu0 0
        %1694 = vmatprep.subr.bf16.mxu0 0
        %1695 = vmatpush1.bf16.msra.mxu0 0
        %1696 = vmatprep.subr.bf16.mxu0 0
        %1697 = vmatpush1.bf16.msra.mxu0 0
        %1698 = vmatprep.subr.bf16.mxu0 0
        %1699 = vmatpush1.bf16.msra.mxu0 0
        %1700 = vmatprep.subr.bf16.mxu0 %v368
        %1701 = vmatpush1.bf16.msra.mxu0 %v367
        %1702 = vmatprep.subr.bf16.mxu0 %v366
        %1703 = vmatpush1.bf16.msra.mxu0 %v365
        %1704 = vmatprep.subr.bf16.mxu0 0
        %1705 = vmatpush2.bf16.msra.mxu0 0
        %1706 = vmatprep.subr.bf16.mxu0 0
        %1707 = vmatpush2.bf16.msra.mxu0 0
        %1708 = vmatprep.subr.bf16.mxu0 0
        %1709 = vmatpush2.bf16.msra.mxu0 0
        %1710 = vmatprep.subr.bf16.mxu0 0
        %1711 = vmatpush2.bf16.msra.mxu0 0
        %1712 = vmatprep.subr.bf16.mxu0 0
        %1713 = vmatpush2.bf16.msra.mxu0 0
        %1714 = vmatprep.subr.bf16.mxu0 0
        %1715 = vmatpush2.bf16.msra.mxu0 0
        %1716 = vmatprep.subr.bf16.mxu0 0
        %1717 = vmatpush2.bf16.msra.mxu0 0
        %1718 = vmatprep.subr.bf16.mxu0 0
        %1719 = vmatpush2.bf16.msra.mxu0 0
        %1720 = vmatprep.mubr.bf16.mxu0 0
        %1721 = vmatmul.mubr.bf16.gmra.mxu0 %v1683
        %v1722 = vpop.f32.mrf.mxu0
        %v1723 = vadd.f32 0.0, %v1722
        %v1724 = vpop.f32.mrf.mxu0
        %v1725 = vadd.f32 0.0, %v1724
        %v1726 = vpop.f32.mrf.mxu0
        %v1727 = vadd.f32 0.0, %v1726
        %v1728 = vpop.f32.mrf.mxu0
        %v1729 = vadd.f32 0.0, %v1728
        %1730 = vmatprep.mubr.bf16.mxu0 0
        %1731 = vmatmul.mubr.bf16.gmra.mxu0 %v1686
        %v1732 = vpop.f32.mrf.mxu0
        %v1733 = vadd.f32 0.0, %v1732
        %v1734 = vpop.f32.mrf.mxu0
        %v1735 = vadd.f32 0.0, %v1734
        %v1736 = vpop.f32.mrf.mxu0
        %v1737 = vadd.f32 0.0, %v1736
        %v1738 = vpop.f32.mrf.mxu0
        %v1739 = vadd.f32 0.0, %v1738
        %1740 = vdwg.mxu0
        %v1741 = vpack.c.bf16 %v1727, %v1723
        %v1742 = vpack.c.bf16 %v1729, %v1725
        %v1743 = vpack.c.bf16 %v1737, %v1733
        %v1744 = vpack.c.bf16 %v1739, %v1735
        %v1745 = vld [vmem:[%s270 + $0x400] sm:$0xff]
        %v1746 = vld [vmem:[%s270 + $0x408] sm:$0xff]
        %v1747 = vld [vmem:[%s270 + $0x410] sm:$0xff]
        %v1748 = vld [vmem:[%s270 + $0x418] sm:$0xff]
        %v1749 = vld [vmem:[%s270 + $0x420] sm:$0xff]
        %v1750 = vld [vmem:[%s270 + $0x428] sm:$0xff]
        %v1751 = vld [vmem:[%s270 + $0x430] sm:$0xff]
        %v1752 = vld [vmem:[%s270 + $0x438] sm:$0xff]
        %v1753 = vld [vmem:[%s270 + $0x440] sm:$0xff]
        %v1754 = vld [vmem:[%s270 + $0x448] sm:$0xff]
        %v1755 = vld [vmem:[%s270 + $0x450] sm:$0xff]
        %v1756 = vld [vmem:[%s270 + $0x458] sm:$0xff]
        %v1757 = vld [vmem:[%s270 + $0x460] sm:$0xff]
        %v1758 = vld [vmem:[%s270 + $0x468] sm:$0xff]
        %v1759 = vld [vmem:[%s270 + $0x470] sm:$0xff]
        %v1760 = vld [vmem:[%s270 + $0x478] sm:$0xff]
        %v1761 = vld [vmem:[%s270 + $0x480] sm:$0xff]
        %v1762 = vld [vmem:[%s270 + $0x488] sm:$0xff]
        %v1763 = vld [vmem:[%s270 + $0x490] sm:$0xff]
        %v1764 = vld [vmem:[%s270 + $0x498] sm:$0xff]
        %v1765 = vld [vmem:[%s270 + $0x4a0] sm:$0xff]
        %v1766 = vld [vmem:[%s270 + $0x4a8] sm:$0xff]
        %v1767 = vld [vmem:[%s270 + $0x4b0] sm:$0xff]
        %v1768 = vld [vmem:[%s270 + $0x4b8] sm:$0xff]
        %v1769 = vld [vmem:[%s270 + $0x4c0] sm:$0xff]
        %v1770 = vld [vmem:[%s270 + $0x4c8] sm:$0xff]
        %v1771 = vld [vmem:[%s270 + $0x4d0] sm:$0xff]
        %v1772 = vld [vmem:[%s270 + $0x4d8] sm:$0xff]
        %v1773 = vld [vmem:[%s270 + $0x4e0] sm:$0xff]
        %v1774 = vld [vmem:[%s270 + $0x4e8] sm:$0xff]
        %v1775 = vld [vmem:[%s270 + $0x4f0] sm:$0xff]
        %v1776 = vld [vmem:[%s270 + $0x4f8] sm:$0xff]
        %v1809 = vunpack.c.l.b16 %v1745
        %v1810 = vunpack.c.h.b16 %v1745
        %v1811 = vunpack.c.l.b16 %v1746
        %v1812 = vunpack.c.h.b16 %v1746
        %v1813 = vunpack.c.l.b16 %v1747
        %v1814 = vunpack.c.h.b16 %v1747
        %v1815 = vunpack.c.l.b16 %v1748
        %v1816 = vunpack.c.h.b16 %v1748
        %v1817 = vunpack.c.l.b16 %v1749
        %v1818 = vunpack.c.h.b16 %v1749
        %v1819 = vunpack.c.l.b16 %v1750
        %v1820 = vunpack.c.h.b16 %v1750
        %v1821 = vunpack.c.l.b16 %v1751
        %v1822 = vunpack.c.h.b16 %v1751
        %v1823 = vunpack.c.l.b16 %v1752
        %v1824 = vunpack.c.h.b16 %v1752
        %v1825 = vunpack.c.l.b16 %v1753
        %v1826 = vunpack.c.h.b16 %v1753
        %v1827 = vunpack.c.l.b16 %v1754
        %v1828 = vunpack.c.h.b16 %v1754
        %v1829 = vunpack.c.l.b16 %v1755
        %v1830 = vunpack.c.h.b16 %v1755
        %v1831 = vunpack.c.l.b16 %v1756
        %v1832 = vunpack.c.h.b16 %v1756
        %v1833 = vunpack.c.l.b16 %v1757
        %v1834 = vunpack.c.h.b16 %v1757
        %v1835 = vunpack.c.l.b16 %v1758
        %v1836 = vunpack.c.h.b16 %v1758
        %v1837 = vunpack.c.l.b16 %v1759
        %v1838 = vunpack.c.h.b16 %v1759
        %v1839 = vunpack.c.l.b16 %v1760
        %v1840 = vunpack.c.h.b16 %v1760
        %v1841 = vunpack.c.l.b16 %v1761
        %v1842 = vunpack.c.h.b16 %v1761
        %v1843 = vunpack.c.l.b16 %v1762
        %v1844 = vunpack.c.h.b16 %v1762
        %v1845 = vunpack.c.l.b16 %v1763
        %v1846 = vunpack.c.h.b16 %v1763
        %v1847 = vunpack.c.l.b16 %v1764
        %v1848 = vunpack.c.h.b16 %v1764
        %v1849 = vunpack.c.l.b16 %v1765
        %v1850 = vunpack.c.h.b16 %v1765
        %v1851 = vunpack.c.l.b16 %v1766
        %v1852 = vunpack.c.h.b16 %v1766
        %v1853 = vunpack.c.l.b16 %v1767
        %v1854 = vunpack.c.h.b16 %v1767
        %v1855 = vunpack.c.l.b16 %v1768
        %v1856 = vunpack.c.h.b16 %v1768
        %v1857 = vunpack.c.l.b16 %v1769
        %v1858 = vunpack.c.h.b16 %v1769
        %v1859 = vunpack.c.l.b16 %v1770
        %v1860 = vunpack.c.h.b16 %v1770
        %v1861 = vunpack.c.l.b16 %v1771
        %v1862 = vunpack.c.h.b16 %v1771
        %v1863 = vunpack.c.l.b16 %v1772
        %v1864 = vunpack.c.h.b16 %v1772
        %v1865 = vunpack.c.l.b16 %v1773
        %v1866 = vunpack.c.h.b16 %v1773
        %v1867 = vunpack.c.l.b16 %v1774
        %v1868 = vunpack.c.h.b16 %v1774
        %v1869 = vunpack.c.l.b16 %v1775
        %v1870 = vunpack.c.h.b16 %v1775
        %v1871 = vunpack.c.l.b16 %v1776
        %v1872 = vunpack.c.h.b16 %v1776
        %v1873 = vpack.c.b16 %v1811, %v1809
        %v1874 = vpack.c.b16 %v1812, %v1810
        %v1875 = vpack.c.b16 %v1815, %v1813
        %v1876 = vpack.c.b16 %v1816, %v1814
        %v1877 = vpack.c.b16 %v1819, %v1817
        %v1878 = vpack.c.b16 %v1820, %v1818
        %v1879 = vpack.c.b16 %v1823, %v1821
        %v1880 = vpack.c.b16 %v1824, %v1822
        %v1881 = vpack.c.b16 %v1827, %v1825
        %v1882 = vpack.c.b16 %v1828, %v1826
        %v1883 = vpack.c.b16 %v1831, %v1829
        %v1884 = vpack.c.b16 %v1832, %v1830
        %v1885 = vpack.c.b16 %v1835, %v1833
        %v1886 = vpack.c.b16 %v1836, %v1834
        %v1887 = vpack.c.b16 %v1839, %v1837
        %v1888 = vpack.c.b16 %v1840, %v1838
        %v1889 = vpack.c.b16 %v1843, %v1841
        %v1890 = vpack.c.b16 %v1844, %v1842
        %v1891 = vpack.c.b16 %v1847, %v1845
        %v1892 = vpack.c.b16 %v1848, %v1846
        %v1893 = vpack.c.b16 %v1851, %v1849
        %v1894 = vpack.c.b16 %v1852, %v1850
        %v1895 = vpack.c.b16 %v1855, %v1853
        %v1896 = vpack.c.b16 %v1856, %v1854
        %v1897 = vpack.c.b16 %v1859, %v1857
        %v1898 = vpack.c.b16 %v1860, %v1858
        %v1899 = vpack.c.b16 %v1863, %v1861
        %v1900 = vpack.c.b16 %v1864, %v1862
        %v1901 = vpack.c.b16 %v1867, %v1865
        %v1902 = vpack.c.b16 %v1868, %v1866
        %v1903 = vpack.c.b16 %v1871, %v1869
        %v1904 = vpack.c.b16 %v1872, %v1870
        %1937 = vmatprep.subr.bf16.mxu0 %v1888
        %1938 = vmatpush1.bf16.msra.mxu0 %v1887
        %1939 = vmatprep.subr.bf16.mxu0 %v1886
        %1940 = vmatpush1.bf16.msra.mxu0 %v1885
        %1941 = vmatprep.subr.bf16.mxu0 %v1884
        %1942 = vmatpush1.bf16.msra.mxu0 %v1883
        %1943 = vmatprep.subr.bf16.mxu0 %v1882
        %1944 = vmatpush1.bf16.msra.mxu0 %v1881
        %1945 = vmatprep.subr.bf16.mxu0 %v1880
        %1946 = vmatpush1.bf16.msra.mxu0 %v1879
        %1947 = vmatprep.subr.bf16.mxu0 %v1878
        %1948 = vmatpush1.bf16.msra.mxu0 %v1877
        %1949 = vmatprep.subr.bf16.mxu0 %v1876
        %1950 = vmatpush1.bf16.msra.mxu0 %v1875
        %1951 = vmatprep.subr.bf16.mxu0 %v1874
        %1952 = vmatpush1.bf16.msra.mxu0 %v1873
        %1953 = vmatprep.subr.bf16.mxu0 %v1904
        %1954 = vmatpush2.bf16.msra.mxu0 %v1903
        %1955 = vmatprep.subr.bf16.mxu0 %v1902
        %1956 = vmatpush2.bf16.msra.mxu0 %v1901
        %1957 = vmatprep.subr.bf16.mxu0 %v1900
        %1958 = vmatpush2.bf16.msra.mxu0 %v1899
        %1959 = vmatprep.subr.bf16.mxu0 %v1898
        %1960 = vmatpush2.bf16.msra.mxu0 %v1897
        %1961 = vmatprep.subr.bf16.mxu0 %v1896
        %1962 = vmatpush2.bf16.msra.mxu0 %v1895
        %1963 = vmatprep.subr.bf16.mxu0 %v1894
        %1964 = vmatpush2.bf16.msra.mxu0 %v1893
        %1965 = vmatprep.subr.bf16.mxu0 %v1892
        %1966 = vmatpush2.bf16.msra.mxu0 %v1891
        %1967 = vmatprep.subr.bf16.mxu0 %v1890
        %1968 = vmatpush2.bf16.msra.mxu0 %v1889
        %1969 = vmatprep.mubr.bf16.mxu0 %v1742
        %1970 = vmatmul.mubr.bf16.gmra.mxu0 %v1741
        %v1971 = vpop.f32.mrf.mxu0
        %v1972 = vadd.f32 0.0, %v1971
        %v1973 = vpop.f32.mrf.mxu0
        %v1974 = vadd.f32 0.0, %v1973
        %v1975 = vpop.f32.mrf.mxu0
        %v1976 = vadd.f32 0.0, %v1975
        %v1977 = vpop.f32.mrf.mxu0
        %v1978 = vadd.f32 0.0, %v1977
        %1979 = vmatprep.mubr.bf16.mxu0 %v1744
        %1980 = vmatmul.mubr.bf16.gmra.mxu0 %v1743
        %v1981 = vpop.f32.mrf.mxu0
        %v1982 = vadd.f32 0.0, %v1981
        %v1983 = vpop.f32.mrf.mxu0
        %v1984 = vadd.f32 0.0, %v1983
        %v1985 = vpop.f32.mrf.mxu0
        %v1986 = vadd.f32 0.0, %v1985
        %v1987 = vpop.f32.mrf.mxu0
        %v1988 = vadd.f32 0.0, %v1987
        %1989 = vdwg.mxu0
        %v1990 = vadd.f32 %v1659, %v1972
        %v1991 = vadd.f32 %v1660, %v1974
        %v1992 = vadd.f32 %v1661, %v1976
        %v1993 = vadd.f32 %v1662, %v1978
        %v1994 = vadd.f32 %v1663, %v1982
        %v1995 = vadd.f32 %v1664, %v1984
        %v1996 = vadd.f32 %v1665, %v1986
        %v1997 = vadd.f32 %v1666, %v1988
        %s1998 = scalar_lea.vmem %s3, 80
        %v1999 = vld [vmem:[%s1998] sm:$0xf]
        %v2000 = vld [vmem:[%s1998 + $0x4] sm:$0xf]
        %v2001 = vld [vmem:[%s1998 + $0x8] sm:$0xf]
        %v2002 = vld [vmem:[%s1998 + $0xc] sm:$0xf]
        %v2007 = vunpack.c.l.b16 %v1999
        %v2008 = vunpack.c.l.b16 %v2000
        %v2009 = vunpack.c.l.b16 %v2001
        %v2010 = vunpack.c.l.b16 %v2002
        %v2011 = vpack.c.b16 %v2008, %v2007
        %v2012 = vpack.c.b16 %v2010, %v2009
        %v2014 = vsel %vm373, %v2011, 0
        %v2017 = vsel %vm373, %v2012, 0
        %2019 = vmatprep.subr.bf16.mxu0 0
        %2020 = vmatpush1.bf16.msra.mxu0 0
        %2021 = vmatprep.subr.bf16.mxu0 0
        %2022 = vmatpush1.bf16.msra.mxu0 0
        %2023 = vmatprep.subr.bf16.mxu0 0
        %2024 = vmatpush1.bf16.msra.mxu0 0
        %2025 = vmatprep.subr.bf16.mxu0 0
        %2026 = vmatpush1.bf16.msra.mxu0 0
        %2027 = vmatprep.subr.bf16.mxu0 0
        %2028 = vmatpush1.bf16.msra.mxu0 0
        %2029 = vmatprep.subr.bf16.mxu0 0
        %2030 = vmatpush1.bf16.msra.mxu0 0
        %2031 = vmatprep.subr.bf16.mxu0 %v368
        %2032 = vmatpush1.bf16.msra.mxu0 %v367
        %2033 = vmatprep.subr.bf16.mxu0 %v366
        %2034 = vmatpush1.bf16.msra.mxu0 %v365
        %2035 = vmatprep.subr.bf16.mxu0 0
        %2036 = vmatpush2.bf16.msra.mxu0 0
        %2037 = vmatprep.subr.bf16.mxu0 0
        %2038 = vmatpush2.bf16.msra.mxu0 0
        %2039 = vmatprep.subr.bf16.mxu0 0
        %2040 = vmatpush2.bf16.msra.mxu0 0
        %2041 = vmatprep.subr.bf16.mxu0 0
        %2042 = vmatpush2.bf16.msra.mxu0 0
        %2043 = vmatprep.subr.bf16.mxu0 0
        %2044 = vmatpush2.bf16.msra.mxu0 0
        %2045 = vmatprep.subr.bf16.mxu0 0
        %2046 = vmatpush2.bf16.msra.mxu0 0
        %2047 = vmatprep.subr.bf16.mxu0 0
        %2048 = vmatpush2.bf16.msra.mxu0 0
        %2049 = vmatprep.subr.bf16.mxu0 0
        %2050 = vmatpush2.bf16.msra.mxu0 0
        %2051 = vmatprep.mubr.bf16.mxu0 0
        %2052 = vmatmul.mubr.bf16.gmra.mxu0 %v2014
        %v2053 = vpop.f32.mrf.mxu0
        %v2054 = vadd.f32 0.0, %v2053
        %v2055 = vpop.f32.mrf.mxu0
        %v2056 = vadd.f32 0.0, %v2055
        %v2057 = vpop.f32.mrf.mxu0
        %v2058 = vadd.f32 0.0, %v2057
        %v2059 = vpop.f32.mrf.mxu0
        %v2060 = vadd.f32 0.0, %v2059
        %2061 = vmatprep.mubr.bf16.mxu0 0
        %2062 = vmatmul.mubr.bf16.gmra.mxu0 %v2017
        %v2063 = vpop.f32.mrf.mxu0
        %v2064 = vadd.f32 0.0, %v2063
        %v2065 = vpop.f32.mrf.mxu0
        %v2066 = vadd.f32 0.0, %v2065
        %v2067 = vpop.f32.mrf.mxu0
        %v2068 = vadd.f32 0.0, %v2067
        %v2069 = vpop.f32.mrf.mxu0
        %v2070 = vadd.f32 0.0, %v2069
        %2071 = vdwg.mxu0
        %v2072 = vpack.c.bf16 %v2058, %v2054
        %v2073 = vpack.c.bf16 %v2060, %v2056
        %v2074 = vpack.c.bf16 %v2068, %v2064
        %v2075 = vpack.c.bf16 %v2070, %v2066
        %v2076 = vld [vmem:[%s270 + $0x500] sm:$0xff]
        %v2077 = vld [vmem:[%s270 + $0x508] sm:$0xff]
        %v2078 = vld [vmem:[%s270 + $0x510] sm:$0xff]
        %v2079 = vld [vmem:[%s270 + $0x518] sm:$0xff]
        %v2080 = vld [vmem:[%s270 + $0x520] sm:$0xff]
        %v2081 = vld [vmem:[%s270 + $0x528] sm:$0xff]
        %v2082 = vld [vmem:[%s270 + $0x530] sm:$0xff]
        %v2083 = vld [vmem:[%s270 + $0x538] sm:$0xff]
        %v2084 = vld [vmem:[%s270 + $0x540] sm:$0xff]
        %v2085 = vld [vmem:[%s270 + $0x548] sm:$0xff]
        %v2086 = vld [vmem:[%s270 + $0x550] sm:$0xff]
        %v2087 = vld [vmem:[%s270 + $0x558] sm:$0xff]
        %v2088 = vld [vmem:[%s270 + $0x560] sm:$0xff]
        %v2089 = vld [vmem:[%s270 + $0x568] sm:$0xff]
        %v2090 = vld [vmem:[%s270 + $0x570] sm:$0xff]
        %v2091 = vld [vmem:[%s270 + $0x578] sm:$0xff]
        %v2092 = vld [vmem:[%s270 + $0x580] sm:$0xff]
        %v2093 = vld [vmem:[%s270 + $0x588] sm:$0xff]
        %v2094 = vld [vmem:[%s270 + $0x590] sm:$0xff]
        %v2095 = vld [vmem:[%s270 + $0x598] sm:$0xff]
        %v2096 = vld [vmem:[%s270 + $0x5a0] sm:$0xff]
        %v2097 = vld [vmem:[%s270 + $0x5a8] sm:$0xff]
        %v2098 = vld [vmem:[%s270 + $0x5b0] sm:$0xff]
        %v2099 = vld [vmem:[%s270 + $0x5b8] sm:$0xff]
        %v2100 = vld [vmem:[%s270 + $0x5c0] sm:$0xff]
        %v2101 = vld [vmem:[%s270 + $0x5c8] sm:$0xff]
        %v2102 = vld [vmem:[%s270 + $0x5d0] sm:$0xff]
        %v2103 = vld [vmem:[%s270 + $0x5d8] sm:$0xff]
        %v2104 = vld [vmem:[%s270 + $0x5e0] sm:$0xff]
        %v2105 = vld [vmem:[%s270 + $0x5e8] sm:$0xff]
        %v2106 = vld [vmem:[%s270 + $0x5f0] sm:$0xff]
        %v2107 = vld [vmem:[%s270 + $0x5f8] sm:$0xff]
        %v2140 = vunpack.c.l.b16 %v2076
        %v2141 = vunpack.c.h.b16 %v2076
        %v2142 = vunpack.c.l.b16 %v2077
        %v2143 = vunpack.c.h.b16 %v2077
        %v2144 = vunpack.c.l.b16 %v2078
        %v2145 = vunpack.c.h.b16 %v2078
        %v2146 = vunpack.c.l.b16 %v2079
        %v2147 = vunpack.c.h.b16 %v2079
        %v2148 = vunpack.c.l.b16 %v2080
        %v2149 = vunpack.c.h.b16 %v2080
        %v2150 = vunpack.c.l.b16 %v2081
        %v2151 = vunpack.c.h.b16 %v2081
        %v2152 = vunpack.c.l.b16 %v2082
        %v2153 = vunpack.c.h.b16 %v2082
        %v2154 = vunpack.c.l.b16 %v2083
        %v2155 = vunpack.c.h.b16 %v2083
        %v2156 = vunpack.c.l.b16 %v2084
        %v2157 = vunpack.c.h.b16 %v2084
        %v2158 = vunpack.c.l.b16 %v2085
        %v2159 = vunpack.c.h.b16 %v2085
        %v2160 = vunpack.c.l.b16 %v2086
        %v2161 = vunpack.c.h.b16 %v2086
        %v2162 = vunpack.c.l.b16 %v2087
        %v2163 = vunpack.c.h.b16 %v2087
        %v2164 = vunpack.c.l.b16 %v2088
        %v2165 = vunpack.c.h.b16 %v2088
        %v2166 = vunpack.c.l.b16 %v2089
        %v2167 = vunpack.c.h.b16 %v2089
        %v2168 = vunpack.c.l.b16 %v2090
        %v2169 = vunpack.c.h.b16 %v2090
        %v2170 = vunpack.c.l.b16 %v2091
        %v2171 = vunpack.c.h.b16 %v2091
        %v2172 = vunpack.c.l.b16 %v2092
        %v2173 = vunpack.c.h.b16 %v2092
        %v2174 = vunpack.c.l.b16 %v2093
        %v2175 = vunpack.c.h.b16 %v2093
        %v2176 = vunpack.c.l.b16 %v2094
        %v2177 = vunpack.c.h.b16 %v2094
        %v2178 = vunpack.c.l.b16 %v2095
        %v2179 = vunpack.c.h.b16 %v2095
        %v2180 = vunpack.c.l.b16 %v2096
        %v2181 = vunpack.c.h.b16 %v2096
        %v2182 = vunpack.c.l.b16 %v2097
        %v2183 = vunpack.c.h.b16 %v2097
        %v2184 = vunpack.c.l.b16 %v2098
        %v2185 = vunpack.c.h.b16 %v2098
        %v2186 = vunpack.c.l.b16 %v2099
        %v2187 = vunpack.c.h.b16 %v2099
        %v2188 = vunpack.c.l.b16 %v2100
        %v2189 = vunpack.c.h.b16 %v2100
        %v2190 = vunpack.c.l.b16 %v2101
        %v2191 = vunpack.c.h.b16 %v2101
        %v2192 = vunpack.c.l.b16 %v2102
        %v2193 = vunpack.c.h.b16 %v2102
        %v2194 = vunpack.c.l.b16 %v2103
        %v2195 = vunpack.c.h.b16 %v2103
        %v2196 = vunpack.c.l.b16 %v2104
        %v2197 = vunpack.c.h.b16 %v2104
        %v2198 = vunpack.c.l.b16 %v2105
        %v2199 = vunpack.c.h.b16 %v2105
        %v2200 = vunpack.c.l.b16 %v2106
        %v2201 = vunpack.c.h.b16 %v2106
        %v2202 = vunpack.c.l.b16 %v2107
        %v2203 = vunpack.c.h.b16 %v2107
        %v2204 = vpack.c.b16 %v2142, %v2140
        %v2205 = vpack.c.b16 %v2143, %v2141
        %v2206 = vpack.c.b16 %v2146, %v2144
        %v2207 = vpack.c.b16 %v2147, %v2145
        %v2208 = vpack.c.b16 %v2150, %v2148
        %v2209 = vpack.c.b16 %v2151, %v2149
        %v2210 = vpack.c.b16 %v2154, %v2152
        %v2211 = vpack.c.b16 %v2155, %v2153
        %v2212 = vpack.c.b16 %v2158, %v2156
        %v2213 = vpack.c.b16 %v2159, %v2157
        %v2214 = vpack.c.b16 %v2162, %v2160
        %v2215 = vpack.c.b16 %v2163, %v2161
        %v2216 = vpack.c.b16 %v2166, %v2164
        %v2217 = vpack.c.b16 %v2167, %v2165
        %v2218 = vpack.c.b16 %v2170, %v2168
        %v2219 = vpack.c.b16 %v2171, %v2169
        %v2220 = vpack.c.b16 %v2174, %v2172
        %v2221 = vpack.c.b16 %v2175, %v2173
        %v2222 = vpack.c.b16 %v2178, %v2176
        %v2223 = vpack.c.b16 %v2179, %v2177
        %v2224 = vpack.c.b16 %v2182, %v2180
        %v2225 = vpack.c.b16 %v2183, %v2181
        %v2226 = vpack.c.b16 %v2186, %v2184
        %v2227 = vpack.c.b16 %v2187, %v2185
        %v2228 = vpack.c.b16 %v2190, %v2188
        %v2229 = vpack.c.b16 %v2191, %v2189
        %v2230 = vpack.c.b16 %v2194, %v2192
        %v2231 = vpack.c.b16 %v2195, %v2193
        %v2232 = vpack.c.b16 %v2198, %v2196
        %v2233 = vpack.c.b16 %v2199, %v2197
        %v2234 = vpack.c.b16 %v2202, %v2200
        %v2235 = vpack.c.b16 %v2203, %v2201
        %2268 = vmatprep.subr.bf16.mxu0 %v2219
        %2269 = vmatpush1.bf16.msra.mxu0 %v2218
        %2270 = vmatprep.subr.bf16.mxu0 %v2217
        %2271 = vmatpush1.bf16.msra.mxu0 %v2216
        %2272 = vmatprep.subr.bf16.mxu0 %v2215
        %2273 = vmatpush1.bf16.msra.mxu0 %v2214
        %2274 = vmatprep.subr.bf16.mxu0 %v2213
        %2275 = vmatpush1.bf16.msra.mxu0 %v2212
        %2276 = vmatprep.subr.bf16.mxu0 %v2211
        %2277 = vmatpush1.bf16.msra.mxu0 %v2210
        %2278 = vmatprep.subr.bf16.mxu0 %v2209
        %2279 = vmatpush1.bf16.msra.mxu0 %v2208
        %2280 = vmatprep.subr.bf16.mxu0 %v2207
        %2281 = vmatpush1.bf16.msra.mxu0 %v2206
        %2282 = vmatprep.subr.bf16.mxu0 %v2205
        %2283 = vmatpush1.bf16.msra.mxu0 %v2204
        %2284 = vmatprep.subr.bf16.mxu0 %v2235
        %2285 = vmatpush2.bf16.msra.mxu0 %v2234
        %2286 = vmatprep.subr.bf16.mxu0 %v2233
        %2287 = vmatpush2.bf16.msra.mxu0 %v2232
        %2288 = vmatprep.subr.bf16.mxu0 %v2231
        %2289 = vmatpush2.bf16.msra.mxu0 %v2230
        %2290 = vmatprep.subr.bf16.mxu0 %v2229
        %2291 = vmatpush2.bf16.msra.mxu0 %v2228
        %2292 = vmatprep.subr.bf16.mxu0 %v2227
        %2293 = vmatpush2.bf16.msra.mxu0 %v2226
        %2294 = vmatprep.subr.bf16.mxu0 %v2225
        %2295 = vmatpush2.bf16.msra.mxu0 %v2224
        %2296 = vmatprep.subr.bf16.mxu0 %v2223
        %2297 = vmatpush2.bf16.msra.mxu0 %v2222
        %2298 = vmatprep.subr.bf16.mxu0 %v2221
        %2299 = vmatpush2.bf16.msra.mxu0 %v2220
        %2300 = vmatprep.mubr.bf16.mxu0 %v2073
        %2301 = vmatmul.mubr.bf16.gmra.mxu0 %v2072
        %v2302 = vpop.f32.mrf.mxu0
        %v2303 = vadd.f32 0.0, %v2302
        %v2304 = vpop.f32.mrf.mxu0
        %v2305 = vadd.f32 0.0, %v2304
        %v2306 = vpop.f32.mrf.mxu0
        %v2307 = vadd.f32 0.0, %v2306
        %v2308 = vpop.f32.mrf.mxu0
        %v2309 = vadd.f32 0.0, %v2308
        %2310 = vmatprep.mubr.bf16.mxu0 %v2075
        %2311 = vmatmul.mubr.bf16.gmra.mxu0 %v2074
        %v2312 = vpop.f32.mrf.mxu0
        %v2313 = vadd.f32 0.0, %v2312
        %v2314 = vpop.f32.mrf.mxu0
        %v2315 = vadd.f32 0.0, %v2314
        %v2316 = vpop.f32.mrf.mxu0
        %v2317 = vadd.f32 0.0, %v2316
        %v2318 = vpop.f32.mrf.mxu0
        %v2319 = vadd.f32 0.0, %v2318
        %2320 = vdwg.mxu0
        %v2321 = vadd.f32 %v1990, %v2303
        %v2322 = vadd.f32 %v1991, %v2305
        %v2323 = vadd.f32 %v1992, %v2307
        %v2324 = vadd.f32 %v1993, %v2309
        %v2325 = vadd.f32 %v1994, %v2313
        %v2326 = vadd.f32 %v1995, %v2315
        %v2327 = vadd.f32 %v1996, %v2317
        %v2328 = vadd.f32 %v1997, %v2319
        %s2329 = scalar_lea.vmem %s3, 96
        %v2330 = vld [vmem:[%s2329] sm:$0xf]
        %v2331 = vld [vmem:[%s2329 + $0x4] sm:$0xf]
        %v2332 = vld [vmem:[%s2329 + $0x8] sm:$0xf]
        %v2333 = vld [vmem:[%s2329 + $0xc] sm:$0xf]
        %v2338 = vunpack.c.l.b16 %v2330
        %v2339 = vunpack.c.l.b16 %v2331
        %v2340 = vunpack.c.l.b16 %v2332
        %v2341 = vunpack.c.l.b16 %v2333
        %v2342 = vpack.c.b16 %v2339, %v2338
        %v2343 = vpack.c.b16 %v2341, %v2340
        %v2345 = vsel %vm373, %v2342, 0
        %v2348 = vsel %vm373, %v2343, 0
        %2350 = vmatprep.subr.bf16.mxu0 0
        %2351 = vmatpush1.bf16.msra.mxu0 0
        %2352 = vmatprep.subr.bf16.mxu0 0
        %2353 = vmatpush1.bf16.msra.mxu0 0
        %2354 = vmatprep.subr.bf16.mxu0 0
        %2355 = vmatpush1.bf16.msra.mxu0 0
        %2356 = vmatprep.subr.bf16.mxu0 0
        %2357 = vmatpush1.bf16.msra.mxu0 0
        %2358 = vmatprep.subr.bf16.mxu0 0
        %2359 = vmatpush1.bf16.msra.mxu0 0
        %2360 = vmatprep.subr.bf16.mxu0 0
        %2361 = vmatpush1.bf16.msra.mxu0 0
        %2362 = vmatprep.subr.bf16.mxu0 %v368
        %2363 = vmatpush1.bf16.msra.mxu0 %v367
        %2364 = vmatprep.subr.bf16.mxu0 %v366
        %2365 = vmatpush1.bf16.msra.mxu0 %v365
        %2366 = vmatprep.subr.bf16.mxu0 0
        %2367 = vmatpush2.bf16.msra.mxu0 0
        %2368 = vmatprep.subr.bf16.mxu0 0
        %2369 = vmatpush2.bf16.msra.mxu0 0
        %2370 = vmatprep.subr.bf16.mxu0 0
        %2371 = vmatpush2.bf16.msra.mxu0 0
        %2372 = vmatprep.subr.bf16.mxu0 0
        %2373 = vmatpush2.bf16.msra.mxu0 0
        %2374 = vmatprep.subr.bf16.mxu0 0
        %2375 = vmatpush2.bf16.msra.mxu0 0
        %2376 = vmatprep.subr.bf16.mxu0 0
        %2377 = vmatpush2.bf16.msra.mxu0 0
        %2378 = vmatprep.subr.bf16.mxu0 0
        %2379 = vmatpush2.bf16.msra.mxu0 0
        %2380 = vmatprep.subr.bf16.mxu0 0
        %2381 = vmatpush2.bf16.msra.mxu0 0
        %2382 = vmatprep.mubr.bf16.mxu0 0
        %2383 = vmatmul.mubr.bf16.gmra.mxu0 %v2345
        %v2384 = vpop.f32.mrf.mxu0
        %v2385 = vadd.f32 0.0, %v2384
        %v2386 = vpop.f32.mrf.mxu0
        %v2387 = vadd.f32 0.0, %v2386
        %v2388 = vpop.f32.mrf.mxu0
        %v2389 = vadd.f32 0.0, %v2388
        %v2390 = vpop.f32.mrf.mxu0
        %v2391 = vadd.f32 0.0, %v2390
        %2392 = vmatprep.mubr.bf16.mxu0 0
        %2393 = vmatmul.mubr.bf16.gmra.mxu0 %v2348
        %v2394 = vpop.f32.mrf.mxu0
        %v2395 = vadd.f32 0.0, %v2394
        %v2396 = vpop.f32.mrf.mxu0
        %v2397 = vadd.f32 0.0, %v2396
        %v2398 = vpop.f32.mrf.mxu0
        %v2399 = vadd.f32 0.0, %v2398
        %v2400 = vpop.f32.mrf.mxu0
        %v2401 = vadd.f32 0.0, %v2400
        %2402 = vdwg.mxu0
        %v2403 = vpack.c.bf16 %v2389, %v2385
        %v2404 = vpack.c.bf16 %v2391, %v2387
        %v2405 = vpack.c.bf16 %v2399, %v2395
        %v2406 = vpack.c.bf16 %v2401, %v2397
        %v2407 = vld [vmem:[%s270 + $0x600] sm:$0xff]
        %v2408 = vld [vmem:[%s270 + $0x608] sm:$0xff]
        %v2409 = vld [vmem:[%s270 + $0x610] sm:$0xff]
        %v2410 = vld [vmem:[%s270 + $0x618] sm:$0xff]
        %v2411 = vld [vmem:[%s270 + $0x620] sm:$0xff]
        %v2412 = vld [vmem:[%s270 + $0x628] sm:$0xff]
        %v2413 = vld [vmem:[%s270 + $0x630] sm:$0xff]
        %v2414 = vld [vmem:[%s270 + $0x638] sm:$0xff]
        %v2415 = vld [vmem:[%s270 + $0x640] sm:$0xff]
        %v2416 = vld [vmem:[%s270 + $0x648] sm:$0xff]
        %v2417 = vld [vmem:[%s270 + $0x650] sm:$0xff]
        %v2418 = vld [vmem:[%s270 + $0x658] sm:$0xff]
        %v2419 = vld [vmem:[%s270 + $0x660] sm:$0xff]
        %v2420 = vld [vmem:[%s270 + $0x668] sm:$0xff]
        %v2421 = vld [vmem:[%s270 + $0x670] sm:$0xff]
        %v2422 = vld [vmem:[%s270 + $0x678] sm:$0xff]
        %v2423 = vld [vmem:[%s270 + $0x680] sm:$0xff]
        %v2424 = vld [vmem:[%s270 + $0x688] sm:$0xff]
        %v2425 = vld [vmem:[%s270 + $0x690] sm:$0xff]
        %v2426 = vld [vmem:[%s270 + $0x698] sm:$0xff]
        %v2427 = vld [vmem:[%s270 + $0x6a0] sm:$0xff]
        %v2428 = vld [vmem:[%s270 + $0x6a8] sm:$0xff]
        %v2429 = vld [vmem:[%s270 + $0x6b0] sm:$0xff]
        %v2430 = vld [vmem:[%s270 + $0x6b8] sm:$0xff]
        %v2431 = vld [vmem:[%s270 + $0x6c0] sm:$0xff]
        %v2432 = vld [vmem:[%s270 + $0x6c8] sm:$0xff]
        %v2433 = vld [vmem:[%s270 + $0x6d0] sm:$0xff]
        %v2434 = vld [vmem:[%s270 + $0x6d8] sm:$0xff]
        %v2435 = vld [vmem:[%s270 + $0x6e0] sm:$0xff]
        %v2436 = vld [vmem:[%s270 + $0x6e8] sm:$0xff]
        %v2437 = vld [vmem:[%s270 + $0x6f0] sm:$0xff]
        %v2438 = vld [vmem:[%s270 + $0x6f8] sm:$0xff]
        %v2471 = vunpack.c.l.b16 %v2407
        %v2472 = vunpack.c.h.b16 %v2407
        %v2473 = vunpack.c.l.b16 %v2408
        %v2474 = vunpack.c.h.b16 %v2408
        %v2475 = vunpack.c.l.b16 %v2409
        %v2476 = vunpack.c.h.b16 %v2409
        %v2477 = vunpack.c.l.b16 %v2410
        %v2478 = vunpack.c.h.b16 %v2410
        %v2479 = vunpack.c.l.b16 %v2411
        %v2480 = vunpack.c.h.b16 %v2411
        %v2481 = vunpack.c.l.b16 %v2412
        %v2482 = vunpack.c.h.b16 %v2412
        %v2483 = vunpack.c.l.b16 %v2413
        %v2484 = vunpack.c.h.b16 %v2413
        %v2485 = vunpack.c.l.b16 %v2414
        %v2486 = vunpack.c.h.b16 %v2414
        %v2487 = vunpack.c.l.b16 %v2415
        %v2488 = vunpack.c.h.b16 %v2415
        %v2489 = vunpack.c.l.b16 %v2416
        %v2490 = vunpack.c.h.b16 %v2416
        %v2491 = vunpack.c.l.b16 %v2417
        %v2492 = vunpack.c.h.b16 %v2417
        %v2493 = vunpack.c.l.b16 %v2418
        %v2494 = vunpack.c.h.b16 %v2418
        %v2495 = vunpack.c.l.b16 %v2419
        %v2496 = vunpack.c.h.b16 %v2419
        %v2497 = vunpack.c.l.b16 %v2420
        %v2498 = vunpack.c.h.b16 %v2420
        %v2499 = vunpack.c.l.b16 %v2421
        %v2500 = vunpack.c.h.b16 %v2421
        %v2501 = vunpack.c.l.b16 %v2422
        %v2502 = vunpack.c.h.b16 %v2422
        %v2503 = vunpack.c.l.b16 %v2423
        %v2504 = vunpack.c.h.b16 %v2423
        %v2505 = vunpack.c.l.b16 %v2424
        %v2506 = vunpack.c.h.b16 %v2424
        %v2507 = vunpack.c.l.b16 %v2425
        %v2508 = vunpack.c.h.b16 %v2425
        %v2509 = vunpack.c.l.b16 %v2426
        %v2510 = vunpack.c.h.b16 %v2426
        %v2511 = vunpack.c.l.b16 %v2427
        %v2512 = vunpack.c.h.b16 %v2427
        %v2513 = vunpack.c.l.b16 %v2428
        %v2514 = vunpack.c.h.b16 %v2428
        %v2515 = vunpack.c.l.b16 %v2429
        %v2516 = vunpack.c.h.b16 %v2429
        %v2517 = vunpack.c.l.b16 %v2430
        %v2518 = vunpack.c.h.b16 %v2430
        %v2519 = vunpack.c.l.b16 %v2431
        %v2520 = vunpack.c.h.b16 %v2431
        %v2521 = vunpack.c.l.b16 %v2432
        %v2522 = vunpack.c.h.b16 %v2432
        %v2523 = vunpack.c.l.b16 %v2433
        %v2524 = vunpack.c.h.b16 %v2433
        %v2525 = vunpack.c.l.b16 %v2434
        %v2526 = vunpack.c.h.b16 %v2434
        %v2527 = vunpack.c.l.b16 %v2435
        %v2528 = vunpack.c.h.b16 %v2435
        %v2529 = vunpack.c.l.b16 %v2436
        %v2530 = vunpack.c.h.b16 %v2436
        %v2531 = vunpack.c.l.b16 %v2437
        %v2532 = vunpack.c.h.b16 %v2437
        %v2533 = vunpack.c.l.b16 %v2438
        %v2534 = vunpack.c.h.b16 %v2438
        %v2535 = vpack.c.b16 %v2473, %v2471
        %v2536 = vpack.c.b16 %v2474, %v2472
        %v2537 = vpack.c.b16 %v2477, %v2475
        %v2538 = vpack.c.b16 %v2478, %v2476
        %v2539 = vpack.c.b16 %v2481, %v2479
        %v2540 = vpack.c.b16 %v2482, %v2480
        %v2541 = vpack.c.b16 %v2485, %v2483
        %v2542 = vpack.c.b16 %v2486, %v2484
        %v2543 = vpack.c.b16 %v2489, %v2487
        %v2544 = vpack.c.b16 %v2490, %v2488
        %v2545 = vpack.c.b16 %v2493, %v2491
        %v2546 = vpack.c.b16 %v2494, %v2492
        %v2547 = vpack.c.b16 %v2497, %v2495
        %v2548 = vpack.c.b16 %v2498, %v2496
        %v2549 = vpack.c.b16 %v2501, %v2499
        %v2550 = vpack.c.b16 %v2502, %v2500
        %v2551 = vpack.c.b16 %v2505, %v2503
        %v2552 = vpack.c.b16 %v2506, %v2504
        %v2553 = vpack.c.b16 %v2509, %v2507
        %v2554 = vpack.c.b16 %v2510, %v2508
        %v2555 = vpack.c.b16 %v2513, %v2511
        %v2556 = vpack.c.b16 %v2514, %v2512
        %v2557 = vpack.c.b16 %v2517, %v2515
        %v2558 = vpack.c.b16 %v2518, %v2516
        %v2559 = vpack.c.b16 %v2521, %v2519
        %v2560 = vpack.c.b16 %v2522, %v2520
        %v2561 = vpack.c.b16 %v2525, %v2523
        %v2562 = vpack.c.b16 %v2526, %v2524
        %v2563 = vpack.c.b16 %v2529, %v2527
        %v2564 = vpack.c.b16 %v2530, %v2528
        %v2565 = vpack.c.b16 %v2533, %v2531
        %v2566 = vpack.c.b16 %v2534, %v2532
        %2599 = vmatprep.subr.bf16.mxu0 %v2550
        %2600 = vmatpush1.bf16.msra.mxu0 %v2549
        %2601 = vmatprep.subr.bf16.mxu0 %v2548
        %2602 = vmatpush1.bf16.msra.mxu0 %v2547
        %2603 = vmatprep.subr.bf16.mxu0 %v2546
        %2604 = vmatpush1.bf16.msra.mxu0 %v2545
        %2605 = vmatprep.subr.bf16.mxu0 %v2544
        %2606 = vmatpush1.bf16.msra.mxu0 %v2543
        %2607 = vmatprep.subr.bf16.mxu0 %v2542
        %2608 = vmatpush1.bf16.msra.mxu0 %v2541
        %2609 = vmatprep.subr.bf16.mxu0 %v2540
        %2610 = vmatpush1.bf16.msra.mxu0 %v2539
        %2611 = vmatprep.subr.bf16.mxu0 %v2538
        %2612 = vmatpush1.bf16.msra.mxu0 %v2537
        %2613 = vmatprep.subr.bf16.mxu0 %v2536
        %2614 = vmatpush1.bf16.msra.mxu0 %v2535
        %2615 = vmatprep.subr.bf16.mxu0 %v2566
        %2616 = vmatpush2.bf16.msra.mxu0 %v2565
        %2617 = vmatprep.subr.bf16.mxu0 %v2564
        %2618 = vmatpush2.bf16.msra.mxu0 %v2563
        %2619 = vmatprep.subr.bf16.mxu0 %v2562
        %2620 = vmatpush2.bf16.msra.mxu0 %v2561
        %2621 = vmatprep.subr.bf16.mxu0 %v2560
        %2622 = vmatpush2.bf16.msra.mxu0 %v2559
        %2623 = vmatprep.subr.bf16.mxu0 %v2558
        %2624 = vmatpush2.bf16.msra.mxu0 %v2557
        %2625 = vmatprep.subr.bf16.mxu0 %v2556
        %2626 = vmatpush2.bf16.msra.mxu0 %v2555
        %2627 = vmatprep.subr.bf16.mxu0 %v2554
        %2628 = vmatpush2.bf16.msra.mxu0 %v2553
        %2629 = vmatprep.subr.bf16.mxu0 %v2552
        %2630 = vmatpush2.bf16.msra.mxu0 %v2551
        %2631 = vmatprep.mubr.bf16.mxu0 %v2404
        %2632 = vmatmul.mubr.bf16.gmra.mxu0 %v2403
        %v2633 = vpop.f32.mrf.mxu0
        %v2634 = vadd.f32 0.0, %v2633
        %v2635 = vpop.f32.mrf.mxu0
        %v2636 = vadd.f32 0.0, %v2635
        %v2637 = vpop.f32.mrf.mxu0
        %v2638 = vadd.f32 0.0, %v2637
        %v2639 = vpop.f32.mrf.mxu0
        %v2640 = vadd.f32 0.0, %v2639
        %2641 = vmatprep.mubr.bf16.mxu0 %v2406
        %2642 = vmatmul.mubr.bf16.gmra.mxu0 %v2405
        %v2643 = vpop.f32.mrf.mxu0
        %v2644 = vadd.f32 0.0, %v2643
        %v2645 = vpop.f32.mrf.mxu0
        %v2646 = vadd.f32 0.0, %v2645
        %v2647 = vpop.f32.mrf.mxu0
        %v2648 = vadd.f32 0.0, %v2647
        %v2649 = vpop.f32.mrf.mxu0
        %v2650 = vadd.f32 0.0, %v2649
        %2651 = vdwg.mxu0
        %v2652 = vadd.f32 %v2321, %v2634
        %v2653 = vadd.f32 %v2322, %v2636
        %v2654 = vadd.f32 %v2323, %v2638
        %v2655 = vadd.f32 %v2324, %v2640
        %v2656 = vadd.f32 %v2325, %v2644
        %v2657 = vadd.f32 %v2326, %v2646
        %v2658 = vadd.f32 %v2327, %v2648
        %v2659 = vadd.f32 %v2328, %v2650
        %s2660 = scalar_lea.vmem %s3, 112
        %v2661 = vld [vmem:[%s2660] sm:$0xf]
        %v2662 = vld [vmem:[%s2660 + $0x4] sm:$0xf]
        %v2663 = vld [vmem:[%s2660 + $0x8] sm:$0xf]
        %v2664 = vld [vmem:[%s2660 + $0xc] sm:$0xf]
        %v2669 = vunpack.c.l.b16 %v2661
        %v2670 = vunpack.c.l.b16 %v2662
        %v2671 = vunpack.c.l.b16 %v2663
        %v2672 = vunpack.c.l.b16 %v2664
        %v2673 = vpack.c.b16 %v2670, %v2669
        %v2674 = vpack.c.b16 %v2672, %v2671
        %v2676 = vsel %vm373, %v2673, 0
        %v2679 = vsel %vm373, %v2674, 0
        %2681 = vmatprep.subr.bf16.mxu0 0
        %2682 = vmatpush1.bf16.msra.mxu0 0
        %2683 = vmatprep.subr.bf16.mxu0 0
        %2684 = vmatpush1.bf16.msra.mxu0 0
        %2685 = vmatprep.subr.bf16.mxu0 0
        %2686 = vmatpush1.bf16.msra.mxu0 0
        %2687 = vmatprep.subr.bf16.mxu0 0
        %2688 = vmatpush1.bf16.msra.mxu0 0
        %2689 = vmatprep.subr.bf16.mxu0 0
        %2690 = vmatpush1.bf16.msra.mxu0 0
        %2691 = vmatprep.subr.bf16.mxu0 0
        %2692 = vmatpush1.bf16.msra.mxu0 0
        %2693 = vmatprep.subr.bf16.mxu0 %v368
        %2694 = vmatpush1.bf16.msra.mxu0 %v367
        %2695 = vmatprep.subr.bf16.mxu0 %v366
        %2696 = vmatpush1.bf16.msra.mxu0 %v365
        %2697 = vmatprep.subr.bf16.mxu0 0
        %2698 = vmatpush2.bf16.msra.mxu0 0
        %2699 = vmatprep.subr.bf16.mxu0 0
        %2700 = vmatpush2.bf16.msra.mxu0 0
        %2701 = vmatprep.subr.bf16.mxu0 0
        %2702 = vmatpush2.bf16.msra.mxu0 0
        %2703 = vmatprep.subr.bf16.mxu0 0
        %2704 = vmatpush2.bf16.msra.mxu0 0
        %2705 = vmatprep.subr.bf16.mxu0 0
        %2706 = vmatpush2.bf16.msra.mxu0 0
        %2707 = vmatprep.subr.bf16.mxu0 0
        %2708 = vmatpush2.bf16.msra.mxu0 0
        %2709 = vmatprep.subr.bf16.mxu0 0
        %2710 = vmatpush2.bf16.msra.mxu0 0
        %2711 = vmatprep.subr.bf16.mxu0 0
        %2712 = vmatpush2.bf16.msra.mxu0 0
        %2713 = vmatprep.mubr.bf16.mxu0 0
        %2714 = vmatmul.mubr.bf16.gmra.mxu0 %v2676
        %v2715 = vpop.f32.mrf.mxu0
        %v2716 = vadd.f32 0.0, %v2715
        %v2717 = vpop.f32.mrf.mxu0
        %v2718 = vadd.f32 0.0, %v2717
        %v2719 = vpop.f32.mrf.mxu0
        %v2720 = vadd.f32 0.0, %v2719
        %v2721 = vpop.f32.mrf.mxu0
        %v2722 = vadd.f32 0.0, %v2721
        %2723 = vmatprep.mubr.bf16.mxu0 0
        %2724 = vmatmul.mubr.bf16.gmra.mxu0 %v2679
        %v2725 = vpop.f32.mrf.mxu0
        %v2726 = vadd.f32 0.0, %v2725
        %v2727 = vpop.f32.mrf.mxu0
        %v2728 = vadd.f32 0.0, %v2727
        %v2729 = vpop.f32.mrf.mxu0
        %v2730 = vadd.f32 0.0, %v2729
        %v2731 = vpop.f32.mrf.mxu0
        %v2732 = vadd.f32 0.0, %v2731
        %2733 = vdwg.mxu0
        %v2734 = vpack.c.bf16 %v2720, %v2716
        %v2735 = vpack.c.bf16 %v2722, %v2718
        %v2736 = vpack.c.bf16 %v2730, %v2726
        %v2737 = vpack.c.bf16 %v2732, %v2728
        %v2738 = vld [vmem:[%s270 + $0x700] sm:$0xff]
        %v2739 = vld [vmem:[%s270 + $0x708] sm:$0xff]
        %v2740 = vld [vmem:[%s270 + $0x710] sm:$0xff]
        %v2741 = vld [vmem:[%s270 + $0x718] sm:$0xff]
        %v2742 = vld [vmem:[%s270 + $0x720] sm:$0xff]
        %v2743 = vld [vmem:[%s270 + $0x728] sm:$0xff]
        %v2744 = vld [vmem:[%s270 + $0x730] sm:$0xff]
        %v2745 = vld [vmem:[%s270 + $0x738] sm:$0xff]
        %v2746 = vld [vmem:[%s270 + $0x740] sm:$0xff]
        %v2747 = vld [vmem:[%s270 + $0x748] sm:$0xff]
        %v2748 = vld [vmem:[%s270 + $0x750] sm:$0xff]
        %v2749 = vld [vmem:[%s270 + $0x758] sm:$0xff]
        %v2750 = vld [vmem:[%s270 + $0x760] sm:$0xff]
        %v2751 = vld [vmem:[%s270 + $0x768] sm:$0xff]
        %v2752 = vld [vmem:[%s270 + $0x770] sm:$0xff]
        %v2753 = vld [vmem:[%s270 + $0x778] sm:$0xff]
        %v2754 = vld [vmem:[%s270 + $0x780] sm:$0xff]
        %v2755 = vld [vmem:[%s270 + $0x788] sm:$0xff]
        %v2756 = vld [vmem:[%s270 + $0x790] sm:$0xff]
        %v2757 = vld [vmem:[%s270 + $0x798] sm:$0xff]
        %v2758 = vld [vmem:[%s270 + $0x7a0] sm:$0xff]
        %v2759 = vld [vmem:[%s270 + $0x7a8] sm:$0xff]
        %v2760 = vld [vmem:[%s270 + $0x7b0] sm:$0xff]
        %v2761 = vld [vmem:[%s270 + $0x7b8] sm:$0xff]
        %v2762 = vld [vmem:[%s270 + $0x7c0] sm:$0xff]
        %v2763 = vld [vmem:[%s270 + $0x7c8] sm:$0xff]
        %v2764 = vld [vmem:[%s270 + $0x7d0] sm:$0xff]
        %v2765 = vld [vmem:[%s270 + $0x7d8] sm:$0xff]
        %v2766 = vld [vmem:[%s270 + $0x7e0] sm:$0xff]
        %v2767 = vld [vmem:[%s270 + $0x7e8] sm:$0xff]
        %v2768 = vld [vmem:[%s270 + $0x7f0] sm:$0xff]
        %v2769 = vld [vmem:[%s270 + $0x7f8] sm:$0xff]
        %v2802 = vunpack.c.l.b16 %v2738
        %v2803 = vunpack.c.h.b16 %v2738
        %v2804 = vunpack.c.l.b16 %v2739
        %v2805 = vunpack.c.h.b16 %v2739
        %v2806 = vunpack.c.l.b16 %v2740
        %v2807 = vunpack.c.h.b16 %v2740
        %v2808 = vunpack.c.l.b16 %v2741
        %v2809 = vunpack.c.h.b16 %v2741
        %v2810 = vunpack.c.l.b16 %v2742
        %v2811 = vunpack.c.h.b16 %v2742
        %v2812 = vunpack.c.l.b16 %v2743
        %v2813 = vunpack.c.h.b16 %v2743
        %v2814 = vunpack.c.l.b16 %v2744
        %v2815 = vunpack.c.h.b16 %v2744
        %v2816 = vunpack.c.l.b16 %v2745
        %v2817 = vunpack.c.h.b16 %v2745
        %v2818 = vunpack.c.l.b16 %v2746
        %v2819 = vunpack.c.h.b16 %v2746
        %v2820 = vunpack.c.l.b16 %v2747
        %v2821 = vunpack.c.h.b16 %v2747
        %v2822 = vunpack.c.l.b16 %v2748
        %v2823 = vunpack.c.h.b16 %v2748
        %v2824 = vunpack.c.l.b16 %v2749
        %v2825 = vunpack.c.h.b16 %v2749
        %v2826 = vunpack.c.l.b16 %v2750
        %v2827 = vunpack.c.h.b16 %v2750
        %v2828 = vunpack.c.l.b16 %v2751
        %v2829 = vunpack.c.h.b16 %v2751
        %v2830 = vunpack.c.l.b16 %v2752
        %v2831 = vunpack.c.h.b16 %v2752
        %v2832 = vunpack.c.l.b16 %v2753
        %v2833 = vunpack.c.h.b16 %v2753
        %v2834 = vunpack.c.l.b16 %v2754
        %v2835 = vunpack.c.h.b16 %v2754
        %v2836 = vunpack.c.l.b16 %v2755
        %v2837 = vunpack.c.h.b16 %v2755
        %v2838 = vunpack.c.l.b16 %v2756
        %v2839 = vunpack.c.h.b16 %v2756
        %v2840 = vunpack.c.l.b16 %v2757
        %v2841 = vunpack.c.h.b16 %v2757
        %v2842 = vunpack.c.l.b16 %v2758
        %v2843 = vunpack.c.h.b16 %v2758
        %v2844 = vunpack.c.l.b16 %v2759
        %v2845 = vunpack.c.h.b16 %v2759
        %v2846 = vunpack.c.l.b16 %v2760
        %v2847 = vunpack.c.h.b16 %v2760
        %v2848 = vunpack.c.l.b16 %v2761
        %v2849 = vunpack.c.h.b16 %v2761
        %v2850 = vunpack.c.l.b16 %v2762
        %v2851 = vunpack.c.h.b16 %v2762
        %v2852 = vunpack.c.l.b16 %v2763
        %v2853 = vunpack.c.h.b16 %v2763
        %v2854 = vunpack.c.l.b16 %v2764
        %v2855 = vunpack.c.h.b16 %v2764
        %v2856 = vunpack.c.l.b16 %v2765
        %v2857 = vunpack.c.h.b16 %v2765
        %v2858 = vunpack.c.l.b16 %v2766
        %v2859 = vunpack.c.h.b16 %v2766
        %v2860 = vunpack.c.l.b16 %v2767
        %v2861 = vunpack.c.h.b16 %v2767
        %v2862 = vunpack.c.l.b16 %v2768
        %v2863 = vunpack.c.h.b16 %v2768
        %v2864 = vunpack.c.l.b16 %v2769
        %v2865 = vunpack.c.h.b16 %v2769
        %v2866 = vpack.c.b16 %v2804, %v2802
        %v2867 = vpack.c.b16 %v2805, %v2803
        %v2868 = vpack.c.b16 %v2808, %v2806
        %v2869 = vpack.c.b16 %v2809, %v2807
        %v2870 = vpack.c.b16 %v2812, %v2810
        %v2871 = vpack.c.b16 %v2813, %v2811
        %v2872 = vpack.c.b16 %v2816, %v2814
        %v2873 = vpack.c.b16 %v2817, %v2815
        %v2874 = vpack.c.b16 %v2820, %v2818
        %v2875 = vpack.c.b16 %v2821, %v2819
        %v2876 = vpack.c.b16 %v2824, %v2822
        %v2877 = vpack.c.b16 %v2825, %v2823
        %v2878 = vpack.c.b16 %v2828, %v2826
        %v2879 = vpack.c.b16 %v2829, %v2827
        %v2880 = vpack.c.b16 %v2832, %v2830
        %v2881 = vpack.c.b16 %v2833, %v2831
        %v2882 = vpack.c.b16 %v2836, %v2834
        %v2883 = vpack.c.b16 %v2837, %v2835
        %v2884 = vpack.c.b16 %v2840, %v2838
        %v2885 = vpack.c.b16 %v2841, %v2839
        %v2886 = vpack.c.b16 %v2844, %v2842
        %v2887 = vpack.c.b16 %v2845, %v2843
        %v2888 = vpack.c.b16 %v2848, %v2846
        %v2889 = vpack.c.b16 %v2849, %v2847
        %v2890 = vpack.c.b16 %v2852, %v2850
        %v2891 = vpack.c.b16 %v2853, %v2851
        %v2892 = vpack.c.b16 %v2856, %v2854
        %v2893 = vpack.c.b16 %v2857, %v2855
        %v2894 = vpack.c.b16 %v2860, %v2858
        %v2895 = vpack.c.b16 %v2861, %v2859
        %v2896 = vpack.c.b16 %v2864, %v2862
        %v2897 = vpack.c.b16 %v2865, %v2863
        %2930 = vmatprep.subr.bf16.mxu0 %v2881
        %2931 = vmatpush1.bf16.msra.mxu0 %v2880
        %2932 = vmatprep.subr.bf16.mxu0 %v2879
        %2933 = vmatpush1.bf16.msra.mxu0 %v2878
        %2934 = vmatprep.subr.bf16.mxu0 %v2877
        %2935 = vmatpush1.bf16.msra.mxu0 %v2876
        %2936 = vmatprep.subr.bf16.mxu0 %v2875
        %2937 = vmatpush1.bf16.msra.mxu0 %v2874
        %2938 = vmatprep.subr.bf16.mxu0 %v2873
        %2939 = vmatpush1.bf16.msra.mxu0 %v2872
        %2940 = vmatprep.subr.bf16.mxu0 %v2871
        %2941 = vmatpush1.bf16.msra.mxu0 %v2870
        %2942 = vmatprep.subr.bf16.mxu0 %v2869
        %2943 = vmatpush1.bf16.msra.mxu0 %v2868
        %2944 = vmatprep.subr.bf16.mxu0 %v2867
        %2945 = vmatpush1.bf16.msra.mxu0 %v2866
        %2946 = vmatprep.subr.bf16.mxu0 %v2897
        %2947 = vmatpush2.bf16.msra.mxu0 %v2896
        %2948 = vmatprep.subr.bf16.mxu0 %v2895
        %2949 = vmatpush2.bf16.msra.mxu0 %v2894
        %2950 = vmatprep.subr.bf16.mxu0 %v2893
        %2951 = vmatpush2.bf16.msra.mxu0 %v2892
        %2952 = vmatprep.subr.bf16.mxu0 %v2891
        %2953 = vmatpush2.bf16.msra.mxu0 %v2890
        %2954 = vmatprep.subr.bf16.mxu0 %v2889
        %2955 = vmatpush2.bf16.msra.mxu0 %v2888
        %2956 = vmatprep.subr.bf16.mxu0 %v2887
        %2957 = vmatpush2.bf16.msra.mxu0 %v2886
        %2958 = vmatprep.subr.bf16.mxu0 %v2885
        %2959 = vmatpush2.bf16.msra.mxu0 %v2884
        %2960 = vmatprep.subr.bf16.mxu0 %v2883
        %2961 = vmatpush2.bf16.msra.mxu0 %v2882
        %2962 = vmatprep.mubr.bf16.mxu0 %v2735
        %2963 = vmatmul.mubr.bf16.gmra.mxu0 %v2734
        %v2964 = vpop.f32.mrf.mxu0
        %v2965 = vadd.f32 0.0, %v2964
        %v2966 = vpop.f32.mrf.mxu0
        %v2967 = vadd.f32 0.0, %v2966
        %v2968 = vpop.f32.mrf.mxu0
        %v2969 = vadd.f32 0.0, %v2968
        %v2970 = vpop.f32.mrf.mxu0
        %v2971 = vadd.f32 0.0, %v2970
        %2972 = vmatprep.mubr.bf16.mxu0 %v2737
        %2973 = vmatmul.mubr.bf16.gmra.mxu0 %v2736
        %v2974 = vpop.f32.mrf.mxu0
        %v2975 = vadd.f32 0.0, %v2974
        %v2976 = vpop.f32.mrf.mxu0
        %v2977 = vadd.f32 0.0, %v2976
        %v2978 = vpop.f32.mrf.mxu0
        %v2979 = vadd.f32 0.0, %v2978
        %v2980 = vpop.f32.mrf.mxu0
        %v2981 = vadd.f32 0.0, %v2980
        %2982 = vdwg.mxu0
        %v2983 = vadd.f32 %v2652, %v2965
        %v2984 = vadd.f32 %v2653, %v2967
        %v2985 = vadd.f32 %v2654, %v2969
        %v2986 = vadd.f32 %v2655, %v2971
        %v2987 = vadd.f32 %v2656, %v2975
        %v2988 = vadd.f32 %v2657, %v2977
        %v2989 = vadd.f32 %v2658, %v2979
        %v2990 = vadd.f32 %v2659, %v2981
        %s2991 = scalar_lea.vmem %s3, 128
        %v2992 = vld [vmem:[%s2991] sm:$0xf]
        %v2993 = vld [vmem:[%s2991 + $0x4] sm:$0xf]
        %v2994 = vld [vmem:[%s2991 + $0x8] sm:$0xf]
        %v2995 = vld [vmem:[%s2991 + $0xc] sm:$0xf]
        %v3000 = vunpack.c.l.b16 %v2992
        %v3001 = vunpack.c.l.b16 %v2993
        %v3002 = vunpack.c.l.b16 %v2994
        %v3003 = vunpack.c.l.b16 %v2995
        %v3004 = vpack.c.b16 %v3001, %v3000
        %v3005 = vpack.c.b16 %v3003, %v3002
        %v3007 = vsel %vm373, %v3004, 0
        %v3010 = vsel %vm373, %v3005, 0
        %3012 = vmatprep.subr.bf16.mxu0 0
        %3013 = vmatpush1.bf16.msra.mxu0 0
        %3014 = vmatprep.subr.bf16.mxu0 0
        %3015 = vmatpush1.bf16.msra.mxu0 0
        %3016 = vmatprep.subr.bf16.mxu0 0
        %3017 = vmatpush1.bf16.msra.mxu0 0
        %3018 = vmatprep.subr.bf16.mxu0 0
        %3019 = vmatpush1.bf16.msra.mxu0 0
        %3020 = vmatprep.subr.bf16.mxu0 0
        %3021 = vmatpush1.bf16.msra.mxu0 0
        %3022 = vmatprep.subr.bf16.mxu0 0
        %3023 = vmatpush1.bf16.msra.mxu0 0
        %3024 = vmatprep.subr.bf16.mxu0 %v368
        %3025 = vmatpush1.bf16.msra.mxu0 %v367
        %3026 = vmatprep.subr.bf16.mxu0 %v366
        %3027 = vmatpush1.bf16.msra.mxu0 %v365
        %3028 = vmatprep.subr.bf16.mxu0 0
        %3029 = vmatpush2.bf16.msra.mxu0 0
        %3030 = vmatprep.subr.bf16.mxu0 0
        %3031 = vmatpush2.bf16.msra.mxu0 0
        %3032 = vmatprep.subr.bf16.mxu0 0
        %3033 = vmatpush2.bf16.msra.mxu0 0
        %3034 = vmatprep.subr.bf16.mxu0 0
        %3035 = vmatpush2.bf16.msra.mxu0 0
        %3036 = vmatprep.subr.bf16.mxu0 0
        %3037 = vmatpush2.bf16.msra.mxu0 0
        %3038 = vmatprep.subr.bf16.mxu0 0
        %3039 = vmatpush2.bf16.msra.mxu0 0
        %3040 = vmatprep.subr.bf16.mxu0 0
        %3041 = vmatpush2.bf16.msra.mxu0 0
        %3042 = vmatprep.subr.bf16.mxu0 0
        %3043 = vmatpush2.bf16.msra.mxu0 0
        %3044 = vmatprep.mubr.bf16.mxu0 0
        %3045 = vmatmul.mubr.bf16.gmra.mxu0 %v3007
        %v3046 = vpop.f32.mrf.mxu0
        %v3047 = vadd.f32 0.0, %v3046
        %v3048 = vpop.f32.mrf.mxu0
        %v3049 = vadd.f32 0.0, %v3048
        %v3050 = vpop.f32.mrf.mxu0
        %v3051 = vadd.f32 0.0, %v3050
        %v3052 = vpop.f32.mrf.mxu0
        %v3053 = vadd.f32 0.0, %v3052
        %3054 = vmatprep.mubr.bf16.mxu0 0
        %3055 = vmatmul.mubr.bf16.gmra.mxu0 %v3010
        %v3056 = vpop.f32.mrf.mxu0
        %v3057 = vadd.f32 0.0, %v3056
        %v3058 = vpop.f32.mrf.mxu0
        %v3059 = vadd.f32 0.0, %v3058
        %v3060 = vpop.f32.mrf.mxu0
        %v3061 = vadd.f32 0.0, %v3060
        %v3062 = vpop.f32.mrf.mxu0
        %v3063 = vadd.f32 0.0, %v3062
        %3064 = vdwg.mxu0
        %v3065 = vpack.c.bf16 %v3051, %v3047
        %v3066 = vpack.c.bf16 %v3053, %v3049
        %v3067 = vpack.c.bf16 %v3061, %v3057
        %v3068 = vpack.c.bf16 %v3063, %v3059
        %v3069 = vld [vmem:[%s270 + $0x800] sm:$0xff]
        %v3070 = vld [vmem:[%s270 + $0x808] sm:$0xff]
        %v3071 = vld [vmem:[%s270 + $0x810] sm:$0xff]
        %v3072 = vld [vmem:[%s270 + $0x818] sm:$0xff]
        %v3073 = vld [vmem:[%s270 + $0x820] sm:$0xff]
        %v3074 = vld [vmem:[%s270 + $0x828] sm:$0xff]
        %v3075 = vld [vmem:[%s270 + $0x830] sm:$0xff]
        %v3076 = vld [vmem:[%s270 + $0x838] sm:$0xff]
        %v3077 = vld [vmem:[%s270 + $0x840] sm:$0xff]
        %v3078 = vld [vmem:[%s270 + $0x848] sm:$0xff]
        %v3079 = vld [vmem:[%s270 + $0x850] sm:$0xff]
        %v3080 = vld [vmem:[%s270 + $0x858] sm:$0xff]
        %v3081 = vld [vmem:[%s270 + $0x860] sm:$0xff]
        %v3082 = vld [vmem:[%s270 + $0x868] sm:$0xff]
        %v3083 = vld [vmem:[%s270 + $0x870] sm:$0xff]
        %v3084 = vld [vmem:[%s270 + $0x878] sm:$0xff]
        %v3085 = vld [vmem:[%s270 + $0x880] sm:$0xff]
        %v3086 = vld [vmem:[%s270 + $0x888] sm:$0xff]
        %v3087 = vld [vmem:[%s270 + $0x890] sm:$0xff]
        %v3088 = vld [vmem:[%s270 + $0x898] sm:$0xff]
        %v3089 = vld [vmem:[%s270 + $0x8a0] sm:$0xff]
        %v3090 = vld [vmem:[%s270 + $0x8a8] sm:$0xff]
        %v3091 = vld [vmem:[%s270 + $0x8b0] sm:$0xff]
        %v3092 = vld [vmem:[%s270 + $0x8b8] sm:$0xff]
        %v3093 = vld [vmem:[%s270 + $0x8c0] sm:$0xff]
        %v3094 = vld [vmem:[%s270 + $0x8c8] sm:$0xff]
        %v3095 = vld [vmem:[%s270 + $0x8d0] sm:$0xff]
        %v3096 = vld [vmem:[%s270 + $0x8d8] sm:$0xff]
        %v3097 = vld [vmem:[%s270 + $0x8e0] sm:$0xff]
        %v3098 = vld [vmem:[%s270 + $0x8e8] sm:$0xff]
        %v3099 = vld [vmem:[%s270 + $0x8f0] sm:$0xff]
        %v3100 = vld [vmem:[%s270 + $0x8f8] sm:$0xff]
        %v3133 = vunpack.c.l.b16 %v3069
        %v3134 = vunpack.c.h.b16 %v3069
        %v3135 = vunpack.c.l.b16 %v3070
        %v3136 = vunpack.c.h.b16 %v3070
        %v3137 = vunpack.c.l.b16 %v3071
        %v3138 = vunpack.c.h.b16 %v3071
        %v3139 = vunpack.c.l.b16 %v3072
        %v3140 = vunpack.c.h.b16 %v3072
        %v3141 = vunpack.c.l.b16 %v3073
        %v3142 = vunpack.c.h.b16 %v3073
        %v3143 = vunpack.c.l.b16 %v3074
        %v3144 = vunpack.c.h.b16 %v3074
        %v3145 = vunpack.c.l.b16 %v3075
        %v3146 = vunpack.c.h.b16 %v3075
        %v3147 = vunpack.c.l.b16 %v3076
        %v3148 = vunpack.c.h.b16 %v3076
        %v3149 = vunpack.c.l.b16 %v3077
        %v3150 = vunpack.c.h.b16 %v3077
        %v3151 = vunpack.c.l.b16 %v3078
        %v3152 = vunpack.c.h.b16 %v3078
        %v3153 = vunpack.c.l.b16 %v3079
        %v3154 = vunpack.c.h.b16 %v3079
        %v3155 = vunpack.c.l.b16 %v3080
        %v3156 = vunpack.c.h.b16 %v3080
        %v3157 = vunpack.c.l.b16 %v3081
        %v3158 = vunpack.c.h.b16 %v3081
        %v3159 = vunpack.c.l.b16 %v3082
        %v3160 = vunpack.c.h.b16 %v3082
        %v3161 = vunpack.c.l.b16 %v3083
        %v3162 = vunpack.c.h.b16 %v3083
        %v3163 = vunpack.c.l.b16 %v3084
        %v3164 = vunpack.c.h.b16 %v3084
        %v3165 = vunpack.c.l.b16 %v3085
        %v3166 = vunpack.c.h.b16 %v3085
        %v3167 = vunpack.c.l.b16 %v3086
        %v3168 = vunpack.c.h.b16 %v3086
        %v3169 = vunpack.c.l.b16 %v3087
        %v3170 = vunpack.c.h.b16 %v3087
        %v3171 = vunpack.c.l.b16 %v3088
        %v3172 = vunpack.c.h.b16 %v3088
        %v3173 = vunpack.c.l.b16 %v3089
        %v3174 = vunpack.c.h.b16 %v3089
        %v3175 = vunpack.c.l.b16 %v3090
        %v3176 = vunpack.c.h.b16 %v3090
        %v3177 = vunpack.c.l.b16 %v3091
        %v3178 = vunpack.c.h.b16 %v3091
        %v3179 = vunpack.c.l.b16 %v3092
        %v3180 = vunpack.c.h.b16 %v3092
        %v3181 = vunpack.c.l.b16 %v3093
        %v3182 = vunpack.c.h.b16 %v3093
        %v3183 = vunpack.c.l.b16 %v3094
        %v3184 = vunpack.c.h.b16 %v3094
        %v3185 = vunpack.c.l.b16 %v3095
        %v3186 = vunpack.c.h.b16 %v3095
        %v3187 = vunpack.c.l.b16 %v3096
        %v3188 = vunpack.c.h.b16 %v3096
        %v3189 = vunpack.c.l.b16 %v3097
        %v3190 = vunpack.c.h.b16 %v3097
        %v3191 = vunpack.c.l.b16 %v3098
        %v3192 = vunpack.c.h.b16 %v3098
        %v3193 = vunpack.c.l.b16 %v3099
        %v3194 = vunpack.c.h.b16 %v3099
        %v3195 = vunpack.c.l.b16 %v3100
        %v3196 = vunpack.c.h.b16 %v3100
        %v3197 = vpack.c.b16 %v3135, %v3133
        %v3198 = vpack.c.b16 %v3136, %v3134
        %v3199 = vpack.c.b16 %v3139, %v3137
        %v3200 = vpack.c.b16 %v3140, %v3138
        %v3201 = vpack.c.b16 %v3143, %v3141
        %v3202 = vpack.c.b16 %v3144, %v3142
        %v3203 = vpack.c.b16 %v3147, %v3145
        %v3204 = vpack.c.b16 %v3148, %v3146
        %v3205 = vpack.c.b16 %v3151, %v3149
        %v3206 = vpack.c.b16 %v3152, %v3150
        %v3207 = vpack.c.b16 %v3155, %v3153
        %v3208 = vpack.c.b16 %v3156, %v3154
        %v3209 = vpack.c.b16 %v3159, %v3157
        %v3210 = vpack.c.b16 %v3160, %v3158
        %v3211 = vpack.c.b16 %v3163, %v3161
        %v3212 = vpack.c.b16 %v3164, %v3162
        %v3213 = vpack.c.b16 %v3167, %v3165
        %v3214 = vpack.c.b16 %v3168, %v3166
        %v3215 = vpack.c.b16 %v3171, %v3169
        %v3216 = vpack.c.b16 %v3172, %v3170
        %v3217 = vpack.c.b16 %v3175, %v3173
        %v3218 = vpack.c.b16 %v3176, %v3174
        %v3219 = vpack.c.b16 %v3179, %v3177
        %v3220 = vpack.c.b16 %v3180, %v3178
        %v3221 = vpack.c.b16 %v3183, %v3181
        %v3222 = vpack.c.b16 %v3184, %v3182
        %v3223 = vpack.c.b16 %v3187, %v3185
        %v3224 = vpack.c.b16 %v3188, %v3186
        %v3225 = vpack.c.b16 %v3191, %v3189
        %v3226 = vpack.c.b16 %v3192, %v3190
        %v3227 = vpack.c.b16 %v3195, %v3193
        %v3228 = vpack.c.b16 %v3196, %v3194
        %3261 = vmatprep.subr.bf16.mxu0 %v3212
        %3262 = vmatpush1.bf16.msra.mxu0 %v3211
        %3263 = vmatprep.subr.bf16.mxu0 %v3210
        %3264 = vmatpush1.bf16.msra.mxu0 %v3209
        %3265 = vmatprep.subr.bf16.mxu0 %v3208
        %3266 = vmatpush1.bf16.msra.mxu0 %v3207
        %3267 = vmatprep.subr.bf16.mxu0 %v3206
        %3268 = vmatpush1.bf16.msra.mxu0 %v3205
        %3269 = vmatprep.subr.bf16.mxu0 %v3204
        %3270 = vmatpush1.bf16.msra.mxu0 %v3203
        %3271 = vmatprep.subr.bf16.mxu0 %v3202
        %3272 = vmatpush1.bf16.msra.mxu0 %v3201
        %3273 = vmatprep.subr.bf16.mxu0 %v3200
        %3274 = vmatpush1.bf16.msra.mxu0 %v3199
        %3275 = vmatprep.subr.bf16.mxu0 %v3198
        %3276 = vmatpush1.bf16.msra.mxu0 %v3197
        %3277 = vmatprep.subr.bf16.mxu0 %v3228
        %3278 = vmatpush2.bf16.msra.mxu0 %v3227
        %3279 = vmatprep.subr.bf16.mxu0 %v3226
        %3280 = vmatpush2.bf16.msra.mxu0 %v3225
        %3281 = vmatprep.subr.bf16.mxu0 %v3224
        %3282 = vmatpush2.bf16.msra.mxu0 %v3223
        %3283 = vmatprep.subr.bf16.mxu0 %v3222
        %3284 = vmatpush2.bf16.msra.mxu0 %v3221
        %3285 = vmatprep.subr.bf16.mxu0 %v3220
        %3286 = vmatpush2.bf16.msra.mxu0 %v3219
        %3287 = vmatprep.subr.bf16.mxu0 %v3218
        %3288 = vmatpush2.bf16.msra.mxu0 %v3217
        %3289 = vmatprep.subr.bf16.mxu0 %v3216
        %3290 = vmatpush2.bf16.msra.mxu0 %v3215
        %3291 = vmatprep.subr.bf16.mxu0 %v3214
        %3292 = vmatpush2.bf16.msra.mxu0 %v3213
        %3293 = vmatprep.mubr.bf16.mxu0 %v3066
        %3294 = vmatmul.mubr.bf16.gmra.mxu0 %v3065
        %v3295 = vpop.f32.mrf.mxu0
        %v3296 = vadd.f32 0.0, %v3295
        %v3297 = vpop.f32.mrf.mxu0
        %v3298 = vadd.f32 0.0, %v3297
        %v3299 = vpop.f32.mrf.mxu0
        %v3300 = vadd.f32 0.0, %v3299
        %v3301 = vpop.f32.mrf.mxu0
        %v3302 = vadd.f32 0.0, %v3301
        %3303 = vmatprep.mubr.bf16.mxu0 %v3068
        %3304 = vmatmul.mubr.bf16.gmra.mxu0 %v3067
        %v3305 = vpop.f32.mrf.mxu0
        %v3306 = vadd.f32 0.0, %v3305
        %v3307 = vpop.f32.mrf.mxu0
        %v3308 = vadd.f32 0.0, %v3307
        %v3309 = vpop.f32.mrf.mxu0
        %v3310 = vadd.f32 0.0, %v3309
        %v3311 = vpop.f32.mrf.mxu0
        %v3312 = vadd.f32 0.0, %v3311
        %3313 = vdwg.mxu0
        %v3314 = vadd.f32 %v2983, %v3296
        %v3315 = vadd.f32 %v2984, %v3298
        %v3316 = vadd.f32 %v2985, %v3300
        %v3317 = vadd.f32 %v2986, %v3302
        %v3318 = vadd.f32 %v2987, %v3306
        %v3319 = vadd.f32 %v2988, %v3308
        %v3320 = vadd.f32 %v2989, %v3310
        %v3321 = vadd.f32 %v2990, %v3312
        %v3322 = vld [vmem:[%s316] ss:$8 sm:$0x3]
        %v3324 = vlaneseq
        %v3325 = vshrl.u32 %v3324, 7
        %v3326 = vsub.s32 0, %v3325
        %v3327 = vrot.slane %v3322, %v3326
        %v3328 = vlaneseq
        %v3329 = vshrl.u32 %v3328, 7
        %v3330 = vsub.s32 1, %v3329
        %v3331 = vrot.slane %v3322, %v3330
        %v3334 = vadd.f32 %v3314, %v3327
        %v3335 = vadd.f32 %v3315, %v3331
        %v3336 = vadd.f32 %v3316, %v3327
        %v3337 = vadd.f32 %v3317, %v3331
        %v3338 = vadd.f32 %v3318, %v3327
        %v3339 = vadd.f32 %v3319, %v3331
        %v3340 = vadd.f32 %v3320, %v3327
        %v3341 = vadd.f32 %v3321, %v3331
        %p3342 = scmp.lt.s32.totalorder %s25, 4
        // Predicated region
        $region53: #{retinanet_forward.3} parent=43 // pred_check
          %p3343 = pneg %p3342
        $region54: #{retinanet_forward.3} parent=43 // pred_check_branch
          %3345 = sbr.rel (%p3343) target = $region56
        $region55: #{retinanet_forward.3} parent=43 // pred_region
          %v3346 = vld [vmem:[%s4] sm:$0xf]
          %v3347 = vld [vmem:[%s4 + $0x4] sm:$0xf]
          %v3348 = vld [vmem:[%s4 + $0x8] sm:$0xf]
          %v3349 = vld [vmem:[%s4 + $0xc] sm:$0xf]
          %v3350 = vld [vmem:[%s5] sm:$0xff]
          %v3351 = vld [vmem:[%s5 + $0x8] sm:$0xff]
          %v3352 = vld [vmem:[%s5 + $0x10] sm:$0xff]
          %v3353 = vld [vmem:[%s5 + $0x18] sm:$0xff]
          %v3354 = vld [vmem:[%s5 + $0x20] sm:$0xff]
          %v3355 = vld [vmem:[%s5 + $0x28] sm:$0xff]
          %v3356 = vld [vmem:[%s5 + $0x30] sm:$0xff]
          %v3357 = vld [vmem:[%s5 + $0x38] sm:$0xff]
          %v3358 = vld [vmem:[%s5 + $0x40] sm:$0xff]
          %v3359 = vld [vmem:[%s5 + $0x48] sm:$0xff]
          %v3360 = vld [vmem:[%s5 + $0x50] sm:$0xff]
          %v3361 = vld [vmem:[%s5 + $0x58] sm:$0xff]
          %v3362 = vld [vmem:[%s5 + $0x60] sm:$0xff]
          %v3363 = vld [vmem:[%s5 + $0x68] sm:$0xff]
          %v3364 = vld [vmem:[%s5 + $0x70] sm:$0xff]
          %v3365 = vld [vmem:[%s5 + $0x78] sm:$0xff]
          %v3366 = vld [vmem:[%s5 + $0x80] sm:$0xff]
          %v3367 = vld [vmem:[%s5 + $0x88] sm:$0xff]
          %v3368 = vld [vmem:[%s5 + $0x90] sm:$0xff]
          %v3369 = vld [vmem:[%s5 + $0x98] sm:$0xff]
          %v3370 = vld [vmem:[%s5 + $0xa0] sm:$0xff]
          %v3371 = vld [vmem:[%s5 + $0xa8] sm:$0xff]
          %v3372 = vld [vmem:[%s5 + $0xb0] sm:$0xff]
          %v3373 = vld [vmem:[%s5 + $0xb8] sm:$0xff]
          %v3374 = vld [vmem:[%s5 + $0xc0] sm:$0xff]
          %v3375 = vld [vmem:[%s5 + $0xc8] sm:$0xff]
          %v3376 = vld [vmem:[%s5 + $0xd0] sm:$0xff]
          %v3377 = vld [vmem:[%s5 + $0xd8] sm:$0xff]
          %v3378 = vld [vmem:[%s5 + $0xe0] sm:$0xff]
          %v3379 = vld [vmem:[%s5 + $0xe8] sm:$0xff]
          %v3380 = vld [vmem:[%s5 + $0xf0] sm:$0xff]
          %v3381 = vld [vmem:[%s5 + $0xf8] sm:$0xff]
          %s3382 = scalar_lea.vmem %s316, 1
          %v3383 = vld [vmem:[%s3382] ss:$8 sm:$0x3]
          %s3384 = scalar_lea.vmem %s316, 2
          %v3385 = vld [vmem:[%s3384] ss:$8 sm:$0x3]
          %v3386 = vpack.c.bf16 %v3336, %v3334
          %v3387 = vpack.c.bf16 %v3337, %v3335
          %v3388 = vpack.c.bf16 %v3340, %v3338
          %v3389 = vpack.c.bf16 %v3341, %v3339
          %v3394 = vunpack.c.l.b16 %v3346
          %v3395 = vunpack.c.l.b16 %v3347
          %v3396 = vunpack.c.l.b16 %v3348
          %v3397 = vunpack.c.l.b16 %v3349
          %v3398 = vpack.c.b16 %v3395, %v3394
          %v3399 = vpack.c.b16 %v3397, %v3396
          %v3401 = vsel %vm373, %v3398, 0
          %v3404 = vsel %vm373, %v3399, 0
          %3406 = vmatprep.subr.bf16.mxu0 0
          %3407 = vmatpush1.bf16.msra.mxu0 0
          %3408 = vmatprep.subr.bf16.mxu0 0
          %3409 = vmatpush1.bf16.msra.mxu0 0
          %3410 = vmatprep.subr.bf16.mxu0 0
          %3411 = vmatpush1.bf16.msra.mxu0 0
          %3412 = vmatprep.subr.bf16.mxu0 0
          %3413 = vmatpush1.bf16.msra.mxu0 0
          %3414 = vmatprep.subr.bf16.mxu0 0
          %3415 = vmatpush1.bf16.msra.mxu0 0
          %3416 = vmatprep.subr.bf16.mxu0 0
          %3417 = vmatpush1.bf16.msra.mxu0 0
          %3418 = vmatprep.subr.bf16.mxu0 %v3389
          %3419 = vmatpush1.bf16.msra.mxu0 %v3388
          %3420 = vmatprep.subr.bf16.mxu0 %v3387
          %3421 = vmatpush1.bf16.msra.mxu0 %v3386
          %3422 = vmatprep.subr.bf16.mxu0 0
          %3423 = vmatpush2.bf16.msra.mxu0 0
          %3424 = vmatprep.subr.bf16.mxu0 0
          %3425 = vmatpush2.bf16.msra.mxu0 0
          %3426 = vmatprep.subr.bf16.mxu0 0
          %3427 = vmatpush2.bf16.msra.mxu0 0
          %3428 = vmatprep.subr.bf16.mxu0 0
          %3429 = vmatpush2.bf16.msra.mxu0 0
          %3430 = vmatprep.subr.bf16.mxu0 0
          %3431 = vmatpush2.bf16.msra.mxu0 0
          %3432 = vmatprep.subr.bf16.mxu0 0
          %3433 = vmatpush2.bf16.msra.mxu0 0
          %3434 = vmatprep.subr.bf16.mxu0 0
          %3435 = vmatpush2.bf16.msra.mxu0 0
          %3436 = vmatprep.subr.bf16.mxu0 0
          %3437 = vmatpush2.bf16.msra.mxu0 0
          %3438 = vmatprep.mubr.bf16.mxu0 0
          %3439 = vmatmul.mubr.bf16.gmra.mxu0 %v3401
          %v3440 = vpop.f32.mrf.mxu0
          %v3441 = vadd.f32 0.0, %v3440
          %v3442 = vpop.f32.mrf.mxu0
          %v3443 = vadd.f32 0.0, %v3442
          %v3444 = vpop.f32.mrf.mxu0
          %v3445 = vadd.f32 0.0, %v3444
          %v3446 = vpop.f32.mrf.mxu0
          %v3447 = vadd.f32 0.0, %v3446
          %3448 = vmatprep.mubr.bf16.mxu0 0
          %3449 = vmatmul.mubr.bf16.gmra.mxu0 %v3404
          %v3450 = vpop.f32.mrf.mxu0
          %v3451 = vadd.f32 0.0, %v3450
          %v3452 = vpop.f32.mrf.mxu0
          %v3453 = vadd.f32 0.0, %v3452
          %v3454 = vpop.f32.mrf.mxu0
          %v3455 = vadd.f32 0.0, %v3454
          %v3456 = vpop.f32.mrf.mxu0
          %v3457 = vadd.f32 0.0, %v3456
          %3458 = vdwg.mxu0
          %v3459 = vpack.c.bf16 %v3445, %v3441
          %v3460 = vpack.c.bf16 %v3447, %v3443
          %v3461 = vpack.c.bf16 %v3455, %v3451
          %v3462 = vpack.c.bf16 %v3457, %v3453
          %v3495 = vunpack.c.l.b16 %v3350
          %v3496 = vunpack.c.h.b16 %v3350
          %v3497 = vunpack.c.l.b16 %v3351
          %v3498 = vunpack.c.h.b16 %v3351
          %v3499 = vunpack.c.l.b16 %v3352
          %v3500 = vunpack.c.h.b16 %v3352
          %v3501 = vunpack.c.l.b16 %v3353
          %v3502 = vunpack.c.h.b16 %v3353
          %v3503 = vunpack.c.l.b16 %v3354
          %v3504 = vunpack.c.h.b16 %v3354
          %v3505 = vunpack.c.l.b16 %v3355
          %v3506 = vunpack.c.h.b16 %v3355
          %v3507 = vunpack.c.l.b16 %v3356
          %v3508 = vunpack.c.h.b16 %v3356
          %v3509 = vunpack.c.l.b16 %v3357
          %v3510 = vunpack.c.h.b16 %v3357
          %v3511 = vunpack.c.l.b16 %v3358
          %v3512 = vunpack.c.h.b16 %v3358
          %v3513 = vunpack.c.l.b16 %v3359
          %v3514 = vunpack.c.h.b16 %v3359
          %v3515 = vunpack.c.l.b16 %v3360
          %v3516 = vunpack.c.h.b16 %v3360
          %v3517 = vunpack.c.l.b16 %v3361
          %v3518 = vunpack.c.h.b16 %v3361
          %v3519 = vunpack.c.l.b16 %v3362
          %v3520 = vunpack.c.h.b16 %v3362
          %v3521 = vunpack.c.l.b16 %v3363
          %v3522 = vunpack.c.h.b16 %v3363
          %v3523 = vunpack.c.l.b16 %v3364
          %v3524 = vunpack.c.h.b16 %v3364
          %v3525 = vunpack.c.l.b16 %v3365
          %v3526 = vunpack.c.h.b16 %v3365
          %v3527 = vunpack.c.l.b16 %v3366
          %v3528 = vunpack.c.h.b16 %v3366
          %v3529 = vunpack.c.l.b16 %v3367
          %v3530 = vunpack.c.h.b16 %v3367
          %v3531 = vunpack.c.l.b16 %v3368
          %v3532 = vunpack.c.h.b16 %v3368
          %v3533 = vunpack.c.l.b16 %v3369
          %v3534 = vunpack.c.h.b16 %v3369
          %v3535 = vunpack.c.l.b16 %v3370
          %v3536 = vunpack.c.h.b16 %v3370
          %v3537 = vunpack.c.l.b16 %v3371
          %v3538 = vunpack.c.h.b16 %v3371
          %v3539 = vunpack.c.l.b16 %v3372
          %v3540 = vunpack.c.h.b16 %v3372
          %v3541 = vunpack.c.l.b16 %v3373
          %v3542 = vunpack.c.h.b16 %v3373
          %v3543 = vunpack.c.l.b16 %v3374
          %v3544 = vunpack.c.h.b16 %v3374
          %v3545 = vunpack.c.l.b16 %v3375
          %v3546 = vunpack.c.h.b16 %v3375
          %v3547 = vunpack.c.l.b16 %v3376
          %v3548 = vunpack.c.h.b16 %v3376
          %v3549 = vunpack.c.l.b16 %v3377
          %v3550 = vunpack.c.h.b16 %v3377
          %v3551 = vunpack.c.l.b16 %v3378
          %v3552 = vunpack.c.h.b16 %v3378
          %v3553 = vunpack.c.l.b16 %v3379
          %v3554 = vunpack.c.h.b16 %v3379
          %v3555 = vunpack.c.l.b16 %v3380
          %v3556 = vunpack.c.h.b16 %v3380
          %v3557 = vunpack.c.l.b16 %v3381
          %v3558 = vunpack.c.h.b16 %v3381
          %v3559 = vpack.c.b16 %v3497, %v3495
          %v3560 = vpack.c.b16 %v3498, %v3496
          %v3561 = vpack.c.b16 %v3501, %v3499
          %v3562 = vpack.c.b16 %v3502, %v3500
          %v3563 = vpack.c.b16 %v3505, %v3503
          %v3564 = vpack.c.b16 %v3506, %v3504
          %v3565 = vpack.c.b16 %v3509, %v3507
          %v3566 = vpack.c.b16 %v3510, %v3508
          %v3567 = vpack.c.b16 %v3513, %v3511
          %v3568 = vpack.c.b16 %v3514, %v3512
          %v3569 = vpack.c.b16 %v3517, %v3515
          %v3570 = vpack.c.b16 %v3518, %v3516
          %v3571 = vpack.c.b16 %v3521, %v3519
          %v3572 = vpack.c.b16 %v3522, %v3520
          %v3573 = vpack.c.b16 %v3525, %v3523
          %v3574 = vpack.c.b16 %v3526, %v3524
          %v3575 = vpack.c.b16 %v3529, %v3527
          %v3576 = vpack.c.b16 %v3530, %v3528
          %v3577 = vpack.c.b16 %v3533, %v3531
          %v3578 = vpack.c.b16 %v3534, %v3532
          %v3579 = vpack.c.b16 %v3537, %v3535
          %v3580 = vpack.c.b16 %v3538, %v3536
          %v3581 = vpack.c.b16 %v3541, %v3539
          %v3582 = vpack.c.b16 %v3542, %v3540
          %v3583 = vpack.c.b16 %v3545, %v3543
          %v3584 = vpack.c.b16 %v3546, %v3544
          %v3585 = vpack.c.b16 %v3549, %v3547
          %v3586 = vpack.c.b16 %v3550, %v3548
          %v3587 = vpack.c.b16 %v3553, %v3551
          %v3588 = vpack.c.b16 %v3554, %v3552
          %v3589 = vpack.c.b16 %v3557, %v3555
          %v3590 = vpack.c.b16 %v3558, %v3556
          %3623 = vmatprep.subr.bf16.mxu0 %v3574
          %3624 = vmatpush1.bf16.msra.mxu0 %v3573
          %3625 = vmatprep.subr.bf16.mxu0 %v3572
          %3626 = vmatpush1.bf16.msra.mxu0 %v3571
          %3627 = vmatprep.subr.bf16.mxu0 %v3570
          %3628 = vmatpush1.bf16.msra.mxu0 %v3569
          %3629 = vmatprep.subr.bf16.mxu0 %v3568
          %3630 = vmatpush1.bf16.msra.mxu0 %v3567
          %3631 = vmatprep.subr.bf16.mxu0 %v3566
          %3632 = vmatpush1.bf16.msra.mxu0 %v3565
          %3633 = vmatprep.subr.bf16.mxu0 %v3564
          %3634 = vmatpush1.bf16.msra.mxu0 %v3563
          %3635 = vmatprep.subr.bf16.mxu0 %v3562
          %3636 = vmatpush1.bf16.msra.mxu0 %v3561
          %3637 = vmatprep.subr.bf16.mxu0 %v3560
          %3638 = vmatpush1.bf16.msra.mxu0 %v3559
          %3639 = vmatprep.subr.bf16.mxu0 %v3590
          %3640 = vmatpush2.bf16.msra.mxu0 %v3589
          %3641 = vmatprep.subr.bf16.mxu0 %v3588
          %3642 = vmatpush2.bf16.msra.mxu0 %v3587
          %3643 = vmatprep.subr.bf16.mxu0 %v3586
          %3644 = vmatpush2.bf16.msra.mxu0 %v3585
          %3645 = vmatprep.subr.bf16.mxu0 %v3584
          %3646 = vmatpush2.bf16.msra.mxu0 %v3583
          %3647 = vmatprep.subr.bf16.mxu0 %v3582
          %3648 = vmatpush2.bf16.msra.mxu0 %v3581
          %3649 = vmatprep.subr.bf16.mxu0 %v3580
          %3650 = vmatpush2.bf16.msra.mxu0 %v3579
          %3651 = vmatprep.subr.bf16.mxu0 %v3578
          %3652 = vmatpush2.bf16.msra.mxu0 %v3577
          %3653 = vmatprep.subr.bf16.mxu0 %v3576
          %3654 = vmatpush2.bf16.msra.mxu0 %v3575
          %3655 = vmatprep.mubr.bf16.mxu0 %v3460
          %3656 = vmatmul.mubr.bf16.gmra.mxu0 %v3459
          %v3657 = vpop.f32.mrf.mxu0
          %v3658 = vadd.f32 0.0, %v3657
          %v3659 = vpop.f32.mrf.mxu0
          %v3660 = vadd.f32 0.0, %v3659
          %v3661 = vpop.f32.mrf.mxu0
          %v3662 = vadd.f32 0.0, %v3661
          %v3663 = vpop.f32.mrf.mxu0
          %v3664 = vadd.f32 0.0, %v3663
          %3665 = vmatprep.mubr.bf16.mxu0 %v3462
          %3666 = vmatmul.mubr.bf16.gmra.mxu0 %v3461
          %v3667 = vpop.f32.mrf.mxu0
          %v3668 = vadd.f32 0.0, %v3667
          %v3669 = vpop.f32.mrf.mxu0
          %v3670 = vadd.f32 0.0, %v3669
          %v3671 = vpop.f32.mrf.mxu0
          %v3672 = vadd.f32 0.0, %v3671
          %v3673 = vpop.f32.mrf.mxu0
          %v3674 = vadd.f32 0.0, %v3673
          %3675 = vdwg.mxu0
          %v3676 = vsub.f32 %v3334, %v3658
          %v3677 = vsub.f32 %v3335, %v3660
          %v3678 = vsub.f32 %v3336, %v3662
          %v3679 = vsub.f32 %v3337, %v3664
          %v3680 = vsub.f32 %v3338, %v3668
          %v3681 = vsub.f32 %v3339, %v3670
          %v3682 = vsub.f32 %v3340, %v3672
          %v3683 = vsub.f32 %v3341, %v3674
          %v3684 = vmul.f32 %v3676, %v3676
          %v3685 = vmul.f32 %v3677, %v3677
          %v3686 = vmul.f32 %v3678, %v3678
          %v3687 = vmul.f32 %v3679, %v3679
          %v3688 = vmul.f32 %v3680, %v3680
          %v3689 = vmul.f32 %v3681, %v3681
          %v3690 = vmul.f32 %v3682, %v3682
          %v3691 = vmul.f32 %v3683, %v3683
          %v3692 = vpack.c.bf16 %v3686, %v3684
          %v3693 = vpack.c.bf16 %v3687, %v3685
          %v3694 = vpack.c.bf16 %v3690, %v3688
          %v3695 = vpack.c.bf16 %v3691, %v3689
          %3696 = vmatprep.subr.bf16.mxu0 0
          %3697 = vmatpush1.bf16.msra.mxu0 0
          %3698 = vmatprep.subr.bf16.mxu0 0
          %3699 = vmatpush1.bf16.msra.mxu0 0
          %3700 = vmatprep.subr.bf16.mxu0 0
          %3701 = vmatpush1.bf16.msra.mxu0 0
          %3702 = vmatprep.subr.bf16.mxu0 0
          %3703 = vmatpush1.bf16.msra.mxu0 0
          %3704 = vmatprep.subr.bf16.mxu0 0
          %3705 = vmatpush1.bf16.msra.mxu0 0
          %3706 = vmatprep.subr.bf16.mxu0 0
          %3707 = vmatpush1.bf16.msra.mxu0 0
          %3708 = vmatprep.subr.bf16.mxu0 %v3695
          %3709 = vmatpush1.bf16.msra.mxu0 %v3694
          %3710 = vmatprep.subr.bf16.mxu0 %v3693
          %3711 = vmatpush1.bf16.msra.mxu0 %v3692
          %3712 = vmatprep.subr.bf16.mxu0 0
          %3713 = vmatpush2.bf16.msra.mxu0 0
          %3714 = vmatprep.subr.bf16.mxu0 0
          %3715 = vmatpush2.bf16.msra.mxu0 0
          %3716 = vmatprep.subr.bf16.mxu0 0
          %3717 = vmatpush2.bf16.msra.mxu0 0
          %3718 = vmatprep.subr.bf16.mxu0 0
          %3719 = vmatpush2.bf16.msra.mxu0 0
          %3720 = vmatprep.subr.bf16.mxu0 0
          %3721 = vmatpush2.bf16.msra.mxu0 0
          %3722 = vmatprep.subr.bf16.mxu0 0
          %3723 = vmatpush2.bf16.msra.mxu0 0
          %3724 = vmatprep.subr.bf16.mxu0 0
          %3725 = vmatpush2.bf16.msra.mxu0 0
          %3726 = vmatprep.subr.bf16.mxu0 0
          %3727 = vmatpush2.bf16.msra.mxu0 0
          %3728 = vmatprep.mubr.bf16.mxu0 0
          %3729 = vmatmul.mubr.bf16.gmra.mxu0 %v3401
          %v3730 = vpop.f32.mrf.mxu0
          %v3731 = vadd.f32 0.0, %v3730
          %v3732 = vpop.f32.mrf.mxu0
          %v3733 = vadd.f32 0.0, %v3732
          %v3734 = vpop.f32.mrf.mxu0
          %v3735 = vadd.f32 0.0, %v3734
          %v3736 = vpop.f32.mrf.mxu0
          %v3737 = vadd.f32 0.0, %v3736
          %3738 = vmatprep.mubr.bf16.mxu0 0
          %3739 = vmatmul.mubr.bf16.gmra.mxu0 %v3404
          %v3740 = vpop.f32.mrf.mxu0
          %v3741 = vadd.f32 0.0, %v3740
          %v3742 = vpop.f32.mrf.mxu0
          %v3743 = vadd.f32 0.0, %v3742
          %v3744 = vpop.f32.mrf.mxu0
          %v3745 = vadd.f32 0.0, %v3744
          %v3746 = vpop.f32.mrf.mxu0
          %v3747 = vadd.f32 0.0, %v3746
          %3748 = vdwg.mxu0
          %v3749 = vpack.c.bf16 %v3735, %v3731
          %v3750 = vpack.c.bf16 %v3737, %v3733
          %v3751 = vpack.c.bf16 %v3745, %v3741
          %v3752 = vpack.c.bf16 %v3747, %v3743
          %3753 = vmatprep.subr.bf16.mxu0 %v3574
          %3754 = vmatpush1.bf16.msra.mxu0 %v3573
          %3755 = vmatprep.subr.bf16.mxu0 %v3572
          %3756 = vmatpush1.bf16.msra.mxu0 %v3571
          %3757 = vmatprep.subr.bf16.mxu0 %v3570
          %3758 = vmatpush1.bf16.msra.mxu0 %v3569
          %3759 = vmatprep.subr.bf16.mxu0 %v3568
          %3760 = vmatpush1.bf16.msra.mxu0 %v3567
          %3761 = vmatprep.subr.bf16.mxu0 %v3566
          %3762 = vmatpush1.bf16.msra.mxu0 %v3565
          %3763 = vmatprep.subr.bf16.mxu0 %v3564
          %3764 = vmatpush1.bf16.msra.mxu0 %v3563
          %3765 = vmatprep.subr.bf16.mxu0 %v3562
          %3766 = vmatpush1.bf16.msra.mxu0 %v3561
          %3767 = vmatprep.subr.bf16.mxu0 %v3560
          %3768 = vmatpush1.bf16.msra.mxu0 %v3559
          %3769 = vmatprep.subr.bf16.mxu0 %v3590
          %3770 = vmatpush2.bf16.msra.mxu0 %v3589
          %3771 = vmatprep.subr.bf16.mxu0 %v3588
          %3772 = vmatpush2.bf16.msra.mxu0 %v3587
          %3773 = vmatprep.subr.bf16.mxu0 %v3586
          %3774 = vmatpush2.bf16.msra.mxu0 %v3585
          %3775 = vmatprep.subr.bf16.mxu0 %v3584
          %3776 = vmatpush2.bf16.msra.mxu0 %v3583
          %3777 = vmatprep.subr.bf16.mxu0 %v3582
          %3778 = vmatpush2.bf16.msra.mxu0 %v3581
          %3779 = vmatprep.subr.bf16.mxu0 %v3580
          %3780 = vmatpush2.bf16.msra.mxu0 %v3579
          %3781 = vmatprep.subr.bf16.mxu0 %v3578
          %3782 = vmatpush2.bf16.msra.mxu0 %v3577
          %3783 = vmatprep.subr.bf16.mxu0 %v3576
          %3784 = vmatpush2.bf16.msra.mxu0 %v3575
          %3785 = vmatprep.mubr.bf16.mxu0 %v3750
          %3786 = vmatmul.mubr.bf16.gmra.mxu0 %v3749
          %v3787 = vpop.f32.mrf.mxu0
          %v3788 = vadd.f32 1e-05, %v3787
          %v3789 = vpop.f32.mrf.mxu0
          %v3790 = vadd.f32 1e-05, %v3789
          %v3791 = vpop.f32.mrf.mxu0
          %v3792 = vadd.f32 1e-05, %v3791
          %v3793 = vpop.f32.mrf.mxu0
          %v3794 = vadd.f32 1e-05, %v3793
          %3795 = vmatprep.mubr.bf16.mxu0 %v3752
          %3796 = vmatmul.mubr.bf16.gmra.mxu0 %v3751
          %v3797 = vpop.f32.mrf.mxu0
          %v3798 = vadd.f32 1e-05, %v3797
          %v3799 = vpop.f32.mrf.mxu0
          %v3800 = vadd.f32 1e-05, %v3799
          %v3801 = vpop.f32.mrf.mxu0
          %v3802 = vadd.f32 1e-05, %v3801
          %v3803 = vpop.f32.mrf.mxu0
          %v3804 = vadd.f32 1e-05, %v3803
          %3805 = vdwg.mxu0
          %v3806 = vrsqrt.pop %v3788
          %v3807 = vrsqrt.pop %v3790
          %v3808 = vrsqrt.pop %v3792
          %v3809 = vrsqrt.pop %v3794
          %v3810 = vrsqrt.pop %v3798
          %v3811 = vrsqrt.pop %v3800
          %v3812 = vrsqrt.pop %v3802
          %v3813 = vrsqrt.pop %v3804
          %v3814 = vmul.f32 %v3676, %v3806
          %v3815 = vmul.f32 %v3677, %v3807
          %v3816 = vmul.f32 %v3678, %v3808
          %v3817 = vmul.f32 %v3679, %v3809
          %v3818 = vmul.f32 %v3680, %v3810
          %v3819 = vmul.f32 %v3681, %v3811
          %v3820 = vmul.f32 %v3682, %v3812
          %v3821 = vmul.f32 %v3683, %v3813
          %v3823 = vlaneseq
          %v3824 = vshrl.u32 %v3823, 7
          %v3825 = vsub.s32 0, %v3824
          %v3826 = vrot.slane %v3383, %v3825
          %v3827 = vlaneseq
          %v3828 = vshrl.u32 %v3827, 7
          %v3829 = vsub.s32 1, %v3828
          %v3830 = vrot.slane %v3383, %v3829
          %v3833 = vmul.f32 %v3814, %v3826
          %v3834 = vmul.f32 %v3815, %v3830
          %v3835 = vmul.f32 %v3816, %v3826
          %v3836 = vmul.f32 %v3817, %v3830
          %v3837 = vmul.f32 %v3818, %v3826
          %v3838 = vmul.f32 %v3819, %v3830
          %v3839 = vmul.f32 %v3820, %v3826
          %v3840 = vmul.f32 %v3821, %v3830
          %v3842 = vlaneseq
          %v3843 = vshrl.u32 %v3842, 7
          %v3844 = vsub.s32 0, %v3843
          %v3845 = vrot.slane %v3385, %v3844
          %v3846 = vlaneseq
          %v3847 = vshrl.u32 %v3846, 7
          %v3848 = vsub.s32 1, %v3847
          %v3849 = vrot.slane %v3385, %v3848
          %v3852 = vadd.f32 %v3833, %v3845
          %v3853 = vadd.f32 %v3834, %v3849
          %v3854 = vadd.f32 %v3835, %v3845
          %v3855 = vadd.f32 %v3836, %v3849
          %v3856 = vadd.f32 %v3837, %v3845
          %v3857 = vadd.f32 %v3838, %v3849
          %v3858 = vadd.f32 %v3839, %v3845
          %v3859 = vadd.f32 %v3840, %v3849
          %v3860 = vmax.f32 %v3852, 0.0
          %v3861 = vmax.f32 %v3853, 0.0
          %v3862 = vmax.f32 %v3854, 0.0
          %v3863 = vmax.f32 %v3855, 0.0
          %v3864 = vmax.f32 %v3856, 0.0
          %v3865 = vmax.f32 %v3857, 0.0
          %v3866 = vmax.f32 %v3858, 0.0
          %v3867 = vmax.f32 %v3859, 0.0
          %v3868 = vpack.c.bf16 %v3862, %v3860
          %v3869 = vpack.c.bf16 %v3863, %v3861
          %v3870 = vpack.c.bf16 %v3866, %v3864
          %v3871 = vpack.c.bf16 %v3867, %v3865
          %v3876 = vunpack.c.l.b16 %v3868
          %v3877 = vunpack.c.l.b16 %v3869
          %v3878 = vunpack.c.h.b16 %v3868
          %v3879 = vunpack.c.h.b16 %v3869
          %v3880 = vunpack.c.l.b16 %v3870
          %v3881 = vunpack.c.l.b16 %v3871
          %v3882 = vunpack.c.h.b16 %v3870
          %v3883 = vunpack.c.h.b16 %v3871
          %v3884 = vpack.c.b16 %v3877, %v3876
          %v3885 = vpack.c.b16 %v3879, %v3878
          %v3886 = vpack.c.b16 %v3881, %v3880
          %v3887 = vpack.c.b16 %v3883, %v3882
          %3892 = vst [vmem:[#allocation2] sm:$0xff] %v3884
          %3893 = vst [vmem:[#allocation2 + $0x8] sm:$0xff] %v3885
          %3894 = vst [vmem:[#allocation2 + $0x10] sm:$0xff] %v3886
          %3895 = vst [vmem:[#allocation2 + $0x18] sm:$0xff] %v3887
        $region56: #{retinanet_forward.3} parent=43 // pred_fallthru
          _
        %p3896 = scmp.eq.s32.totalorder %s25, 4
        // Predicated region
        $region57: #{retinanet_forward.3} parent=43 // pred_check
          %p3897 = pneg %p3896
        $region58: #{retinanet_forward.3} parent=43 // pred_check_branch
          %3899 = sbr.rel (%p3897) target = $region60
        $region59: #{retinanet_forward.3} parent=43 // pred_region
          %3900 = vst [vmem:[%s321] sm:$0xff] %v3334
          %3901 = vst [vmem:[%s321 + $0x8] sm:$0xff] %v3335
          %3902 = vst [vmem:[%s321 + $0x10] sm:$0xff] %v3336
          %3903 = vst [vmem:[%s321 + $0x18] sm:$0xff] %v3337
          %3904 = vst [vmem:[%s321 + $0x20] sm:$0xff] %v3338
          %3905 = vst [vmem:[%s321 + $0x28] sm:$0xff] %v3339
          %3906 = vst [vmem:[%s321 + $0x30] sm:$0xff] %v3340
          %3907 = vst [vmem:[%s321 + $0x38] sm:$0xff] %v3341
        $region60: #{retinanet_forward.3} parent=43 // pred_fallthru
          _
        %p3908 = scmp.lt.s32.totalorder %s24, 1
        %s3909 = scalar_select %p3908, %s24, 1
        %s3910 = smul.addr %s3909, 8
        %s3911 = smul.addr %s3910, 8
        %s3912 = scalar_lea.vmem %s6, %s3911
        // Predicated region
        $region61: #{retinanet_forward.3} parent=43 // pred_check
          %p3913 = pneg %p190
        $region62: #{retinanet_forward.3} parent=43 // pred_check_branch
          %3915 = sbr.rel (%p3913) target = $region64
        $region63: #{retinanet_forward.3} parent=43 // pred_region
          _
        $region64: #{retinanet_forward.3} parent=43 // pred_fallthru
          _
      $region44: #{retinanet_forward.3} parent=5 // pred_fallthru
        _
      %p3916 = scmp.le.s32.totalorder 2, %s15
      // Predicated region
      $region65: #{retinanet_forward.3} parent=5 // pred_check
        %p3917 = pneg %p3916
      $region66: #{retinanet_forward.3} parent=5 // pred_check_branch
        %3919 = sbr.rel (%p3917) target = $region68
      $region67: #{retinanet_forward.3} parent=5 // pred_region
        %s3920 = ssub.s32 %s15, 2
        // Predicated region
        $region69: #{retinanet_forward.3} parent=67 // pred_check
          %p3921 = pneg %p196
        $region70: #{retinanet_forward.3} parent=67 // pred_check_branch
          %3923 = sbr.rel (%p3921) target = $region72
        $region71: #{retinanet_forward.3} parent=67 // pred_region
          %p3924 = scmp.lt.s32.totalorder %s26, 1
          %s3925 = scalar_select %p3924, %s26, 1
          %s3926 = smul.addr %s3925, 8
          %s3927 = smul.addr %s3926, 8
          %s3928 = scalar_lea.vmem %s6, %s3927
        $region72: #{retinanet_forward.3} parent=67 // pred_fallthru
          _
      $region68: #{retinanet_forward.3} parent=5 // pred_fallthru
        _
    $region6: #{retinanet_forward.3} parent=1 // loop_footer
      %s19 = sadd.s32 1, %s15
    $region7: #{retinanet_forward.3} parent=1 // loop_footer_branch
      %14 = sbr.rel target = $region3
    $region8: #{retinanet_forward.3} parent=1 // loop_exit
      _
    %3929 = vsyncpa [#allocation4], 1
    %s3930 = scalar_lea.sflag [#allocation4], 1
    %3931 = vsyncpa %s3930, 1

// kernel: retinanet_forward.2
$region0: #{retinanet_forward.2}
  #allocation0 [shape = 'u32[]', space=smem, size = 0x4, offset = 0x4, fixed_abs, tag = 'smem constant byte address 0x4 - core index']
  #allocation1 [shape = 'u32[144,128]{1,0:T(1,128)}', space=vmem, size = 0x12000, scoped, tag = 'internal scratch']
  %s0 = inlined_call_operand.vmem [shape: bf16[32,2048], index: 0, kind: input, shape index: {}]
  %s1 = inlined_call_operand.vmem [shape: bf16[2048,256], index: 1, kind: input, shape index: {}]
  %s2 = inlined_call_operand.vmem [shape: bf16[2304,256], index: 2, kind: input, shape index: {}]
  %s3 = inlined_call_operand.vmem [shape: f32[16,256], index: 3, kind: input, shape index: {}]
  %s4 = inlined_call_operand.vmem [shape: bf16[9,32,32], index: 4, kind: input, shape index: {}]
  %s5 = inlined_call_operand.vmem [shape: bf16[32,32], index: 5, kind: input, shape index: {}]
  %s6 = inlined_call_operand.vmem [shape: bf16[256,256], index: 6, kind: input, shape index: {}]
  %s7 = inlined_call_operand.vmem [shape: bf16[32,256], index: 7, kind: output, shape index: {}]
  %s8 = sld [smem:[#allocation0]]
  $region38: #{retinanet_forward.2} parent=0
    _
  %s10 = ssub.s32 1, %s8
  %s11 = scalar_select 0, %s10, %s8
  // Predicated region
  $region2: #{retinanet_forward.2} parent=0 // pred_check
    _
  $region3: #{retinanet_forward.2} parent=0 // pred_check_branch
    %13 = sbr.rel (0) target = $region5
  $region4: #{retinanet_forward.2} parent=0 // pred_region
    _
  $region5: #{retinanet_forward.2} parent=0 // pred_fallthru
    _
  // Predicated region
  $region6: #{retinanet_forward.2} parent=0 // pred_check
    _
  $region7: #{retinanet_forward.2} parent=0 // pred_check_branch
    %15 = sbr.rel (0) target = $region9
  $region8: #{retinanet_forward.2} parent=0 // pred_region
    _
  $region9: #{retinanet_forward.2} parent=0 // pred_fallthru
    _
  // Predicated region
  $region10: #{retinanet_forward.2} parent=0 // pred_check
    _
  $region11: #{retinanet_forward.2} parent=0 // pred_check_branch
    %17 = sbr.rel (0) target = $region13
  $region12: #{retinanet_forward.2} parent=0 // pred_region
    _
  $region13: #{retinanet_forward.2} parent=0 // pred_fallthru
    _
  // Predicated region
  $region14: #{retinanet_forward.2} parent=0 // pred_check
    _
  $region15: #{retinanet_forward.2} parent=0 // pred_check_branch
    %19 = sbr.rel (0) target = $region17
  $region16: #{retinanet_forward.2} parent=0 // pred_region
    _
  $region17: #{retinanet_forward.2} parent=0 // pred_fallthru
    _
  // Predicated region
  $region18: #{retinanet_forward.2} parent=0 // pred_check
    _
  $region19: #{retinanet_forward.2} parent=0 // pred_check_branch
    %21 = sbr.rel (0) target = $region21
  $region20: #{retinanet_forward.2} parent=0 // pred_region
    _
  $region21: #{retinanet_forward.2} parent=0 // pred_fallthru
    _
  // Predicated region
  $region22: #{retinanet_forward.2} parent=0 // pred_check
    _
  $region23: #{retinanet_forward.2} parent=0 // pred_check_branch
    %23 = sbr.rel (0) target = $region25
  $region24: #{retinanet_forward.2} parent=0 // pred_region
    _
  $region25: #{retinanet_forward.2} parent=0 // pred_fallthru
    _
  // Predicated region
  $region26: #{retinanet_forward.2} parent=0 // pred_check
    _
  $region27: #{retinanet_forward.2} parent=0 // pred_check_branch
    %25 = sbr.rel (0) target = $region29
  $region28: #{retinanet_forward.2} parent=0 // pred_region
    _
  $region29: #{retinanet_forward.2} parent=0 // pred_fallthru
    _
  %v27 = vld [vmem:[%s5] sm:$0xf]
  %v28 = vld [vmem:[%s5 + $0x4] sm:$0xf]
  %v29 = vld [vmem:[%s5 + $0x8] sm:$0xf]
  %v30 = vld [vmem:[%s5 + $0xc] sm:$0xf]
  %v31 = vld [vmem:[%s6] sm:$0xff]
  %v32 = vld [vmem:[%s6 + $0x8] sm:$0xff]
  %v33 = vld [vmem:[%s6 + $0x10] sm:$0xff]
  %v34 = vld [vmem:[%s6 + $0x18] sm:$0xff]
  %v35 = vld [vmem:[%s6 + $0x20] sm:$0xff]
  %v36 = vld [vmem:[%s6 + $0x28] sm:$0xff]
  %v37 = vld [vmem:[%s6 + $0x30] sm:$0xff]
  %v38 = vld [vmem:[%s6 + $0x38] sm:$0xff]
  %v39 = vld [vmem:[%s6 + $0x40] sm:$0xff]
  %v40 = vld [vmem:[%s6 + $0x48] sm:$0xff]
  %v41 = vld [vmem:[%s6 + $0x50] sm:$0xff]
  %v42 = vld [vmem:[%s6 + $0x58] sm:$0xff]
  %v43 = vld [vmem:[%s6 + $0x60] sm:$0xff]
  %v44 = vld [vmem:[%s6 + $0x68] sm:$0xff]
  %v45 = vld [vmem:[%s6 + $0x70] sm:$0xff]
  %v46 = vld [vmem:[%s6 + $0x78] sm:$0xff]
  %v47 = vld [vmem:[%s6 + $0x80] sm:$0xff]
  %v48 = vld [vmem:[%s6 + $0x88] sm:$0xff]
  %v49 = vld [vmem:[%s6 + $0x90] sm:$0xff]
  %v50 = vld [vmem:[%s6 + $0x98] sm:$0xff]
  %v51 = vld [vmem:[%s6 + $0xa0] sm:$0xff]
  %v52 = vld [vmem:[%s6 + $0xa8] sm:$0xff]
  %v53 = vld [vmem:[%s6 + $0xb0] sm:$0xff]
  %v54 = vld [vmem:[%s6 + $0xb8] sm:$0xff]
  %v55 = vld [vmem:[%s6 + $0xc0] sm:$0xff]
  %v56 = vld [vmem:[%s6 + $0xc8] sm:$0xff]
  %v57 = vld [vmem:[%s6 + $0xd0] sm:$0xff]
  %v58 = vld [vmem:[%s6 + $0xd8] sm:$0xff]
  %v59 = vld [vmem:[%s6 + $0xe0] sm:$0xff]
  %v60 = vld [vmem:[%s6 + $0xe8] sm:$0xff]
  %v61 = vld [vmem:[%s6 + $0xf0] sm:$0xff]
  %v62 = vld [vmem:[%s6 + $0xf8] sm:$0xff]
  %v63 = vld [vmem:[%s0] sm:$0xff]
  %v64 = vld [vmem:[%s0 + $0x8] sm:$0xff]
  %v65 = vld [vmem:[%s0 + $0x10] sm:$0xff]
  %v66 = vld [vmem:[%s0 + $0x18] sm:$0xff]
  %v67 = vld [vmem:[%s0 + $0x20] sm:$0xff]
  %v68 = vld [vmem:[%s0 + $0x28] sm:$0xff]
  %v69 = vld [vmem:[%s0 + $0x30] sm:$0xff]
  %v70 = vld [vmem:[%s0 + $0x38] sm:$0xff]
  %v71 = vld [vmem:[%s0 + $0x40] sm:$0xff]
  %v72 = vld [vmem:[%s0 + $0x48] sm:$0xff]
  %v73 = vld [vmem:[%s0 + $0x50] sm:$0xff]
  %v74 = vld [vmem:[%s0 + $0x58] sm:$0xff]
  %v75 = vld [vmem:[%s0 + $0x60] sm:$0xff]
  %v76 = vld [vmem:[%s0 + $0x68] sm:$0xff]
  %v77 = vld [vmem:[%s0 + $0x70] sm:$0xff]
  %v78 = vld [vmem:[%s0 + $0x78] sm:$0xff]
  %v79 = vld [vmem:[%s0 + $0x80] sm:$0xff]
  %v80 = vld [vmem:[%s0 + $0x88] sm:$0xff]
  %v81 = vld [vmem:[%s0 + $0x90] sm:$0xff]
  %v82 = vld [vmem:[%s0 + $0x98] sm:$0xff]
  %v83 = vld [vmem:[%s0 + $0xa0] sm:$0xff]
  %v84 = vld [vmem:[%s0 + $0xa8] sm:$0xff]
  %v85 = vld [vmem:[%s0 + $0xb0] sm:$0xff]
  %v86 = vld [vmem:[%s0 + $0xb8] sm:$0xff]
  %v87 = vld [vmem:[%s0 + $0xc0] sm:$0xff]
  %v88 = vld [vmem:[%s0 + $0xc8] sm:$0xff]
  %v89 = vld [vmem:[%s0 + $0xd0] sm:$0xff]
  %v90 = vld [vmem:[%s0 + $0xd8] sm:$0xff]
  %v91 = vld [vmem:[%s0 + $0xe0] sm:$0xff]
  %v92 = vld [vmem:[%s0 + $0xe8] sm:$0xff]
  %v93 = vld [vmem:[%s0 + $0xf0] sm:$0xff]
  %v94 = vld [vmem:[%s0 + $0xf8] sm:$0xff]
  %v95 = vld [vmem:[%s1] sm:$0xff]
  %v96 = vld [vmem:[%s1 + $0x8] sm:$0xff]
  %v97 = vld [vmem:[%s1 + $0x10] sm:$0xff]
  %v98 = vld [vmem:[%s1 + $0x18] sm:$0xff]
  %v99 = vld [vmem:[%s1 + $0x20] sm:$0xff]
  %v100 = vld [vmem:[%s1 + $0x28] sm:$0xff]
  %v101 = vld [vmem:[%s1 + $0x30] sm:$0xff]
  %v102 = vld [vmem:[%s1 + $0x38] sm:$0xff]
  %v103 = vld [vmem:[%s1 + $0x40] sm:$0xff]
  %v104 = vld [vmem:[%s1 + $0x48] sm:$0xff]
  %v105 = vld [vmem:[%s1 + $0x50] sm:$0xff]
  %v106 = vld [vmem:[%s1 + $0x58] sm:$0xff]
  %v107 = vld [vmem:[%s1 + $0x60] sm:$0xff]
  %v108 = vld [vmem:[%s1 + $0x68] sm:$0xff]
  %v109 = vld [vmem:[%s1 + $0x70] sm:$0xff]
  %v110 = vld [vmem:[%s1 + $0x78] sm:$0xff]
  %v111 = vld [vmem:[%s1 + $0x80] sm:$0xff]
  %v112 = vld [vmem:[%s1 + $0x88] sm:$0xff]
  %v113 = vld [vmem:[%s1 + $0x90] sm:$0xff]
  %v114 = vld [vmem:[%s1 + $0x98] sm:$0xff]
  %v115 = vld [vmem:[%s1 + $0xa0] sm:$0xff]
  %v116 = vld [vmem:[%s1 + $0xa8] sm:$0xff]
  %v117 = vld [vmem:[%s1 + $0xb0] sm:$0xff]
  %v118 = vld [vmem:[%s1 + $0xb8] sm:$0xff]
  %v119 = vld [vmem:[%s1 + $0xc0] sm:$0xff]
  %v120 = vld [vmem:[%s1 + $0xc8] sm:$0xff]
  %v121 = vld [vmem:[%s1 + $0xd0] sm:$0xff]
  %v122 = vld [vmem:[%s1 + $0xd8] sm:$0xff]
  %v123 = vld [vmem:[%s1 + $0xe0] sm:$0xff]
  %v124 = vld [vmem:[%s1 + $0xe8] sm:$0xff]
  %v125 = vld [vmem:[%s1 + $0xf0] sm:$0xff]
  %v126 = vld [vmem:[%s1 + $0xf8] sm:$0xff]
  %v127 = vld [vmem:[%s1 + $0x100] sm:$0xff]
  %v128 = vld [vmem:[%s1 + $0x108] sm:$0xff]
  %v129 = vld [vmem:[%s1 + $0x110] sm:$0xff]
  %v130 = vld [vmem:[%s1 + $0x118] sm:$0xff]
  %v131 = vld [vmem:[%s1 + $0x120] sm:$0xff]
  %v132 = vld [vmem:[%s1 + $0x128] sm:$0xff]
  %v133 = vld [vmem:[%s1 + $0x130] sm:$0xff]
  %v134 = vld [vmem:[%s1 + $0x138] sm:$0xff]
  %v135 = vld [vmem:[%s1 + $0x140] sm:$0xff]
  %v136 = vld [vmem:[%s1 + $0x148] sm:$0xff]
  %v137 = vld [vmem:[%s1 + $0x150] sm:$0xff]
  %v138 = vld [vmem:[%s1 + $0x158] sm:$0xff]
  %v139 = vld [vmem:[%s1 + $0x160] sm:$0xff]
  %v140 = vld [vmem:[%s1 + $0x168] sm:$0xff]
  %v141 = vld [vmem:[%s1 + $0x170] sm:$0xff]
  %v142 = vld [vmem:[%s1 + $0x178] sm:$0xff]
  %v143 = vld [vmem:[%s1 + $0x180] sm:$0xff]
  %v144 = vld [vmem:[%s1 + $0x188] sm:$0xff]
  %v145 = vld [vmem:[%s1 + $0x190] sm:$0xff]
  %v146 = vld [vmem:[%s1 + $0x198] sm:$0xff]
  %v147 = vld [vmem:[%s1 + $0x1a0] sm:$0xff]
  %v148 = vld [vmem:[%s1 + $0x1a8] sm:$0xff]
  %v149 = vld [vmem:[%s1 + $0x1b0] sm:$0xff]
  %v150 = vld [vmem:[%s1 + $0x1b8] sm:$0xff]
  %v151 = vld [vmem:[%s1 + $0x1c0] sm:$0xff]
  %v152 = vld [vmem:[%s1 + $0x1c8] sm:$0xff]
  %v153 = vld [vmem:[%s1 + $0x1d0] sm:$0xff]
  %v154 = vld [vmem:[%s1 + $0x1d8] sm:$0xff]
  %v155 = vld [vmem:[%s1 + $0x1e0] sm:$0xff]
  %v156 = vld [vmem:[%s1 + $0x1e8] sm:$0xff]
  %v157 = vld [vmem:[%s1 + $0x1f0] sm:$0xff]
  %v158 = vld [vmem:[%s1 + $0x1f8] sm:$0xff]
  %v159 = vld [vmem:[%s1 + $0x200] sm:$0xff]
  %v160 = vld [vmem:[%s1 + $0x208] sm:$0xff]
  %v161 = vld [vmem:[%s1 + $0x210] sm:$0xff]
  %v162 = vld [vmem:[%s1 + $0x218] sm:$0xff]
  %v163 = vld [vmem:[%s1 + $0x220] sm:$0xff]
  %v164 = vld [vmem:[%s1 + $0x228] sm:$0xff]
  %v165 = vld [vmem:[%s1 + $0x230] sm:$0xff]
  %v166 = vld [vmem:[%s1 + $0x238] sm:$0xff]
  %v167 = vld [vmem:[%s1 + $0x240] sm:$0xff]
  %v168 = vld [vmem:[%s1 + $0x248] sm:$0xff]
  %v169 = vld [vmem:[%s1 + $0x250] sm:$0xff]
  %v170 = vld [vmem:[%s1 + $0x258] sm:$0xff]
  %v171 = vld [vmem:[%s1 + $0x260] sm:$0xff]
  %v172 = vld [vmem:[%s1 + $0x268] sm:$0xff]
  %v173 = vld [vmem:[%s1 + $0x270] sm:$0xff]
  %v174 = vld [vmem:[%s1 + $0x278] sm:$0xff]
  %v175 = vld [vmem:[%s1 + $0x280] sm:$0xff]
  %v176 = vld [vmem:[%s1 + $0x288] sm:$0xff]
  %v177 = vld [vmem:[%s1 + $0x290] sm:$0xff]
  %v178 = vld [vmem:[%s1 + $0x298] sm:$0xff]
  %v179 = vld [vmem:[%s1 + $0x2a0] sm:$0xff]
  %v180 = vld [vmem:[%s1 + $0x2a8] sm:$0xff]
  %v181 = vld [vmem:[%s1 + $0x2b0] sm:$0xff]
  %v182 = vld [vmem:[%s1 + $0x2b8] sm:$0xff]
  %v183 = vld [vmem:[%s1 + $0x2c0] sm:$0xff]
  %v184 = vld [vmem:[%s1 + $0x2c8] sm:$0xff]
  %v185 = vld [vmem:[%s1 + $0x2d0] sm:$0xff]
  %v186 = vld [vmem:[%s1 + $0x2d8] sm:$0xff]
  %v187 = vld [vmem:[%s1 + $0x2e0] sm:$0xff]
  %v188 = vld [vmem:[%s1 + $0x2e8] sm:$0xff]
  %v189 = vld [vmem:[%s1 + $0x2f0] sm:$0xff]
  %v190 = vld [vmem:[%s1 + $0x2f8] sm:$0xff]
  %v191 = vld [vmem:[%s1 + $0x300] sm:$0xff]
  %v192 = vld [vmem:[%s1 + $0x308] sm:$0xff]
  %v193 = vld [vmem:[%s1 + $0x310] sm:$0xff]
  %v194 = vld [vmem:[%s1 + $0x318] sm:$0xff]
  %v195 = vld [vmem:[%s1 + $0x320] sm:$0xff]
  %v196 = vld [vmem:[%s1 + $0x328] sm:$0xff]
  %v197 = vld [vmem:[%s1 + $0x330] sm:$0xff]
  %v198 = vld [vmem:[%s1 + $0x338] sm:$0xff]
  %v199 = vld [vmem:[%s1 + $0x340] sm:$0xff]
  %v200 = vld [vmem:[%s1 + $0x348] sm:$0xff]
  %v201 = vld [vmem:[%s1 + $0x350] sm:$0xff]
  %v202 = vld [vmem:[%s1 + $0x358] sm:$0xff]
  %v203 = vld [vmem:[%s1 + $0x360] sm:$0xff]
  %v204 = vld [vmem:[%s1 + $0x368] sm:$0xff]
  %v205 = vld [vmem:[%s1 + $0x370] sm:$0xff]
  %v206 = vld [vmem:[%s1 + $0x378] sm:$0xff]
  %v207 = vld [vmem:[%s1 + $0x380] sm:$0xff]
  %v208 = vld [vmem:[%s1 + $0x388] sm:$0xff]
  %v209 = vld [vmem:[%s1 + $0x390] sm:$0xff]
  %v210 = vld [vmem:[%s1 + $0x398] sm:$0xff]
  %v211 = vld [vmem:[%s1 + $0x3a0] sm:$0xff]
  %v212 = vld [vmem:[%s1 + $0x3a8] sm:$0xff]
  %v213 = vld [vmem:[%s1 + $0x3b0] sm:$0xff]
  %v214 = vld [vmem:[%s1 + $0x3b8] sm:$0xff]
  %v215 = vld [vmem:[%s1 + $0x3c0] sm:$0xff]
  %v216 = vld [vmem:[%s1 + $0x3c8] sm:$0xff]
  %v217 = vld [vmem:[%s1 + $0x3d0] sm:$0xff]
  %v218 = vld [vmem:[%s1 + $0x3d8] sm:$0xff]
  %v219 = vld [vmem:[%s1 + $0x3e0] sm:$0xff]
  %v220 = vld [vmem:[%s1 + $0x3e8] sm:$0xff]
  %v221 = vld [vmem:[%s1 + $0x3f0] sm:$0xff]
  %v222 = vld [vmem:[%s1 + $0x3f8] sm:$0xff]
  %v223 = vld [vmem:[%s1 + $0x400] sm:$0xff]
  %v224 = vld [vmem:[%s1 + $0x408] sm:$0xff]
  %v225 = vld [vmem:[%s1 + $0x410] sm:$0xff]
  %v226 = vld [vmem:[%s1 + $0x418] sm:$0xff]
  %v227 = vld [vmem:[%s1 + $0x420] sm:$0xff]
  %v228 = vld [vmem:[%s1 + $0x428] sm:$0xff]
  %v229 = vld [vmem:[%s1 + $0x430] sm:$0xff]
  %v230 = vld [vmem:[%s1 + $0x438] sm:$0xff]
  %v231 = vld [vmem:[%s1 + $0x440] sm:$0xff]
  %v232 = vld [vmem:[%s1 + $0x448] sm:$0xff]
  %v233 = vld [vmem:[%s1 + $0x450] sm:$0xff]
  %v234 = vld [vmem:[%s1 + $0x458] sm:$0xff]
  %v235 = vld [vmem:[%s1 + $0x460] sm:$0xff]
  %v236 = vld [vmem:[%s1 + $0x468] sm:$0xff]
  %v237 = vld [vmem:[%s1 + $0x470] sm:$0xff]
  %v238 = vld [vmem:[%s1 + $0x478] sm:$0xff]
  %v239 = vld [vmem:[%s1 + $0x480] sm:$0xff]
  %v240 = vld [vmem:[%s1 + $0x488] sm:$0xff]
  %v241 = vld [vmem:[%s1 + $0x490] sm:$0xff]
  %v242 = vld [vmem:[%s1 + $0x498] sm:$0xff]
  %v243 = vld [vmem:[%s1 + $0x4a0] sm:$0xff]
  %v244 = vld [vmem:[%s1 + $0x4a8] sm:$0xff]
  %v245 = vld [vmem:[%s1 + $0x4b0] sm:$0xff]
  %v246 = vld [vmem:[%s1 + $0x4b8] sm:$0xff]
  %v247 = vld [vmem:[%s1 + $0x4c0] sm:$0xff]
  %v248 = vld [vmem:[%s1 + $0x4c8] sm:$0xff]
  %v249 = vld [vmem:[%s1 + $0x4d0] sm:$0xff]
  %v250 = vld [vmem:[%s1 + $0x4d8] sm:$0xff]
  %v251 = vld [vmem:[%s1 + $0x4e0] sm:$0xff]
  %v252 = vld [vmem:[%s1 + $0x4e8] sm:$0xff]
  %v253 = vld [vmem:[%s1 + $0x4f0] sm:$0xff]
  %v254 = vld [vmem:[%s1 + $0x4f8] sm:$0xff]
  %v255 = vld [vmem:[%s1 + $0x500] sm:$0xff]
  %v256 = vld [vmem:[%s1 + $0x508] sm:$0xff]
  %v257 = vld [vmem:[%s1 + $0x510] sm:$0xff]
  %v258 = vld [vmem:[%s1 + $0x518] sm:$0xff]
  %v259 = vld [vmem:[%s1 + $0x520] sm:$0xff]
  %v260 = vld [vmem:[%s1 + $0x528] sm:$0xff]
  %v261 = vld [vmem:[%s1 + $0x530] sm:$0xff]
  %v262 = vld [vmem:[%s1 + $0x538] sm:$0xff]
  %v263 = vld [vmem:[%s1 + $0x540] sm:$0xff]
  %v264 = vld [vmem:[%s1 + $0x548] sm:$0xff]
  %v265 = vld [vmem:[%s1 + $0x550] sm:$0xff]
  %v266 = vld [vmem:[%s1 + $0x558] sm:$0xff]
  %v267 = vld [vmem:[%s1 + $0x560] sm:$0xff]
  %v268 = vld [vmem:[%s1 + $0x568] sm:$0xff]
  %v269 = vld [vmem:[%s1 + $0x570] sm:$0xff]
  %v270 = vld [vmem:[%s1 + $0x578] sm:$0xff]
  %v271 = vld [vmem:[%s1 + $0x580] sm:$0xff]
  %v272 = vld [vmem:[%s1 + $0x588] sm:$0xff]
  %v273 = vld [vmem:[%s1 + $0x590] sm:$0xff]
  %v274 = vld [vmem:[%s1 + $0x598] sm:$0xff]
  %v275 = vld [vmem:[%s1 + $0x5a0] sm:$0xff]
  %v276 = vld [vmem:[%s1 + $0x5a8] sm:$0xff]
  %v277 = vld [vmem:[%s1 + $0x5b0] sm:$0xff]
  %v278 = vld [vmem:[%s1 + $0x5b8] sm:$0xff]
  %v279 = vld [vmem:[%s1 + $0x5c0] sm:$0xff]
  %v280 = vld [vmem:[%s1 + $0x5c8] sm:$0xff]
  %v281 = vld [vmem:[%s1 + $0x5d0] sm:$0xff]
  %v282 = vld [vmem:[%s1 + $0x5d8] sm:$0xff]
  %v283 = vld [vmem:[%s1 + $0x5e0] sm:$0xff]
  %v284 = vld [vmem:[%s1 + $0x5e8] sm:$0xff]
  %v285 = vld [vmem:[%s1 + $0x5f0] sm:$0xff]
  %v286 = vld [vmem:[%s1 + $0x5f8] sm:$0xff]
  %v287 = vld [vmem:[%s1 + $0x600] sm:$0xff]
  %v288 = vld [vmem:[%s1 + $0x608] sm:$0xff]
  %v289 = vld [vmem:[%s1 + $0x610] sm:$0xff]
  %v290 = vld [vmem:[%s1 + $0x618] sm:$0xff]
  %v291 = vld [vmem:[%s1 + $0x620] sm:$0xff]
  %v292 = vld [vmem:[%s1 + $0x628] sm:$0xff]
  %v293 = vld [vmem:[%s1 + $0x630] sm:$0xff]
  %v294 = vld [vmem:[%s1 + $0x638] sm:$0xff]
  %v295 = vld [vmem:[%s1 + $0x640] sm:$0xff]
  %v296 = vld [vmem:[%s1 + $0x648] sm:$0xff]
  %v297 = vld [vmem:[%s1 + $0x650] sm:$0xff]
  %v298 = vld [vmem:[%s1 + $0x658] sm:$0xff]
  %v299 = vld [vmem:[%s1 + $0x660] sm:$0xff]
  %v300 = vld [vmem:[%s1 + $0x668] sm:$0xff]
  %v301 = vld [vmem:[%s1 + $0x670] sm:$0xff]
  %v302 = vld [vmem:[%s1 + $0x678] sm:$0xff]
  %v303 = vld [vmem:[%s1 + $0x680] sm:$0xff]
  %v304 = vld [vmem:[%s1 + $0x688] sm:$0xff]
  %v305 = vld [vmem:[%s1 + $0x690] sm:$0xff]
  %v306 = vld [vmem:[%s1 + $0x698] sm:$0xff]
  %v307 = vld [vmem:[%s1 + $0x6a0] sm:$0xff]
  %v308 = vld [vmem:[%s1 + $0x6a8] sm:$0xff]
  %v309 = vld [vmem:[%s1 + $0x6b0] sm:$0xff]
  %v310 = vld [vmem:[%s1 + $0x6b8] sm:$0xff]
  %v311 = vld [vmem:[%s1 + $0x6c0] sm:$0xff]
  %v312 = vld [vmem:[%s1 + $0x6c8] sm:$0xff]
  %v313 = vld [vmem:[%s1 + $0x6d0] sm:$0xff]
  %v314 = vld [vmem:[%s1 + $0x6d8] sm:$0xff]
  %v315 = vld [vmem:[%s1 + $0x6e0] sm:$0xff]
  %v316 = vld [vmem:[%s1 + $0x6e8] sm:$0xff]
  %v317 = vld [vmem:[%s1 + $0x6f0] sm:$0xff]
  %v318 = vld [vmem:[%s1 + $0x6f8] sm:$0xff]
  %v319 = vld [vmem:[%s1 + $0x700] sm:$0xff]
  %v320 = vld [vmem:[%s1 + $0x708] sm:$0xff]
  %v321 = vld [vmem:[%s1 + $0x710] sm:$0xff]
  %v322 = vld [vmem:[%s1 + $0x718] sm:$0xff]
  %v323 = vld [vmem:[%s1 + $0x720] sm:$0xff]
  %v324 = vld [vmem:[%s1 + $0x728] sm:$0xff]
  %v325 = vld [vmem:[%s1 + $0x730] sm:$0xff]
  %v326 = vld [vmem:[%s1 + $0x738] sm:$0xff]
  %v327 = vld [vmem:[%s1 + $0x740] sm:$0xff]
  %v328 = vld [vmem:[%s1 + $0x748] sm:$0xff]
  %v329 = vld [vmem:[%s1 + $0x750] sm:$0xff]
  %v330 = vld [vmem:[%s1 + $0x758] sm:$0xff]
  %v331 = vld [vmem:[%s1 + $0x760] sm:$0xff]
  %v332 = vld [vmem:[%s1 + $0x768] sm:$0xff]
  %v333 = vld [vmem:[%s1 + $0x770] sm:$0xff]
  %v334 = vld [vmem:[%s1 + $0x778] sm:$0xff]
  %v335 = vld [vmem:[%s1 + $0x780] sm:$0xff]
  %v336 = vld [vmem:[%s1 + $0x788] sm:$0xff]
  %v337 = vld [vmem:[%s1 + $0x790] sm:$0xff]
  %v338 = vld [vmem:[%s1 + $0x798] sm:$0xff]
  %v339 = vld [vmem:[%s1 + $0x7a0] sm:$0xff]
  %v340 = vld [vmem:[%s1 + $0x7a8] sm:$0xff]
  %v341 = vld [vmem:[%s1 + $0x7b0] sm:$0xff]
  %v342 = vld [vmem:[%s1 + $0x7b8] sm:$0xff]
  %v343 = vld [vmem:[%s1 + $0x7c0] sm:$0xff]
  %v344 = vld [vmem:[%s1 + $0x7c8] sm:$0xff]
  %v345 = vld [vmem:[%s1 + $0x7d0] sm:$0xff]
  %v346 = vld [vmem:[%s1 + $0x7d8] sm:$0xff]
  %v347 = vld [vmem:[%s1 + $0x7e0] sm:$0xff]
  %v348 = vld [vmem:[%s1 + $0x7e8] sm:$0xff]
  %v349 = vld [vmem:[%s1 + $0x7f0] sm:$0xff]
  %v350 = vld [vmem:[%s1 + $0x7f8] sm:$0xff]
  %v351 = vld [vmem:[%s3] ss:$8 sm:$0x3]
  %v353 = vlaneseq
  %v354 = vshrl.u32 %v353, 7
  %v355 = vsub.s32 0, %v354
  %v356 = vrot.slane %v351, %v355
  %v357 = vlaneseq
  %v358 = vshrl.u32 %v357, 7
  %v359 = vsub.s32 1, %v358
  %v360 = vrot.slane %v351, %v359
  %v395 = vunpack.c.l.b16 %v63
  %v396 = vunpack.c.h.b16 %v63
  %v397 = vunpack.c.l.b16 %v64
  %v398 = vunpack.c.h.b16 %v64
  %v399 = vunpack.c.l.b16 %v65
  %v400 = vunpack.c.h.b16 %v65
  %v401 = vunpack.c.l.b16 %v66
  %v402 = vunpack.c.h.b16 %v66
  %v403 = vunpack.c.l.b16 %v67
  %v404 = vunpack.c.h.b16 %v67
  %v405 = vunpack.c.l.b16 %v68
  %v406 = vunpack.c.h.b16 %v68
  %v407 = vunpack.c.l.b16 %v69
  %v408 = vunpack.c.h.b16 %v69
  %v409 = vunpack.c.l.b16 %v70
  %v410 = vunpack.c.h.b16 %v70
  %v411 = vunpack.c.l.b16 %v71
  %v412 = vunpack.c.h.b16 %v71
  %v413 = vunpack.c.l.b16 %v72
  %v414 = vunpack.c.h.b16 %v72
  %v415 = vunpack.c.l.b16 %v73
  %v416 = vunpack.c.h.b16 %v73
  %v417 = vunpack.c.l.b16 %v74
  %v418 = vunpack.c.h.b16 %v74
  %v419 = vunpack.c.l.b16 %v75
  %v420 = vunpack.c.h.b16 %v75
  %v421 = vunpack.c.l.b16 %v76
  %v422 = vunpack.c.h.b16 %v76
  %v423 = vunpack.c.l.b16 %v77
  %v424 = vunpack.c.h.b16 %v77
  %v425 = vunpack.c.l.b16 %v78
  %v426 = vunpack.c.h.b16 %v78
  %v427 = vunpack.c.l.b16 %v79
  %v428 = vunpack.c.h.b16 %v79
  %v429 = vunpack.c.l.b16 %v80
  %v430 = vunpack.c.h.b16 %v80
  %v431 = vunpack.c.l.b16 %v81
  %v432 = vunpack.c.h.b16 %v81
  %v433 = vunpack.c.l.b16 %v82
  %v434 = vunpack.c.h.b16 %v82
  %v435 = vunpack.c.l.b16 %v83
  %v436 = vunpack.c.h.b16 %v83
  %v437 = vunpack.c.l.b16 %v84
  %v438 = vunpack.c.h.b16 %v84
  %v439 = vunpack.c.l.b16 %v85
  %v440 = vunpack.c.h.b16 %v85
  %v441 = vunpack.c.l.b16 %v86
  %v442 = vunpack.c.h.b16 %v86
  %v443 = vunpack.c.l.b16 %v87
  %v444 = vunpack.c.h.b16 %v87
  %v445 = vunpack.c.l.b16 %v88
  %v446 = vunpack.c.h.b16 %v88
  %v447 = vunpack.c.l.b16 %v89
  %v448 = vunpack.c.h.b16 %v89
  %v449 = vunpack.c.l.b16 %v90
  %v450 = vunpack.c.h.b16 %v90
  %v451 = vunpack.c.l.b16 %v91
  %v452 = vunpack.c.h.b16 %v91
  %v453 = vunpack.c.l.b16 %v92
  %v454 = vunpack.c.h.b16 %v92
  %v455 = vunpack.c.l.b16 %v93
  %v456 = vunpack.c.h.b16 %v93
  %v457 = vunpack.c.l.b16 %v94
  %v458 = vunpack.c.h.b16 %v94
  %v459 = vpack.c.b16 %v411, %v395
  %v460 = vpack.c.b16 %v412, %v396
  %v461 = vpack.c.b16 %v413, %v397
  %v462 = vpack.c.b16 %v414, %v398
  %v463 = vpack.c.b16 %v415, %v399
  %v464 = vpack.c.b16 %v416, %v400
  %v465 = vpack.c.b16 %v417, %v401
  %v466 = vpack.c.b16 %v418, %v402
  %v467 = vpack.c.b16 %v419, %v403
  %v468 = vpack.c.b16 %v420, %v404
  %v469 = vpack.c.b16 %v421, %v405
  %v470 = vpack.c.b16 %v422, %v406
  %v471 = vpack.c.b16 %v423, %v407
  %v472 = vpack.c.b16 %v424, %v408
  %v473 = vpack.c.b16 %v425, %v409
  %v474 = vpack.c.b16 %v426, %v410
  %v475 = vpack.c.b16 %v443, %v427
  %v476 = vpack.c.b16 %v444, %v428
  %v477 = vpack.c.b16 %v445, %v429
  %v478 = vpack.c.b16 %v446, %v430
  %v479 = vpack.c.b16 %v447, %v431
  %v480 = vpack.c.b16 %v448, %v432
  %v481 = vpack.c.b16 %v449, %v433
  %v482 = vpack.c.b16 %v450, %v434
  %v483 = vpack.c.b16 %v451, %v435
  %v484 = vpack.c.b16 %v452, %v436
  %v485 = vpack.c.b16 %v453, %v437
  %v486 = vpack.c.b16 %v454, %v438
  %v487 = vpack.c.b16 %v455, %v439
  %v488 = vpack.c.b16 %v456, %v440
  %v489 = vpack.c.b16 %v457, %v441
  %v490 = vpack.c.b16 %v458, %v442
  %v779 = vunpack.c.l.b16 %v95
  %v780 = vunpack.c.h.b16 %v95
  %v781 = vunpack.c.l.b16 %v96
  %v782 = vunpack.c.h.b16 %v96
  %v783 = vunpack.c.l.b16 %v97
  %v784 = vunpack.c.h.b16 %v97
  %v785 = vunpack.c.l.b16 %v98
  %v786 = vunpack.c.h.b16 %v98
  %v787 = vunpack.c.l.b16 %v99
  %v788 = vunpack.c.h.b16 %v99
  %v789 = vunpack.c.l.b16 %v100
  %v790 = vunpack.c.h.b16 %v100
  %v791 = vunpack.c.l.b16 %v101
  %v792 = vunpack.c.h.b16 %v101
  %v793 = vunpack.c.l.b16 %v102
  %v794 = vunpack.c.h.b16 %v102
  %v795 = vunpack.c.l.b16 %v103
  %v796 = vunpack.c.h.b16 %v103
  %v797 = vunpack.c.l.b16 %v104
  %v798 = vunpack.c.h.b16 %v104
  %v799 = vunpack.c.l.b16 %v105
  %v800 = vunpack.c.h.b16 %v105
  %v801 = vunpack.c.l.b16 %v106
  %v802 = vunpack.c.h.b16 %v106
  %v803 = vunpack.c.l.b16 %v107
  %v804 = vunpack.c.h.b16 %v107
  %v805 = vunpack.c.l.b16 %v108
  %v806 = vunpack.c.h.b16 %v108
  %v807 = vunpack.c.l.b16 %v109
  %v808 = vunpack.c.h.b16 %v109
  %v809 = vunpack.c.l.b16 %v110
  %v810 = vunpack.c.h.b16 %v110
  %v811 = vunpack.c.l.b16 %v111
  %v812 = vunpack.c.h.b16 %v111
  %v813 = vunpack.c.l.b16 %v112
  %v814 = vunpack.c.h.b16 %v112
  %v815 = vunpack.c.l.b16 %v113
  %v816 = vunpack.c.h.b16 %v113
  %v817 = vunpack.c.l.b16 %v114
  %v818 = vunpack.c.h.b16 %v114
  %v819 = vunpack.c.l.b16 %v115
  %v820 = vunpack.c.h.b16 %v115
  %v821 = vunpack.c.l.b16 %v116
  %v822 = vunpack.c.h.b16 %v116
  %v823 = vunpack.c.l.b16 %v117
  %v824 = vunpack.c.h.b16 %v117
  %v825 = vunpack.c.l.b16 %v118
  %v826 = vunpack.c.h.b16 %v118
  %v827 = vunpack.c.l.b16 %v119
  %v828 = vunpack.c.h.b16 %v119
  %v829 = vunpack.c.l.b16 %v120
  %v830 = vunpack.c.h.b16 %v120
  %v831 = vunpack.c.l.b16 %v121
  %v832 = vunpack.c.h.b16 %v121
  %v833 = vunpack.c.l.b16 %v122
  %v834 = vunpack.c.h.b16 %v122
  %v835 = vunpack.c.l.b16 %v123
  %v836 = vunpack.c.h.b16 %v123
  %v837 = vunpack.c.l.b16 %v124
  %v838 = vunpack.c.h.b16 %v124
  %v839 = vunpack.c.l.b16 %v125
  %v840 = vunpack.c.h.b16 %v125
  %v841 = vunpack.c.l.b16 %v126
  %v842 = vunpack.c.h.b16 %v126
  %v843 = vunpack.c.l.b16 %v127
  %v844 = vunpack.c.h.b16 %v127
  %v845 = vunpack.c.l.b16 %v128
  %v846 = vunpack.c.h.b16 %v128
  %v847 = vunpack.c.l.b16 %v129
  %v848 = vunpack.c.h.b16 %v129
  %v849 = vunpack.c.l.b16 %v130
  %v850 = vunpack.c.h.b16 %v130
  %v851 = vunpack.c.l.b16 %v131
  %v852 = vunpack.c.h.b16 %v131
  %v853 = vunpack.c.l.b16 %v132
  %v854 = vunpack.c.h.b16 %v132
  %v855 = vunpack.c.l.b16 %v133
  %v856 = vunpack.c.h.b16 %v133
  %v857 = vunpack.c.l.b16 %v134
  %v858 = vunpack.c.h.b16 %v134
  %v859 = vunpack.c.l.b16 %v135
  %v860 = vunpack.c.h.b16 %v135
  %v861 = vunpack.c.l.b16 %v136
  %v862 = vunpack.c.h.b16 %v136
  %v863 = vunpack.c.l.b16 %v137
  %v864 = vunpack.c.h.b16 %v137
  %v865 = vunpack.c.l.b16 %v138
  %v866 = vunpack.c.h.b16 %v138
  %v867 = vunpack.c.l.b16 %v139
  %v868 = vunpack.c.h.b16 %v139
  %v869 = vunpack.c.l.b16 %v140
  %v870 = vunpack.c.h.b16 %v140
  %v871 = vunpack.c.l.b16 %v141
  %v872 = vunpack.c.h.b16 %v141
  %v873 = vunpack.c.l.b16 %v142
  %v874 = vunpack.c.h.b16 %v142
  %v875 = vunpack.c.l.b16 %v143
  %v876 = vunpack.c.h.b16 %v143
  %v877 = vunpack.c.l.b16 %v144
  %v878 = vunpack.c.h.b16 %v144
  %v879 = vunpack.c.l.b16 %v145
  %v880 = vunpack.c.h.b16 %v145
  %v881 = vunpack.c.l.b16 %v146
  %v882 = vunpack.c.h.b16 %v146
  %v883 = vunpack.c.l.b16 %v147
  %v884 = vunpack.c.h.b16 %v147
  %v885 = vunpack.c.l.b16 %v148
  %v886 = vunpack.c.h.b16 %v148
  %v887 = vunpack.c.l.b16 %v149
  %v888 = vunpack.c.h.b16 %v149
  %v889 = vunpack.c.l.b16 %v150
  %v890 = vunpack.c.h.b16 %v150
  %v891 = vunpack.c.l.b16 %v151
  %v892 = vunpack.c.h.b16 %v151
  %v893 = vunpack.c.l.b16 %v152
  %v894 = vunpack.c.h.b16 %v152
  %v895 = vunpack.c.l.b16 %v153
  %v896 = vunpack.c.h.b16 %v153
  %v897 = vunpack.c.l.b16 %v154
  %v898 = vunpack.c.h.b16 %v154
  %v899 = vunpack.c.l.b16 %v155
  %v900 = vunpack.c.h.b16 %v155
  %v901 = vunpack.c.l.b16 %v156
  %v902 = vunpack.c.h.b16 %v156
  %v903 = vunpack.c.l.b16 %v157
  %v904 = vunpack.c.h.b16 %v157
  %v905 = vunpack.c.l.b16 %v158
  %v906 = vunpack.c.h.b16 %v158
  %v907 = vunpack.c.l.b16 %v159
  %v908 = vunpack.c.h.b16 %v159
  %v909 = vunpack.c.l.b16 %v160
  %v910 = vunpack.c.h.b16 %v160
  %v911 = vunpack.c.l.b16 %v161
  %v912 = vunpack.c.h.b16 %v161
  %v913 = vunpack.c.l.b16 %v162
  %v914 = vunpack.c.h.b16 %v162
  %v915 = vunpack.c.l.b16 %v163
  %v916 = vunpack.c.h.b16 %v163
  %v917 = vunpack.c.l.b16 %v164
  %v918 = vunpack.c.h.b16 %v164
  %v919 = vunpack.c.l.b16 %v165
  %v920 = vunpack.c.h.b16 %v165
  %v921 = vunpack.c.l.b16 %v166
  %v922 = vunpack.c.h.b16 %v166
  %v923 = vunpack.c.l.b16 %v167
  %v924 = vunpack.c.h.b16 %v167
  %v925 = vunpack.c.l.b16 %v168
  %v926 = vunpack.c.h.b16 %v168
  %v927 = vunpack.c.l.b16 %v169
  %v928 = vunpack.c.h.b16 %v169
  %v929 = vunpack.c.l.b16 %v170
  %v930 = vunpack.c.h.b16 %v170
  %v931 = vunpack.c.l.b16 %v171
  %v932 = vunpack.c.h.b16 %v171
  %v933 = vunpack.c.l.b16 %v172
  %v934 = vunpack.c.h.b16 %v172
  %v935 = vunpack.c.l.b16 %v173
  %v936 = vunpack.c.h.b16 %v173
  %v937 = vunpack.c.l.b16 %v174
  %v938 = vunpack.c.h.b16 %v174
  %v939 = vunpack.c.l.b16 %v175
  %v940 = vunpack.c.h.b16 %v175
  %v941 = vunpack.c.l.b16 %v176
  %v942 = vunpack.c.h.b16 %v176
  %v943 = vunpack.c.l.b16 %v177
  %v944 = vunpack.c.h.b16 %v177
  %v945 = vunpack.c.l.b16 %v178
  %v946 = vunpack.c.h.b16 %v178
  %v947 = vunpack.c.l.b16 %v179
  %v948 = vunpack.c.h.b16 %v179
  %v949 = vunpack.c.l.b16 %v180
  %v950 = vunpack.c.h.b16 %v180
  %v951 = vunpack.c.l.b16 %v181
  %v952 = vunpack.c.h.b16 %v181
  %v953 = vunpack.c.l.b16 %v182
  %v954 = vunpack.c.h.b16 %v182
  %v955 = vunpack.c.l.b16 %v183
  %v956 = vunpack.c.h.b16 %v183
  %v957 = vunpack.c.l.b16 %v184
  %v958 = vunpack.c.h.b16 %v184
  %v959 = vunpack.c.l.b16 %v185
  %v960 = vunpack.c.h.b16 %v185
  %v961 = vunpack.c.l.b16 %v186
  %v962 = vunpack.c.h.b16 %v186
  %v963 = vunpack.c.l.b16 %v187
  %v964 = vunpack.c.h.b16 %v187
  %v965 = vunpack.c.l.b16 %v188
  %v966 = vunpack.c.h.b16 %v188
  %v967 = vunpack.c.l.b16 %v189
  %v968 = vunpack.c.h.b16 %v189
  %v969 = vunpack.c.l.b16 %v190
  %v970 = vunpack.c.h.b16 %v190
  %v971 = vunpack.c.l.b16 %v191
  %v972 = vunpack.c.h.b16 %v191
  %v973 = vunpack.c.l.b16 %v192
  %v974 = vunpack.c.h.b16 %v192
  %v975 = vunpack.c.l.b16 %v193
  %v976 = vunpack.c.h.b16 %v193
  %v977 = vunpack.c.l.b16 %v194
  %v978 = vunpack.c.h.b16 %v194
  %v979 = vunpack.c.l.b16 %v195
  %v980 = vunpack.c.h.b16 %v195
  %v981 = vunpack.c.l.b16 %v196
  %v982 = vunpack.c.h.b16 %v196
  %v983 = vunpack.c.l.b16 %v197
  %v984 = vunpack.c.h.b16 %v197
  %v985 = vunpack.c.l.b16 %v198
  %v986 = vunpack.c.h.b16 %v198
  %v987 = vunpack.c.l.b16 %v199
  %v988 = vunpack.c.h.b16 %v199
  %v989 = vunpack.c.l.b16 %v200
  %v990 = vunpack.c.h.b16 %v200
  %v991 = vunpack.c.l.b16 %v201
  %v992 = vunpack.c.h.b16 %v201
  %v993 = vunpack.c.l.b16 %v202
  %v994 = vunpack.c.h.b16 %v202
  %v995 = vunpack.c.l.b16 %v203
  %v996 = vunpack.c.h.b16 %v203
  %v997 = vunpack.c.l.b16 %v204
  %v998 = vunpack.c.h.b16 %v204
  %v999 = vunpack.c.l.b16 %v205
  %v1000 = vunpack.c.h.b16 %v205
  %v1001 = vunpack.c.l.b16 %v206
  %v1002 = vunpack.c.h.b16 %v206
  %v1003 = vunpack.c.l.b16 %v207
  %v1004 = vunpack.c.h.b16 %v207
  %v1005 = vunpack.c.l.b16 %v208
  %v1006 = vunpack.c.h.b16 %v208
  %v1007 = vunpack.c.l.b16 %v209
  %v1008 = vunpack.c.h.b16 %v209
  %v1009 = vunpack.c.l.b16 %v210
  %v1010 = vunpack.c.h.b16 %v210
  %v1011 = vunpack.c.l.b16 %v211
  %v1012 = vunpack.c.h.b16 %v211
  %v1013 = vunpack.c.l.b16 %v212
  %v1014 = vunpack.c.h.b16 %v212
  %v1015 = vunpack.c.l.b16 %v213
  %v1016 = vunpack.c.h.b16 %v213
  %v1017 = vunpack.c.l.b16 %v214
  %v1018 = vunpack.c.h.b16 %v214
  %v1019 = vunpack.c.l.b16 %v215
  %v1020 = vunpack.c.h.b16 %v215
  %v1021 = vunpack.c.l.b16 %v216
  %v1022 = vunpack.c.h.b16 %v216
  %v1023 = vunpack.c.l.b16 %v217
  %v1024 = vunpack.c.h.b16 %v217
  %v1025 = vunpack.c.l.b16 %v218
  %v1026 = vunpack.c.h.b16 %v218
  %v1027 = vunpack.c.l.b16 %v219
  %v1028 = vunpack.c.h.b16 %v219
  %v1029 = vunpack.c.l.b16 %v220
  %v1030 = vunpack.c.h.b16 %v220
  %v1031 = vunpack.c.l.b16 %v221
  %v1032 = vunpack.c.h.b16 %v221
  %v1033 = vunpack.c.l.b16 %v222
  %v1034 = vunpack.c.h.b16 %v222
  %v1035 = vunpack.c.l.b16 %v223
  %v1036 = vunpack.c.h.b16 %v223
  %v1037 = vunpack.c.l.b16 %v224
  %v1038 = vunpack.c.h.b16 %v224
  %v1039 = vunpack.c.l.b16 %v225
  %v1040 = vunpack.c.h.b16 %v225
  %v1041 = vunpack.c.l.b16 %v226
  %v1042 = vunpack.c.h.b16 %v226
  %v1043 = vunpack.c.l.b16 %v227
  %v1044 = vunpack.c.h.b16 %v227
  %v1045 = vunpack.c.l.b16 %v228
  %v1046 = vunpack.c.h.b16 %v228
  %v1047 = vunpack.c.l.b16 %v229
  %v1048 = vunpack.c.h.b16 %v229
  %v1049 = vunpack.c.l.b16 %v230
  %v1050 = vunpack.c.h.b16 %v230
  %v1051 = vunpack.c.l.b16 %v231
  %v1052 = vunpack.c.h.b16 %v231
  %v1053 = vunpack.c.l.b16 %v232
  %v1054 = vunpack.c.h.b16 %v232
  %v1055 = vunpack.c.l.b16 %v233
  %v1056 = vunpack.c.h.b16 %v233
  %v1057 = vunpack.c.l.b16 %v234
  %v1058 = vunpack.c.h.b16 %v234
  %v1059 = vunpack.c.l.b16 %v235
  %v1060 = vunpack.c.h.b16 %v235
  %v1061 = vunpack.c.l.b16 %v236
  %v1062 = vunpack.c.h.b16 %v236
  %v1063 = vunpack.c.l.b16 %v237
  %v1064 = vunpack.c.h.b16 %v237
  %v1065 = vunpack.c.l.b16 %v238
  %v1066 = vunpack.c.h.b16 %v238
  %v1067 = vunpack.c.l.b16 %v239
  %v1068 = vunpack.c.h.b16 %v239
  %v1069 = vunpack.c.l.b16 %v240
  %v1070 = vunpack.c.h.b16 %v240
  %v1071 = vunpack.c.l.b16 %v241
  %v1072 = vunpack.c.h.b16 %v241
  %v1073 = vunpack.c.l.b16 %v242
  %v1074 = vunpack.c.h.b16 %v242
  %v1075 = vunpack.c.l.b16 %v243
  %v1076 = vunpack.c.h.b16 %v243
  %v1077 = vunpack.c.l.b16 %v244
  %v1078 = vunpack.c.h.b16 %v244
  %v1079 = vunpack.c.l.b16 %v245
  %v1080 = vunpack.c.h.b16 %v245
  %v1081 = vunpack.c.l.b16 %v246
  %v1082 = vunpack.c.h.b16 %v246
  %v1083 = vunpack.c.l.b16 %v247
  %v1084 = vunpack.c.h.b16 %v247
  %v1085 = vunpack.c.l.b16 %v248
  %v1086 = vunpack.c.h.b16 %v248
  %v1087 = vunpack.c.l.b16 %v249
  %v1088 = vunpack.c.h.b16 %v249
  %v1089 = vunpack.c.l.b16 %v250
  %v1090 = vunpack.c.h.b16 %v250
  %v1091 = vunpack.c.l.b16 %v251
  %v1092 = vunpack.c.h.b16 %v251
  %v1093 = vunpack.c.l.b16 %v252
  %v1094 = vunpack.c.h.b16 %v252
  %v1095 = vunpack.c.l.b16 %v253
  %v1096 = vunpack.c.h.b16 %v253
  %v1097 = vunpack.c.l.b16 %v254
  %v1098 = vunpack.c.h.b16 %v254
  %v1099 = vunpack.c.l.b16 %v255
  %v1100 = vunpack.c.h.b16 %v255
  %v1101 = vunpack.c.l.b16 %v256
  %v1102 = vunpack.c.h.b16 %v256
  %v1103 = vunpack.c.l.b16 %v257
  %v1104 = vunpack.c.h.b16 %v257
  %v1105 = vunpack.c.l.b16 %v258
  %v1106 = vunpack.c.h.b16 %v258
  %v1107 = vunpack.c.l.b16 %v259
  %v1108 = vunpack.c.h.b16 %v259
  %v1109 = vunpack.c.l.b16 %v260
  %v1110 = vunpack.c.h.b16 %v260
  %v1111 = vunpack.c.l.b16 %v261
  %v1112 = vunpack.c.h.b16 %v261
  %v1113 = vunpack.c.l.b16 %v262
  %v1114 = vunpack.c.h.b16 %v262
  %v1115 = vunpack.c.l.b16 %v263
  %v1116 = vunpack.c.h.b16 %v263
  %v1117 = vunpack.c.l.b16 %v264
  %v1118 = vunpack.c.h.b16 %v264
  %v1119 = vunpack.c.l.b16 %v265
  %v1120 = vunpack.c.h.b16 %v265
  %v1121 = vunpack.c.l.b16 %v266
  %v1122 = vunpack.c.h.b16 %v266
  %v1123 = vunpack.c.l.b16 %v267
  %v1124 = vunpack.c.h.b16 %v267
  %v1125 = vunpack.c.l.b16 %v268
  %v1126 = vunpack.c.h.b16 %v268
  %v1127 = vunpack.c.l.b16 %v269
  %v1128 = vunpack.c.h.b16 %v269
  %v1129 = vunpack.c.l.b16 %v270
  %v1130 = vunpack.c.h.b16 %v270
  %v1131 = vunpack.c.l.b16 %v271
  %v1132 = vunpack.c.h.b16 %v271
  %v1133 = vunpack.c.l.b16 %v272
  %v1134 = vunpack.c.h.b16 %v272
  %v1135 = vunpack.c.l.b16 %v273
  %v1136 = vunpack.c.h.b16 %v273
  %v1137 = vunpack.c.l.b16 %v274
  %v1138 = vunpack.c.h.b16 %v274
  %v1139 = vunpack.c.l.b16 %v275
  %v1140 = vunpack.c.h.b16 %v275
  %v1141 = vunpack.c.l.b16 %v276
  %v1142 = vunpack.c.h.b16 %v276
  %v1143 = vunpack.c.l.b16 %v277
  %v1144 = vunpack.c.h.b16 %v277
  %v1145 = vunpack.c.l.b16 %v278
  %v1146 = vunpack.c.h.b16 %v278
  %v1147 = vunpack.c.l.b16 %v279
  %v1148 = vunpack.c.h.b16 %v279
  %v1149 = vunpack.c.l.b16 %v280
  %v1150 = vunpack.c.h.b16 %v280
  %v1151 = vunpack.c.l.b16 %v281
  %v1152 = vunpack.c.h.b16 %v281
  %v1153 = vunpack.c.l.b16 %v282
  %v1154 = vunpack.c.h.b16 %v282
  %v1155 = vunpack.c.l.b16 %v283
  %v1156 = vunpack.c.h.b16 %v283
  %v1157 = vunpack.c.l.b16 %v284
  %v1158 = vunpack.c.h.b16 %v284
  %v1159 = vunpack.c.l.b16 %v285
  %v1160 = vunpack.c.h.b16 %v285
  %v1161 = vunpack.c.l.b16 %v286
  %v1162 = vunpack.c.h.b16 %v286
  %v1163 = vunpack.c.l.b16 %v287
  %v1164 = vunpack.c.h.b16 %v287
  %v1165 = vunpack.c.l.b16 %v288
  %v1166 = vunpack.c.h.b16 %v288
  %v1167 = vunpack.c.l.b16 %v289
  %v1168 = vunpack.c.h.b16 %v289
  %v1169 = vunpack.c.l.b16 %v290
  %v1170 = vunpack.c.h.b16 %v290
  %v1171 = vunpack.c.l.b16 %v291
  %v1172 = vunpack.c.h.b16 %v291
  %v1173 = vunpack.c.l.b16 %v292
  %v1174 = vunpack.c.h.b16 %v292
  %v1175 = vunpack.c.l.b16 %v293
  %v1176 = vunpack.c.h.b16 %v293
  %v1177 = vunpack.c.l.b16 %v294
  %v1178 = vunpack.c.h.b16 %v294
  %v1179 = vunpack.c.l.b16 %v295
  %v1180 = vunpack.c.h.b16 %v295
  %v1181 = vunpack.c.l.b16 %v296
  %v1182 = vunpack.c.h.b16 %v296
  %v1183 = vunpack.c.l.b16 %v297
  %v1184 = vunpack.c.h.b16 %v297
  %v1185 = vunpack.c.l.b16 %v298
  %v1186 = vunpack.c.h.b16 %v298
  %v1187 = vunpack.c.l.b16 %v299
  %v1188 = vunpack.c.h.b16 %v299
  %v1189 = vunpack.c.l.b16 %v300
  %v1190 = vunpack.c.h.b16 %v300
  %v1191 = vunpack.c.l.b16 %v301
  %v1192 = vunpack.c.h.b16 %v301
  %v1193 = vunpack.c.l.b16 %v302
  %v1194 = vunpack.c.h.b16 %v302
  %v1195 = vunpack.c.l.b16 %v303
  %v1196 = vunpack.c.h.b16 %v303
  %v1197 = vunpack.c.l.b16 %v304
  %v1198 = vunpack.c.h.b16 %v304
  %v1199 = vunpack.c.l.b16 %v305
  %v1200 = vunpack.c.h.b16 %v305
  %v1201 = vunpack.c.l.b16 %v306
  %v1202 = vunpack.c.h.b16 %v306
  %v1203 = vunpack.c.l.b16 %v307
  %v1204 = vunpack.c.h.b16 %v307
  %v1205 = vunpack.c.l.b16 %v308
  %v1206 = vunpack.c.h.b16 %v308
  %v1207 = vunpack.c.l.b16 %v309
  %v1208 = vunpack.c.h.b16 %v309
  %v1209 = vunpack.c.l.b16 %v310
  %v1210 = vunpack.c.h.b16 %v310
  %v1211 = vunpack.c.l.b16 %v311
  %v1212 = vunpack.c.h.b16 %v311
  %v1213 = vunpack.c.l.b16 %v312
  %v1214 = vunpack.c.h.b16 %v312
  %v1215 = vunpack.c.l.b16 %v313
  %v1216 = vunpack.c.h.b16 %v313
  %v1217 = vunpack.c.l.b16 %v314
  %v1218 = vunpack.c.h.b16 %v314
  %v1219 = vunpack.c.l.b16 %v315
  %v1220 = vunpack.c.h.b16 %v315
  %v1221 = vunpack.c.l.b16 %v316
  %v1222 = vunpack.c.h.b16 %v316
  %v1223 = vunpack.c.l.b16 %v317
  %v1224 = vunpack.c.h.b16 %v317
  %v1225 = vunpack.c.l.b16 %v318
  %v1226 = vunpack.c.h.b16 %v318
  %v1227 = vunpack.c.l.b16 %v319
  %v1228 = vunpack.c.h.b16 %v319
  %v1229 = vunpack.c.l.b16 %v320
  %v1230 = vunpack.c.h.b16 %v320
  %v1231 = vunpack.c.l.b16 %v321
  %v1232 = vunpack.c.h.b16 %v321
  %v1233 = vunpack.c.l.b16 %v322
  %v1234 = vunpack.c.h.b16 %v322
  %v1235 = vunpack.c.l.b16 %v323
  %v1236 = vunpack.c.h.b16 %v323
  %v1237 = vunpack.c.l.b16 %v324
  %v1238 = vunpack.c.h.b16 %v324
  %v1239 = vunpack.c.l.b16 %v325
  %v1240 = vunpack.c.h.b16 %v325
  %v1241 = vunpack.c.l.b16 %v326
  %v1242 = vunpack.c.h.b16 %v326
  %v1243 = vunpack.c.l.b16 %v327
  %v1244 = vunpack.c.h.b16 %v327
  %v1245 = vunpack.c.l.b16 %v328
  %v1246 = vunpack.c.h.b16 %v328
  %v1247 = vunpack.c.l.b16 %v329
  %v1248 = vunpack.c.h.b16 %v329
  %v1249 = vunpack.c.l.b16 %v330
  %v1250 = vunpack.c.h.b16 %v330
  %v1251 = vunpack.c.l.b16 %v331
  %v1252 = vunpack.c.h.b16 %v331
  %v1253 = vunpack.c.l.b16 %v332
  %v1254 = vunpack.c.h.b16 %v332
  %v1255 = vunpack.c.l.b16 %v333
  %v1256 = vunpack.c.h.b16 %v333
  %v1257 = vunpack.c.l.b16 %v334
  %v1258 = vunpack.c.h.b16 %v334
  %v1259 = vunpack.c.l.b16 %v335
  %v1260 = vunpack.c.h.b16 %v335
  %v1261 = vunpack.c.l.b16 %v336
  %v1262 = vunpack.c.h.b16 %v336
  %v1263 = vunpack.c.l.b16 %v337
  %v1264 = vunpack.c.h.b16 %v337
  %v1265 = vunpack.c.l.b16 %v338
  %v1266 = vunpack.c.h.b16 %v338
  %v1267 = vunpack.c.l.b16 %v339
  %v1268 = vunpack.c.h.b16 %v339
  %v1269 = vunpack.c.l.b16 %v340
  %v1270 = vunpack.c.h.b16 %v340
  %v1271 = vunpack.c.l.b16 %v341
  %v1272 = vunpack.c.h.b16 %v341
  %v1273 = vunpack.c.l.b16 %v342
  %v1274 = vunpack.c.h.b16 %v342
  %v1275 = vunpack.c.l.b16 %v343
  %v1276 = vunpack.c.h.b16 %v343
  %v1277 = vunpack.c.l.b16 %v344
  %v1278 = vunpack.c.h.b16 %v344
  %v1279 = vunpack.c.l.b16 %v345
  %v1280 = vunpack.c.h.b16 %v345
  %v1281 = vunpack.c.l.b16 %v346
  %v1282 = vunpack.c.h.b16 %v346
  %v1283 = vunpack.c.l.b16 %v347
  %v1284 = vunpack.c.h.b16 %v347
  %v1285 = vunpack.c.l.b16 %v348
  %v1286 = vunpack.c.h.b16 %v348
  %v1287 = vunpack.c.l.b16 %v349
  %v1288 = vunpack.c.h.b16 %v349
  %v1289 = vunpack.c.l.b16 %v350
  %v1290 = vunpack.c.h.b16 %v350
  %v1291 = vpack.c.b16 %v781, %v779
  %v1292 = vpack.c.b16 %v782, %v780
  %v1293 = vpack.c.b16 %v785, %v783
  %v1294 = vpack.c.b16 %v786, %v784
  %v1295 = vpack.c.b16 %v789, %v787
  %v1296 = vpack.c.b16 %v790, %v788
  %v1297 = vpack.c.b16 %v793, %v791
  %v1298 = vpack.c.b16 %v794, %v792
  %v1299 = vpack.c.b16 %v797, %v795
  %v1300 = vpack.c.b16 %v798, %v796
  %v1301 = vpack.c.b16 %v801, %v799
  %v1302 = vpack.c.b16 %v802, %v800
  %v1303 = vpack.c.b16 %v805, %v803
  %v1304 = vpack.c.b16 %v806, %v804
  %v1305 = vpack.c.b16 %v809, %v807
  %v1306 = vpack.c.b16 %v810, %v808
  %v1307 = vpack.c.b16 %v813, %v811
  %v1308 = vpack.c.b16 %v814, %v812
  %v1309 = vpack.c.b16 %v817, %v815
  %v1310 = vpack.c.b16 %v818, %v816
  %v1311 = vpack.c.b16 %v821, %v819
  %v1312 = vpack.c.b16 %v822, %v820
  %v1313 = vpack.c.b16 %v825, %v823
  %v1314 = vpack.c.b16 %v826, %v824
  %v1315 = vpack.c.b16 %v829, %v827
  %v1316 = vpack.c.b16 %v830, %v828
  %v1317 = vpack.c.b16 %v833, %v831
  %v1318 = vpack.c.b16 %v834, %v832
  %v1319 = vpack.c.b16 %v837, %v835
  %v1320 = vpack.c.b16 %v838, %v836
  %v1321 = vpack.c.b16 %v841, %v839
  %v1322 = vpack.c.b16 %v842, %v840
  %v1323 = vpack.c.b16 %v845, %v843
  %v1324 = vpack.c.b16 %v846, %v844
  %v1325 = vpack.c.b16 %v849, %v847
  %v1326 = vpack.c.b16 %v850, %v848
  %v1327 = vpack.c.b16 %v853, %v851
  %v1328 = vpack.c.b16 %v854, %v852
  %v1329 = vpack.c.b16 %v857, %v855
  %v1330 = vpack.c.b16 %v858, %v856
  %v1331 = vpack.c.b16 %v861, %v859
  %v1332 = vpack.c.b16 %v862, %v860
  %v1333 = vpack.c.b16 %v865, %v863
  %v1334 = vpack.c.b16 %v866, %v864
  %v1335 = vpack.c.b16 %v869, %v867
  %v1336 = vpack.c.b16 %v870, %v868
  %v1337 = vpack.c.b16 %v873, %v871
  %v1338 = vpack.c.b16 %v874, %v872
  %v1339 = vpack.c.b16 %v877, %v875
  %v1340 = vpack.c.b16 %v878, %v876
  %v1341 = vpack.c.b16 %v881, %v879
  %v1342 = vpack.c.b16 %v882, %v880
  %v1343 = vpack.c.b16 %v885, %v883
  %v1344 = vpack.c.b16 %v886, %v884
  %v1345 = vpack.c.b16 %v889, %v887
  %v1346 = vpack.c.b16 %v890, %v888
  %v1347 = vpack.c.b16 %v893, %v891
  %v1348 = vpack.c.b16 %v894, %v892
  %v1349 = vpack.c.b16 %v897, %v895
  %v1350 = vpack.c.b16 %v898, %v896
  %v1351 = vpack.c.b16 %v901, %v899
  %v1352 = vpack.c.b16 %v902, %v900
  %v1353 = vpack.c.b16 %v905, %v903
  %v1354 = vpack.c.b16 %v906, %v904
  %v1355 = vpack.c.b16 %v909, %v907
  %v1356 = vpack.c.b16 %v910, %v908
  %v1357 = vpack.c.b16 %v913, %v911
  %v1358 = vpack.c.b16 %v914, %v912
  %v1359 = vpack.c.b16 %v917, %v915
  %v1360 = vpack.c.b16 %v918, %v916
  %v1361 = vpack.c.b16 %v921, %v919
  %v1362 = vpack.c.b16 %v922, %v920
  %v1363 = vpack.c.b16 %v925, %v923
  %v1364 = vpack.c.b16 %v926, %v924
  %v1365 = vpack.c.b16 %v929, %v927
  %v1366 = vpack.c.b16 %v930, %v928
  %v1367 = vpack.c.b16 %v933, %v931
  %v1368 = vpack.c.b16 %v934, %v932
  %v1369 = vpack.c.b16 %v937, %v935
  %v1370 = vpack.c.b16 %v938, %v936
  %v1371 = vpack.c.b16 %v941, %v939
  %v1372 = vpack.c.b16 %v942, %v940
  %v1373 = vpack.c.b16 %v945, %v943
  %v1374 = vpack.c.b16 %v946, %v944
  %v1375 = vpack.c.b16 %v949, %v947
  %v1376 = vpack.c.b16 %v950, %v948
  %v1377 = vpack.c.b16 %v953, %v951
  %v1378 = vpack.c.b16 %v954, %v952
  %v1379 = vpack.c.b16 %v957, %v955
  %v1380 = vpack.c.b16 %v958, %v956
  %v1381 = vpack.c.b16 %v961, %v959
  %v1382 = vpack.c.b16 %v962, %v960
  %v1383 = vpack.c.b16 %v965, %v963
  %v1384 = vpack.c.b16 %v966, %v964
  %v1385 = vpack.c.b16 %v969, %v967
  %v1386 = vpack.c.b16 %v970, %v968
  %v1387 = vpack.c.b16 %v973, %v971
  %v1388 = vpack.c.b16 %v974, %v972
  %v1389 = vpack.c.b16 %v977, %v975
  %v1390 = vpack.c.b16 %v978, %v976
  %v1391 = vpack.c.b16 %v981, %v979
  %v1392 = vpack.c.b16 %v982, %v980
  %v1393 = vpack.c.b16 %v985, %v983
  %v1394 = vpack.c.b16 %v986, %v984
  %v1395 = vpack.c.b16 %v989, %v987
  %v1396 = vpack.c.b16 %v990, %v988
  %v1397 = vpack.c.b16 %v993, %v991
  %v1398 = vpack.c.b16 %v994, %v992
  %v1399 = vpack.c.b16 %v997, %v995
  %v1400 = vpack.c.b16 %v998, %v996
  %v1401 = vpack.c.b16 %v1001, %v999
  %v1402 = vpack.c.b16 %v1002, %v1000
  %v1403 = vpack.c.b16 %v1005, %v1003
  %v1404 = vpack.c.b16 %v1006, %v1004
  %v1405 = vpack.c.b16 %v1009, %v1007
  %v1406 = vpack.c.b16 %v1010, %v1008
  %v1407 = vpack.c.b16 %v1013, %v1011
  %v1408 = vpack.c.b16 %v1014, %v1012
  %v1409 = vpack.c.b16 %v1017, %v1015
  %v1410 = vpack.c.b16 %v1018, %v1016
  %v1411 = vpack.c.b16 %v1021, %v1019
  %v1412 = vpack.c.b16 %v1022, %v1020
  %v1413 = vpack.c.b16 %v1025, %v1023
  %v1414 = vpack.c.b16 %v1026, %v1024
  %v1415 = vpack.c.b16 %v1029, %v1027
  %v1416 = vpack.c.b16 %v1030, %v1028
  %v1417 = vpack.c.b16 %v1033, %v1031
  %v1418 = vpack.c.b16 %v1034, %v1032
  %v1419 = vpack.c.b16 %v1037, %v1035
  %v1420 = vpack.c.b16 %v1038, %v1036
  %v1421 = vpack.c.b16 %v1041, %v1039
  %v1422 = vpack.c.b16 %v1042, %v1040
  %v1423 = vpack.c.b16 %v1045, %v1043
  %v1424 = vpack.c.b16 %v1046, %v1044
  %v1425 = vpack.c.b16 %v1049, %v1047
  %v1426 = vpack.c.b16 %v1050, %v1048
  %v1427 = vpack.c.b16 %v1053, %v1051
  %v1428 = vpack.c.b16 %v1054, %v1052
  %v1429 = vpack.c.b16 %v1057, %v1055
  %v1430 = vpack.c.b16 %v1058, %v1056
  %v1431 = vpack.c.b16 %v1061, %v1059
  %v1432 = vpack.c.b16 %v1062, %v1060
  %v1433 = vpack.c.b16 %v1065, %v1063
  %v1434 = vpack.c.b16 %v1066, %v1064
  %v1435 = vpack.c.b16 %v1069, %v1067
  %v1436 = vpack.c.b16 %v1070, %v1068
  %v1437 = vpack.c.b16 %v1073, %v1071
  %v1438 = vpack.c.b16 %v1074, %v1072
  %v1439 = vpack.c.b16 %v1077, %v1075
  %v1440 = vpack.c.b16 %v1078, %v1076
  %v1441 = vpack.c.b16 %v1081, %v1079
  %v1442 = vpack.c.b16 %v1082, %v1080
  %v1443 = vpack.c.b16 %v1085, %v1083
  %v1444 = vpack.c.b16 %v1086, %v1084
  %v1445 = vpack.c.b16 %v1089, %v1087
  %v1446 = vpack.c.b16 %v1090, %v1088
  %v1447 = vpack.c.b16 %v1093, %v1091
  %v1448 = vpack.c.b16 %v1094, %v1092
  %v1449 = vpack.c.b16 %v1097, %v1095
  %v1450 = vpack.c.b16 %v1098, %v1096
  %v1451 = vpack.c.b16 %v1101, %v1099
  %v1452 = vpack.c.b16 %v1102, %v1100
  %v1453 = vpack.c.b16 %v1105, %v1103
  %v1454 = vpack.c.b16 %v1106, %v1104
  %v1455 = vpack.c.b16 %v1109, %v1107
  %v1456 = vpack.c.b16 %v1110, %v1108
  %v1457 = vpack.c.b16 %v1113, %v1111
  %v1458 = vpack.c.b16 %v1114, %v1112
  %v1459 = vpack.c.b16 %v1117, %v1115
  %v1460 = vpack.c.b16 %v1118, %v1116
  %v1461 = vpack.c.b16 %v1121, %v1119
  %v1462 = vpack.c.b16 %v1122, %v1120
  %v1463 = vpack.c.b16 %v1125, %v1123
  %v1464 = vpack.c.b16 %v1126, %v1124
  %v1465 = vpack.c.b16 %v1129, %v1127
  %v1466 = vpack.c.b16 %v1130, %v1128
  %v1467 = vpack.c.b16 %v1133, %v1131
  %v1468 = vpack.c.b16 %v1134, %v1132
  %v1469 = vpack.c.b16 %v1137, %v1135
  %v1470 = vpack.c.b16 %v1138, %v1136
  %v1471 = vpack.c.b16 %v1141, %v1139
  %v1472 = vpack.c.b16 %v1142, %v1140
  %v1473 = vpack.c.b16 %v1145, %v1143
  %v1474 = vpack.c.b16 %v1146, %v1144
  %v1475 = vpack.c.b16 %v1149, %v1147
  %v1476 = vpack.c.b16 %v1150, %v1148
  %v1477 = vpack.c.b16 %v1153, %v1151
  %v1478 = vpack.c.b16 %v1154, %v1152
  %v1479 = vpack.c.b16 %v1157, %v1155
  %v1480 = vpack.c.b16 %v1158, %v1156
  %v1481 = vpack.c.b16 %v1161, %v1159
  %v1482 = vpack.c.b16 %v1162, %v1160
  %v1483 = vpack.c.b16 %v1165, %v1163
  %v1484 = vpack.c.b16 %v1166, %v1164
  %v1485 = vpack.c.b16 %v1169, %v1167
  %v1486 = vpack.c.b16 %v1170, %v1168
  %v1487 = vpack.c.b16 %v1173, %v1171
  %v1488 = vpack.c.b16 %v1174, %v1172
  %v1489 = vpack.c.b16 %v1177, %v1175
  %v1490 = vpack.c.b16 %v1178, %v1176
  %v1491 = vpack.c.b16 %v1181, %v1179
  %v1492 = vpack.c.b16 %v1182, %v1180
  %v1493 = vpack.c.b16 %v1185, %v1183
  %v1494 = vpack.c.b16 %v1186, %v1184
  %v1495 = vpack.c.b16 %v1189, %v1187
  %v1496 = vpack.c.b16 %v1190, %v1188
  %v1497 = vpack.c.b16 %v1193, %v1191
  %v1498 = vpack.c.b16 %v1194, %v1192
  %v1499 = vpack.c.b16 %v1197, %v1195
  %v1500 = vpack.c.b16 %v1198, %v1196
  %v1501 = vpack.c.b16 %v1201, %v1199
  %v1502 = vpack.c.b16 %v1202, %v1200
  %v1503 = vpack.c.b16 %v1205, %v1203
  %v1504 = vpack.c.b16 %v1206, %v1204
  %v1505 = vpack.c.b16 %v1209, %v1207
  %v1506 = vpack.c.b16 %v1210, %v1208
  %v1507 = vpack.c.b16 %v1213, %v1211
  %v1508 = vpack.c.b16 %v1214, %v1212
  %v1509 = vpack.c.b16 %v1217, %v1215
  %v1510 = vpack.c.b16 %v1218, %v1216
  %v1511 = vpack.c.b16 %v1221, %v1219
  %v1512 = vpack.c.b16 %v1222, %v1220
  %v1513 = vpack.c.b16 %v1225, %v1223
  %v1514 = vpack.c.b16 %v1226, %v1224
  %v1515 = vpack.c.b16 %v1229, %v1227
  %v1516 = vpack.c.b16 %v1230, %v1228
  %v1517 = vpack.c.b16 %v1233, %v1231
  %v1518 = vpack.c.b16 %v1234, %v1232
  %v1519 = vpack.c.b16 %v1237, %v1235
  %v1520 = vpack.c.b16 %v1238, %v1236
  %v1521 = vpack.c.b16 %v1241, %v1239
  %v1522 = vpack.c.b16 %v1242, %v1240
  %v1523 = vpack.c.b16 %v1245, %v1243
  %v1524 = vpack.c.b16 %v1246, %v1244
  %v1525 = vpack.c.b16 %v1249, %v1247
  %v1526 = vpack.c.b16 %v1250, %v1248
  %v1527 = vpack.c.b16 %v1253, %v1251
  %v1528 = vpack.c.b16 %v1254, %v1252
  %v1529 = vpack.c.b16 %v1257, %v1255
  %v1530 = vpack.c.b16 %v1258, %v1256
  %v1531 = vpack.c.b16 %v1261, %v1259
  %v1532 = vpack.c.b16 %v1262, %v1260
  %v1533 = vpack.c.b16 %v1265, %v1263
  %v1534 = vpack.c.b16 %v1266, %v1264
  %v1535 = vpack.c.b16 %v1269, %v1267
  %v1536 = vpack.c.b16 %v1270, %v1268
  %v1537 = vpack.c.b16 %v1273, %v1271
  %v1538 = vpack.c.b16 %v1274, %v1272
  %v1539 = vpack.c.b16 %v1277, %v1275
  %v1540 = vpack.c.b16 %v1278, %v1276
  %v1541 = vpack.c.b16 %v1281, %v1279
  %v1542 = vpack.c.b16 %v1282, %v1280
  %v1543 = vpack.c.b16 %v1285, %v1283
  %v1544 = vpack.c.b16 %v1286, %v1284
  %v1545 = vpack.c.b16 %v1289, %v1287
  %v1546 = vpack.c.b16 %v1290, %v1288
  %1803 = vmatprep.subr.bf16.mxu0 %v1306
  %1804 = vmatpush1.bf16.msra.mxu0 %v1305
  %1805 = vmatprep.subr.bf16.mxu0 %v1304
  %1806 = vmatpush1.bf16.msra.mxu0 %v1303
  %1807 = vmatprep.subr.bf16.mxu0 %v1302
  %1808 = vmatpush1.bf16.msra.mxu0 %v1301
  %1809 = vmatprep.subr.bf16.mxu0 %v1300
  %1810 = vmatpush1.bf16.msra.mxu0 %v1299
  %1811 = vmatprep.subr.bf16.mxu0 %v1298
  %1812 = vmatpush1.bf16.msra.mxu0 %v1297
  %1813 = vmatprep.subr.bf16.mxu0 %v1296
  %1814 = vmatpush1.bf16.msra.mxu0 %v1295
  %1815 = vmatprep.subr.bf16.mxu0 %v1294
  %1816 = vmatpush1.bf16.msra.mxu0 %v1293
  %1817 = vmatprep.subr.bf16.mxu0 %v1292
  %1818 = vmatpush1.bf16.msra.mxu0 %v1291
  %1819 = vmatprep.subr.bf16.mxu0 %v1322
  %1820 = vmatpush2.bf16.msra.mxu0 %v1321
  %1821 = vmatprep.subr.bf16.mxu0 %v1320
  %1822 = vmatpush2.bf16.msra.mxu0 %v1319
  %1823 = vmatprep.subr.bf16.mxu0 %v1318
  %1824 = vmatpush2.bf16.msra.mxu0 %v1317
  %1825 = vmatprep.subr.bf16.mxu0 %v1316
  %1826 = vmatpush2.bf16.msra.mxu0 %v1315
  %1827 = vmatprep.subr.bf16.mxu0 %v1314
  %1828 = vmatpush2.bf16.msra.mxu0 %v1313
  %1829 = vmatprep.subr.bf16.mxu0 %v1312
  %1830 = vmatpush2.bf16.msra.mxu0 %v1311
  %1831 = vmatprep.subr.bf16.mxu0 %v1310
  %1832 = vmatpush2.bf16.msra.mxu0 %v1309
  %1833 = vmatprep.subr.bf16.mxu0 %v1308
  %1834 = vmatpush2.bf16.msra.mxu0 %v1307
  %1835 = vmatprep.mubr.bf16.mxu0 %v460
  %1836 = vmatmul.mubr.bf16.gmra.mxu0 %v459
  %v1837 = vpop.f32.mrf.mxu0
  %v1838 = vadd.f32 %v356, %v1837
  %v1839 = vpop.f32.mrf.mxu0
  %v1840 = vadd.f32 %v360, %v1839
  %v1841 = vpop.f32.mrf.mxu0
  %v1842 = vadd.f32 %v356, %v1841
  %v1843 = vpop.f32.mrf.mxu0
  %v1844 = vadd.f32 %v360, %v1843
  %1845 = vmatprep.mubr.bf16.mxu0 %v476
  %1846 = vmatmul.mubr.bf16.gmra.mxu0 %v475
  %v1847 = vpop.f32.mrf.mxu0
  %v1848 = vadd.f32 %v356, %v1847
  %v1849 = vpop.f32.mrf.mxu0
  %v1850 = vadd.f32 %v360, %v1849
  %v1851 = vpop.f32.mrf.mxu0
  %v1852 = vadd.f32 %v356, %v1851
  %v1853 = vpop.f32.mrf.mxu0
  %v1854 = vadd.f32 %v360, %v1853
  %1855 = vdwg.mxu0
  %1856 = vmatprep.subr.bf16.mxu0 %v1338
  %1857 = vmatpush1.bf16.msra.mxu0 %v1337
  %1858 = vmatprep.subr.bf16.mxu0 %v1336
  %1859 = vmatpush1.bf16.msra.mxu0 %v1335
  %1860 = vmatprep.subr.bf16.mxu0 %v1334
  %1861 = vmatpush1.bf16.msra.mxu0 %v1333
  %1862 = vmatprep.subr.bf16.mxu0 %v1332
  %1863 = vmatpush1.bf16.msra.mxu0 %v1331
  %1864 = vmatprep.subr.bf16.mxu0 %v1330
  %1865 = vmatpush1.bf16.msra.mxu0 %v1329
  %1866 = vmatprep.subr.bf16.mxu0 %v1328
  %1867 = vmatpush1.bf16.msra.mxu0 %v1327
  %1868 = vmatprep.subr.bf16.mxu0 %v1326
  %1869 = vmatpush1.bf16.msra.mxu0 %v1325
  %1870 = vmatprep.subr.bf16.mxu0 %v1324
  %1871 = vmatpush1.bf16.msra.mxu0 %v1323
  %1872 = vmatprep.subr.bf16.mxu0 %v1354
  %1873 = vmatpush2.bf16.msra.mxu0 %v1353
  %1874 = vmatprep.subr.bf16.mxu0 %v1352
  %1875 = vmatpush2.bf16.msra.mxu0 %v1351
  %1876 = vmatprep.subr.bf16.mxu0 %v1350
  %1877 = vmatpush2.bf16.msra.mxu0 %v1349
  %1878 = vmatprep.subr.bf16.mxu0 %v1348
  %1879 = vmatpush2.bf16.msra.mxu0 %v1347
  %1880 = vmatprep.subr.bf16.mxu0 %v1346
  %1881 = vmatpush2.bf16.msra.mxu0 %v1345
  %1882 = vmatprep.subr.bf16.mxu0 %v1344
  %1883 = vmatpush2.bf16.msra.mxu0 %v1343
  %1884 = vmatprep.subr.bf16.mxu0 %v1342
  %1885 = vmatpush2.bf16.msra.mxu0 %v1341
  %1886 = vmatprep.subr.bf16.mxu0 %v1340
  %1887 = vmatpush2.bf16.msra.mxu0 %v1339
  %1888 = vmatprep.mubr.bf16.mxu0 %v462
  %1889 = vmatmul.mubr.bf16.gmra.mxu0 %v461
  %v1890 = vpop.f32.mrf.mxu0
  %v1891 = vadd.f32 %v1838, %v1890
  %v1892 = vpop.f32.mrf.mxu0
  %v1893 = vadd.f32 %v1840, %v1892
  %v1894 = vpop.f32.mrf.mxu0
  %v1895 = vadd.f32 %v1842, %v1894
  %v1896 = vpop.f32.mrf.mxu0
  %v1897 = vadd.f32 %v1844, %v1896
  %1898 = vmatprep.mubr.bf16.mxu0 %v478
  %1899 = vmatmul.mubr.bf16.gmra.mxu0 %v477
  %v1900 = vpop.f32.mrf.mxu0
  %v1901 = vadd.f32 %v1848, %v1900
  %v1902 = vpop.f32.mrf.mxu0
  %v1903 = vadd.f32 %v1850, %v1902
  %v1904 = vpop.f32.mrf.mxu0
  %v1905 = vadd.f32 %v1852, %v1904
  %v1906 = vpop.f32.mrf.mxu0
  %v1907 = vadd.f32 %v1854, %v1906
  %1908 = vdwg.mxu0
  %1909 = vmatprep.subr.bf16.mxu0 %v1370
  %1910 = vmatpush1.bf16.msra.mxu0 %v1369
  %1911 = vmatprep.subr.bf16.mxu0 %v1368
  %1912 = vmatpush1.bf16.msra.mxu0 %v1367
  %1913 = vmatprep.subr.bf16.mxu0 %v1366
  %1914 = vmatpush1.bf16.msra.mxu0 %v1365
  %1915 = vmatprep.subr.bf16.mxu0 %v1364
  %1916 = vmatpush1.bf16.msra.mxu0 %v1363
  %1917 = vmatprep.subr.bf16.mxu0 %v1362
  %1918 = vmatpush1.bf16.msra.mxu0 %v1361
  %1919 = vmatprep.subr.bf16.mxu0 %v1360
  %1920 = vmatpush1.bf16.msra.mxu0 %v1359
  %1921 = vmatprep.subr.bf16.mxu0 %v1358
  %1922 = vmatpush1.bf16.msra.mxu0 %v1357
  %1923 = vmatprep.subr.bf16.mxu0 %v1356
  %1924 = vmatpush1.bf16.msra.mxu0 %v1355
  %1925 = vmatprep.subr.bf16.mxu0 %v1386
  %1926 = vmatpush2.bf16.msra.mxu0 %v1385
  %1927 = vmatprep.subr.bf16.mxu0 %v1384
  %1928 = vmatpush2.bf16.msra.mxu0 %v1383
  %1929 = vmatprep.subr.bf16.mxu0 %v1382
  %1930 = vmatpush2.bf16.msra.mxu0 %v1381
  %1931 = vmatprep.subr.bf16.mxu0 %v1380
  %1932 = vmatpush2.bf16.msra.mxu0 %v1379
  %1933 = vmatprep.subr.bf16.mxu0 %v1378
  %1934 = vmatpush2.bf16.msra.mxu0 %v1377
  %1935 = vmatprep.subr.bf16.mxu0 %v1376
  %1936 = vmatpush2.bf16.msra.mxu0 %v1375
  %1937 = vmatprep.subr.bf16.mxu0 %v1374
  %1938 = vmatpush2.bf16.msra.mxu0 %v1373
  %1939 = vmatprep.subr.bf16.mxu0 %v1372
  %1940 = vmatpush2.bf16.msra.mxu0 %v1371
  %1941 = vmatprep.mubr.bf16.mxu0 %v464
  %1942 = vmatmul.mubr.bf16.gmra.mxu0 %v463
  %v1943 = vpop.f32.mrf.mxu0
  %v1944 = vadd.f32 %v1891, %v1943
  %v1945 = vpop.f32.mrf.mxu0
  %v1946 = vadd.f32 %v1893, %v1945
  %v1947 = vpop.f32.mrf.mxu0
  %v1948 = vadd.f32 %v1895, %v1947
  %v1949 = vpop.f32.mrf.mxu0
  %v1950 = vadd.f32 %v1897, %v1949
  %1951 = vmatprep.mubr.bf16.mxu0 %v480
  %1952 = vmatmul.mubr.bf16.gmra.mxu0 %v479
  %v1953 = vpop.f32.mrf.mxu0
  %v1954 = vadd.f32 %v1901, %v1953
  %v1955 = vpop.f32.mrf.mxu0
  %v1956 = vadd.f32 %v1903, %v1955
  %v1957 = vpop.f32.mrf.mxu0
  %v1958 = vadd.f32 %v1905, %v1957
  %v1959 = vpop.f32.mrf.mxu0
  %v1960 = vadd.f32 %v1907, %v1959
  %1961 = vdwg.mxu0
  %1962 = vmatprep.subr.bf16.mxu0 %v1402
  %1963 = vmatpush1.bf16.msra.mxu0 %v1401
  %1964 = vmatprep.subr.bf16.mxu0 %v1400
  %1965 = vmatpush1.bf16.msra.mxu0 %v1399
  %1966 = vmatprep.subr.bf16.mxu0 %v1398
  %1967 = vmatpush1.bf16.msra.mxu0 %v1397
  %1968 = vmatprep.subr.bf16.mxu0 %v1396
  %1969 = vmatpush1.bf16.msra.mxu0 %v1395
  %1970 = vmatprep.subr.bf16.mxu0 %v1394
  %1971 = vmatpush1.bf16.msra.mxu0 %v1393
  %1972 = vmatprep.subr.bf16.mxu0 %v1392
  %1973 = vmatpush1.bf16.msra.mxu0 %v1391
  %1974 = vmatprep.subr.bf16.mxu0 %v1390
  %1975 = vmatpush1.bf16.msra.mxu0 %v1389
  %1976 = vmatprep.subr.bf16.mxu0 %v1388
  %1977 = vmatpush1.bf16.msra.mxu0 %v1387
  %1978 = vmatprep.subr.bf16.mxu0 %v1418
  %1979 = vmatpush2.bf16.msra.mxu0 %v1417
  %1980 = vmatprep.subr.bf16.mxu0 %v1416
  %1981 = vmatpush2.bf16.msra.mxu0 %v1415
  %1982 = vmatprep.subr.bf16.mxu0 %v1414
  %1983 = vmatpush2.bf16.msra.mxu0 %v1413
  %1984 = vmatprep.subr.bf16.mxu0 %v1412
  %1985 = vmatpush2.bf16.msra.mxu0 %v1411
  %1986 = vmatprep.subr.bf16.mxu0 %v1410
  %1987 = vmatpush2.bf16.msra.mxu0 %v1409
  %1988 = vmatprep.subr.bf16.mxu0 %v1408
  %1989 = vmatpush2.bf16.msra.mxu0 %v1407
  %1990 = vmatprep.subr.bf16.mxu0 %v1406
  %1991 = vmatpush2.bf16.msra.mxu0 %v1405
  %1992 = vmatprep.subr.bf16.mxu0 %v1404
  %1993 = vmatpush2.bf16.msra.mxu0 %v1403
  %1994 = vmatprep.mubr.bf16.mxu0 %v466
  %1995 = vmatmul.mubr.bf16.gmra.mxu0 %v465
  %v1996 = vpop.f32.mrf.mxu0
  %v1997 = vadd.f32 %v1944, %v1996
  %v1998 = vpop.f32.mrf.mxu0
  %v1999 = vadd.f32 %v1946, %v1998
  %v2000 = vpop.f32.mrf.mxu0
  %v2001 = vadd.f32 %v1948, %v2000
  %v2002 = vpop.f32.mrf.mxu0
  %v2003 = vadd.f32 %v1950, %v2002
  %2004 = vmatprep.mubr.bf16.mxu0 %v482
  %2005 = vmatmul.mubr.bf16.gmra.mxu0 %v481
  %v2006 = vpop.f32.mrf.mxu0
  %v2007 = vadd.f32 %v1954, %v2006
  %v2008 = vpop.f32.mrf.mxu0
  %v2009 = vadd.f32 %v1956, %v2008
  %v2010 = vpop.f32.mrf.mxu0
  %v2011 = vadd.f32 %v1958, %v2010
  %v2012 = vpop.f32.mrf.mxu0
  %v2013 = vadd.f32 %v1960, %v2012
  %2014 = vdwg.mxu0
  %2015 = vmatprep.subr.bf16.mxu0 %v1434
  %2016 = vmatpush1.bf16.msra.mxu0 %v1433
  %2017 = vmatprep.subr.bf16.mxu0 %v1432
  %2018 = vmatpush1.bf16.msra.mxu0 %v1431
  %2019 = vmatprep.subr.bf16.mxu0 %v1430
  %2020 = vmatpush1.bf16.msra.mxu0 %v1429
  %2021 = vmatprep.subr.bf16.mxu0 %v1428
  %2022 = vmatpush1.bf16.msra.mxu0 %v1427
  %2023 = vmatprep.subr.bf16.mxu0 %v1426
  %2024 = vmatpush1.bf16.msra.mxu0 %v1425
  %2025 = vmatprep.subr.bf16.mxu0 %v1424
  %2026 = vmatpush1.bf16.msra.mxu0 %v1423
  %2027 = vmatprep.subr.bf16.mxu0 %v1422
  %2028 = vmatpush1.bf16.msra.mxu0 %v1421
  %2029 = vmatprep.subr.bf16.mxu0 %v1420
  %2030 = vmatpush1.bf16.msra.mxu0 %v1419
  %2031 = vmatprep.subr.bf16.mxu0 %v1450
  %2032 = vmatpush2.bf16.msra.mxu0 %v1449
  %2033 = vmatprep.subr.bf16.mxu0 %v1448
  %2034 = vmatpush2.bf16.msra.mxu0 %v1447
  %2035 = vmatprep.subr.bf16.mxu0 %v1446
  %2036 = vmatpush2.bf16.msra.mxu0 %v1445
  %2037 = vmatprep.subr.bf16.mxu0 %v1444
  %2038 = vmatpush2.bf16.msra.mxu0 %v1443
  %2039 = vmatprep.subr.bf16.mxu0 %v1442
  %2040 = vmatpush2.bf16.msra.mxu0 %v1441
  %2041 = vmatprep.subr.bf16.mxu0 %v1440
  %2042 = vmatpush2.bf16.msra.mxu0 %v1439
  %2043 = vmatprep.subr.bf16.mxu0 %v1438
  %2044 = vmatpush2.bf16.msra.mxu0 %v1437
  %2045 = vmatprep.subr.bf16.mxu0 %v1436
  %2046 = vmatpush2.bf16.msra.mxu0 %v1435
  %2047 = vmatprep.mubr.bf16.mxu0 %v468
  %2048 = vmatmul.mubr.bf16.gmra.mxu0 %v467
  %v2049 = vpop.f32.mrf.mxu0
  %v2050 = vadd.f32 %v1997, %v2049
  %v2051 = vpop.f32.mrf.mxu0
  %v2052 = vadd.f32 %v1999, %v2051
  %v2053 = vpop.f32.mrf.mxu0
  %v2054 = vadd.f32 %v2001, %v2053
  %v2055 = vpop.f32.mrf.mxu0
  %v2056 = vadd.f32 %v2003, %v2055
  %2057 = vmatprep.mubr.bf16.mxu0 %v484
  %2058 = vmatmul.mubr.bf16.gmra.mxu0 %v483
  %v2059 = vpop.f32.mrf.mxu0
  %v2060 = vadd.f32 %v2007, %v2059
  %v2061 = vpop.f32.mrf.mxu0
  %v2062 = vadd.f32 %v2009, %v2061
  %v2063 = vpop.f32.mrf.mxu0
  %v2064 = vadd.f32 %v2011, %v2063
  %v2065 = vpop.f32.mrf.mxu0
  %v2066 = vadd.f32 %v2013, %v2065
  %2067 = vdwg.mxu0
  %2068 = vmatprep.subr.bf16.mxu0 %v1466
  %2069 = vmatpush1.bf16.msra.mxu0 %v1465
  %2070 = vmatprep.subr.bf16.mxu0 %v1464
  %2071 = vmatpush1.bf16.msra.mxu0 %v1463
  %2072 = vmatprep.subr.bf16.mxu0 %v1462
  %2073 = vmatpush1.bf16.msra.mxu0 %v1461
  %2074 = vmatprep.subr.bf16.mxu0 %v1460
  %2075 = vmatpush1.bf16.msra.mxu0 %v1459
  %2076 = vmatprep.subr.bf16.mxu0 %v1458
  %2077 = vmatpush1.bf16.msra.mxu0 %v1457
  %2078 = vmatprep.subr.bf16.mxu0 %v1456
  %2079 = vmatpush1.bf16.msra.mxu0 %v1455
  %2080 = vmatprep.subr.bf16.mxu0 %v1454
  %2081 = vmatpush1.bf16.msra.mxu0 %v1453
  %2082 = vmatprep.subr.bf16.mxu0 %v1452
  %2083 = vmatpush1.bf16.msra.mxu0 %v1451
  %2084 = vmatprep.subr.bf16.mxu0 %v1482
  %2085 = vmatpush2.bf16.msra.mxu0 %v1481
  %2086 = vmatprep.subr.bf16.mxu0 %v1480
  %2087 = vmatpush2.bf16.msra.mxu0 %v1479
  %2088 = vmatprep.subr.bf16.mxu0 %v1478
  %2089 = vmatpush2.bf16.msra.mxu0 %v1477
  %2090 = vmatprep.subr.bf16.mxu0 %v1476
  %2091 = vmatpush2.bf16.msra.mxu0 %v1475
  %2092 = vmatprep.subr.bf16.mxu0 %v1474
  %2093 = vmatpush2.bf16.msra.mxu0 %v1473
  %2094 = vmatprep.subr.bf16.mxu0 %v1472
  %2095 = vmatpush2.bf16.msra.mxu0 %v1471
  %2096 = vmatprep.subr.bf16.mxu0 %v1470
  %2097 = vmatpush2.bf16.msra.mxu0 %v1469
  %2098 = vmatprep.subr.bf16.mxu0 %v1468
  %2099 = vmatpush2.bf16.msra.mxu0 %v1467
  %2100 = vmatprep.mubr.bf16.mxu0 %v470
  %2101 = vmatmul.mubr.bf16.gmra.mxu0 %v469
  %v2102 = vpop.f32.mrf.mxu0
  %v2103 = vadd.f32 %v2050, %v2102
  %v2104 = vpop.f32.mrf.mxu0
  %v2105 = vadd.f32 %v2052, %v2104
  %v2106 = vpop.f32.mrf.mxu0
  %v2107 = vadd.f32 %v2054, %v2106
  %v2108 = vpop.f32.mrf.mxu0
  %v2109 = vadd.f32 %v2056, %v2108
  %2110 = vmatprep.mubr.bf16.mxu0 %v486
  %2111 = vmatmul.mubr.bf16.gmra.mxu0 %v485
  %v2112 = vpop.f32.mrf.mxu0
  %v2113 = vadd.f32 %v2060, %v2112
  %v2114 = vpop.f32.mrf.mxu0
  %v2115 = vadd.f32 %v2062, %v2114
  %v2116 = vpop.f32.mrf.mxu0
  %v2117 = vadd.f32 %v2064, %v2116
  %v2118 = vpop.f32.mrf.mxu0
  %v2119 = vadd.f32 %v2066, %v2118
  %2120 = vdwg.mxu0
  %2121 = vmatprep.subr.bf16.mxu0 %v1498
  %2122 = vmatpush1.bf16.msra.mxu0 %v1497
  %2123 = vmatprep.subr.bf16.mxu0 %v1496
  %2124 = vmatpush1.bf16.msra.mxu0 %v1495
  %2125 = vmatprep.subr.bf16.mxu0 %v1494
  %2126 = vmatpush1.bf16.msra.mxu0 %v1493
  %2127 = vmatprep.subr.bf16.mxu0 %v1492
  %2128 = vmatpush1.bf16.msra.mxu0 %v1491
  %2129 = vmatprep.subr.bf16.mxu0 %v1490
  %2130 = vmatpush1.bf16.msra.mxu0 %v1489
  %2131 = vmatprep.subr.bf16.mxu0 %v1488
  %2132 = vmatpush1.bf16.msra.mxu0 %v1487
  %2133 = vmatprep.subr.bf16.mxu0 %v1486
  %2134 = vmatpush1.bf16.msra.mxu0 %v1485
  %2135 = vmatprep.subr.bf16.mxu0 %v1484
  %2136 = vmatpush1.bf16.msra.mxu0 %v1483
  %2137 = vmatprep.subr.bf16.mxu0 %v1514
  %2138 = vmatpush2.bf16.msra.mxu0 %v1513
  %2139 = vmatprep.subr.bf16.mxu0 %v1512
  %2140 = vmatpush2.bf16.msra.mxu0 %v1511
  %2141 = vmatprep.subr.bf16.mxu0 %v1510
  %2142 = vmatpush2.bf16.msra.mxu0 %v1509
  %2143 = vmatprep.subr.bf16.mxu0 %v1508
  %2144 = vmatpush2.bf16.msra.mxu0 %v1507
  %2145 = vmatprep.subr.bf16.mxu0 %v1506
  %2146 = vmatpush2.bf16.msra.mxu0 %v1505
  %2147 = vmatprep.subr.bf16.mxu0 %v1504
  %2148 = vmatpush2.bf16.msra.mxu0 %v1503
  %2149 = vmatprep.subr.bf16.mxu0 %v1502
  %2150 = vmatpush2.bf16.msra.mxu0 %v1501
  %2151 = vmatprep.subr.bf16.mxu0 %v1500
  %2152 = vmatpush2.bf16.msra.mxu0 %v1499
  %2153 = vmatprep.mubr.bf16.mxu0 %v472
  %2154 = vmatmul.mubr.bf16.gmra.mxu0 %v471
  %v2155 = vpop.f32.mrf.mxu0
  %v2156 = vadd.f32 %v2103, %v2155
  %v2157 = vpop.f32.mrf.mxu0
  %v2158 = vadd.f32 %v2105, %v2157
  %v2159 = vpop.f32.mrf.mxu0
  %v2160 = vadd.f32 %v2107, %v2159
  %v2161 = vpop.f32.mrf.mxu0
  %v2162 = vadd.f32 %v2109, %v2161
  %2163 = vmatprep.mubr.bf16.mxu0 %v488
  %2164 = vmatmul.mubr.bf16.gmra.mxu0 %v487
  %v2165 = vpop.f32.mrf.mxu0
  %v2166 = vadd.f32 %v2113, %v2165
  %v2167 = vpop.f32.mrf.mxu0
  %v2168 = vadd.f32 %v2115, %v2167
  %v2169 = vpop.f32.mrf.mxu0
  %v2170 = vadd.f32 %v2117, %v2169
  %v2171 = vpop.f32.mrf.mxu0
  %v2172 = vadd.f32 %v2119, %v2171
  %2173 = vdwg.mxu0
  %2174 = vmatprep.subr.bf16.mxu0 %v1530
  %2175 = vmatpush1.bf16.msra.mxu0 %v1529
  %2176 = vmatprep.subr.bf16.mxu0 %v1528
  %2177 = vmatpush1.bf16.msra.mxu0 %v1527
  %2178 = vmatprep.subr.bf16.mxu0 %v1526
  %2179 = vmatpush1.bf16.msra.mxu0 %v1525
  %2180 = vmatprep.subr.bf16.mxu0 %v1524
  %2181 = vmatpush1.bf16.msra.mxu0 %v1523
  %2182 = vmatprep.subr.bf16.mxu0 %v1522
  %2183 = vmatpush1.bf16.msra.mxu0 %v1521
  %2184 = vmatprep.subr.bf16.mxu0 %v1520
  %2185 = vmatpush1.bf16.msra.mxu0 %v1519
  %2186 = vmatprep.subr.bf16.mxu0 %v1518
  %2187 = vmatpush1.bf16.msra.mxu0 %v1517
  %2188 = vmatprep.subr.bf16.mxu0 %v1516
  %2189 = vmatpush1.bf16.msra.mxu0 %v1515
  %2190 = vmatprep.subr.bf16.mxu0 %v1546
  %2191 = vmatpush2.bf16.msra.mxu0 %v1545
  %2192 = vmatprep.subr.bf16.mxu0 %v1544
  %2193 = vmatpush2.bf16.msra.mxu0 %v1543
  %2194 = vmatprep.subr.bf16.mxu0 %v1542
  %2195 = vmatpush2.bf16.msra.mxu0 %v1541
  %2196 = vmatprep.subr.bf16.mxu0 %v1540
  %2197 = vmatpush2.bf16.msra.mxu0 %v1539
  %2198 = vmatprep.subr.bf16.mxu0 %v1538
  %2199 = vmatpush2.bf16.msra.mxu0 %v1537
  %2200 = vmatprep.subr.bf16.mxu0 %v1536
  %2201 = vmatpush2.bf16.msra.mxu0 %v1535
  %2202 = vmatprep.subr.bf16.mxu0 %v1534
  %2203 = vmatpush2.bf16.msra.mxu0 %v1533
  %2204 = vmatprep.subr.bf16.mxu0 %v1532
  %2205 = vmatpush2.bf16.msra.mxu0 %v1531
  %2206 = vmatprep.mubr.bf16.mxu0 %v474
  %2207 = vmatmul.mubr.bf16.gmra.mxu0 %v473
  %v2208 = vpop.f32.mrf.mxu0
  %v2209 = vadd.f32 %v2156, %v2208
  %v2210 = vpop.f32.mrf.mxu0
  %v2211 = vadd.f32 %v2158, %v2210
  %v2212 = vpop.f32.mrf.mxu0
  %v2213 = vadd.f32 %v2160, %v2212
  %v2214 = vpop.f32.mrf.mxu0
  %v2215 = vadd.f32 %v2162, %v2214
  %2216 = vmatprep.mubr.bf16.mxu0 %v490
  %2217 = vmatmul.mubr.bf16.gmra.mxu0 %v489
  %v2218 = vpop.f32.mrf.mxu0
  %v2219 = vadd.f32 %v2166, %v2218
  %v2220 = vpop.f32.mrf.mxu0
  %v2221 = vadd.f32 %v2168, %v2220
  %v2222 = vpop.f32.mrf.mxu0
  %v2223 = vadd.f32 %v2170, %v2222
  %v2224 = vpop.f32.mrf.mxu0
  %v2225 = vadd.f32 %v2172, %v2224
  %2226 = vdwg.mxu0
  %s2227 = scalar_lea.vmem %s3, 1
  %v2228 = vld [vmem:[%s2227] ss:$8 sm:$0x3]
  %s2229 = scalar_lea.vmem %s3, 2
  %v2230 = vld [vmem:[%s2229] ss:$8 sm:$0x3]
  %v2231 = vpack.c.bf16 %v2213, %v2209
  %v2232 = vpack.c.bf16 %v2215, %v2211
  %v2233 = vpack.c.bf16 %v2223, %v2219
  %v2234 = vpack.c.bf16 %v2225, %v2221
  %v2239 = vunpack.c.l.b16 %v27
  %v2240 = vunpack.c.l.b16 %v28
  %v2241 = vunpack.c.l.b16 %v29
  %v2242 = vunpack.c.l.b16 %v30
  %v2243 = vpack.c.b16 %v2240, %v2239
  %v2244 = vpack.c.b16 %v2242, %v2241
  %vm2245 = vcmask 261120
  %v2247 = vsel %vm2245, %v2243, 0
  %v2250 = vsel %vm2245, %v2244, 0
  %2252 = vmatprep.subr.bf16.mxu0 0
  %2253 = vmatpush1.bf16.msra.mxu0 0
  %2254 = vmatprep.subr.bf16.mxu0 0
  %2255 = vmatpush1.bf16.msra.mxu0 0
  %2256 = vmatprep.subr.bf16.mxu0 0
  %2257 = vmatpush1.bf16.msra.mxu0 0
  %2258 = vmatprep.subr.bf16.mxu0 0
  %2259 = vmatpush1.bf16.msra.mxu0 0
  %2260 = vmatprep.subr.bf16.mxu0 0
  %2261 = vmatpush1.bf16.msra.mxu0 0
  %2262 = vmatprep.subr.bf16.mxu0 0
  %2263 = vmatpush1.bf16.msra.mxu0 0
  %2264 = vmatprep.subr.bf16.mxu0 %v2234
  %2265 = vmatpush1.bf16.msra.mxu0 %v2233
  %2266 = vmatprep.subr.bf16.mxu0 %v2232
  %2267 = vmatpush1.bf16.msra.mxu0 %v2231
  %2268 = vmatprep.subr.bf16.mxu0 0
  %2269 = vmatpush2.bf16.msra.mxu0 0
  %2270 = vmatprep.subr.bf16.mxu0 0
  %2271 = vmatpush2.bf16.msra.mxu0 0
  %2272 = vmatprep.subr.bf16.mxu0 0
  %2273 = vmatpush2.bf16.msra.mxu0 0
  %2274 = vmatprep.subr.bf16.mxu0 0
  %2275 = vmatpush2.bf16.msra.mxu0 0
  %2276 = vmatprep.subr.bf16.mxu0 0
  %2277 = vmatpush2.bf16.msra.mxu0 0
  %2278 = vmatprep.subr.bf16.mxu0 0
  %2279 = vmatpush2.bf16.msra.mxu0 0
  %2280 = vmatprep.subr.bf16.mxu0 0
  %2281 = vmatpush2.bf16.msra.mxu0 0
  %2282 = vmatprep.subr.bf16.mxu0 0
  %2283 = vmatpush2.bf16.msra.mxu0 0
  %2284 = vmatprep.mubr.bf16.mxu0 0
  %2285 = vmatmul.mubr.bf16.gmra.mxu0 %v2247
  %v2286 = vpop.f32.mrf.mxu0
  %v2287 = vadd.f32 0.0, %v2286
  %v2288 = vpop.f32.mrf.mxu0
  %v2289 = vadd.f32 0.0, %v2288
  %v2290 = vpop.f32.mrf.mxu0
  %v2291 = vadd.f32 0.0, %v2290
  %v2292 = vpop.f32.mrf.mxu0
  %v2293 = vadd.f32 0.0, %v2292
  %2294 = vmatprep.mubr.bf16.mxu0 0
  %2295 = vmatmul.mubr.bf16.gmra.mxu0 %v2250
  %v2296 = vpop.f32.mrf.mxu0
  %v2297 = vadd.f32 0.0, %v2296
  %v2298 = vpop.f32.mrf.mxu0
  %v2299 = vadd.f32 0.0, %v2298
  %v2300 = vpop.f32.mrf.mxu0
  %v2301 = vadd.f32 0.0, %v2300
  %v2302 = vpop.f32.mrf.mxu0
  %v2303 = vadd.f32 0.0, %v2302
  %2304 = vdwg.mxu0
  %v2305 = vpack.c.bf16 %v2291, %v2287
  %v2306 = vpack.c.bf16 %v2293, %v2289
  %v2307 = vpack.c.bf16 %v2301, %v2297
  %v2308 = vpack.c.bf16 %v2303, %v2299
  %v2341 = vunpack.c.l.b16 %v31
  %v2342 = vunpack.c.h.b16 %v31
  %v2343 = vunpack.c.l.b16 %v32
  %v2344 = vunpack.c.h.b16 %v32
  %v2345 = vunpack.c.l.b16 %v33
  %v2346 = vunpack.c.h.b16 %v33
  %v2347 = vunpack.c.l.b16 %v34
  %v2348 = vunpack.c.h.b16 %v34
  %v2349 = vunpack.c.l.b16 %v35
  %v2350 = vunpack.c.h.b16 %v35
  %v2351 = vunpack.c.l.b16 %v36
  %v2352 = vunpack.c.h.b16 %v36
  %v2353 = vunpack.c.l.b16 %v37
  %v2354 = vunpack.c.h.b16 %v37
  %v2355 = vunpack.c.l.b16 %v38
  %v2356 = vunpack.c.h.b16 %v38
  %v2357 = vunpack.c.l.b16 %v39
  %v2358 = vunpack.c.h.b16 %v39
  %v2359 = vunpack.c.l.b16 %v40
  %v2360 = vunpack.c.h.b16 %v40
  %v2361 = vunpack.c.l.b16 %v41
  %v2362 = vunpack.c.h.b16 %v41
  %v2363 = vunpack.c.l.b16 %v42
  %v2364 = vunpack.c.h.b16 %v42
  %v2365 = vunpack.c.l.b16 %v43
  %v2366 = vunpack.c.h.b16 %v43
  %v2367 = vunpack.c.l.b16 %v44
  %v2368 = vunpack.c.h.b16 %v44
  %v2369 = vunpack.c.l.b16 %v45
  %v2370 = vunpack.c.h.b16 %v45
  %v2371 = vunpack.c.l.b16 %v46
  %v2372 = vunpack.c.h.b16 %v46
  %v2373 = vunpack.c.l.b16 %v47
  %v2374 = vunpack.c.h.b16 %v47
  %v2375 = vunpack.c.l.b16 %v48
  %v2376 = vunpack.c.h.b16 %v48
  %v2377 = vunpack.c.l.b16 %v49
  %v2378 = vunpack.c.h.b16 %v49
  %v2379 = vunpack.c.l.b16 %v50
  %v2380 = vunpack.c.h.b16 %v50
  %v2381 = vunpack.c.l.b16 %v51
  %v2382 = vunpack.c.h.b16 %v51
  %v2383 = vunpack.c.l.b16 %v52
  %v2384 = vunpack.c.h.b16 %v52
  %v2385 = vunpack.c.l.b16 %v53
  %v2386 = vunpack.c.h.b16 %v53
  %v2387 = vunpack.c.l.b16 %v54
  %v2388 = vunpack.c.h.b16 %v54
  %v2389 = vunpack.c.l.b16 %v55
  %v2390 = vunpack.c.h.b16 %v55
  %v2391 = vunpack.c.l.b16 %v56
  %v2392 = vunpack.c.h.b16 %v56
  %v2393 = vunpack.c.l.b16 %v57
  %v2394 = vunpack.c.h.b16 %v57
  %v2395 = vunpack.c.l.b16 %v58
  %v2396 = vunpack.c.h.b16 %v58
  %v2397 = vunpack.c.l.b16 %v59
  %v2398 = vunpack.c.h.b16 %v59
  %v2399 = vunpack.c.l.b16 %v60
  %v2400 = vunpack.c.h.b16 %v60
  %v2401 = vunpack.c.l.b16 %v61
  %v2402 = vunpack.c.h.b16 %v61
  %v2403 = vunpack.c.l.b16 %v62
  %v2404 = vunpack.c.h.b16 %v62
  %v2405 = vpack.c.b16 %v2343, %v2341
  %v2406 = vpack.c.b16 %v2344, %v2342
  %v2407 = vpack.c.b16 %v2347, %v2345
  %v2408 = vpack.c.b16 %v2348, %v2346
  %v2409 = vpack.c.b16 %v2351, %v2349
  %v2410 = vpack.c.b16 %v2352, %v2350
  %v2411 = vpack.c.b16 %v2355, %v2353
  %v2412 = vpack.c.b16 %v2356, %v2354
  %v2413 = vpack.c.b16 %v2359, %v2357
  %v2414 = vpack.c.b16 %v2360, %v2358
  %v2415 = vpack.c.b16 %v2363, %v2361
  %v2416 = vpack.c.b16 %v2364, %v2362
  %v2417 = vpack.c.b16 %v2367, %v2365
  %v2418 = vpack.c.b16 %v2368, %v2366
  %v2419 = vpack.c.b16 %v2371, %v2369
  %v2420 = vpack.c.b16 %v2372, %v2370
  %v2421 = vpack.c.b16 %v2375, %v2373
  %v2422 = vpack.c.b16 %v2376, %v2374
  %v2423 = vpack.c.b16 %v2379, %v2377
  %v2424 = vpack.c.b16 %v2380, %v2378
  %v2425 = vpack.c.b16 %v2383, %v2381
  %v2426 = vpack.c.b16 %v2384, %v2382
  %v2427 = vpack.c.b16 %v2387, %v2385
  %v2428 = vpack.c.b16 %v2388, %v2386
  %v2429 = vpack.c.b16 %v2391, %v2389
  %v2430 = vpack.c.b16 %v2392, %v2390
  %v2431 = vpack.c.b16 %v2395, %v2393
  %v2432 = vpack.c.b16 %v2396, %v2394
  %v2433 = vpack.c.b16 %v2399, %v2397
  %v2434 = vpack.c.b16 %v2400, %v2398
  %v2435 = vpack.c.b16 %v2403, %v2401
  %v2436 = vpack.c.b16 %v2404, %v2402
  %2469 = vmatprep.subr.bf16.mxu0 %v2420
  %2470 = vmatpush1.bf16.msra.mxu0 %v2419
  %2471 = vmatprep.subr.bf16.mxu0 %v2418
  %2472 = vmatpush1.bf16.msra.mxu0 %v2417
  %2473 = vmatprep.subr.bf16.mxu0 %v2416
  %2474 = vmatpush1.bf16.msra.mxu0 %v2415
  %2475 = vmatprep.subr.bf16.mxu0 %v2414
  %2476 = vmatpush1.bf16.msra.mxu0 %v2413
  %2477 = vmatprep.subr.bf16.mxu0 %v2412
  %2478 = vmatpush1.bf16.msra.mxu0 %v2411
  %2479 = vmatprep.subr.bf16.mxu0 %v2410
  %2480 = vmatpush1.bf16.msra.mxu0 %v2409
  %2481 = vmatprep.subr.bf16.mxu0 %v2408
  %2482 = vmatpush1.bf16.msra.mxu0 %v2407
  %2483 = vmatprep.subr.bf16.mxu0 %v2406
  %2484 = vmatpush1.bf16.msra.mxu0 %v2405
  %2485 = vmatprep.subr.bf16.mxu0 %v2436
  %2486 = vmatpush2.bf16.msra.mxu0 %v2435
  %2487 = vmatprep.subr.bf16.mxu0 %v2434
  %2488 = vmatpush2.bf16.msra.mxu0 %v2433
  %2489 = vmatprep.subr.bf16.mxu0 %v2432
  %2490 = vmatpush2.bf16.msra.mxu0 %v2431
  %2491 = vmatprep.subr.bf16.mxu0 %v2430
  %2492 = vmatpush2.bf16.msra.mxu0 %v2429
  %2493 = vmatprep.subr.bf16.mxu0 %v2428
  %2494 = vmatpush2.bf16.msra.mxu0 %v2427
  %2495 = vmatprep.subr.bf16.mxu0 %v2426
  %2496 = vmatpush2.bf16.msra.mxu0 %v2425
  %2497 = vmatprep.subr.bf16.mxu0 %v2424
  %2498 = vmatpush2.bf16.msra.mxu0 %v2423
  %2499 = vmatprep.subr.bf16.mxu0 %v2422
  %2500 = vmatpush2.bf16.msra.mxu0 %v2421
  %2501 = vmatprep.mubr.bf16.mxu0 %v2306
  %2502 = vmatmul.mubr.bf16.gmra.mxu0 %v2305
  %v2503 = vpop.f32.mrf.mxu0
  %v2504 = vadd.f32 0.0, %v2503
  %v2505 = vpop.f32.mrf.mxu0
  %v2506 = vadd.f32 0.0, %v2505
  %v2507 = vpop.f32.mrf.mxu0
  %v2508 = vadd.f32 0.0, %v2507
  %v2509 = vpop.f32.mrf.mxu0
  %v2510 = vadd.f32 0.0, %v2509
  %2511 = vmatprep.mubr.bf16.mxu0 %v2308
  %2512 = vmatmul.mubr.bf16.gmra.mxu0 %v2307
  %v2513 = vpop.f32.mrf.mxu0
  %v2514 = vadd.f32 0.0, %v2513
  %v2515 = vpop.f32.mrf.mxu0
  %v2516 = vadd.f32 0.0, %v2515
  %v2517 = vpop.f32.mrf.mxu0
  %v2518 = vadd.f32 0.0, %v2517
  %v2519 = vpop.f32.mrf.mxu0
  %v2520 = vadd.f32 0.0, %v2519
  %2521 = vdwg.mxu0
  %v2522 = vsub.f32 %v2209, %v2504
  %v2523 = vsub.f32 %v2211, %v2506
  %v2524 = vsub.f32 %v2213, %v2508
  %v2525 = vsub.f32 %v2215, %v2510
  %v2526 = vsub.f32 %v2219, %v2514
  %v2527 = vsub.f32 %v2221, %v2516
  %v2528 = vsub.f32 %v2223, %v2518
  %v2529 = vsub.f32 %v2225, %v2520
  %v2530 = vmul.f32 %v2522, %v2522
  %v2531 = vmul.f32 %v2523, %v2523
  %v2532 = vmul.f32 %v2524, %v2524
  %v2533 = vmul.f32 %v2525, %v2525
  %v2534 = vmul.f32 %v2526, %v2526
  %v2535 = vmul.f32 %v2527, %v2527
  %v2536 = vmul.f32 %v2528, %v2528
  %v2537 = vmul.f32 %v2529, %v2529
  %v2538 = vpack.c.bf16 %v2532, %v2530
  %v2539 = vpack.c.bf16 %v2533, %v2531
  %v2540 = vpack.c.bf16 %v2536, %v2534
  %v2541 = vpack.c.bf16 %v2537, %v2535
  %2542 = vmatprep.subr.bf16.mxu0 0
  %2543 = vmatpush1.bf16.msra.mxu0 0
  %2544 = vmatprep.subr.bf16.mxu0 0
  %2545 = vmatpush1.bf16.msra.mxu0 0
  %2546 = vmatprep.subr.bf16.mxu0 0
  %2547 = vmatpush1.bf16.msra.mxu0 0
  %2548 = vmatprep.subr.bf16.mxu0 0
  %2549 = vmatpush1.bf16.msra.mxu0 0
  %2550 = vmatprep.subr.bf16.mxu0 0
  %2551 = vmatpush1.bf16.msra.mxu0 0
  %2552 = vmatprep.subr.bf16.mxu0 0
  %2553 = vmatpush1.bf16.msra.mxu0 0
  %2554 = vmatprep.subr.bf16.mxu0 %v2541
  %2555 = vmatpush1.bf16.msra.mxu0 %v2540
  %2556 = vmatprep.subr.bf16.mxu0 %v2539
  %2557 = vmatpush1.bf16.msra.mxu0 %v2538
  %2558 = vmatprep.subr.bf16.mxu0 0
  %2559 = vmatpush2.bf16.msra.mxu0 0
  %2560 = vmatprep.subr.bf16.mxu0 0
  %2561 = vmatpush2.bf16.msra.mxu0 0
  %2562 = vmatprep.subr.bf16.mxu0 0
  %2563 = vmatpush2.bf16.msra.mxu0 0
  %2564 = vmatprep.subr.bf16.mxu0 0
  %2565 = vmatpush2.bf16.msra.mxu0 0
  %2566 = vmatprep.subr.bf16.mxu0 0
  %2567 = vmatpush2.bf16.msra.mxu0 0
  %2568 = vmatprep.subr.bf16.mxu0 0
  %2569 = vmatpush2.bf16.msra.mxu0 0
  %2570 = vmatprep.subr.bf16.mxu0 0
  %2571 = vmatpush2.bf16.msra.mxu0 0
  %2572 = vmatprep.subr.bf16.mxu0 0
  %2573 = vmatpush2.bf16.msra.mxu0 0
  %2574 = vmatprep.mubr.bf16.mxu0 0
  %2575 = vmatmul.mubr.bf16.gmra.mxu0 %v2247
  %v2576 = vpop.f32.mrf.mxu0
  %v2577 = vadd.f32 0.0, %v2576
  %v2578 = vpop.f32.mrf.mxu0
  %v2579 = vadd.f32 0.0, %v2578
  %v2580 = vpop.f32.mrf.mxu0
  %v2581 = vadd.f32 0.0, %v2580
  %v2582 = vpop.f32.mrf.mxu0
  %v2583 = vadd.f32 0.0, %v2582
  %2584 = vmatprep.mubr.bf16.mxu0 0
  %2585 = vmatmul.mubr.bf16.gmra.mxu0 %v2250
  %v2586 = vpop.f32.mrf.mxu0
  %v2587 = vadd.f32 0.0, %v2586
  %v2588 = vpop.f32.mrf.mxu0
  %v2589 = vadd.f32 0.0, %v2588
  %v2590 = vpop.f32.mrf.mxu0
  %v2591 = vadd.f32 0.0, %v2590
  %v2592 = vpop.f32.mrf.mxu0
  %v2593 = vadd.f32 0.0, %v2592
  %2594 = vdwg.mxu0
  %v2595 = vpack.c.bf16 %v2581, %v2577
  %v2596 = vpack.c.bf16 %v2583, %v2579
  %v2597 = vpack.c.bf16 %v2591, %v2587
  %v2598 = vpack.c.bf16 %v2593, %v2589
  %2599 = vmatprep.subr.bf16.mxu0 %v2420
  %2600 = vmatpush1.bf16.msra.mxu0 %v2419
  %2601 = vmatprep.subr.bf16.mxu0 %v2418
  %2602 = vmatpush1.bf16.msra.mxu0 %v2417
  %2603 = vmatprep.subr.bf16.mxu0 %v2416
  %2604 = vmatpush1.bf16.msra.mxu0 %v2415
  %2605 = vmatprep.subr.bf16.mxu0 %v2414
  %2606 = vmatpush1.bf16.msra.mxu0 %v2413
  %2607 = vmatprep.subr.bf16.mxu0 %v2412
  %2608 = vmatpush1.bf16.msra.mxu0 %v2411
  %2609 = vmatprep.subr.bf16.mxu0 %v2410
  %2610 = vmatpush1.bf16.msra.mxu0 %v2409
  %2611 = vmatprep.subr.bf16.mxu0 %v2408
  %2612 = vmatpush1.bf16.msra.mxu0 %v2407
  %2613 = vmatprep.subr.bf16.mxu0 %v2406
  %2614 = vmatpush1.bf16.msra.mxu0 %v2405
  %2615 = vmatprep.subr.bf16.mxu0 %v2436
  %2616 = vmatpush2.bf16.msra.mxu0 %v2435
  %2617 = vmatprep.subr.bf16.mxu0 %v2434
  %2618 = vmatpush2.bf16.msra.mxu0 %v2433
  %2619 = vmatprep.subr.bf16.mxu0 %v2432
  %2620 = vmatpush2.bf16.msra.mxu0 %v2431
  %2621 = vmatprep.subr.bf16.mxu0 %v2430
  %2622 = vmatpush2.bf16.msra.mxu0 %v2429
  %2623 = vmatprep.subr.bf16.mxu0 %v2428
  %2624 = vmatpush2.bf16.msra.mxu0 %v2427
  %2625 = vmatprep.subr.bf16.mxu0 %v2426
  %2626 = vmatpush2.bf16.msra.mxu0 %v2425
  %2627 = vmatprep.subr.bf16.mxu0 %v2424
  %2628 = vmatpush2.bf16.msra.mxu0 %v2423
  %2629 = vmatprep.subr.bf16.mxu0 %v2422
  %2630 = vmatpush2.bf16.msra.mxu0 %v2421
  %2631 = vmatprep.mubr.bf16.mxu0 %v2596
  %2632 = vmatmul.mubr.bf16.gmra.mxu0 %v2595
  %v2633 = vpop.f32.mrf.mxu0
  %v2634 = vadd.f32 1e-05, %v2633
  %v2635 = vpop.f32.mrf.mxu0
  %v2636 = vadd.f32 1e-05, %v2635
  %v2637 = vpop.f32.mrf.mxu0
  %v2638 = vadd.f32 1e-05, %v2637
  %v2639 = vpop.f32.mrf.mxu0
  %v2640 = vadd.f32 1e-05, %v2639
  %2641 = vmatprep.mubr.bf16.mxu0 %v2598
  %2642 = vmatmul.mubr.bf16.gmra.mxu0 %v2597
  %v2643 = vpop.f32.mrf.mxu0
  %v2644 = vadd.f32 1e-05, %v2643
  %v2645 = vpop.f32.mrf.mxu0
  %v2646 = vadd.f32 1e-05, %v2645
  %v2647 = vpop.f32.mrf.mxu0
  %v2648 = vadd.f32 1e-05, %v2647
  %v2649 = vpop.f32.mrf.mxu0
  %v2650 = vadd.f32 1e-05, %v2649
  %2651 = vdwg.mxu0
  %v2652 = vrsqrt.pop %v2634
  %v2653 = vrsqrt.pop %v2636
  %v2654 = vrsqrt.pop %v2638
  %v2655 = vrsqrt.pop %v2640
  %v2656 = vrsqrt.pop %v2644
  %v2657 = vrsqrt.pop %v2646
  %v2658 = vrsqrt.pop %v2648
  %v2659 = vrsqrt.pop %v2650
  %v2660 = vmul.f32 %v2522, %v2652
  %v2661 = vmul.f32 %v2523, %v2653
  %v2662 = vmul.f32 %v2524, %v2654
  %v2663 = vmul.f32 %v2525, %v2655
  %v2664 = vmul.f32 %v2526, %v2656
  %v2665 = vmul.f32 %v2527, %v2657
  %v2666 = vmul.f32 %v2528, %v2658
  %v2667 = vmul.f32 %v2529, %v2659
  %v2669 = vlaneseq
  %v2670 = vshrl.u32 %v2669, 7
  %v2671 = vsub.s32 0, %v2670
  %v2672 = vrot.slane %v2228, %v2671
  %v2673 = vlaneseq
  %v2674 = vshrl.u32 %v2673, 7
  %v2675 = vsub.s32 1, %v2674
  %v2676 = vrot.slane %v2228, %v2675
  %v2679 = vmul.f32 %v2660, %v2672
  %v2680 = vmul.f32 %v2661, %v2676
  %v2681 = vmul.f32 %v2662, %v2672
  %v2682 = vmul.f32 %v2663, %v2676
  %v2683 = vmul.f32 %v2664, %v2672
  %v2684 = vmul.f32 %v2665, %v2676
  %v2685 = vmul.f32 %v2666, %v2672
  %v2686 = vmul.f32 %v2667, %v2676
  %v2688 = vlaneseq
  %v2689 = vshrl.u32 %v2688, 7
  %v2690 = vsub.s32 0, %v2689
  %v2691 = vrot.slane %v2230, %v2690
  %v2692 = vlaneseq
  %v2693 = vshrl.u32 %v2692, 7
  %v2694 = vsub.s32 1, %v2693
  %v2695 = vrot.slane %v2230, %v2694
  %v2698 = vadd.f32 %v2679, %v2691
  %v2699 = vadd.f32 %v2680, %v2695
  %v2700 = vadd.f32 %v2681, %v2691
  %v2701 = vadd.f32 %v2682, %v2695
  %v2702 = vadd.f32 %v2683, %v2691
  %v2703 = vadd.f32 %v2684, %v2695
  %v2704 = vadd.f32 %v2685, %v2691
  %v2705 = vadd.f32 %v2686, %v2695
  %v2706 = vpack.c.bf16 %v2700, %v2698
  %v2707 = vpack.c.bf16 %v2701, %v2699
  %v2708 = vpack.c.bf16 %v2704, %v2702
  %v2709 = vpack.c.bf16 %v2705, %v2703
  %v2710 = vld [vmem:[%s4] sm:$0xf]
  %v2711 = vld [vmem:[%s4 + $0x4] sm:$0xf]
  %v2712 = vld [vmem:[%s4 + $0x8] sm:$0xf]
  %v2713 = vld [vmem:[%s4 + $0xc] sm:$0xf]
  %v2718 = vunpack.c.l.b16 %v2710
  %v2719 = vunpack.c.l.b16 %v2711
  %v2720 = vunpack.c.l.b16 %v2712
  %v2721 = vunpack.c.l.b16 %v2713
  %v2722 = vpack.c.b16 %v2719, %v2718
  %v2723 = vpack.c.b16 %v2721, %v2720
  %v2725 = vsel %vm2245, %v2722, 0
  %v2728 = vsel %vm2245, %v2723, 0
  %2730 = vmatprep.subr.bf16.mxu0 0
  %2731 = vmatpush1.bf16.msra.mxu0 0
  %2732 = vmatprep.subr.bf16.mxu0 0
  %2733 = vmatpush1.bf16.msra.mxu0 0
  %2734 = vmatprep.subr.bf16.mxu0 0
  %2735 = vmatpush1.bf16.msra.mxu0 0
  %2736 = vmatprep.subr.bf16.mxu0 0
  %2737 = vmatpush1.bf16.msra.mxu0 0
  %2738 = vmatprep.subr.bf16.mxu0 0
  %2739 = vmatpush1.bf16.msra.mxu0 0
  %2740 = vmatprep.subr.bf16.mxu0 0
  %2741 = vmatpush1.bf16.msra.mxu0 0
  %2742 = vmatprep.subr.bf16.mxu0 %v2709
  %2743 = vmatpush1.bf16.msra.mxu0 %v2708
  %2744 = vmatprep.subr.bf16.mxu0 %v2707
  %2745 = vmatpush1.bf16.msra.mxu0 %v2706
  %2746 = vmatprep.subr.bf16.mxu0 0
  %2747 = vmatpush2.bf16.msra.mxu0 0
  %2748 = vmatprep.subr.bf16.mxu0 0
  %2749 = vmatpush2.bf16.msra.mxu0 0
  %2750 = vmatprep.subr.bf16.mxu0 0
  %2751 = vmatpush2.bf16.msra.mxu0 0
  %2752 = vmatprep.subr.bf16.mxu0 0
  %2753 = vmatpush2.bf16.msra.mxu0 0
  %2754 = vmatprep.subr.bf16.mxu0 0
  %2755 = vmatpush2.bf16.msra.mxu0 0
  %2756 = vmatprep.subr.bf16.mxu0 0
  %2757 = vmatpush2.bf16.msra.mxu0 0
  %2758 = vmatprep.subr.bf16.mxu0 0
  %2759 = vmatpush2.bf16.msra.mxu0 0
  %2760 = vmatprep.subr.bf16.mxu0 0
  %2761 = vmatpush2.bf16.msra.mxu0 0
  %2762 = vmatprep.mubr.bf16.mxu0 0
  %2763 = vmatmul.mubr.bf16.gmra.mxu0 %v2725
  %v2764 = vpop.f32.mrf.mxu0
  %v2765 = vadd.f32 0.0, %v2764
  %v2766 = vpop.f32.mrf.mxu0
  %v2767 = vadd.f32 0.0, %v2766
  %v2768 = vpop.f32.mrf.mxu0
  %v2769 = vadd.f32 0.0, %v2768
  %v2770 = vpop.f32.mrf.mxu0
  %v2771 = vadd.f32 0.0, %v2770
  %2772 = vmatprep.mubr.bf16.mxu0 0
  %2773 = vmatmul.mubr.bf16.gmra.mxu0 %v2728
  %v2774 = vpop.f32.mrf.mxu0
  %v2775 = vadd.f32 0.0, %v2774
  %v2776 = vpop.f32.mrf.mxu0
  %v2777 = vadd.f32 0.0, %v2776
  %v2778 = vpop.f32.mrf.mxu0
  %v2779 = vadd.f32 0.0, %v2778
  %v2780 = vpop.f32.mrf.mxu0
  %v2781 = vadd.f32 0.0, %v2780
  %2782 = vdwg.mxu0
  %v2783 = vpack.c.bf16 %v2769, %v2765
  %v2784 = vpack.c.bf16 %v2771, %v2767
  %v2785 = vpack.c.bf16 %v2779, %v2775
  %v2786 = vpack.c.bf16 %v2781, %v2777
  %v2787 = vld [vmem:[%s2] sm:$0xff]
  %v2788 = vld [vmem:[%s2 + $0x8] sm:$0xff]
  %v2789 = vld [vmem:[%s2 + $0x10] sm:$0xff]
  %v2790 = vld [vmem:[%s2 + $0x18] sm:$0xff]
  %v2791 = vld [vmem:[%s2 + $0x20] sm:$0xff]
  %v2792 = vld [vmem:[%s2 + $0x28] sm:$0xff]
  %v2793 = vld [vmem:[%s2 + $0x30] sm:$0xff]
  %v2794 = vld [vmem:[%s2 + $0x38] sm:$0xff]
  %v2795 = vld [vmem:[%s2 + $0x40] sm:$0xff]
  %v2796 = vld [vmem:[%s2 + $0x48] sm:$0xff]
  %v2797 = vld [vmem:[%s2 + $0x50] sm:$0xff]
  %v2798 = vld [vmem:[%s2 + $0x58] sm:$0xff]
  %v2799 = vld [vmem:[%s2 + $0x60] sm:$0xff]
  %v2800 = vld [vmem:[%s2 + $0x68] sm:$0xff]
  %v2801 = vld [vmem:[%s2 + $0x70] sm:$0xff]
  %v2802 = vld [vmem:[%s2 + $0x78] sm:$0xff]
  %v2803 = vld [vmem:[%s2 + $0x80] sm:$0xff]
  %v2804 = vld [vmem:[%s2 + $0x88] sm:$0xff]
  %v2805 = vld [vmem:[%s2 + $0x90] sm:$0xff]
  %v2806 = vld [vmem:[%s2 + $0x98] sm:$0xff]
  %v2807 = vld [vmem:[%s2 + $0xa0] sm:$0xff]
  %v2808 = vld [vmem:[%s2 + $0xa8] sm:$0xff]
  %v2809 = vld [vmem:[%s2 + $0xb0] sm:$0xff]
  %v2810 = vld [vmem:[%s2 + $0xb8] sm:$0xff]
  %v2811 = vld [vmem:[%s2 + $0xc0] sm:$0xff]
  %v2812 = vld [vmem:[%s2 + $0xc8] sm:$0xff]
  %v2813 = vld [vmem:[%s2 + $0xd0] sm:$0xff]
  %v2814 = vld [vmem:[%s2 + $0xd8] sm:$0xff]
  %v2815 = vld [vmem:[%s2 + $0xe0] sm:$0xff]
  %v2816 = vld [vmem:[%s2 + $0xe8] sm:$0xff]
  %v2817 = vld [vmem:[%s2 + $0xf0] sm:$0xff]
  %v2818 = vld [vmem:[%s2 + $0xf8] sm:$0xff]
  %s2819 = scalar_lea.vmem %s4, 16
  %v2820 = vld [vmem:[%s2819] sm:$0xf]
  %v2821 = vld [vmem:[%s2819 + $0x4] sm:$0xf]
  %v2822 = vld [vmem:[%s2819 + $0x8] sm:$0xf]
  %v2823 = vld [vmem:[%s2819 + $0xc] sm:$0xf]
  %v2828 = vunpack.c.l.b16 %v2820
  %v2829 = vunpack.c.l.b16 %v2821
  %v2830 = vunpack.c.l.b16 %v2822
  %v2831 = vunpack.c.l.b16 %v2823
  %v2832 = vpack.c.b16 %v2829, %v2828
  %v2833 = vpack.c.b16 %v2831, %v2830
  %v2835 = vsel %vm2245, %v2832, 0
  %v2838 = vsel %vm2245, %v2833, 0
  %2840 = vmatprep.subr.bf16.mxu0 0
  %2841 = vmatpush1.bf16.msra.mxu0 0
  %2842 = vmatprep.subr.bf16.mxu0 0
  %2843 = vmatpush1.bf16.msra.mxu0 0
  %2844 = vmatprep.subr.bf16.mxu0 0
  %2845 = vmatpush1.bf16.msra.mxu0 0
  %2846 = vmatprep.subr.bf16.mxu0 0
  %2847 = vmatpush1.bf16.msra.mxu0 0
  %2848 = vmatprep.subr.bf16.mxu0 0
  %2849 = vmatpush1.bf16.msra.mxu0 0
  %2850 = vmatprep.subr.bf16.mxu0 0
  %2851 = vmatpush1.bf16.msra.mxu0 0
  %2852 = vmatprep.subr.bf16.mxu0 %v2709
  %2853 = vmatpush1.bf16.msra.mxu0 %v2708
  %2854 = vmatprep.subr.bf16.mxu0 %v2707
  %2855 = vmatpush1.bf16.msra.mxu0 %v2706
  %2856 = vmatprep.subr.bf16.mxu0 0
  %2857 = vmatpush2.bf16.msra.mxu0 0
  %2858 = vmatprep.subr.bf16.mxu0 0
  %2859 = vmatpush2.bf16.msra.mxu0 0
  %2860 = vmatprep.subr.bf16.mxu0 0
  %2861 = vmatpush2.bf16.msra.mxu0 0
  %2862 = vmatprep.subr.bf16.mxu0 0
  %2863 = vmatpush2.bf16.msra.mxu0 0
  %2864 = vmatprep.subr.bf16.mxu0 0
  %2865 = vmatpush2.bf16.msra.mxu0 0
  %2866 = vmatprep.subr.bf16.mxu0 0
  %2867 = vmatpush2.bf16.msra.mxu0 0
  %2868 = vmatprep.subr.bf16.mxu0 0
  %2869 = vmatpush2.bf16.msra.mxu0 0
  %2870 = vmatprep.subr.bf16.mxu0 0
  %2871 = vmatpush2.bf16.msra.mxu0 0
  %2872 = vmatprep.mubr.bf16.mxu0 0
  %2873 = vmatmul.mubr.bf16.gmra.mxu0 %v2835
  %v2874 = vpop.f32.mrf.mxu0
  %v2875 = vadd.f32 0.0, %v2874
  %v2876 = vpop.f32.mrf.mxu0
  %v2877 = vadd.f32 0.0, %v2876
  %v2878 = vpop.f32.mrf.mxu0
  %v2879 = vadd.f32 0.0, %v2878
  %v2880 = vpop.f32.mrf.mxu0
  %v2881 = vadd.f32 0.0, %v2880
  %2882 = vmatprep.mubr.bf16.mxu0 0
  %2883 = vmatmul.mubr.bf16.gmra.mxu0 %v2838
  %v2884 = vpop.f32.mrf.mxu0
  %v2885 = vadd.f32 0.0, %v2884
  %v2886 = vpop.f32.mrf.mxu0
  %v2887 = vadd.f32 0.0, %v2886
  %v2888 = vpop.f32.mrf.mxu0
  %v2889 = vadd.f32 0.0, %v2888
  %v2890 = vpop.f32.mrf.mxu0
  %v2891 = vadd.f32 0.0, %v2890
  %2892 = vdwg.mxu0
  %v2893 = vpack.c.bf16 %v2879, %v2875
  %v2894 = vpack.c.bf16 %v2881, %v2877
  %v2895 = vpack.c.bf16 %v2889, %v2885
  %v2896 = vpack.c.bf16 %v2891, %v2887
  %v2897 = vld [vmem:[%s2 + $0x100] sm:$0xff]
  %v2898 = vld [vmem:[%s2 + $0x108] sm:$0xff]
  %v2899 = vld [vmem:[%s2 + $0x110] sm:$0xff]
  %v2900 = vld [vmem:[%s2 + $0x118] sm:$0xff]
  %v2901 = vld [vmem:[%s2 + $0x120] sm:$0xff]
  %v2902 = vld [vmem:[%s2 + $0x128] sm:$0xff]
  %v2903 = vld [vmem:[%s2 + $0x130] sm:$0xff]
  %v2904 = vld [vmem:[%s2 + $0x138] sm:$0xff]
  %v2905 = vld [vmem:[%s2 + $0x140] sm:$0xff]
  %v2906 = vld [vmem:[%s2 + $0x148] sm:$0xff]
  %v2907 = vld [vmem:[%s2 + $0x150] sm:$0xff]
  %v2908 = vld [vmem:[%s2 + $0x158] sm:$0xff]
  %v2909 = vld [vmem:[%s2 + $0x160] sm:$0xff]
  %v2910 = vld [vmem:[%s2 + $0x168] sm:$0xff]
  %v2911 = vld [vmem:[%s2 + $0x170] sm:$0xff]
  %v2912 = vld [vmem:[%s2 + $0x178] sm:$0xff]
  %v2913 = vld [vmem:[%s2 + $0x180] sm:$0xff]
  %v2914 = vld [vmem:[%s2 + $0x188] sm:$0xff]
  %v2915 = vld [vmem:[%s2 + $0x190] sm:$0xff]
  %v2916 = vld [vmem:[%s2 + $0x198] sm:$0xff]
  %v2917 = vld [vmem:[%s2 + $0x1a0] sm:$0xff]
  %v2918 = vld [vmem:[%s2 + $0x1a8] sm:$0xff]
  %v2919 = vld [vmem:[%s2 + $0x1b0] sm:$0xff]
  %v2920 = vld [vmem:[%s2 + $0x1b8] sm:$0xff]
  %v2921 = vld [vmem:[%s2 + $0x1c0] sm:$0xff]
  %v2922 = vld [vmem:[%s2 + $0x1c8] sm:$0xff]
  %v2923 = vld [vmem:[%s2 + $0x1d0] sm:$0xff]
  %v2924 = vld [vmem:[%s2 + $0x1d8] sm:$0xff]
  %v2925 = vld [vmem:[%s2 + $0x1e0] sm:$0xff]
  %v2926 = vld [vmem:[%s2 + $0x1e8] sm:$0xff]
  %v2927 = vld [vmem:[%s2 + $0x1f0] sm:$0xff]
  %v2928 = vld [vmem:[%s2 + $0x1f8] sm:$0xff]
  %v2961 = vunpack.c.l.b16 %v2897
  %v2962 = vunpack.c.h.b16 %v2897
  %v2963 = vunpack.c.l.b16 %v2898
  %v2964 = vunpack.c.h.b16 %v2898
  %v2965 = vunpack.c.l.b16 %v2899
  %v2966 = vunpack.c.h.b16 %v2899
  %v2967 = vunpack.c.l.b16 %v2900
  %v2968 = vunpack.c.h.b16 %v2900
  %v2969 = vunpack.c.l.b16 %v2901
  %v2970 = vunpack.c.h.b16 %v2901
  %v2971 = vunpack.c.l.b16 %v2902
  %v2972 = vunpack.c.h.b16 %v2902
  %v2973 = vunpack.c.l.b16 %v2903
  %v2974 = vunpack.c.h.b16 %v2903
  %v2975 = vunpack.c.l.b16 %v2904
  %v2976 = vunpack.c.h.b16 %v2904
  %v2977 = vunpack.c.l.b16 %v2905
  %v2978 = vunpack.c.h.b16 %v2905
  %v2979 = vunpack.c.l.b16 %v2906
  %v2980 = vunpack.c.h.b16 %v2906
  %v2981 = vunpack.c.l.b16 %v2907
  %v2982 = vunpack.c.h.b16 %v2907
  %v2983 = vunpack.c.l.b16 %v2908
  %v2984 = vunpack.c.h.b16 %v2908
  %v2985 = vunpack.c.l.b16 %v2909
  %v2986 = vunpack.c.h.b16 %v2909
  %v2987 = vunpack.c.l.b16 %v2910
  %v2988 = vunpack.c.h.b16 %v2910
  %v2989 = vunpack.c.l.b16 %v2911
  %v2990 = vunpack.c.h.b16 %v2911
  %v2991 = vunpack.c.l.b16 %v2912
  %v2992 = vunpack.c.h.b16 %v2912
  %v2993 = vunpack.c.l.b16 %v2913
  %v2994 = vunpack.c.h.b16 %v2913
  %v2995 = vunpack.c.l.b16 %v2914
  %v2996 = vunpack.c.h.b16 %v2914
  %v2997 = vunpack.c.l.b16 %v2915
  %v2998 = vunpack.c.h.b16 %v2915
  %v2999 = vunpack.c.l.b16 %v2916
  %v3000 = vunpack.c.h.b16 %v2916
  %v3001 = vunpack.c.l.b16 %v2917
  %v3002 = vunpack.c.h.b16 %v2917
  %v3003 = vunpack.c.l.b16 %v2918
  %v3004 = vunpack.c.h.b16 %v2918
  %v3005 = vunpack.c.l.b16 %v2919
  %v3006 = vunpack.c.h.b16 %v2919
  %v3007 = vunpack.c.l.b16 %v2920
  %v3008 = vunpack.c.h.b16 %v2920
  %v3009 = vunpack.c.l.b16 %v2921
  %v3010 = vunpack.c.h.b16 %v2921
  %v3011 = vunpack.c.l.b16 %v2922
  %v3012 = vunpack.c.h.b16 %v2922
  %v3013 = vunpack.c.l.b16 %v2923
  %v3014 = vunpack.c.h.b16 %v2923
  %v3015 = vunpack.c.l.b16 %v2924
  %v3016 = vunpack.c.h.b16 %v2924
  %v3017 = vunpack.c.l.b16 %v2925
  %v3018 = vunpack.c.h.b16 %v2925
  %v3019 = vunpack.c.l.b16 %v2926
  %v3020 = vunpack.c.h.b16 %v2926
  %v3021 = vunpack.c.l.b16 %v2927
  %v3022 = vunpack.c.h.b16 %v2927
  %v3023 = vunpack.c.l.b16 %v2928
  %v3024 = vunpack.c.h.b16 %v2928
  %v3025 = vpack.c.b16 %v2963, %v2961
  %v3026 = vpack.c.b16 %v2964, %v2962
  %v3027 = vpack.c.b16 %v2967, %v2965
  %v3028 = vpack.c.b16 %v2968, %v2966
  %v3029 = vpack.c.b16 %v2971, %v2969
  %v3030 = vpack.c.b16 %v2972, %v2970
  %v3031 = vpack.c.b16 %v2975, %v2973
  %v3032 = vpack.c.b16 %v2976, %v2974
  %v3033 = vpack.c.b16 %v2979, %v2977
  %v3034 = vpack.c.b16 %v2980, %v2978
  %v3035 = vpack.c.b16 %v2983, %v2981
  %v3036 = vpack.c.b16 %v2984, %v2982
  %v3037 = vpack.c.b16 %v2987, %v2985
  %v3038 = vpack.c.b16 %v2988, %v2986
  %v3039 = vpack.c.b16 %v2991, %v2989
  %v3040 = vpack.c.b16 %v2992, %v2990
  %v3041 = vpack.c.b16 %v2995, %v2993
  %v3042 = vpack.c.b16 %v2996, %v2994
  %v3043 = vpack.c.b16 %v2999, %v2997
  %v3044 = vpack.c.b16 %v3000, %v2998
  %v3045 = vpack.c.b16 %v3003, %v3001
  %v3046 = vpack.c.b16 %v3004, %v3002
  %v3047 = vpack.c.b16 %v3007, %v3005
  %v3048 = vpack.c.b16 %v3008, %v3006
  %v3049 = vpack.c.b16 %v3011, %v3009
  %v3050 = vpack.c.b16 %v3012, %v3010
  %v3051 = vpack.c.b16 %v3015, %v3013
  %v3052 = vpack.c.b16 %v3016, %v3014
  %v3053 = vpack.c.b16 %v3019, %v3017
  %v3054 = vpack.c.b16 %v3020, %v3018
  %v3055 = vpack.c.b16 %v3023, %v3021
  %v3056 = vpack.c.b16 %v3024, %v3022
  %3089 = vmatprep.subr.bf16.mxu0 %v3040
  %3090 = vmatpush1.bf16.msra.mxu0 %v3039
  %3091 = vmatprep.subr.bf16.mxu0 %v3038
  %3092 = vmatpush1.bf16.msra.mxu0 %v3037
  %3093 = vmatprep.subr.bf16.mxu0 %v3036
  %3094 = vmatpush1.bf16.msra.mxu0 %v3035
  %3095 = vmatprep.subr.bf16.mxu0 %v3034
  %3096 = vmatpush1.bf16.msra.mxu0 %v3033
  %3097 = vmatprep.subr.bf16.mxu0 %v3032
  %3098 = vmatpush1.bf16.msra.mxu0 %v3031
  %3099 = vmatprep.subr.bf16.mxu0 %v3030
  %3100 = vmatpush1.bf16.msra.mxu0 %v3029
  %3101 = vmatprep.subr.bf16.mxu0 %v3028
  %3102 = vmatpush1.bf16.msra.mxu0 %v3027
  %3103 = vmatprep.subr.bf16.mxu0 %v3026
  %3104 = vmatpush1.bf16.msra.mxu0 %v3025
  %3105 = vmatprep.subr.bf16.mxu0 %v3056
  %3106 = vmatpush2.bf16.msra.mxu0 %v3055
  %3107 = vmatprep.subr.bf16.mxu0 %v3054
  %3108 = vmatpush2.bf16.msra.mxu0 %v3053
  %3109 = vmatprep.subr.bf16.mxu0 %v3052
  %3110 = vmatpush2.bf16.msra.mxu0 %v3051
  %3111 = vmatprep.subr.bf16.mxu0 %v3050
  %3112 = vmatpush2.bf16.msra.mxu0 %v3049
  %3113 = vmatprep.subr.bf16.mxu0 %v3048
  %3114 = vmatpush2.bf16.msra.mxu0 %v3047
  %3115 = vmatprep.subr.bf16.mxu0 %v3046
  %3116 = vmatpush2.bf16.msra.mxu0 %v3045
  %3117 = vmatprep.subr.bf16.mxu0 %v3044
  %3118 = vmatpush2.bf16.msra.mxu0 %v3043
  %3119 = vmatprep.subr.bf16.mxu0 %v3042
  %3120 = vmatpush2.bf16.msra.mxu0 %v3041
  %3121 = vmatprep.mubr.bf16.mxu0 %v2894
  %3122 = vmatmul.mubr.bf16.gmra.mxu0 %v2893
  %v3123 = vpop.f32.mrf.mxu0
  %v3124 = vadd.f32 0.0, %v3123
  %v3125 = vpop.f32.mrf.mxu0
  %v3126 = vadd.f32 0.0, %v3125
  %v3127 = vpop.f32.mrf.mxu0
  %v3128 = vadd.f32 0.0, %v3127
  %v3129 = vpop.f32.mrf.mxu0
  %v3130 = vadd.f32 0.0, %v3129
  %3131 = vmatprep.mubr.bf16.mxu0 %v2896
  %3132 = vmatmul.mubr.bf16.gmra.mxu0 %v2895
  %v3133 = vpop.f32.mrf.mxu0
  %v3134 = vadd.f32 0.0, %v3133
  %v3135 = vpop.f32.mrf.mxu0
  %v3136 = vadd.f32 0.0, %v3135
  %v3137 = vpop.f32.mrf.mxu0
  %v3138 = vadd.f32 0.0, %v3137
  %v3139 = vpop.f32.mrf.mxu0
  %v3140 = vadd.f32 0.0, %v3139
  %3141 = vdwg.mxu0
  %v3174 = vunpack.c.l.b16 %v2787
  %v3175 = vunpack.c.h.b16 %v2787
  %v3176 = vunpack.c.l.b16 %v2788
  %v3177 = vunpack.c.h.b16 %v2788
  %v3178 = vunpack.c.l.b16 %v2789
  %v3179 = vunpack.c.h.b16 %v2789
  %v3180 = vunpack.c.l.b16 %v2790
  %v3181 = vunpack.c.h.b16 %v2790
  %v3182 = vunpack.c.l.b16 %v2791
  %v3183 = vunpack.c.h.b16 %v2791
  %v3184 = vunpack.c.l.b16 %v2792
  %v3185 = vunpack.c.h.b16 %v2792
  %v3186 = vunpack.c.l.b16 %v2793
  %v3187 = vunpack.c.h.b16 %v2793
  %v3188 = vunpack.c.l.b16 %v2794
  %v3189 = vunpack.c.h.b16 %v2794
  %v3190 = vunpack.c.l.b16 %v2795
  %v3191 = vunpack.c.h.b16 %v2795
  %v3192 = vunpack.c.l.b16 %v2796
  %v3193 = vunpack.c.h.b16 %v2796
  %v3194 = vunpack.c.l.b16 %v2797
  %v3195 = vunpack.c.h.b16 %v2797
  %v3196 = vunpack.c.l.b16 %v2798
  %v3197 = vunpack.c.h.b16 %v2798
  %v3198 = vunpack.c.l.b16 %v2799
  %v3199 = vunpack.c.h.b16 %v2799
  %v3200 = vunpack.c.l.b16 %v2800
  %v3201 = vunpack.c.h.b16 %v2800
  %v3202 = vunpack.c.l.b16 %v2801
  %v3203 = vunpack.c.h.b16 %v2801
  %v3204 = vunpack.c.l.b16 %v2802
  %v3205 = vunpack.c.h.b16 %v2802
  %v3206 = vunpack.c.l.b16 %v2803
  %v3207 = vunpack.c.h.b16 %v2803
  %v3208 = vunpack.c.l.b16 %v2804
  %v3209 = vunpack.c.h.b16 %v2804
  %v3210 = vunpack.c.l.b16 %v2805
  %v3211 = vunpack.c.h.b16 %v2805
  %v3212 = vunpack.c.l.b16 %v2806
  %v3213 = vunpack.c.h.b16 %v2806
  %v3214 = vunpack.c.l.b16 %v2807
  %v3215 = vunpack.c.h.b16 %v2807
  %v3216 = vunpack.c.l.b16 %v2808
  %v3217 = vunpack.c.h.b16 %v2808
  %v3218 = vunpack.c.l.b16 %v2809
  %v3219 = vunpack.c.h.b16 %v2809
  %v3220 = vunpack.c.l.b16 %v2810
  %v3221 = vunpack.c.h.b16 %v2810
  %v3222 = vunpack.c.l.b16 %v2811
  %v3223 = vunpack.c.h.b16 %v2811
  %v3224 = vunpack.c.l.b16 %v2812
  %v3225 = vunpack.c.h.b16 %v2812
  %v3226 = vunpack.c.l.b16 %v2813
  %v3227 = vunpack.c.h.b16 %v2813
  %v3228 = vunpack.c.l.b16 %v2814
  %v3229 = vunpack.c.h.b16 %v2814
  %v3230 = vunpack.c.l.b16 %v2815
  %v3231 = vunpack.c.h.b16 %v2815
  %v3232 = vunpack.c.l.b16 %v2816
  %v3233 = vunpack.c.h.b16 %v2816
  %v3234 = vunpack.c.l.b16 %v2817
  %v3235 = vunpack.c.h.b16 %v2817
  %v3236 = vunpack.c.l.b16 %v2818
  %v3237 = vunpack.c.h.b16 %v2818
  %v3238 = vpack.c.b16 %v3176, %v3174
  %v3239 = vpack.c.b16 %v3177, %v3175
  %v3240 = vpack.c.b16 %v3180, %v3178
  %v3241 = vpack.c.b16 %v3181, %v3179
  %v3242 = vpack.c.b16 %v3184, %v3182
  %v3243 = vpack.c.b16 %v3185, %v3183
  %v3244 = vpack.c.b16 %v3188, %v3186
  %v3245 = vpack.c.b16 %v3189, %v3187
  %v3246 = vpack.c.b16 %v3192, %v3190
  %v3247 = vpack.c.b16 %v3193, %v3191
  %v3248 = vpack.c.b16 %v3196, %v3194
  %v3249 = vpack.c.b16 %v3197, %v3195
  %v3250 = vpack.c.b16 %v3200, %v3198
  %v3251 = vpack.c.b16 %v3201, %v3199
  %v3252 = vpack.c.b16 %v3204, %v3202
  %v3253 = vpack.c.b16 %v3205, %v3203
  %v3254 = vpack.c.b16 %v3208, %v3206
  %v3255 = vpack.c.b16 %v3209, %v3207
  %v3256 = vpack.c.b16 %v3212, %v3210
  %v3257 = vpack.c.b16 %v3213, %v3211
  %v3258 = vpack.c.b16 %v3216, %v3214
  %v3259 = vpack.c.b16 %v3217, %v3215
  %v3260 = vpack.c.b16 %v3220, %v3218
  %v3261 = vpack.c.b16 %v3221, %v3219
  %v3262 = vpack.c.b16 %v3224, %v3222
  %v3263 = vpack.c.b16 %v3225, %v3223
  %v3264 = vpack.c.b16 %v3228, %v3226
  %v3265 = vpack.c.b16 %v3229, %v3227
  %v3266 = vpack.c.b16 %v3232, %v3230
  %v3267 = vpack.c.b16 %v3233, %v3231
  %v3268 = vpack.c.b16 %v3236, %v3234
  %v3269 = vpack.c.b16 %v3237, %v3235
  %3302 = vmatprep.subr.bf16.mxu0 %v3253
  %3303 = vmatpush1.bf16.msra.mxu0 %v3252
  %3304 = vmatprep.subr.bf16.mxu0 %v3251
  %3305 = vmatpush1.bf16.msra.mxu0 %v3250
  %3306 = vmatprep.subr.bf16.mxu0 %v3249
  %3307 = vmatpush1.bf16.msra.mxu0 %v3248
  %3308 = vmatprep.subr.bf16.mxu0 %v3247
  %3309 = vmatpush1.bf16.msra.mxu0 %v3246
  %3310 = vmatprep.subr.bf16.mxu0 %v3245
  %3311 = vmatpush1.bf16.msra.mxu0 %v3244
  %3312 = vmatprep.subr.bf16.mxu0 %v3243
  %3313 = vmatpush1.bf16.msra.mxu0 %v3242
  %3314 = vmatprep.subr.bf16.mxu0 %v3241
  %3315 = vmatpush1.bf16.msra.mxu0 %v3240
  %3316 = vmatprep.subr.bf16.mxu0 %v3239
  %3317 = vmatpush1.bf16.msra.mxu0 %v3238
  %3318 = vmatprep.subr.bf16.mxu0 %v3269
  %3319 = vmatpush2.bf16.msra.mxu0 %v3268
  %3320 = vmatprep.subr.bf16.mxu0 %v3267
  %3321 = vmatpush2.bf16.msra.mxu0 %v3266
  %3322 = vmatprep.subr.bf16.mxu0 %v3265
  %3323 = vmatpush2.bf16.msra.mxu0 %v3264
  %3324 = vmatprep.subr.bf16.mxu0 %v3263
  %3325 = vmatpush2.bf16.msra.mxu0 %v3262
  %3326 = vmatprep.subr.bf16.mxu0 %v3261
  %3327 = vmatpush2.bf16.msra.mxu0 %v3260
  %3328 = vmatprep.subr.bf16.mxu0 %v3259
  %3329 = vmatpush2.bf16.msra.mxu0 %v3258
  %3330 = vmatprep.subr.bf16.mxu0 %v3257
  %3331 = vmatpush2.bf16.msra.mxu0 %v3256
  %3332 = vmatprep.subr.bf16.mxu0 %v3255
  %3333 = vmatpush2.bf16.msra.mxu0 %v3254
  %3334 = vmatprep.mubr.bf16.mxu0 %v2784
  %3335 = vmatmul.mubr.bf16.gmra.mxu0 %v2783
  %v3336 = vpop.f32.mrf.mxu0
  %v3337 = vadd.f32 %v3124, %v3336
  %v3338 = vpop.f32.mrf.mxu0
  %v3339 = vadd.f32 %v3126, %v3338
  %v3340 = vpop.f32.mrf.mxu0
  %v3341 = vadd.f32 %v3128, %v3340
  %v3342 = vpop.f32.mrf.mxu0
  %v3343 = vadd.f32 %v3130, %v3342
  %3344 = vmatprep.mubr.bf16.mxu0 %v2786
  %3345 = vmatmul.mubr.bf16.gmra.mxu0 %v2785
  %v3346 = vpop.f32.mrf.mxu0
  %v3347 = vadd.f32 %v3134, %v3346
  %v3348 = vpop.f32.mrf.mxu0
  %v3349 = vadd.f32 %v3136, %v3348
  %v3350 = vpop.f32.mrf.mxu0
  %v3351 = vadd.f32 %v3138, %v3350
  %v3352 = vpop.f32.mrf.mxu0
  %v3353 = vadd.f32 %v3140, %v3352
  %3354 = vdwg.mxu0
  %s3355 = scalar_lea.vmem %s4, 32
  %v3356 = vld [vmem:[%s3355] sm:$0xf]
  %v3357 = vld [vmem:[%s3355 + $0x4] sm:$0xf]
  %v3358 = vld [vmem:[%s3355 + $0x8] sm:$0xf]
  %v3359 = vld [vmem:[%s3355 + $0xc] sm:$0xf]
  %v3364 = vunpack.c.l.b16 %v3356
  %v3365 = vunpack.c.l.b16 %v3357
  %v3366 = vunpack.c.l.b16 %v3358
  %v3367 = vunpack.c.l.b16 %v3359
  %v3368 = vpack.c.b16 %v3365, %v3364
  %v3369 = vpack.c.b16 %v3367, %v3366
  %v3371 = vsel %vm2245, %v3368, 0
  %v3374 = vsel %vm2245, %v3369, 0
  %3376 = vmatprep.subr.bf16.mxu0 0
  %3377 = vmatpush1.bf16.msra.mxu0 0
  %3378 = vmatprep.subr.bf16.mxu0 0
  %3379 = vmatpush1.bf16.msra.mxu0 0
  %3380 = vmatprep.subr.bf16.mxu0 0
  %3381 = vmatpush1.bf16.msra.mxu0 0
  %3382 = vmatprep.subr.bf16.mxu0 0
  %3383 = vmatpush1.bf16.msra.mxu0 0
  %3384 = vmatprep.subr.bf16.mxu0 0
  %3385 = vmatpush1.bf16.msra.mxu0 0
  %3386 = vmatprep.subr.bf16.mxu0 0
  %3387 = vmatpush1.bf16.msra.mxu0 0
  %3388 = vmatprep.subr.bf16.mxu0 %v2709
  %3389 = vmatpush1.bf16.msra.mxu0 %v2708
  %3390 = vmatprep.subr.bf16.mxu0 %v2707
  %3391 = vmatpush1.bf16.msra.mxu0 %v2706
  %3392 = vmatprep.subr.bf16.mxu0 0
  %3393 = vmatpush2.bf16.msra.mxu0 0
  %3394 = vmatprep.subr.bf16.mxu0 0
  %3395 = vmatpush2.bf16.msra.mxu0 0
  %3396 = vmatprep.subr.bf16.mxu0 0
  %3397 = vmatpush2.bf16.msra.mxu0 0
  %3398 = vmatprep.subr.bf16.mxu0 0
  %3399 = vmatpush2.bf16.msra.mxu0 0
  %3400 = vmatprep.subr.bf16.mxu0 0
  %3401 = vmatpush2.bf16.msra.mxu0 0
  %3402 = vmatprep.subr.bf16.mxu0 0
  %3403 = vmatpush2.bf16.msra.mxu0 0
  %3404 = vmatprep.subr.bf16.mxu0 0
  %3405 = vmatpush2.bf16.msra.mxu0 0
  %3406 = vmatprep.subr.bf16.mxu0 0
  %3407 = vmatpush2.bf16.msra.mxu0 0
  %3408 = vmatprep.mubr.bf16.mxu0 0
  %3409 = vmatmul.mubr.bf16.gmra.mxu0 %v3371
  %v3410 = vpop.f32.mrf.mxu0
  %v3411 = vadd.f32 0.0, %v3410
  %v3412 = vpop.f32.mrf.mxu0
  %v3413 = vadd.f32 0.0, %v3412
  %v3414 = vpop.f32.mrf.mxu0
  %v3415 = vadd.f32 0.0, %v3414
  %v3416 = vpop.f32.mrf.mxu0
  %v3417 = vadd.f32 0.0, %v3416
  %3418 = vmatprep.mubr.bf16.mxu0 0
  %3419 = vmatmul.mubr.bf16.gmra.mxu0 %v3374
  %v3420 = vpop.f32.mrf.mxu0
  %v3421 = vadd.f32 0.0, %v3420
  %v3422 = vpop.f32.mrf.mxu0
  %v3423 = vadd.f32 0.0, %v3422
  %v3424 = vpop.f32.mrf.mxu0
  %v3425 = vadd.f32 0.0, %v3424
  %v3426 = vpop.f32.mrf.mxu0
  %v3427 = vadd.f32 0.0, %v3426
  %3428 = vdwg.mxu0
  %v3429 = vpack.c.bf16 %v3415, %v3411
  %v3430 = vpack.c.bf16 %v3417, %v3413
  %v3431 = vpack.c.bf16 %v3425, %v3421
  %v3432 = vpack.c.bf16 %v3427, %v3423
  %v3433 = vld [vmem:[%s2 + $0x200] sm:$0xff]
  %v3434 = vld [vmem:[%s2 + $0x208] sm:$0xff]
  %v3435 = vld [vmem:[%s2 + $0x210] sm:$0xff]
  %v3436 = vld [vmem:[%s2 + $0x218] sm:$0xff]
  %v3437 = vld [vmem:[%s2 + $0x220] sm:$0xff]
  %v3438 = vld [vmem:[%s2 + $0x228] sm:$0xff]
  %v3439 = vld [vmem:[%s2 + $0x230] sm:$0xff]
  %v3440 = vld [vmem:[%s2 + $0x238] sm:$0xff]
  %v3441 = vld [vmem:[%s2 + $0x240] sm:$0xff]
  %v3442 = vld [vmem:[%s2 + $0x248] sm:$0xff]
  %v3443 = vld [vmem:[%s2 + $0x250] sm:$0xff]
  %v3444 = vld [vmem:[%s2 + $0x258] sm:$0xff]
  %v3445 = vld [vmem:[%s2 + $0x260] sm:$0xff]
  %v3446 = vld [vmem:[%s2 + $0x268] sm:$0xff]
  %v3447 = vld [vmem:[%s2 + $0x270] sm:$0xff]
  %v3448 = vld [vmem:[%s2 + $0x278] sm:$0xff]
  %v3449 = vld [vmem:[%s2 + $0x280] sm:$0xff]
  %v3450 = vld [vmem:[%s2 + $0x288] sm:$0xff]
  %v3451 = vld [vmem:[%s2 + $0x290] sm:$0xff]
  %v3452 = vld [vmem:[%s2 + $0x298] sm:$0xff]
  %v3453 = vld [vmem:[%s2 + $0x2a0] sm:$0xff]
  %v3454 = vld [vmem:[%s2 + $0x2a8] sm:$0xff]
  %v3455 = vld [vmem:[%s2 + $0x2b0] sm:$0xff]
  %v3456 = vld [vmem:[%s2 + $0x2b8] sm:$0xff]
  %v3457 = vld [vmem:[%s2 + $0x2c0] sm:$0xff]
  %v3458 = vld [vmem:[%s2 + $0x2c8] sm:$0xff]
  %v3459 = vld [vmem:[%s2 + $0x2d0] sm:$0xff]
  %v3460 = vld [vmem:[%s2 + $0x2d8] sm:$0xff]
  %v3461 = vld [vmem:[%s2 + $0x2e0] sm:$0xff]
  %v3462 = vld [vmem:[%s2 + $0x2e8] sm:$0xff]
  %v3463 = vld [vmem:[%s2 + $0x2f0] sm:$0xff]
  %v3464 = vld [vmem:[%s2 + $0x2f8] sm:$0xff]
  %v3497 = vunpack.c.l.b16 %v3433
  %v3498 = vunpack.c.h.b16 %v3433
  %v3499 = vunpack.c.l.b16 %v3434
  %v3500 = vunpack.c.h.b16 %v3434
  %v3501 = vunpack.c.l.b16 %v3435
  %v3502 = vunpack.c.h.b16 %v3435
  %v3503 = vunpack.c.l.b16 %v3436
  %v3504 = vunpack.c.h.b16 %v3436
  %v3505 = vunpack.c.l.b16 %v3437
  %v3506 = vunpack.c.h.b16 %v3437
  %v3507 = vunpack.c.l.b16 %v3438
  %v3508 = vunpack.c.h.b16 %v3438
  %v3509 = vunpack.c.l.b16 %v3439
  %v3510 = vunpack.c.h.b16 %v3439
  %v3511 = vunpack.c.l.b16 %v3440
  %v3512 = vunpack.c.h.b16 %v3440
  %v3513 = vunpack.c.l.b16 %v3441
  %v3514 = vunpack.c.h.b16 %v3441
  %v3515 = vunpack.c.l.b16 %v3442
  %v3516 = vunpack.c.h.b16 %v3442
  %v3517 = vunpack.c.l.b16 %v3443
  %v3518 = vunpack.c.h.b16 %v3443
  %v3519 = vunpack.c.l.b16 %v3444
  %v3520 = vunpack.c.h.b16 %v3444
  %v3521 = vunpack.c.l.b16 %v3445
  %v3522 = vunpack.c.h.b16 %v3445
  %v3523 = vunpack.c.l.b16 %v3446
  %v3524 = vunpack.c.h.b16 %v3446
  %v3525 = vunpack.c.l.b16 %v3447
  %v3526 = vunpack.c.h.b16 %v3447
  %v3527 = vunpack.c.l.b16 %v3448
  %v3528 = vunpack.c.h.b16 %v3448
  %v3529 = vunpack.c.l.b16 %v3449
  %v3530 = vunpack.c.h.b16 %v3449
  %v3531 = vunpack.c.l.b16 %v3450
  %v3532 = vunpack.c.h.b16 %v3450
  %v3533 = vunpack.c.l.b16 %v3451
  %v3534 = vunpack.c.h.b16 %v3451
  %v3535 = vunpack.c.l.b16 %v3452
  %v3536 = vunpack.c.h.b16 %v3452
  %v3537 = vunpack.c.l.b16 %v3453
  %v3538 = vunpack.c.h.b16 %v3453
  %v3539 = vunpack.c.l.b16 %v3454
  %v3540 = vunpack.c.h.b16 %v3454
  %v3541 = vunpack.c.l.b16 %v3455
  %v3542 = vunpack.c.h.b16 %v3455
  %v3543 = vunpack.c.l.b16 %v3456
  %v3544 = vunpack.c.h.b16 %v3456
  %v3545 = vunpack.c.l.b16 %v3457
  %v3546 = vunpack.c.h.b16 %v3457
  %v3547 = vunpack.c.l.b16 %v3458
  %v3548 = vunpack.c.h.b16 %v3458
  %v3549 = vunpack.c.l.b16 %v3459
  %v3550 = vunpack.c.h.b16 %v3459
  %v3551 = vunpack.c.l.b16 %v3460
  %v3552 = vunpack.c.h.b16 %v3460
  %v3553 = vunpack.c.l.b16 %v3461
  %v3554 = vunpack.c.h.b16 %v3461
  %v3555 = vunpack.c.l.b16 %v3462
  %v3556 = vunpack.c.h.b16 %v3462
  %v3557 = vunpack.c.l.b16 %v3463
  %v3558 = vunpack.c.h.b16 %v3463
  %v3559 = vunpack.c.l.b16 %v3464
  %v3560 = vunpack.c.h.b16 %v3464
  %v3561 = vpack.c.b16 %v3499, %v3497
  %v3562 = vpack.c.b16 %v3500, %v3498
  %v3563 = vpack.c.b16 %v3503, %v3501
  %v3564 = vpack.c.b16 %v3504, %v3502
  %v3565 = vpack.c.b16 %v3507, %v3505
  %v3566 = vpack.c.b16 %v3508, %v3506
  %v3567 = vpack.c.b16 %v3511, %v3509
  %v3568 = vpack.c.b16 %v3512, %v3510
  %v3569 = vpack.c.b16 %v3515, %v3513
  %v3570 = vpack.c.b16 %v3516, %v3514
  %v3571 = vpack.c.b16 %v3519, %v3517
  %v3572 = vpack.c.b16 %v3520, %v3518
  %v3573 = vpack.c.b16 %v3523, %v3521
  %v3574 = vpack.c.b16 %v3524, %v3522
  %v3575 = vpack.c.b16 %v3527, %v3525
  %v3576 = vpack.c.b16 %v3528, %v3526
  %v3577 = vpack.c.b16 %v3531, %v3529
  %v3578 = vpack.c.b16 %v3532, %v3530
  %v3579 = vpack.c.b16 %v3535, %v3533
  %v3580 = vpack.c.b16 %v3536, %v3534
  %v3581 = vpack.c.b16 %v3539, %v3537
  %v3582 = vpack.c.b16 %v3540, %v3538
  %v3583 = vpack.c.b16 %v3543, %v3541
  %v3584 = vpack.c.b16 %v3544, %v3542
  %v3585 = vpack.c.b16 %v3547, %v3545
  %v3586 = vpack.c.b16 %v3548, %v3546
  %v3587 = vpack.c.b16 %v3551, %v3549
  %v3588 = vpack.c.b16 %v3552, %v3550
  %v3589 = vpack.c.b16 %v3555, %v3553
  %v3590 = vpack.c.b16 %v3556, %v3554
  %v3591 = vpack.c.b16 %v3559, %v3557
  %v3592 = vpack.c.b16 %v3560, %v3558
  %3625 = vmatprep.subr.bf16.mxu0 %v3576
  %3626 = vmatpush1.bf16.msra.mxu0 %v3575
  %3627 = vmatprep.subr.bf16.mxu0 %v3574
  %3628 = vmatpush1.bf16.msra.mxu0 %v3573
  %3629 = vmatprep.subr.bf16.mxu0 %v3572
  %3630 = vmatpush1.bf16.msra.mxu0 %v3571
  %3631 = vmatprep.subr.bf16.mxu0 %v3570
  %3632 = vmatpush1.bf16.msra.mxu0 %v3569
  %3633 = vmatprep.subr.bf16.mxu0 %v3568
  %3634 = vmatpush1.bf16.msra.mxu0 %v3567
  %3635 = vmatprep.subr.bf16.mxu0 %v3566
  %3636 = vmatpush1.bf16.msra.mxu0 %v3565
  %3637 = vmatprep.subr.bf16.mxu0 %v3564
  %3638 = vmatpush1.bf16.msra.mxu0 %v3563
  %3639 = vmatprep.subr.bf16.mxu0 %v3562
  %3640 = vmatpush1.bf16.msra.mxu0 %v3561
  %3641 = vmatprep.subr.bf16.mxu0 %v3592
  %3642 = vmatpush2.bf16.msra.mxu0 %v3591
  %3643 = vmatprep.subr.bf16.mxu0 %v3590
  %3644 = vmatpush2.bf16.msra.mxu0 %v3589
  %3645 = vmatprep.subr.bf16.mxu0 %v3588
  %3646 = vmatpush2.bf16.msra.mxu0 %v3587
  %3647 = vmatprep.subr.bf16.mxu0 %v3586
  %3648 = vmatpush2.bf16.msra.mxu0 %v3585
  %3649 = vmatprep.subr.bf16.mxu0 %v3584
  %3650 = vmatpush2.bf16.msra.mxu0 %v3583
  %3651 = vmatprep.subr.bf16.mxu0 %v3582
  %3652 = vmatpush2.bf16.msra.mxu0 %v3581
  %3653 = vmatprep.subr.bf16.mxu0 %v3580
  %3654 = vmatpush2.bf16.msra.mxu0 %v3579
  %3655 = vmatprep.subr.bf16.mxu0 %v3578
  %3656 = vmatpush2.bf16.msra.mxu0 %v3577
  %3657 = vmatprep.mubr.bf16.mxu0 %v3430
  %3658 = vmatmul.mubr.bf16.gmra.mxu0 %v3429
  %v3659 = vpop.f32.mrf.mxu0
  %v3660 = vadd.f32 0.0, %v3659
  %v3661 = vpop.f32.mrf.mxu0
  %v3662 = vadd.f32 0.0, %v3661
  %v3663 = vpop.f32.mrf.mxu0
  %v3664 = vadd.f32 0.0, %v3663
  %v3665 = vpop.f32.mrf.mxu0
  %v3666 = vadd.f32 0.0, %v3665
  %3667 = vmatprep.mubr.bf16.mxu0 %v3432
  %3668 = vmatmul.mubr.bf16.gmra.mxu0 %v3431
  %v3669 = vpop.f32.mrf.mxu0
  %v3670 = vadd.f32 0.0, %v3669
  %v3671 = vpop.f32.mrf.mxu0
  %v3672 = vadd.f32 0.0, %v3671
  %v3673 = vpop.f32.mrf.mxu0
  %v3674 = vadd.f32 0.0, %v3673
  %v3675 = vpop.f32.mrf.mxu0
  %v3676 = vadd.f32 0.0, %v3675
  %3677 = vdwg.mxu0
  %v3678 = vadd.f32 %v3337, %v3660
  %v3679 = vadd.f32 %v3339, %v3662
  %v3680 = vadd.f32 %v3341, %v3664
  %v3681 = vadd.f32 %v3343, %v3666
  %v3682 = vadd.f32 %v3347, %v3670
  %v3683 = vadd.f32 %v3349, %v3672
  %v3684 = vadd.f32 %v3351, %v3674
  %v3685 = vadd.f32 %v3353, %v3676
  %s3686 = scalar_lea.vmem %s4, 48
  %v3687 = vld [vmem:[%s3686] sm:$0xf]
  %v3688 = vld [vmem:[%s3686 + $0x4] sm:$0xf]
  %v3689 = vld [vmem:[%s3686 + $0x8] sm:$0xf]
  %v3690 = vld [vmem:[%s3686 + $0xc] sm:$0xf]
  %v3695 = vunpack.c.l.b16 %v3687
  %v3696 = vunpack.c.l.b16 %v3688
  %v3697 = vunpack.c.l.b16 %v3689
  %v3698 = vunpack.c.l.b16 %v3690
  %v3699 = vpack.c.b16 %v3696, %v3695
  %v3700 = vpack.c.b16 %v3698, %v3697
  %v3702 = vsel %vm2245, %v3699, 0
  %v3705 = vsel %vm2245, %v3700, 0
  %3707 = vmatprep.subr.bf16.mxu0 0
  %3708 = vmatpush1.bf16.msra.mxu0 0
  %3709 = vmatprep.subr.bf16.mxu0 0
  %3710 = vmatpush1.bf16.msra.mxu0 0
  %3711 = vmatprep.subr.bf16.mxu0 0
  %3712 = vmatpush1.bf16.msra.mxu0 0
  %3713 = vmatprep.subr.bf16.mxu0 0
  %3714 = vmatpush1.bf16.msra.mxu0 0
  %3715 = vmatprep.subr.bf16.mxu0 0
  %3716 = vmatpush1.bf16.msra.mxu0 0
  %3717 = vmatprep.subr.bf16.mxu0 0
  %3718 = vmatpush1.bf16.msra.mxu0 0
  %3719 = vmatprep.subr.bf16.mxu0 %v2709
  %3720 = vmatpush1.bf16.msra.mxu0 %v2708
  %3721 = vmatprep.subr.bf16.mxu0 %v2707
  %3722 = vmatpush1.bf16.msra.mxu0 %v2706
  %3723 = vmatprep.subr.bf16.mxu0 0
  %3724 = vmatpush2.bf16.msra.mxu0 0
  %3725 = vmatprep.subr.bf16.mxu0 0
  %3726 = vmatpush2.bf16.msra.mxu0 0
  %3727 = vmatprep.subr.bf16.mxu0 0
  %3728 = vmatpush2.bf16.msra.mxu0 0
  %3729 = vmatprep.subr.bf16.mxu0 0
  %3730 = vmatpush2.bf16.msra.mxu0 0
  %3731 = vmatprep.subr.bf16.mxu0 0
  %3732 = vmatpush2.bf16.msra.mxu0 0
  %3733 = vmatprep.subr.bf16.mxu0 0
  %3734 = vmatpush2.bf16.msra.mxu0 0
  %3735 = vmatprep.subr.bf16.mxu0 0
  %3736 = vmatpush2.bf16.msra.mxu0 0
  %3737 = vmatprep.subr.bf16.mxu0 0
  %3738 = vmatpush2.bf16.msra.mxu0 0
  %3739 = vmatprep.mubr.bf16.mxu0 0
  %3740 = vmatmul.mubr.bf16.gmra.mxu0 %v3702
  %v3741 = vpop.f32.mrf.mxu0
  %v3742 = vadd.f32 0.0, %v3741
  %v3743 = vpop.f32.mrf.mxu0
  %v3744 = vadd.f32 0.0, %v3743
  %v3745 = vpop.f32.mrf.mxu0
  %v3746 = vadd.f32 0.0, %v3745
  %v3747 = vpop.f32.mrf.mxu0
  %v3748 = vadd.f32 0.0, %v3747
  %3749 = vmatprep.mubr.bf16.mxu0 0
  %3750 = vmatmul.mubr.bf16.gmra.mxu0 %v3705
  %v3751 = vpop.f32.mrf.mxu0
  %v3752 = vadd.f32 0.0, %v3751
  %v3753 = vpop.f32.mrf.mxu0
  %v3754 = vadd.f32 0.0, %v3753
  %v3755 = vpop.f32.mrf.mxu0
  %v3756 = vadd.f32 0.0, %v3755
  %v3757 = vpop.f32.mrf.mxu0
  %v3758 = vadd.f32 0.0, %v3757
  %3759 = vdwg.mxu0
  %v3760 = vpack.c.bf16 %v3746, %v3742
  %v3761 = vpack.c.bf16 %v3748, %v3744
  %v3762 = vpack.c.bf16 %v3756, %v3752
  %v3763 = vpack.c.bf16 %v3758, %v3754
  %v3764 = vld [vmem:[%s2 + $0x300] sm:$0xff]
  %v3765 = vld [vmem:[%s2 + $0x308] sm:$0xff]
  %v3766 = vld [vmem:[%s2 + $0x310] sm:$0xff]
  %v3767 = vld [vmem:[%s2 + $0x318] sm:$0xff]
  %v3768 = vld [vmem:[%s2 + $0x320] sm:$0xff]
  %v3769 = vld [vmem:[%s2 + $0x328] sm:$0xff]
  %v3770 = vld [vmem:[%s2 + $0x330] sm:$0xff]
  %v3771 = vld [vmem:[%s2 + $0x338] sm:$0xff]
  %v3772 = vld [vmem:[%s2 + $0x340] sm:$0xff]
  %v3773 = vld [vmem:[%s2 + $0x348] sm:$0xff]
  %v3774 = vld [vmem:[%s2 + $0x350] sm:$0xff]
  %v3775 = vld [vmem:[%s2 + $0x358] sm:$0xff]
  %v3776 = vld [vmem:[%s2 + $0x360] sm:$0xff]
  %v3777 = vld [vmem:[%s2 + $0x368] sm:$0xff]
  %v3778 = vld [vmem:[%s2 + $0x370] sm:$0xff]
  %v3779 = vld [vmem:[%s2 + $0x378] sm:$0xff]
  %v3780 = vld [vmem:[%s2 + $0x380] sm:$0xff]
  %v3781 = vld [vmem:[%s2 + $0x388] sm:$0xff]
  %v3782 = vld [vmem:[%s2 + $0x390] sm:$0xff]
  %v3783 = vld [vmem:[%s2 + $0x398] sm:$0xff]
  %v3784 = vld [vmem:[%s2 + $0x3a0] sm:$0xff]
  %v3785 = vld [vmem:[%s2 + $0x3a8] sm:$0xff]
  %v3786 = vld [vmem:[%s2 + $0x3b0] sm:$0xff]
  %v3787 = vld [vmem:[%s2 + $0x3b8] sm:$0xff]
  %v3788 = vld [vmem:[%s2 + $0x3c0] sm:$0xff]
  %v3789 = vld [vmem:[%s2 + $0x3c8] sm:$0xff]
  %v3790 = vld [vmem:[%s2 + $0x3d0] sm:$0xff]
  %v3791 = vld [vmem:[%s2 + $0x3d8] sm:$0xff]
  %v3792 = vld [vmem:[%s2 + $0x3e0] sm:$0xff]
  %v3793 = vld [vmem:[%s2 + $0x3e8] sm:$0xff]
  %v3794 = vld [vmem:[%s2 + $0x3f0] sm:$0xff]
  %v3795 = vld [vmem:[%s2 + $0x3f8] sm:$0xff]
  %v3828 = vunpack.c.l.b16 %v3764
  %v3829 = vunpack.c.h.b16 %v3764
  %v3830 = vunpack.c.l.b16 %v3765
  %v3831 = vunpack.c.h.b16 %v3765
  %v3832 = vunpack.c.l.b16 %v3766
  %v3833 = vunpack.c.h.b16 %v3766
  %v3834 = vunpack.c.l.b16 %v3767
  %v3835 = vunpack.c.h.b16 %v3767
  %v3836 = vunpack.c.l.b16 %v3768
  %v3837 = vunpack.c.h.b16 %v3768
  %v3838 = vunpack.c.l.b16 %v3769
  %v3839 = vunpack.c.h.b16 %v3769
  %v3840 = vunpack.c.l.b16 %v3770
  %v3841 = vunpack.c.h.b16 %v3770
  %v3842 = vunpack.c.l.b16 %v3771
  %v3843 = vunpack.c.h.b16 %v3771
  %v3844 = vunpack.c.l.b16 %v3772
  %v3845 = vunpack.c.h.b16 %v3772
  %v3846 = vunpack.c.l.b16 %v3773
  %v3847 = vunpack.c.h.b16 %v3773
  %v3848 = vunpack.c.l.b16 %v3774
  %v3849 = vunpack.c.h.b16 %v3774
  %v3850 = vunpack.c.l.b16 %v3775
  %v3851 = vunpack.c.h.b16 %v3775
  %v3852 = vunpack.c.l.b16 %v3776
  %v3853 = vunpack.c.h.b16 %v3776
  %v3854 = vunpack.c.l.b16 %v3777
  %v3855 = vunpack.c.h.b16 %v3777
  %v3856 = vunpack.c.l.b16 %v3778
  %v3857 = vunpack.c.h.b16 %v3778
  %v3858 = vunpack.c.l.b16 %v3779
  %v3859 = vunpack.c.h.b16 %v3779
  %v3860 = vunpack.c.l.b16 %v3780
  %v3861 = vunpack.c.h.b16 %v3780
  %v3862 = vunpack.c.l.b16 %v3781
  %v3863 = vunpack.c.h.b16 %v3781
  %v3864 = vunpack.c.l.b16 %v3782
  %v3865 = vunpack.c.h.b16 %v3782
  %v3866 = vunpack.c.l.b16 %v3783
  %v3867 = vunpack.c.h.b16 %v3783
  %v3868 = vunpack.c.l.b16 %v3784
  %v3869 = vunpack.c.h.b16 %v3784
  %v3870 = vunpack.c.l.b16 %v3785
  %v3871 = vunpack.c.h.b16 %v3785
  %v3872 = vunpack.c.l.b16 %v3786
  %v3873 = vunpack.c.h.b16 %v3786
  %v3874 = vunpack.c.l.b16 %v3787
  %v3875 = vunpack.c.h.b16 %v3787
  %v3876 = vunpack.c.l.b16 %v3788
  %v3877 = vunpack.c.h.b16 %v3788
  %v3878 = vunpack.c.l.b16 %v3789
  %v3879 = vunpack.c.h.b16 %v3789
  %v3880 = vunpack.c.l.b16 %v3790
  %v3881 = vunpack.c.h.b16 %v3790
  %v3882 = vunpack.c.l.b16 %v3791
  %v3883 = vunpack.c.h.b16 %v3791
  %v3884 = vunpack.c.l.b16 %v3792
  %v3885 = vunpack.c.h.b16 %v3792
  %v3886 = vunpack.c.l.b16 %v3793
  %v3887 = vunpack.c.h.b16 %v3793
  %v3888 = vunpack.c.l.b16 %v3794
  %v3889 = vunpack.c.h.b16 %v3794
  %v3890 = vunpack.c.l.b16 %v3795
  %v3891 = vunpack.c.h.b16 %v3795
  %v3892 = vpack.c.b16 %v3830, %v3828
  %v3893 = vpack.c.b16 %v3831, %v3829
  %v3894 = vpack.c.b16 %v3834, %v3832
  %v3895 = vpack.c.b16 %v3835, %v3833
  %v3896 = vpack.c.b16 %v3838, %v3836
  %v3897 = vpack.c.b16 %v3839, %v3837
  %v3898 = vpack.c.b16 %v3842, %v3840
  %v3899 = vpack.c.b16 %v3843, %v3841
  %v3900 = vpack.c.b16 %v3846, %v3844
  %v3901 = vpack.c.b16 %v3847, %v3845
  %v3902 = vpack.c.b16 %v3850, %v3848
  %v3903 = vpack.c.b16 %v3851, %v3849
  %v3904 = vpack.c.b16 %v3854, %v3852
  %v3905 = vpack.c.b16 %v3855, %v3853
  %v3906 = vpack.c.b16 %v3858, %v3856
  %v3907 = vpack.c.b16 %v3859, %v3857
  %v3908 = vpack.c.b16 %v3862, %v3860
  %v3909 = vpack.c.b16 %v3863, %v3861
  %v3910 = vpack.c.b16 %v3866, %v3864
  %v3911 = vpack.c.b16 %v3867, %v3865
  %v3912 = vpack.c.b16 %v3870, %v3868
  %v3913 = vpack.c.b16 %v3871, %v3869
  %v3914 = vpack.c.b16 %v3874, %v3872
  %v3915 = vpack.c.b16 %v3875, %v3873
  %v3916 = vpack.c.b16 %v3878, %v3876
  %v3917 = vpack.c.b16 %v3879, %v3877
  %v3918 = vpack.c.b16 %v3882, %v3880
  %v3919 = vpack.c.b16 %v3883, %v3881
  %v3920 = vpack.c.b16 %v3886, %v3884
  %v3921 = vpack.c.b16 %v3887, %v3885
  %v3922 = vpack.c.b16 %v3890, %v3888
  %v3923 = vpack.c.b16 %v3891, %v3889
  %3956 = vmatprep.subr.bf16.mxu0 %v3907
  %3957 = vmatpush1.bf16.msra.mxu0 %v3906
  %3958 = vmatprep.subr.bf16.mxu0 %v3905
  %3959 = vmatpush1.bf16.msra.mxu0 %v3904
  %3960 = vmatprep.subr.bf16.mxu0 %v3903
  %3961 = vmatpush1.bf16.msra.mxu0 %v3902
  %3962 = vmatprep.subr.bf16.mxu0 %v3901
  %3963 = vmatpush1.bf16.msra.mxu0 %v3900
  %3964 = vmatprep.subr.bf16.mxu0 %v3899
  %3965 = vmatpush1.bf16.msra.mxu0 %v3898
  %3966 = vmatprep.subr.bf16.mxu0 %v3897
  %3967 = vmatpush1.bf16.msra.mxu0 %v3896
  %3968 = vmatprep.subr.bf16.mxu0 %v3895
  %3969 = vmatpush1.bf16.msra.mxu0 %v3894
  %3970 = vmatprep.subr.bf16.mxu0 %v3893
  %3971 = vmatpush1.bf16.msra.mxu0 %v3892
  %3972 = vmatprep.subr.bf16.mxu0 %v3923
  %3973 = vmatpush2.bf16.msra.mxu0 %v3922
  %3974 = vmatprep.subr.bf16.mxu0 %v3921
  %3975 = vmatpush2.bf16.msra.mxu0 %v3920
  %3976 = vmatprep.subr.bf16.mxu0 %v3919
  %3977 = vmatpush2.bf16.msra.mxu0 %v3918
  %3978 = vmatprep.subr.bf16.mxu0 %v3917
  %3979 = vmatpush2.bf16.msra.mxu0 %v3916
  %3980 = vmatprep.subr.bf16.mxu0 %v3915
  %3981 = vmatpush2.bf16.msra.mxu0 %v3914
  %3982 = vmatprep.subr.bf16.mxu0 %v3913
  %3983 = vmatpush2.bf16.msra.mxu0 %v3912
  %3984 = vmatprep.subr.bf16.mxu0 %v3911
  %3985 = vmatpush2.bf16.msra.mxu0 %v3910
  %3986 = vmatprep.subr.bf16.mxu0 %v3909
  %3987 = vmatpush2.bf16.msra.mxu0 %v3908
  %3988 = vmatprep.mubr.bf16.mxu0 %v3761
  %3989 = vmatmul.mubr.bf16.gmra.mxu0 %v3760
  %v3990 = vpop.f32.mrf.mxu0
  %v3991 = vadd.f32 0.0, %v3990
  %v3992 = vpop.f32.mrf.mxu0
  %v3993 = vadd.f32 0.0, %v3992
  %v3994 = vpop.f32.mrf.mxu0
  %v3995 = vadd.f32 0.0, %v3994
  %v3996 = vpop.f32.mrf.mxu0
  %v3997 = vadd.f32 0.0, %v3996
  %3998 = vmatprep.mubr.bf16.mxu0 %v3763
  %3999 = vmatmul.mubr.bf16.gmra.mxu0 %v3762
  %v4000 = vpop.f32.mrf.mxu0
  %v4001 = vadd.f32 0.0, %v4000
  %v4002 = vpop.f32.mrf.mxu0
  %v4003 = vadd.f32 0.0, %v4002
  %v4004 = vpop.f32.mrf.mxu0
  %v4005 = vadd.f32 0.0, %v4004
  %v4006 = vpop.f32.mrf.mxu0
  %v4007 = vadd.f32 0.0, %v4006
  %4008 = vdwg.mxu0
  %v4009 = vadd.f32 %v3678, %v3991
  %v4010 = vadd.f32 %v3679, %v3993
  %v4011 = vadd.f32 %v3680, %v3995
  %v4012 = vadd.f32 %v3681, %v3997
  %v4013 = vadd.f32 %v3682, %v4001
  %v4014 = vadd.f32 %v3683, %v4003
  %v4015 = vadd.f32 %v3684, %v4005
  %v4016 = vadd.f32 %v3685, %v4007
  %s4017 = scalar_lea.vmem %s4, 64
  %v4018 = vld [vmem:[%s4017] sm:$0xf]
  %v4019 = vld [vmem:[%s4017 + $0x4] sm:$0xf]
  %v4020 = vld [vmem:[%s4017 + $0x8] sm:$0xf]
  %v4021 = vld [vmem:[%s4017 + $0xc] sm:$0xf]
  %v4026 = vunpack.c.l.b16 %v4018
  %v4027 = vunpack.c.l.b16 %v4019
  %v4028 = vunpack.c.l.b16 %v4020
  %v4029 = vunpack.c.l.b16 %v4021
  %v4030 = vpack.c.b16 %v4027, %v4026
  %v4031 = vpack.c.b16 %v4029, %v4028
  %v4033 = vsel %vm2245, %v4030, 0
  %v4036 = vsel %vm2245, %v4031, 0
  %4038 = vmatprep.subr.bf16.mxu0 0
  %4039 = vmatpush1.bf16.msra.mxu0 0
  %4040 = vmatprep.subr.bf16.mxu0 0
  %4041 = vmatpush1.bf16.msra.mxu0 0
  %4042 = vmatprep.subr.bf16.mxu0 0
  %4043 = vmatpush1.bf16.msra.mxu0 0
  %4044 = vmatprep.subr.bf16.mxu0 0
  %4045 = vmatpush1.bf16.msra.mxu0 0
  %4046 = vmatprep.subr.bf16.mxu0 0
  %4047 = vmatpush1.bf16.msra.mxu0 0
  %4048 = vmatprep.subr.bf16.mxu0 0
  %4049 = vmatpush1.bf16.msra.mxu0 0
  %4050 = vmatprep.subr.bf16.mxu0 %v2709
  %4051 = vmatpush1.bf16.msra.mxu0 %v2708
  %4052 = vmatprep.subr.bf16.mxu0 %v2707
  %4053 = vmatpush1.bf16.msra.mxu0 %v2706
  %4054 = vmatprep.subr.bf16.mxu0 0
  %4055 = vmatpush2.bf16.msra.mxu0 0
  %4056 = vmatprep.subr.bf16.mxu0 0
  %4057 = vmatpush2.bf16.msra.mxu0 0
  %4058 = vmatprep.subr.bf16.mxu0 0
  %4059 = vmatpush2.bf16.msra.mxu0 0
  %4060 = vmatprep.subr.bf16.mxu0 0
  %4061 = vmatpush2.bf16.msra.mxu0 0
  %4062 = vmatprep.subr.bf16.mxu0 0
  %4063 = vmatpush2.bf16.msra.mxu0 0
  %4064 = vmatprep.subr.bf16.mxu0 0
  %4065 = vmatpush2.bf16.msra.mxu0 0
  %4066 = vmatprep.subr.bf16.mxu0 0
  %4067 = vmatpush2.bf16.msra.mxu0 0
  %4068 = vmatprep.subr.bf16.mxu0 0
  %4069 = vmatpush2.bf16.msra.mxu0 0
  %4070 = vmatprep.mubr.bf16.mxu0 0
  %4071 = vmatmul.mubr.bf16.gmra.mxu0 %v4033
  %v4072 = vpop.f32.mrf.mxu0
  %v4073 = vadd.f32 0.0, %v4072
  %v4074 = vpop.f32.mrf.mxu0
  %v4075 = vadd.f32 0.0, %v4074
  %v4076 = vpop.f32.mrf.mxu0
  %v4077 = vadd.f32 0.0, %v4076
  %v4078 = vpop.f32.mrf.mxu0
  %v4079 = vadd.f32 0.0, %v4078
  %4080 = vmatprep.mubr.bf16.mxu0 0
  %4081 = vmatmul.mubr.bf16.gmra.mxu0 %v4036
  %v4082 = vpop.f32.mrf.mxu0
  %v4083 = vadd.f32 0.0, %v4082
  %v4084 = vpop.f32.mrf.mxu0
  %v4085 = vadd.f32 0.0, %v4084
  %v4086 = vpop.f32.mrf.mxu0
  %v4087 = vadd.f32 0.0, %v4086
  %v4088 = vpop.f32.mrf.mxu0
  %v4089 = vadd.f32 0.0, %v4088
  %4090 = vdwg.mxu0
  %v4091 = vpack.c.bf16 %v4077, %v4073
  %v4092 = vpack.c.bf16 %v4079, %v4075
  %v4093 = vpack.c.bf16 %v4087, %v4083
  %v4094 = vpack.c.bf16 %v4089, %v4085
  %v4095 = vld [vmem:[%s2 + $0x400] sm:$0xff]
  %v4096 = vld [vmem:[%s2 + $0x408] sm:$0xff]
  %v4097 = vld [vmem:[%s2 + $0x410] sm:$0xff]
  %v4098 = vld [vmem:[%s2 + $0x418] sm:$0xff]
  %v4099 = vld [vmem:[%s2 + $0x420] sm:$0xff]
  %v4100 = vld [vmem:[%s2 + $0x428] sm:$0xff]
  %v4101 = vld [vmem:[%s2 + $0x430] sm:$0xff]
  %v4102 = vld [vmem:[%s2 + $0x438] sm:$0xff]
  %v4103 = vld [vmem:[%s2 + $0x440] sm:$0xff]
  %v4104 = vld [vmem:[%s2 + $0x448] sm:$0xff]
  %v4105 = vld [vmem:[%s2 + $0x450] sm:$0xff]
  %v4106 = vld [vmem:[%s2 + $0x458] sm:$0xff]
  %v4107 = vld [vmem:[%s2 + $0x460] sm:$0xff]
  %v4108 = vld [vmem:[%s2 + $0x468] sm:$0xff]
  %v4109 = vld [vmem:[%s2 + $0x470] sm:$0xff]
  %v4110 = vld [vmem:[%s2 + $0x478] sm:$0xff]
  %v4111 = vld [vmem:[%s2 + $0x480] sm:$0xff]
  %v4112 = vld [vmem:[%s2 + $0x488] sm:$0xff]
  %v4113 = vld [vmem:[%s2 + $0x490] sm:$0xff]
  %v4114 = vld [vmem:[%s2 + $0x498] sm:$0xff]
  %v4115 = vld [vmem:[%s2 + $0x4a0] sm:$0xff]
  %v4116 = vld [vmem:[%s2 + $0x4a8] sm:$0xff]
  %v4117 = vld [vmem:[%s2 + $0x4b0] sm:$0xff]
  %v4118 = vld [vmem:[%s2 + $0x4b8] sm:$0xff]
  %v4119 = vld [vmem:[%s2 + $0x4c0] sm:$0xff]
  %v4120 = vld [vmem:[%s2 + $0x4c8] sm:$0xff]
  %v4121 = vld [vmem:[%s2 + $0x4d0] sm:$0xff]
  %v4122 = vld [vmem:[%s2 + $0x4d8] sm:$0xff]
  %v4123 = vld [vmem:[%s2 + $0x4e0] sm:$0xff]
  %v4124 = vld [vmem:[%s2 + $0x4e8] sm:$0xff]
  %v4125 = vld [vmem:[%s2 + $0x4f0] sm:$0xff]
  %v4126 = vld [vmem:[%s2 + $0x4f8] sm:$0xff]
  %v4159 = vunpack.c.l.b16 %v4095
  %v4160 = vunpack.c.h.b16 %v4095
  %v4161 = vunpack.c.l.b16 %v4096
  %v4162 = vunpack.c.h.b16 %v4096
  %v4163 = vunpack.c.l.b16 %v4097
  %v4164 = vunpack.c.h.b16 %v4097
  %v4165 = vunpack.c.l.b16 %v4098
  %v4166 = vunpack.c.h.b16 %v4098
  %v4167 = vunpack.c.l.b16 %v4099
  %v4168 = vunpack.c.h.b16 %v4099
  %v4169 = vunpack.c.l.b16 %v4100
  %v4170 = vunpack.c.h.b16 %v4100
  %v4171 = vunpack.c.l.b16 %v4101
  %v4172 = vunpack.c.h.b16 %v4101
  %v4173 = vunpack.c.l.b16 %v4102
  %v4174 = vunpack.c.h.b16 %v4102
  %v4175 = vunpack.c.l.b16 %v4103
  %v4176 = vunpack.c.h.b16 %v4103
  %v4177 = vunpack.c.l.b16 %v4104
  %v4178 = vunpack.c.h.b16 %v4104
  %v4179 = vunpack.c.l.b16 %v4105
  %v4180 = vunpack.c.h.b16 %v4105
  %v4181 = vunpack.c.l.b16 %v4106
  %v4182 = vunpack.c.h.b16 %v4106
  %v4183 = vunpack.c.l.b16 %v4107
  %v4184 = vunpack.c.h.b16 %v4107
  %v4185 = vunpack.c.l.b16 %v4108
  %v4186 = vunpack.c.h.b16 %v4108
  %v4187 = vunpack.c.l.b16 %v4109
  %v4188 = vunpack.c.h.b16 %v4109
  %v4189 = vunpack.c.l.b16 %v4110
  %v4190 = vunpack.c.h.b16 %v4110
  %v4191 = vunpack.c.l.b16 %v4111
  %v4192 = vunpack.c.h.b16 %v4111
  %v4193 = vunpack.c.l.b16 %v4112
  %v4194 = vunpack.c.h.b16 %v4112
  %v4195 = vunpack.c.l.b16 %v4113
  %v4196 = vunpack.c.h.b16 %v4113
  %v4197 = vunpack.c.l.b16 %v4114
  %v4198 = vunpack.c.h.b16 %v4114
  %v4199 = vunpack.c.l.b16 %v4115
  %v4200 = vunpack.c.h.b16 %v4115
  %v4201 = vunpack.c.l.b16 %v4116
  %v4202 = vunpack.c.h.b16 %v4116
  %v4203 = vunpack.c.l.b16 %v4117
  %v4204 = vunpack.c.h.b16 %v4117
  %v4205 = vunpack.c.l.b16 %v4118
  %v4206 = vunpack.c.h.b16 %v4118
  %v4207 = vunpack.c.l.b16 %v4119
  %v4208 = vunpack.c.h.b16 %v4119
  %v4209 = vunpack.c.l.b16 %v4120
  %v4210 = vunpack.c.h.b16 %v4120
  %v4211 = vunpack.c.l.b16 %v4121
  %v4212 = vunpack.c.h.b16 %v4121
  %v4213 = vunpack.c.l.b16 %v4122
  %v4214 = vunpack.c.h.b16 %v4122
  %v4215 = vunpack.c.l.b16 %v4123
  %v4216 = vunpack.c.h.b16 %v4123
  %v4217 = vunpack.c.l.b16 %v4124
  %v4218 = vunpack.c.h.b16 %v4124
  %v4219 = vunpack.c.l.b16 %v4125
  %v4220 = vunpack.c.h.b16 %v4125
  %v4221 = vunpack.c.l.b16 %v4126
  %v4222 = vunpack.c.h.b16 %v4126
  %v4223 = vpack.c.b16 %v4161, %v4159
  %v4224 = vpack.c.b16 %v4162, %v4160
  %v4225 = vpack.c.b16 %v4165, %v4163
  %v4226 = vpack.c.b16 %v4166, %v4164
  %v4227 = vpack.c.b16 %v4169, %v4167
  %v4228 = vpack.c.b16 %v4170, %v4168
  %v4229 = vpack.c.b16 %v4173, %v4171
  %v4230 = vpack.c.b16 %v4174, %v4172
  %v4231 = vpack.c.b16 %v4177, %v4175
  %v4232 = vpack.c.b16 %v4178, %v4176
  %v4233 = vpack.c.b16 %v4181, %v4179
  %v4234 = vpack.c.b16 %v4182, %v4180
  %v4235 = vpack.c.b16 %v4185, %v4183
  %v4236 = vpack.c.b16 %v4186, %v4184
  %v4237 = vpack.c.b16 %v4189, %v4187
  %v4238 = vpack.c.b16 %v4190, %v4188
  %v4239 = vpack.c.b16 %v4193, %v4191
  %v4240 = vpack.c.b16 %v4194, %v4192
  %v4241 = vpack.c.b16 %v4197, %v4195
  %v4242 = vpack.c.b16 %v4198, %v4196
  %v4243 = vpack.c.b16 %v4201, %v4199
  %v4244 = vpack.c.b16 %v4202, %v4200
  %v4245 = vpack.c.b16 %v4205, %v4203
  %v4246 = vpack.c.b16 %v4206, %v4204
  %v4247 = vpack.c.b16 %v4209, %v4207
  %v4248 = vpack.c.b16 %v4210, %v4208
  %v4249 = vpack.c.b16 %v4213, %v4211
  %v4250 = vpack.c.b16 %v4214, %v4212
  %v4251 = vpack.c.b16 %v4217, %v4215
  %v4252 = vpack.c.b16 %v4218, %v4216
  %v4253 = vpack.c.b16 %v4221, %v4219
  %v4254 = vpack.c.b16 %v4222, %v4220
  %4287 = vmatprep.subr.bf16.mxu0 %v4238
  %4288 = vmatpush1.bf16.msra.mxu0 %v4237
  %4289 = vmatprep.subr.bf16.mxu0 %v4236
  %4290 = vmatpush1.bf16.msra.mxu0 %v4235
  %4291 = vmatprep.subr.bf16.mxu0 %v4234
  %4292 = vmatpush1.bf16.msra.mxu0 %v4233
  %4293 = vmatprep.subr.bf16.mxu0 %v4232
  %4294 = vmatpush1.bf16.msra.mxu0 %v4231
  %4295 = vmatprep.subr.bf16.mxu0 %v4230
  %4296 = vmatpush1.bf16.msra.mxu0 %v4229
  %4297 = vmatprep.subr.bf16.mxu0 %v4228
  %4298 = vmatpush1.bf16.msra.mxu0 %v4227
  %4299 = vmatprep.subr.bf16.mxu0 %v4226
  %4300 = vmatpush1.bf16.msra.mxu0 %v4225
  %4301 = vmatprep.subr.bf16.mxu0 %v4224
  %4302 = vmatpush1.bf16.msra.mxu0 %v4223
  %4303 = vmatprep.subr.bf16.mxu0 %v4254
  %4304 = vmatpush2.bf16.msra.mxu0 %v4253
  %4305 = vmatprep.subr.bf16.mxu0 %v4252
  %4306 = vmatpush2.bf16.msra.mxu0 %v4251
  %4307 = vmatprep.subr.bf16.mxu0 %v4250
  %4308 = vmatpush2.bf16.msra.mxu0 %v4249
  %4309 = vmatprep.subr.bf16.mxu0 %v4248
  %4310 = vmatpush2.bf16.msra.mxu0 %v4247
  %4311 = vmatprep.subr.bf16.mxu0 %v4246
  %4312 = vmatpush2.bf16.msra.mxu0 %v4245
  %4313 = vmatprep.subr.bf16.mxu0 %v4244
  %4314 = vmatpush2.bf16.msra.mxu0 %v4243
  %4315 = vmatprep.subr.bf16.mxu0 %v4242
  %4316 = vmatpush2.bf16.msra.mxu0 %v4241
  %4317 = vmatprep.subr.bf16.mxu0 %v4240
  %4318 = vmatpush2.bf16.msra.mxu0 %v4239
  %4319 = vmatprep.mubr.bf16.mxu0 %v4092
  %4320 = vmatmul.mubr.bf16.gmra.mxu0 %v4091
  %v4321 = vpop.f32.mrf.mxu0
  %v4322 = vadd.f32 0.0, %v4321
  %v4323 = vpop.f32.mrf.mxu0
  %v4324 = vadd.f32 0.0, %v4323
  %v4325 = vpop.f32.mrf.mxu0
  %v4326 = vadd.f32 0.0, %v4325
  %v4327 = vpop.f32.mrf.mxu0
  %v4328 = vadd.f32 0.0, %v4327
  %4329 = vmatprep.mubr.bf16.mxu0 %v4094
  %4330 = vmatmul.mubr.bf16.gmra.mxu0 %v4093
  %v4331 = vpop.f32.mrf.mxu0
  %v4332 = vadd.f32 0.0, %v4331
  %v4333 = vpop.f32.mrf.mxu0
  %v4334 = vadd.f32 0.0, %v4333
  %v4335 = vpop.f32.mrf.mxu0
  %v4336 = vadd.f32 0.0, %v4335
  %v4337 = vpop.f32.mrf.mxu0
  %v4338 = vadd.f32 0.0, %v4337
  %4339 = vdwg.mxu0
  %v4340 = vadd.f32 %v4009, %v4322
  %v4341 = vadd.f32 %v4010, %v4324
  %v4342 = vadd.f32 %v4011, %v4326
  %v4343 = vadd.f32 %v4012, %v4328
  %v4344 = vadd.f32 %v4013, %v4332
  %v4345 = vadd.f32 %v4014, %v4334
  %v4346 = vadd.f32 %v4015, %v4336
  %v4347 = vadd.f32 %v4016, %v4338
  %s4348 = scalar_lea.vmem %s4, 80
  %v4349 = vld [vmem:[%s4348] sm:$0xf]
  %v4350 = vld [vmem:[%s4348 + $0x4] sm:$0xf]
  %v4351 = vld [vmem:[%s4348 + $0x8] sm:$0xf]
  %v4352 = vld [vmem:[%s4348 + $0xc] sm:$0xf]
  %v4357 = vunpack.c.l.b16 %v4349
  %v4358 = vunpack.c.l.b16 %v4350
  %v4359 = vunpack.c.l.b16 %v4351
  %v4360 = vunpack.c.l.b16 %v4352
  %v4361 = vpack.c.b16 %v4358, %v4357
  %v4362 = vpack.c.b16 %v4360, %v4359
  %v4364 = vsel %vm2245, %v4361, 0
  %v4367 = vsel %vm2245, %v4362, 0
  %4369 = vmatprep.subr.bf16.mxu0 0
  %4370 = vmatpush1.bf16.msra.mxu0 0
  %4371 = vmatprep.subr.bf16.mxu0 0
  %4372 = vmatpush1.bf16.msra.mxu0 0
  %4373 = vmatprep.subr.bf16.mxu0 0
  %4374 = vmatpush1.bf16.msra.mxu0 0
  %4375 = vmatprep.subr.bf16.mxu0 0
  %4376 = vmatpush1.bf16.msra.mxu0 0
  %4377 = vmatprep.subr.bf16.mxu0 0
  %4378 = vmatpush1.bf16.msra.mxu0 0
  %4379 = vmatprep.subr.bf16.mxu0 0
  %4380 = vmatpush1.bf16.msra.mxu0 0
  %4381 = vmatprep.subr.bf16.mxu0 %v2709
  %4382 = vmatpush1.bf16.msra.mxu0 %v2708
  %4383 = vmatprep.subr.bf16.mxu0 %v2707
  %4384 = vmatpush1.bf16.msra.mxu0 %v2706
  %4385 = vmatprep.subr.bf16.mxu0 0
  %4386 = vmatpush2.bf16.msra.mxu0 0
  %4387 = vmatprep.subr.bf16.mxu0 0
  %4388 = vmatpush2.bf16.msra.mxu0 0
  %4389 = vmatprep.subr.bf16.mxu0 0
  %4390 = vmatpush2.bf16.msra.mxu0 0
  %4391 = vmatprep.subr.bf16.mxu0 0
  %4392 = vmatpush2.bf16.msra.mxu0 0
  %4393 = vmatprep.subr.bf16.mxu0 0
  %4394 = vmatpush2.bf16.msra.mxu0 0
  %4395 = vmatprep.subr.bf16.mxu0 0
  %4396 = vmatpush2.bf16.msra.mxu0 0
  %4397 = vmatprep.subr.bf16.mxu0 0
  %4398 = vmatpush2.bf16.msra.mxu0 0
  %4399 = vmatprep.subr.bf16.mxu0 0
  %4400 = vmatpush2.bf16.msra.mxu0 0
  %4401 = vmatprep.mubr.bf16.mxu0 0
  %4402 = vmatmul.mubr.bf16.gmra.mxu0 %v4364
  %v4403 = vpop.f32.mrf.mxu0
  %v4404 = vadd.f32 0.0, %v4403
  %v4405 = vpop.f32.mrf.mxu0
  %v4406 = vadd.f32 0.0, %v4405
  %v4407 = vpop.f32.mrf.mxu0
  %v4408 = vadd.f32 0.0, %v4407
  %v4409 = vpop.f32.mrf.mxu0
  %v4410 = vadd.f32 0.0, %v4409
  %4411 = vmatprep.mubr.bf16.mxu0 0
  %4412 = vmatmul.mubr.bf16.gmra.mxu0 %v4367
  %v4413 = vpop.f32.mrf.mxu0
  %v4414 = vadd.f32 0.0, %v4413
  %v4415 = vpop.f32.mrf.mxu0
  %v4416 = vadd.f32 0.0, %v4415
  %v4417 = vpop.f32.mrf.mxu0
  %v4418 = vadd.f32 0.0, %v4417
  %v4419 = vpop.f32.mrf.mxu0
  %v4420 = vadd.f32 0.0, %v4419
  %4421 = vdwg.mxu0
  %v4422 = vpack.c.bf16 %v4408, %v4404
  %v4423 = vpack.c.bf16 %v4410, %v4406
  %v4424 = vpack.c.bf16 %v4418, %v4414
  %v4425 = vpack.c.bf16 %v4420, %v4416
  %v4426 = vld [vmem:[%s2 + $0x500] sm:$0xff]
  %v4427 = vld [vmem:[%s2 + $0x508] sm:$0xff]
  %v4428 = vld [vmem:[%s2 + $0x510] sm:$0xff]
  %v4429 = vld [vmem:[%s2 + $0x518] sm:$0xff]
  %v4430 = vld [vmem:[%s2 + $0x520] sm:$0xff]
  %v4431 = vld [vmem:[%s2 + $0x528] sm:$0xff]
  %v4432 = vld [vmem:[%s2 + $0x530] sm:$0xff]
  %v4433 = vld [vmem:[%s2 + $0x538] sm:$0xff]
  %v4434 = vld [vmem:[%s2 + $0x540] sm:$0xff]
  %v4435 = vld [vmem:[%s2 + $0x548] sm:$0xff]
  %v4436 = vld [vmem:[%s2 + $0x550] sm:$0xff]
  %v4437 = vld [vmem:[%s2 + $0x558] sm:$0xff]
  %v4438 = vld [vmem:[%s2 + $0x560] sm:$0xff]
  %v4439 = vld [vmem:[%s2 + $0x568] sm:$0xff]
  %v4440 = vld [vmem:[%s2 + $0x570] sm:$0xff]
  %v4441 = vld [vmem:[%s2 + $0x578] sm:$0xff]
  %v4442 = vld [vmem:[%s2 + $0x580] sm:$0xff]
  %v4443 = vld [vmem:[%s2 + $0x588] sm:$0xff]
  %v4444 = vld [vmem:[%s2 + $0x590] sm:$0xff]
  %v4445 = vld [vmem:[%s2 + $0x598] sm:$0xff]
  %v4446 = vld [vmem:[%s2 + $0x5a0] sm:$0xff]
  %v4447 = vld [vmem:[%s2 + $0x5a8] sm:$0xff]
  %v4448 = vld [vmem:[%s2 + $0x5b0] sm:$0xff]
  %v4449 = vld [vmem:[%s2 + $0x5b8] sm:$0xff]
  %v4450 = vld [vmem:[%s2 + $0x5c0] sm:$0xff]
  %v4451 = vld [vmem:[%s2 + $0x5c8] sm:$0xff]
  %v4452 = vld [vmem:[%s2 + $0x5d0] sm:$0xff]
  %v4453 = vld [vmem:[%s2 + $0x5d8] sm:$0xff]
  %v4454 = vld [vmem:[%s2 + $0x5e0] sm:$0xff]
  %v4455 = vld [vmem:[%s2 + $0x5e8] sm:$0xff]
  %v4456 = vld [vmem:[%s2 + $0x5f0] sm:$0xff]
  %v4457 = vld [vmem:[%s2 + $0x5f8] sm:$0xff]
  %v4490 = vunpack.c.l.b16 %v4426
  %v4491 = vunpack.c.h.b16 %v4426
  %v4492 = vunpack.c.l.b16 %v4427
  %v4493 = vunpack.c.h.b16 %v4427
  %v4494 = vunpack.c.l.b16 %v4428
  %v4495 = vunpack.c.h.b16 %v4428
  %v4496 = vunpack.c.l.b16 %v4429
  %v4497 = vunpack.c.h.b16 %v4429
  %v4498 = vunpack.c.l.b16 %v4430
  %v4499 = vunpack.c.h.b16 %v4430
  %v4500 = vunpack.c.l.b16 %v4431
  %v4501 = vunpack.c.h.b16 %v4431
  %v4502 = vunpack.c.l.b16 %v4432
  %v4503 = vunpack.c.h.b16 %v4432
  %v4504 = vunpack.c.l.b16 %v4433
  %v4505 = vunpack.c.h.b16 %v4433
  %v4506 = vunpack.c.l.b16 %v4434
  %v4507 = vunpack.c.h.b16 %v4434
  %v4508 = vunpack.c.l.b16 %v4435
  %v4509 = vunpack.c.h.b16 %v4435
  %v4510 = vunpack.c.l.b16 %v4436
  %v4511 = vunpack.c.h.b16 %v4436
  %v4512 = vunpack.c.l.b16 %v4437
  %v4513 = vunpack.c.h.b16 %v4437
  %v4514 = vunpack.c.l.b16 %v4438
  %v4515 = vunpack.c.h.b16 %v4438
  %v4516 = vunpack.c.l.b16 %v4439
  %v4517 = vunpack.c.h.b16 %v4439
  %v4518 = vunpack.c.l.b16 %v4440
  %v4519 = vunpack.c.h.b16 %v4440
  %v4520 = vunpack.c.l.b16 %v4441
  %v4521 = vunpack.c.h.b16 %v4441
  %v4522 = vunpack.c.l.b16 %v4442
  %v4523 = vunpack.c.h.b16 %v4442
  %v4524 = vunpack.c.l.b16 %v4443
  %v4525 = vunpack.c.h.b16 %v4443
  %v4526 = vunpack.c.l.b16 %v4444
  %v4527 = vunpack.c.h.b16 %v4444
  %v4528 = vunpack.c.l.b16 %v4445
  %v4529 = vunpack.c.h.b16 %v4445
  %v4530 = vunpack.c.l.b16 %v4446
  %v4531 = vunpack.c.h.b16 %v4446
  %v4532 = vunpack.c.l.b16 %v4447
  %v4533 = vunpack.c.h.b16 %v4447
  %v4534 = vunpack.c.l.b16 %v4448
  %v4535 = vunpack.c.h.b16 %v4448
  %v4536 = vunpack.c.l.b16 %v4449
  %v4537 = vunpack.c.h.b16 %v4449
  %v4538 = vunpack.c.l.b16 %v4450
  %v4539 = vunpack.c.h.b16 %v4450
  %v4540 = vunpack.c.l.b16 %v4451
  %v4541 = vunpack.c.h.b16 %v4451
  %v4542 = vunpack.c.l.b16 %v4452
  %v4543 = vunpack.c.h.b16 %v4452
  %v4544 = vunpack.c.l.b16 %v4453
  %v4545 = vunpack.c.h.b16 %v4453
  %v4546 = vunpack.c.l.b16 %v4454
  %v4547 = vunpack.c.h.b16 %v4454
  %v4548 = vunpack.c.l.b16 %v4455
  %v4549 = vunpack.c.h.b16 %v4455
  %v4550 = vunpack.c.l.b16 %v4456
  %v4551 = vunpack.c.h.b16 %v4456
  %v4552 = vunpack.c.l.b16 %v4457
  %v4553 = vunpack.c.h.b16 %v4457
  %v4554 = vpack.c.b16 %v4492, %v4490
  %v4555 = vpack.c.b16 %v4493, %v4491
  %v4556 = vpack.c.b16 %v4496, %v4494
  %v4557 = vpack.c.b16 %v4497, %v4495
  %v4558 = vpack.c.b16 %v4500, %v4498
  %v4559 = vpack.c.b16 %v4501, %v4499
  %v4560 = vpack.c.b16 %v4504, %v4502
  %v4561 = vpack.c.b16 %v4505, %v4503
  %v4562 = vpack.c.b16 %v4508, %v4506
  %v4563 = vpack.c.b16 %v4509, %v4507
  %v4564 = vpack.c.b16 %v4512, %v4510
  %v4565 = vpack.c.b16 %v4513, %v4511
  %v4566 = vpack.c.b16 %v4516, %v4514
  %v4567 = vpack.c.b16 %v4517, %v4515
  %v4568 = vpack.c.b16 %v4520, %v4518
  %v4569 = vpack.c.b16 %v4521, %v4519
  %v4570 = vpack.c.b16 %v4524, %v4522
  %v4571 = vpack.c.b16 %v4525, %v4523
  %v4572 = vpack.c.b16 %v4528, %v4526
  %v4573 = vpack.c.b16 %v4529, %v4527
  %v4574 = vpack.c.b16 %v4532, %v4530
  %v4575 = vpack.c.b16 %v4533, %v4531
  %v4576 = vpack.c.b16 %v4536, %v4534
  %v4577 = vpack.c.b16 %v4537, %v4535
  %v4578 = vpack.c.b16 %v4540, %v4538
  %v4579 = vpack.c.b16 %v4541, %v4539
  %v4580 = vpack.c.b16 %v4544, %v4542
  %v4581 = vpack.c.b16 %v4545, %v4543
  %v4582 = vpack.c.b16 %v4548, %v4546
  %v4583 = vpack.c.b16 %v4549, %v4547
  %v4584 = vpack.c.b16 %v4552, %v4550
  %v4585 = vpack.c.b16 %v4553, %v4551
  %4618 = vmatprep.subr.bf16.mxu0 %v4569
  %4619 = vmatpush1.bf16.msra.mxu0 %v4568
  %4620 = vmatprep.subr.bf16.mxu0 %v4567
  %4621 = vmatpush1.bf16.msra.mxu0 %v4566
  %4622 = vmatprep.subr.bf16.mxu0 %v4565
  %4623 = vmatpush1.bf16.msra.mxu0 %v4564
  %4624 = vmatprep.subr.bf16.mxu0 %v4563
  %4625 = vmatpush1.bf16.msra.mxu0 %v4562
  %4626 = vmatprep.subr.bf16.mxu0 %v4561
  %4627 = vmatpush1.bf16.msra.mxu0 %v4560
  %4628 = vmatprep.subr.bf16.mxu0 %v4559
  %4629 = vmatpush1.bf16.msra.mxu0 %v4558
  %4630 = vmatprep.subr.bf16.mxu0 %v4557
  %4631 = vmatpush1.bf16.msra.mxu0 %v4556
  %4632 = vmatprep.subr.bf16.mxu0 %v4555
  %4633 = vmatpush1.bf16.msra.mxu0 %v4554
  %4634 = vmatprep.subr.bf16.mxu0 %v4585
  %4635 = vmatpush2.bf16.msra.mxu0 %v4584
  %4636 = vmatprep.subr.bf16.mxu0 %v4583
  %4637 = vmatpush2.bf16.msra.mxu0 %v4582
  %4638 = vmatprep.subr.bf16.mxu0 %v4581
  %4639 = vmatpush2.bf16.msra.mxu0 %v4580
  %4640 = vmatprep.subr.bf16.mxu0 %v4579
  %4641 = vmatpush2.bf16.msra.mxu0 %v4578
  %4642 = vmatprep.subr.bf16.mxu0 %v4577
  %4643 = vmatpush2.bf16.msra.mxu0 %v4576
  %4644 = vmatprep.subr.bf16.mxu0 %v4575
  %4645 = vmatpush2.bf16.msra.mxu0 %v4574
  %4646 = vmatprep.subr.bf16.mxu0 %v4573
  %4647 = vmatpush2.bf16.msra.mxu0 %v4572
  %4648 = vmatprep.subr.bf16.mxu0 %v4571
  %4649 = vmatpush2.bf16.msra.mxu0 %v4570
  %4650 = vmatprep.mubr.bf16.mxu0 %v4423
  %4651 = vmatmul.mubr.bf16.gmra.mxu0 %v4422
  %v4652 = vpop.f32.mrf.mxu0
  %v4653 = vadd.f32 0.0, %v4652
  %v4654 = vpop.f32.mrf.mxu0
  %v4655 = vadd.f32 0.0, %v4654
  %v4656 = vpop.f32.mrf.mxu0
  %v4657 = vadd.f32 0.0, %v4656
  %v4658 = vpop.f32.mrf.mxu0
  %v4659 = vadd.f32 0.0, %v4658
  %4660 = vmatprep.mubr.bf16.mxu0 %v4425
  %4661 = vmatmul.mubr.bf16.gmra.mxu0 %v4424
  %v4662 = vpop.f32.mrf.mxu0
  %v4663 = vadd.f32 0.0, %v4662
  %v4664 = vpop.f32.mrf.mxu0
  %v4665 = vadd.f32 0.0, %v4664
  %v4666 = vpop.f32.mrf.mxu0
  %v4667 = vadd.f32 0.0, %v4666
  %v4668 = vpop.f32.mrf.mxu0
  %v4669 = vadd.f32 0.0, %v4668
  %4670 = vdwg.mxu0
  %v4671 = vadd.f32 %v4340, %v4653
  %v4672 = vadd.f32 %v4341, %v4655
  %v4673 = vadd.f32 %v4342, %v4657
  %v4674 = vadd.f32 %v4343, %v4659
  %v4675 = vadd.f32 %v4344, %v4663
  %v4676 = vadd.f32 %v4345, %v4665
  %v4677 = vadd.f32 %v4346, %v4667
  %v4678 = vadd.f32 %v4347, %v4669
  %s4679 = scalar_lea.vmem %s4, 96
  %v4680 = vld [vmem:[%s4679] sm:$0xf]
  %v4681 = vld [vmem:[%s4679 + $0x4] sm:$0xf]
  %v4682 = vld [vmem:[%s4679 + $0x8] sm:$0xf]
  %v4683 = vld [vmem:[%s4679 + $0xc] sm:$0xf]
  %v4688 = vunpack.c.l.b16 %v4680
  %v4689 = vunpack.c.l.b16 %v4681
  %v4690 = vunpack.c.l.b16 %v4682
  %v4691 = vunpack.c.l.b16 %v4683
  %v4692 = vpack.c.b16 %v4689, %v4688
  %v4693 = vpack.c.b16 %v4691, %v4690
  %v4695 = vsel %vm2245, %v4692, 0
  %v4698 = vsel %vm2245, %v4693, 0
  %4700 = vmatprep.subr.bf16.mxu0 0
  %4701 = vmatpush1.bf16.msra.mxu0 0
  %4702 = vmatprep.subr.bf16.mxu0 0
  %4703 = vmatpush1.bf16.msra.mxu0 0
  %4704 = vmatprep.subr.bf16.mxu0 0
  %4705 = vmatpush1.bf16.msra.mxu0 0
  %4706 = vmatprep.subr.bf16.mxu0 0
  %4707 = vmatpush1.bf16.msra.mxu0 0
  %4708 = vmatprep.subr.bf16.mxu0 0
  %4709 = vmatpush1.bf16.msra.mxu0 0
  %4710 = vmatprep.subr.bf16.mxu0 0
  %4711 = vmatpush1.bf16.msra.mxu0 0
  %4712 = vmatprep.subr.bf16.mxu0 %v2709
  %4713 = vmatpush1.bf16.msra.mxu0 %v2708
  %4714 = vmatprep.subr.bf16.mxu0 %v2707
  %4715 = vmatpush1.bf16.msra.mxu0 %v2706
  %4716 = vmatprep.subr.bf16.mxu0 0
  %4717 = vmatpush2.bf16.msra.mxu0 0
  %4718 = vmatprep.subr.bf16.mxu0 0
  %4719 = vmatpush2.bf16.msra.mxu0 0
  %4720 = vmatprep.subr.bf16.mxu0 0
  %4721 = vmatpush2.bf16.msra.mxu0 0
  %4722 = vmatprep.subr.bf16.mxu0 0
  %4723 = vmatpush2.bf16.msra.mxu0 0
  %4724 = vmatprep.subr.bf16.mxu0 0
  %4725 = vmatpush2.bf16.msra.mxu0 0
  %4726 = vmatprep.subr.bf16.mxu0 0
  %4727 = vmatpush2.bf16.msra.mxu0 0
  %4728 = vmatprep.subr.bf16.mxu0 0
  %4729 = vmatpush2.bf16.msra.mxu0 0
  %4730 = vmatprep.subr.bf16.mxu0 0
  %4731 = vmatpush2.bf16.msra.mxu0 0
  %4732 = vmatprep.mubr.bf16.mxu0 0
  %4733 = vmatmul.mubr.bf16.gmra.mxu0 %v4695
  %v4734 = vpop.f32.mrf.mxu0
  %v4735 = vadd.f32 0.0, %v4734
  %v4736 = vpop.f32.mrf.mxu0
  %v4737 = vadd.f32 0.0, %v4736
  %v4738 = vpop.f32.mrf.mxu0
  %v4739 = vadd.f32 0.0, %v4738
  %v4740 = vpop.f32.mrf.mxu0
  %v4741 = vadd.f32 0.0, %v4740
  %4742 = vmatprep.mubr.bf16.mxu0 0
  %4743 = vmatmul.mubr.bf16.gmra.mxu0 %v4698
  %v4744 = vpop.f32.mrf.mxu0
  %v4745 = vadd.f32 0.0, %v4744
  %v4746 = vpop.f32.mrf.mxu0
  %v4747 = vadd.f32 0.0, %v4746
  %v4748 = vpop.f32.mrf.mxu0
  %v4749 = vadd.f32 0.0, %v4748
  %v4750 = vpop.f32.mrf.mxu0
  %v4751 = vadd.f32 0.0, %v4750
  %4752 = vdwg.mxu0
  %v4753 = vpack.c.bf16 %v4739, %v4735
  %v4754 = vpack.c.bf16 %v4741, %v4737
  %v4755 = vpack.c.bf16 %v4749, %v4745
  %v4756 = vpack.c.bf16 %v4751, %v4747
  %v4757 = vld [vmem:[%s2 + $0x600] sm:$0xff]
  %v4758 = vld [vmem:[%s2 + $0x608] sm:$0xff]
  %v4759 = vld [vmem:[%s2 + $0x610] sm:$0xff]
  %v4760 = vld [vmem:[%s2 + $0x618] sm:$0xff]
  %v4761 = vld [vmem:[%s2 + $0x620] sm:$0xff]
  %v4762 = vld [vmem:[%s2 + $0x628] sm:$0xff]
  %v4763 = vld [vmem:[%s2 + $0x630] sm:$0xff]
  %v4764 = vld [vmem:[%s2 + $0x638] sm:$0xff]
  %v4765 = vld [vmem:[%s2 + $0x640] sm:$0xff]
  %v4766 = vld [vmem:[%s2 + $0x648] sm:$0xff]
  %v4767 = vld [vmem:[%s2 + $0x650] sm:$0xff]
  %v4768 = vld [vmem:[%s2 + $0x658] sm:$0xff]
  %v4769 = vld [vmem:[%s2 + $0x660] sm:$0xff]
  %v4770 = vld [vmem:[%s2 + $0x668] sm:$0xff]
  %v4771 = vld [vmem:[%s2 + $0x670] sm:$0xff]
  %v4772 = vld [vmem:[%s2 + $0x678] sm:$0xff]
  %v4773 = vld [vmem:[%s2 + $0x680] sm:$0xff]
  %v4774 = vld [vmem:[%s2 + $0x688] sm:$0xff]
  %v4775 = vld [vmem:[%s2 + $0x690] sm:$0xff]
  %v4776 = vld [vmem:[%s2 + $0x698] sm:$0xff]
  %v4777 = vld [vmem:[%s2 + $0x6a0] sm:$0xff]
  %v4778 = vld [vmem:[%s2 + $0x6a8] sm:$0xff]
  %v4779 = vld [vmem:[%s2 + $0x6b0] sm:$0xff]
  %v4780 = vld [vmem:[%s2 + $0x6b8] sm:$0xff]
  %v4781 = vld [vmem:[%s2 + $0x6c0] sm:$0xff]
  %v4782 = vld [vmem:[%s2 + $0x6c8] sm:$0xff]
  %v4783 = vld [vmem:[%s2 + $0x6d0] sm:$0xff]
  %v4784 = vld [vmem:[%s2 + $0x6d8] sm:$0xff]
  %v4785 = vld [vmem:[%s2 + $0x6e0] sm:$0xff]
  %v4786 = vld [vmem:[%s2 + $0x6e8] sm:$0xff]
  %v4787 = vld [vmem:[%s2 + $0x6f0] sm:$0xff]
  %v4788 = vld [vmem:[%s2 + $0x6f8] sm:$0xff]
  %v4821 = vunpack.c.l.b16 %v4757
  %v4822 = vunpack.c.h.b16 %v4757
  %v4823 = vunpack.c.l.b16 %v4758
  %v4824 = vunpack.c.h.b16 %v4758
  %v4825 = vunpack.c.l.b16 %v4759
  %v4826 = vunpack.c.h.b16 %v4759
  %v4827 = vunpack.c.l.b16 %v4760
  %v4828 = vunpack.c.h.b16 %v4760
  %v4829 = vunpack.c.l.b16 %v4761
  %v4830 = vunpack.c.h.b16 %v4761
  %v4831 = vunpack.c.l.b16 %v4762
  %v4832 = vunpack.c.h.b16 %v4762
  %v4833 = vunpack.c.l.b16 %v4763
  %v4834 = vunpack.c.h.b16 %v4763
  %v4835 = vunpack.c.l.b16 %v4764
  %v4836 = vunpack.c.h.b16 %v4764
  %v4837 = vunpack.c.l.b16 %v4765
  %v4838 = vunpack.c.h.b16 %v4765
  %v4839 = vunpack.c.l.b16 %v4766
  %v4840 = vunpack.c.h.b16 %v4766
  %v4841 = vunpack.c.l.b16 %v4767
  %v4842 = vunpack.c.h.b16 %v4767
  %v4843 = vunpack.c.l.b16 %v4768
  %v4844 = vunpack.c.h.b16 %v4768
  %v4845 = vunpack.c.l.b16 %v4769
  %v4846 = vunpack.c.h.b16 %v4769
  %v4847 = vunpack.c.l.b16 %v4770
  %v4848 = vunpack.c.h.b16 %v4770
  %v4849 = vunpack.c.l.b16 %v4771
  %v4850 = vunpack.c.h.b16 %v4771
  %v4851 = vunpack.c.l.b16 %v4772
  %v4852 = vunpack.c.h.b16 %v4772
  %v4853 = vunpack.c.l.b16 %v4773
  %v4854 = vunpack.c.h.b16 %v4773
  %v4855 = vunpack.c.l.b16 %v4774
  %v4856 = vunpack.c.h.b16 %v4774
  %v4857 = vunpack.c.l.b16 %v4775
  %v4858 = vunpack.c.h.b16 %v4775
  %v4859 = vunpack.c.l.b16 %v4776
  %v4860 = vunpack.c.h.b16 %v4776
  %v4861 = vunpack.c.l.b16 %v4777
  %v4862 = vunpack.c.h.b16 %v4777
  %v4863 = vunpack.c.l.b16 %v4778
  %v4864 = vunpack.c.h.b16 %v4778
  %v4865 = vunpack.c.l.b16 %v4779
  %v4866 = vunpack.c.h.b16 %v4779
  %v4867 = vunpack.c.l.b16 %v4780
  %v4868 = vunpack.c.h.b16 %v4780
  %v4869 = vunpack.c.l.b16 %v4781
  %v4870 = vunpack.c.h.b16 %v4781
  %v4871 = vunpack.c.l.b16 %v4782
  %v4872 = vunpack.c.h.b16 %v4782
  %v4873 = vunpack.c.l.b16 %v4783
  %v4874 = vunpack.c.h.b16 %v4783
  %v4875 = vunpack.c.l.b16 %v4784
  %v4876 = vunpack.c.h.b16 %v4784
  %v4877 = vunpack.c.l.b16 %v4785
  %v4878 = vunpack.c.h.b16 %v4785
  %v4879 = vunpack.c.l.b16 %v4786
  %v4880 = vunpack.c.h.b16 %v4786
  %v4881 = vunpack.c.l.b16 %v4787
  %v4882 = vunpack.c.h.b16 %v4787
  %v4883 = vunpack.c.l.b16 %v4788
  %v4884 = vunpack.c.h.b16 %v4788
  %v4885 = vpack.c.b16 %v4823, %v4821
  %v4886 = vpack.c.b16 %v4824, %v4822
  %v4887 = vpack.c.b16 %v4827, %v4825
  %v4888 = vpack.c.b16 %v4828, %v4826
  %v4889 = vpack.c.b16 %v4831, %v4829
  %v4890 = vpack.c.b16 %v4832, %v4830
  %v4891 = vpack.c.b16 %v4835, %v4833
  %v4892 = vpack.c.b16 %v4836, %v4834
  %v4893 = vpack.c.b16 %v4839, %v4837
  %v4894 = vpack.c.b16 %v4840, %v4838
  %v4895 = vpack.c.b16 %v4843, %v4841
  %v4896 = vpack.c.b16 %v4844, %v4842
  %v4897 = vpack.c.b16 %v4847, %v4845
  %v4898 = vpack.c.b16 %v4848, %v4846
  %v4899 = vpack.c.b16 %v4851, %v4849
  %v4900 = vpack.c.b16 %v4852, %v4850
  %v4901 = vpack.c.b16 %v4855, %v4853
  %v4902 = vpack.c.b16 %v4856, %v4854
  %v4903 = vpack.c.b16 %v4859, %v4857
  %v4904 = vpack.c.b16 %v4860, %v4858
  %v4905 = vpack.c.b16 %v4863, %v4861
  %v4906 = vpack.c.b16 %v4864, %v4862
  %v4907 = vpack.c.b16 %v4867, %v4865
  %v4908 = vpack.c.b16 %v4868, %v4866
  %v4909 = vpack.c.b16 %v4871, %v4869
  %v4910 = vpack.c.b16 %v4872, %v4870
  %v4911 = vpack.c.b16 %v4875, %v4873
  %v4912 = vpack.c.b16 %v4876, %v4874
  %v4913 = vpack.c.b16 %v4879, %v4877
  %v4914 = vpack.c.b16 %v4880, %v4878
  %v4915 = vpack.c.b16 %v4883, %v4881
  %v4916 = vpack.c.b16 %v4884, %v4882
  %4949 = vmatprep.subr.bf16.mxu0 %v4900
  %4950 = vmatpush1.bf16.msra.mxu0 %v4899
  %4951 = vmatprep.subr.bf16.mxu0 %v4898
  %4952 = vmatpush1.bf16.msra.mxu0 %v4897
  %4953 = vmatprep.subr.bf16.mxu0 %v4896
  %4954 = vmatpush1.bf16.msra.mxu0 %v4895
  %4955 = vmatprep.subr.bf16.mxu0 %v4894
  %4956 = vmatpush1.bf16.msra.mxu0 %v4893
  %4957 = vmatprep.subr.bf16.mxu0 %v4892
  %4958 = vmatpush1.bf16.msra.mxu0 %v4891
  %4959 = vmatprep.subr.bf16.mxu0 %v4890
  %4960 = vmatpush1.bf16.msra.mxu0 %v4889
  %4961 = vmatprep.subr.bf16.mxu0 %v4888
  %4962 = vmatpush1.bf16.msra.mxu0 %v4887
  %4963 = vmatprep.subr.bf16.mxu0 %v4886
  %4964 = vmatpush1.bf16.msra.mxu0 %v4885
  %4965 = vmatprep.subr.bf16.mxu0 %v4916
  %4966 = vmatpush2.bf16.msra.mxu0 %v4915
  %4967 = vmatprep.subr.bf16.mxu0 %v4914
  %4968 = vmatpush2.bf16.msra.mxu0 %v4913
  %4969 = vmatprep.subr.bf16.mxu0 %v4912
  %4970 = vmatpush2.bf16.msra.mxu0 %v4911
  %4971 = vmatprep.subr.bf16.mxu0 %v4910
  %4972 = vmatpush2.bf16.msra.mxu0 %v4909
  %4973 = vmatprep.subr.bf16.mxu0 %v4908
  %4974 = vmatpush2.bf16.msra.mxu0 %v4907
  %4975 = vmatprep.subr.bf16.mxu0 %v4906
  %4976 = vmatpush2.bf16.msra.mxu0 %v4905
  %4977 = vmatprep.subr.bf16.mxu0 %v4904
  %4978 = vmatpush2.bf16.msra.mxu0 %v4903
  %4979 = vmatprep.subr.bf16.mxu0 %v4902
  %4980 = vmatpush2.bf16.msra.mxu0 %v4901
  %4981 = vmatprep.mubr.bf16.mxu0 %v4754
  %4982 = vmatmul.mubr.bf16.gmra.mxu0 %v4753
  %v4983 = vpop.f32.mrf.mxu0
  %v4984 = vadd.f32 0.0, %v4983
  %v4985 = vpop.f32.mrf.mxu0
  %v4986 = vadd.f32 0.0, %v4985
  %v4987 = vpop.f32.mrf.mxu0
  %v4988 = vadd.f32 0.0, %v4987
  %v4989 = vpop.f32.mrf.mxu0
  %v4990 = vadd.f32 0.0, %v4989
  %4991 = vmatprep.mubr.bf16.mxu0 %v4756
  %4992 = vmatmul.mubr.bf16.gmra.mxu0 %v4755
  %v4993 = vpop.f32.mrf.mxu0
  %v4994 = vadd.f32 0.0, %v4993
  %v4995 = vpop.f32.mrf.mxu0
  %v4996 = vadd.f32 0.0, %v4995
  %v4997 = vpop.f32.mrf.mxu0
  %v4998 = vadd.f32 0.0, %v4997
  %v4999 = vpop.f32.mrf.mxu0
  %v5000 = vadd.f32 0.0, %v4999
  %5001 = vdwg.mxu0
  %v5002 = vadd.f32 %v4671, %v4984
  %v5003 = vadd.f32 %v4672, %v4986
  %v5004 = vadd.f32 %v4673, %v4988
  %v5005 = vadd.f32 %v4674, %v4990
  %v5006 = vadd.f32 %v4675, %v4994
  %v5007 = vadd.f32 %v4676, %v4996
  %v5008 = vadd.f32 %v4677, %v4998
  %v5009 = vadd.f32 %v4678, %v5000
  %s5010 = scalar_lea.vmem %s4, 112
  %v5011 = vld [vmem:[%s5010] sm:$0xf]
  %v5012 = vld [vmem:[%s5010 + $0x4] sm:$0xf]
  %v5013 = vld [vmem:[%s5010 + $0x8] sm:$0xf]
  %v5014 = vld [vmem:[%s5010 + $0xc] sm:$0xf]
  %v5019 = vunpack.c.l.b16 %v5011
  %v5020 = vunpack.c.l.b16 %v5012
  %v5021 = vunpack.c.l.b16 %v5013
  %v5022 = vunpack.c.l.b16 %v5014
  %v5023 = vpack.c.b16 %v5020, %v5019
  %v5024 = vpack.c.b16 %v5022, %v5021
  %v5026 = vsel %vm2245, %v5023, 0
  %v5029 = vsel %vm2245, %v5024, 0
  %5031 = vmatprep.subr.bf16.mxu0 0
  %5032 = vmatpush1.bf16.msra.mxu0 0
  %5033 = vmatprep.subr.bf16.mxu0 0
  %5034 = vmatpush1.bf16.msra.mxu0 0
  %5035 = vmatprep.subr.bf16.mxu0 0
  %5036 = vmatpush1.bf16.msra.mxu0 0
  %5037 = vmatprep.subr.bf16.mxu0 0
  %5038 = vmatpush1.bf16.msra.mxu0 0
  %5039 = vmatprep.subr.bf16.mxu0 0
  %5040 = vmatpush1.bf16.msra.mxu0 0
  %5041 = vmatprep.subr.bf16.mxu0 0
  %5042 = vmatpush1.bf16.msra.mxu0 0
  %5043 = vmatprep.subr.bf16.mxu0 %v2709
  %5044 = vmatpush1.bf16.msra.mxu0 %v2708
  %5045 = vmatprep.subr.bf16.mxu0 %v2707
  %5046 = vmatpush1.bf16.msra.mxu0 %v2706
  %5047 = vmatprep.subr.bf16.mxu0 0
  %5048 = vmatpush2.bf16.msra.mxu0 0
  %5049 = vmatprep.subr.bf16.mxu0 0
  %5050 = vmatpush2.bf16.msra.mxu0 0
  %5051 = vmatprep.subr.bf16.mxu0 0
  %5052 = vmatpush2.bf16.msra.mxu0 0
  %5053 = vmatprep.subr.bf16.mxu0 0
  %5054 = vmatpush2.bf16.msra.mxu0 0
  %5055 = vmatprep.subr.bf16.mxu0 0
  %5056 = vmatpush2.bf16.msra.mxu0 0
  %5057 = vmatprep.subr.bf16.mxu0 0
  %5058 = vmatpush2.bf16.msra.mxu0 0
  %5059 = vmatprep.subr.bf16.mxu0 0
  %5060 = vmatpush2.bf16.msra.mxu0 0
  %5061 = vmatprep.subr.bf16.mxu0 0
  %5062 = vmatpush2.bf16.msra.mxu0 0
  %5063 = vmatprep.mubr.bf16.mxu0 0
  %5064 = vmatmul.mubr.bf16.gmra.mxu0 %v5026
  %v5065 = vpop.f32.mrf.mxu0
  %v5066 = vadd.f32 0.0, %v5065
  %v5067 = vpop.f32.mrf.mxu0
  %v5068 = vadd.f32 0.0, %v5067
  %v5069 = vpop.f32.mrf.mxu0
  %v5070 = vadd.f32 0.0, %v5069
  %v5071 = vpop.f32.mrf.mxu0
  %v5072 = vadd.f32 0.0, %v5071
  %5073 = vmatprep.mubr.bf16.mxu0 0
  %5074 = vmatmul.mubr.bf16.gmra.mxu0 %v5029
  %v5075 = vpop.f32.mrf.mxu0
  %v5076 = vadd.f32 0.0, %v5075
  %v5077 = vpop.f32.mrf.mxu0
  %v5078 = vadd.f32 0.0, %v5077
  %v5079 = vpop.f32.mrf.mxu0
  %v5080 = vadd.f32 0.0, %v5079
  %v5081 = vpop.f32.mrf.mxu0
  %v5082 = vadd.f32 0.0, %v5081
  %5083 = vdwg.mxu0
  %v5084 = vpack.c.bf16 %v5070, %v5066
  %v5085 = vpack.c.bf16 %v5072, %v5068
  %v5086 = vpack.c.bf16 %v5080, %v5076
  %v5087 = vpack.c.bf16 %v5082, %v5078
  %v5088 = vld [vmem:[%s2 + $0x700] sm:$0xff]
  %v5089 = vld [vmem:[%s2 + $0x708] sm:$0xff]
  %v5090 = vld [vmem:[%s2 + $0x710] sm:$0xff]
  %v5091 = vld [vmem:[%s2 + $0x718] sm:$0xff]
  %v5092 = vld [vmem:[%s2 + $0x720] sm:$0xff]
  %v5093 = vld [vmem:[%s2 + $0x728] sm:$0xff]
  %v5094 = vld [vmem:[%s2 + $0x730] sm:$0xff]
  %v5095 = vld [vmem:[%s2 + $0x738] sm:$0xff]
  %v5096 = vld [vmem:[%s2 + $0x740] sm:$0xff]
  %v5097 = vld [vmem:[%s2 + $0x748] sm:$0xff]
  %v5098 = vld [vmem:[%s2 + $0x750] sm:$0xff]
  %v5099 = vld [vmem:[%s2 + $0x758] sm:$0xff]
  %v5100 = vld [vmem:[%s2 + $0x760] sm:$0xff]
  %v5101 = vld [vmem:[%s2 + $0x768] sm:$0xff]
  %v5102 = vld [vmem:[%s2 + $0x770] sm:$0xff]
  %v5103 = vld [vmem:[%s2 + $0x778] sm:$0xff]
  %v5104 = vld [vmem:[%s2 + $0x780] sm:$0xff]
  %v5105 = vld [vmem:[%s2 + $0x788] sm:$0xff]
  %v5106 = vld [vmem:[%s2 + $0x790] sm:$0xff]
  %v5107 = vld [vmem:[%s2 + $0x798] sm:$0xff]
  %v5108 = vld [vmem:[%s2 + $0x7a0] sm:$0xff]
  %v5109 = vld [vmem:[%s2 + $0x7a8] sm:$0xff]
  %v5110 = vld [vmem:[%s2 + $0x7b0] sm:$0xff]
  %v5111 = vld [vmem:[%s2 + $0x7b8] sm:$0xff]
  %v5112 = vld [vmem:[%s2 + $0x7c0] sm:$0xff]
  %v5113 = vld [vmem:[%s2 + $0x7c8] sm:$0xff]
  %v5114 = vld [vmem:[%s2 + $0x7d0] sm:$0xff]
  %v5115 = vld [vmem:[%s2 + $0x7d8] sm:$0xff]
  %v5116 = vld [vmem:[%s2 + $0x7e0] sm:$0xff]
  %v5117 = vld [vmem:[%s2 + $0x7e8] sm:$0xff]
  %v5118 = vld [vmem:[%s2 + $0x7f0] sm:$0xff]
  %v5119 = vld [vmem:[%s2 + $0x7f8] sm:$0xff]
  %v5152 = vunpack.c.l.b16 %v5088
  %v5153 = vunpack.c.h.b16 %v5088
  %v5154 = vunpack.c.l.b16 %v5089
  %v5155 = vunpack.c.h.b16 %v5089
  %v5156 = vunpack.c.l.b16 %v5090
  %v5157 = vunpack.c.h.b16 %v5090
  %v5158 = vunpack.c.l.b16 %v5091
  %v5159 = vunpack.c.h.b16 %v5091
  %v5160 = vunpack.c.l.b16 %v5092
  %v5161 = vunpack.c.h.b16 %v5092
  %v5162 = vunpack.c.l.b16 %v5093
  %v5163 = vunpack.c.h.b16 %v5093
  %v5164 = vunpack.c.l.b16 %v5094
  %v5165 = vunpack.c.h.b16 %v5094
  %v5166 = vunpack.c.l.b16 %v5095
  %v5167 = vunpack.c.h.b16 %v5095
  %v5168 = vunpack.c.l.b16 %v5096
  %v5169 = vunpack.c.h.b16 %v5096
  %v5170 = vunpack.c.l.b16 %v5097
  %v5171 = vunpack.c.h.b16 %v5097
  %v5172 = vunpack.c.l.b16 %v5098
  %v5173 = vunpack.c.h.b16 %v5098
  %v5174 = vunpack.c.l.b16 %v5099
  %v5175 = vunpack.c.h.b16 %v5099
  %v5176 = vunpack.c.l.b16 %v5100
  %v5177 = vunpack.c.h.b16 %v5100
  %v5178 = vunpack.c.l.b16 %v5101
  %v5179 = vunpack.c.h.b16 %v5101
  %v5180 = vunpack.c.l.b16 %v5102
  %v5181 = vunpack.c.h.b16 %v5102
  %v5182 = vunpack.c.l.b16 %v5103
  %v5183 = vunpack.c.h.b16 %v5103
  %v5184 = vunpack.c.l.b16 %v5104
  %v5185 = vunpack.c.h.b16 %v5104
  %v5186 = vunpack.c.l.b16 %v5105
  %v5187 = vunpack.c.h.b16 %v5105
  %v5188 = vunpack.c.l.b16 %v5106
  %v5189 = vunpack.c.h.b16 %v5106
  %v5190 = vunpack.c.l.b16 %v5107
  %v5191 = vunpack.c.h.b16 %v5107
  %v5192 = vunpack.c.l.b16 %v5108
  %v5193 = vunpack.c.h.b16 %v5108
  %v5194 = vunpack.c.l.b16 %v5109
  %v5195 = vunpack.c.h.b16 %v5109
  %v5196 = vunpack.c.l.b16 %v5110
  %v5197 = vunpack.c.h.b16 %v5110
  %v5198 = vunpack.c.l.b16 %v5111
  %v5199 = vunpack.c.h.b16 %v5111
  %v5200 = vunpack.c.l.b16 %v5112
  %v5201 = vunpack.c.h.b16 %v5112
  %v5202 = vunpack.c.l.b16 %v5113
  %v5203 = vunpack.c.h.b16 %v5113
  %v5204 = vunpack.c.l.b16 %v5114
  %v5205 = vunpack.c.h.b16 %v5114
  %v5206 = vunpack.c.l.b16 %v5115
  %v5207 = vunpack.c.h.b16 %v5115
  %v5208 = vunpack.c.l.b16 %v5116
  %v5209 = vunpack.c.h.b16 %v5116
  %v5210 = vunpack.c.l.b16 %v5117
  %v5211 = vunpack.c.h.b16 %v5117
  %v5212 = vunpack.c.l.b16 %v5118
  %v5213 = vunpack.c.h.b16 %v5118
  %v5214 = vunpack.c.l.b16 %v5119
  %v5215 = vunpack.c.h.b16 %v5119
  %v5216 = vpack.c.b16 %v5154, %v5152
  %v5217 = vpack.c.b16 %v5155, %v5153
  %v5218 = vpack.c.b16 %v5158, %v5156
  %v5219 = vpack.c.b16 %v5159, %v5157
  %v5220 = vpack.c.b16 %v5162, %v5160
  %v5221 = vpack.c.b16 %v5163, %v5161
  %v5222 = vpack.c.b16 %v5166, %v5164
  %v5223 = vpack.c.b16 %v5167, %v5165
  %v5224 = vpack.c.b16 %v5170, %v5168
  %v5225 = vpack.c.b16 %v5171, %v5169
  %v5226 = vpack.c.b16 %v5174, %v5172
  %v5227 = vpack.c.b16 %v5175, %v5173
  %v5228 = vpack.c.b16 %v5178, %v5176
  %v5229 = vpack.c.b16 %v5179, %v5177
  %v5230 = vpack.c.b16 %v5182, %v5180
  %v5231 = vpack.c.b16 %v5183, %v5181
  %v5232 = vpack.c.b16 %v5186, %v5184
  %v5233 = vpack.c.b16 %v5187, %v5185
  %v5234 = vpack.c.b16 %v5190, %v5188
  %v5235 = vpack.c.b16 %v5191, %v5189
  %v5236 = vpack.c.b16 %v5194, %v5192
  %v5237 = vpack.c.b16 %v5195, %v5193
  %v5238 = vpack.c.b16 %v5198, %v5196
  %v5239 = vpack.c.b16 %v5199, %v5197
  %v5240 = vpack.c.b16 %v5202, %v5200
  %v5241 = vpack.c.b16 %v5203, %v5201
  %v5242 = vpack.c.b16 %v5206, %v5204
  %v5243 = vpack.c.b16 %v5207, %v5205
  %v5244 = vpack.c.b16 %v5210, %v5208
  %v5245 = vpack.c.b16 %v5211, %v5209
  %v5246 = vpack.c.b16 %v5214, %v5212
  %v5247 = vpack.c.b16 %v5215, %v5213
  %5280 = vmatprep.subr.bf16.mxu0 %v5231
  %5281 = vmatpush1.bf16.msra.mxu0 %v5230
  %5282 = vmatprep.subr.bf16.mxu0 %v5229
  %5283 = vmatpush1.bf16.msra.mxu0 %v5228
  %5284 = vmatprep.subr.bf16.mxu0 %v5227
  %5285 = vmatpush1.bf16.msra.mxu0 %v5226
  %5286 = vmatprep.subr.bf16.mxu0 %v5225
  %5287 = vmatpush1.bf16.msra.mxu0 %v5224
  %5288 = vmatprep.subr.bf16.mxu0 %v5223
  %5289 = vmatpush1.bf16.msra.mxu0 %v5222
  %5290 = vmatprep.subr.bf16.mxu0 %v5221
  %5291 = vmatpush1.bf16.msra.mxu0 %v5220
  %5292 = vmatprep.subr.bf16.mxu0 %v5219
  %5293 = vmatpush1.bf16.msra.mxu0 %v5218
  %5294 = vmatprep.subr.bf16.mxu0 %v5217
  %5295 = vmatpush1.bf16.msra.mxu0 %v5216
  %5296 = vmatprep.subr.bf16.mxu0 %v5247
  %5297 = vmatpush2.bf16.msra.mxu0 %v5246
  %5298 = vmatprep.subr.bf16.mxu0 %v5245
  %5299 = vmatpush2.bf16.msra.mxu0 %v5244
  %5300 = vmatprep.subr.bf16.mxu0 %v5243
  %5301 = vmatpush2.bf16.msra.mxu0 %v5242
  %5302 = vmatprep.subr.bf16.mxu0 %v5241
  %5303 = vmatpush2.bf16.msra.mxu0 %v5240
  %5304 = vmatprep.subr.bf16.mxu0 %v5239
  %5305 = vmatpush2.bf16.msra.mxu0 %v5238
  %5306 = vmatprep.subr.bf16.mxu0 %v5237
  %5307 = vmatpush2.bf16.msra.mxu0 %v5236
  %5308 = vmatprep.subr.bf16.mxu0 %v5235
  %5309 = vmatpush2.bf16.msra.mxu0 %v5234
  %5310 = vmatprep.subr.bf16.mxu0 %v5233
  %5311 = vmatpush2.bf16.msra.mxu0 %v5232
  %5312 = vmatprep.mubr.bf16.mxu0 %v5085
  %5313 = vmatmul.mubr.bf16.gmra.mxu0 %v5084
  %v5314 = vpop.f32.mrf.mxu0
  %v5315 = vadd.f32 0.0, %v5314
  %v5316 = vpop.f32.mrf.mxu0
  %v5317 = vadd.f32 0.0, %v5316
  %v5318 = vpop.f32.mrf.mxu0
  %v5319 = vadd.f32 0.0, %v5318
  %v5320 = vpop.f32.mrf.mxu0
  %v5321 = vadd.f32 0.0, %v5320
  %5322 = vmatprep.mubr.bf16.mxu0 %v5087
  %5323 = vmatmul.mubr.bf16.gmra.mxu0 %v5086
  %v5324 = vpop.f32.mrf.mxu0
  %v5325 = vadd.f32 0.0, %v5324
  %v5326 = vpop.f32.mrf.mxu0
  %v5327 = vadd.f32 0.0, %v5326
  %v5328 = vpop.f32.mrf.mxu0
  %v5329 = vadd.f32 0.0, %v5328
  %v5330 = vpop.f32.mrf.mxu0
  %v5331 = vadd.f32 0.0, %v5330
  %5332 = vdwg.mxu0
  %v5333 = vadd.f32 %v5002, %v5315
  %v5334 = vadd.f32 %v5003, %v5317
  %v5335 = vadd.f32 %v5004, %v5319
  %v5336 = vadd.f32 %v5005, %v5321
  %v5337 = vadd.f32 %v5006, %v5325
  %v5338 = vadd.f32 %v5007, %v5327
  %v5339 = vadd.f32 %v5008, %v5329
  %v5340 = vadd.f32 %v5009, %v5331
  %s5341 = scalar_lea.vmem %s4, 128
  %v5342 = vld [vmem:[%s5341] sm:$0xf]
  %v5343 = vld [vmem:[%s5341 + $0x4] sm:$0xf]
  %v5344 = vld [vmem:[%s5341 + $0x8] sm:$0xf]
  %v5345 = vld [vmem:[%s5341 + $0xc] sm:$0xf]
  %v5350 = vunpack.c.l.b16 %v5342
  %v5351 = vunpack.c.l.b16 %v5343
  %v5352 = vunpack.c.l.b16 %v5344
  %v5353 = vunpack.c.l.b16 %v5345
  %v5354 = vpack.c.b16 %v5351, %v5350
  %v5355 = vpack.c.b16 %v5353, %v5352
  %v5357 = vsel %vm2245, %v5354, 0
  %v5360 = vsel %vm2245, %v5355, 0
  %5362 = vmatprep.subr.bf16.mxu0 0
  %5363 = vmatpush1.bf16.msra.mxu0 0
  %5364 = vmatprep.subr.bf16.mxu0 0
  %5365 = vmatpush1.bf16.msra.mxu0 0
  %5366 = vmatprep.subr.bf16.mxu0 0
  %5367 = vmatpush1.bf16.msra.mxu0 0
  %5368 = vmatprep.subr.bf16.mxu0 0
  %5369 = vmatpush1.bf16.msra.mxu0 0
  %5370 = vmatprep.subr.bf16.mxu0 0
  %5371 = vmatpush1.bf16.msra.mxu0 0
  %5372 = vmatprep.subr.bf16.mxu0 0
  %5373 = vmatpush1.bf16.msra.mxu0 0
  %5374 = vmatprep.subr.bf16.mxu0 %v2709
  %5375 = vmatpush1.bf16.msra.mxu0 %v2708
  %5376 = vmatprep.subr.bf16.mxu0 %v2707
  %5377 = vmatpush1.bf16.msra.mxu0 %v2706
  %5378 = vmatprep.subr.bf16.mxu0 0
  %5379 = vmatpush2.bf16.msra.mxu0 0
  %5380 = vmatprep.subr.bf16.mxu0 0
  %5381 = vmatpush2.bf16.msra.mxu0 0
  %5382 = vmatprep.subr.bf16.mxu0 0
  %5383 = vmatpush2.bf16.msra.mxu0 0
  %5384 = vmatprep.subr.bf16.mxu0 0
  %5385 = vmatpush2.bf16.msra.mxu0 0
  %5386 = vmatprep.subr.bf16.mxu0 0
  %5387 = vmatpush2.bf16.msra.mxu0 0
  %5388 = vmatprep.subr.bf16.mxu0 0
  %5389 = vmatpush2.bf16.msra.mxu0 0
  %5390 = vmatprep.subr.bf16.mxu0 0
  %5391 = vmatpush2.bf16.msra.mxu0 0
  %5392 = vmatprep.subr.bf16.mxu0 0
  %5393 = vmatpush2.bf16.msra.mxu0 0
  %5394 = vmatprep.mubr.bf16.mxu0 0
  %5395 = vmatmul.mubr.bf16.gmra.mxu0 %v5357
  %v5396 = vpop.f32.mrf.mxu0
  %v5397 = vadd.f32 0.0, %v5396
  %v5398 = vpop.f32.mrf.mxu0
  %v5399 = vadd.f32 0.0, %v5398
  %v5400 = vpop.f32.mrf.mxu0
  %v5401 = vadd.f32 0.0, %v5400
  %v5402 = vpop.f32.mrf.mxu0
  %v5403 = vadd.f32 0.0, %v5402
  %5404 = vmatprep.mubr.bf16.mxu0 0
  %5405 = vmatmul.mubr.bf16.gmra.mxu0 %v5360
  %v5406 = vpop.f32.mrf.mxu0
  %v5407 = vadd.f32 0.0, %v5406
  %v5408 = vpop.f32.mrf.mxu0
  %v5409 = vadd.f32 0.0, %v5408
  %v5410 = vpop.f32.mrf.mxu0
  %v5411 = vadd.f32 0.0, %v5410
  %v5412 = vpop.f32.mrf.mxu0
  %v5413 = vadd.f32 0.0, %v5412
  %5414 = vdwg.mxu0
  %v5415 = vpack.c.bf16 %v5401, %v5397
  %v5416 = vpack.c.bf16 %v5403, %v5399
  %v5417 = vpack.c.bf16 %v5411, %v5407
  %v5418 = vpack.c.bf16 %v5413, %v5409
  %v5419 = vld [vmem:[%s2 + $0x800] sm:$0xff]
  %v5420 = vld [vmem:[%s2 + $0x808] sm:$0xff]
  %v5421 = vld [vmem:[%s2 + $0x810] sm:$0xff]
  %v5422 = vld [vmem:[%s2 + $0x818] sm:$0xff]
  %v5423 = vld [vmem:[%s2 + $0x820] sm:$0xff]
  %v5424 = vld [vmem:[%s2 + $0x828] sm:$0xff]
  %v5425 = vld [vmem:[%s2 + $0x830] sm:$0xff]
  %v5426 = vld [vmem:[%s2 + $0x838] sm:$0xff]
  %v5427 = vld [vmem:[%s2 + $0x840] sm:$0xff]
  %v5428 = vld [vmem:[%s2 + $0x848] sm:$0xff]
  %v5429 = vld [vmem:[%s2 + $0x850] sm:$0xff]
  %v5430 = vld [vmem:[%s2 + $0x858] sm:$0xff]
  %v5431 = vld [vmem:[%s2 + $0x860] sm:$0xff]
  %v5432 = vld [vmem:[%s2 + $0x868] sm:$0xff]
  %v5433 = vld [vmem:[%s2 + $0x870] sm:$0xff]
  %v5434 = vld [vmem:[%s2 + $0x878] sm:$0xff]
  %v5435 = vld [vmem:[%s2 + $0x880] sm:$0xff]
  %v5436 = vld [vmem:[%s2 + $0x888] sm:$0xff]
  %v5437 = vld [vmem:[%s2 + $0x890] sm:$0xff]
  %v5438 = vld [vmem:[%s2 + $0x898] sm:$0xff]
  %v5439 = vld [vmem:[%s2 + $0x8a0] sm:$0xff]
  %v5440 = vld [vmem:[%s2 + $0x8a8] sm:$0xff]
  %v5441 = vld [vmem:[%s2 + $0x8b0] sm:$0xff]
  %v5442 = vld [vmem:[%s2 + $0x8b8] sm:$0xff]
  %v5443 = vld [vmem:[%s2 + $0x8c0] sm:$0xff]
  %v5444 = vld [vmem:[%s2 + $0x8c8] sm:$0xff]
  %v5445 = vld [vmem:[%s2 + $0x8d0] sm:$0xff]
  %v5446 = vld [vmem:[%s2 + $0x8d8] sm:$0xff]
  %v5447 = vld [vmem:[%s2 + $0x8e0] sm:$0xff]
  %v5448 = vld [vmem:[%s2 + $0x8e8] sm:$0xff]
  %v5449 = vld [vmem:[%s2 + $0x8f0] sm:$0xff]
  %v5450 = vld [vmem:[%s2 + $0x8f8] sm:$0xff]
  %v5483 = vunpack.c.l.b16 %v5419
  %v5484 = vunpack.c.h.b16 %v5419
  %v5485 = vunpack.c.l.b16 %v5420
  %v5486 = vunpack.c.h.b16 %v5420
  %v5487 = vunpack.c.l.b16 %v5421
  %v5488 = vunpack.c.h.b16 %v5421
  %v5489 = vunpack.c.l.b16 %v5422
  %v5490 = vunpack.c.h.b16 %v5422
  %v5491 = vunpack.c.l.b16 %v5423
  %v5492 = vunpack.c.h.b16 %v5423
  %v5493 = vunpack.c.l.b16 %v5424
  %v5494 = vunpack.c.h.b16 %v5424
  %v5495 = vunpack.c.l.b16 %v5425
  %v5496 = vunpack.c.h.b16 %v5425
  %v5497 = vunpack.c.l.b16 %v5426
  %v5498 = vunpack.c.h.b16 %v5426
  %v5499 = vunpack.c.l.b16 %v5427
  %v5500 = vunpack.c.h.b16 %v5427
  %v5501 = vunpack.c.l.b16 %v5428
  %v5502 = vunpack.c.h.b16 %v5428
  %v5503 = vunpack.c.l.b16 %v5429
  %v5504 = vunpack.c.h.b16 %v5429
  %v5505 = vunpack.c.l.b16 %v5430
  %v5506 = vunpack.c.h.b16 %v5430
  %v5507 = vunpack.c.l.b16 %v5431
  %v5508 = vunpack.c.h.b16 %v5431
  %v5509 = vunpack.c.l.b16 %v5432
  %v5510 = vunpack.c.h.b16 %v5432
  %v5511 = vunpack.c.l.b16 %v5433
  %v5512 = vunpack.c.h.b16 %v5433
  %v5513 = vunpack.c.l.b16 %v5434
  %v5514 = vunpack.c.h.b16 %v5434
  %v5515 = vunpack.c.l.b16 %v5435
  %v5516 = vunpack.c.h.b16 %v5435
  %v5517 = vunpack.c.l.b16 %v5436
  %v5518 = vunpack.c.h.b16 %v5436
  %v5519 = vunpack.c.l.b16 %v5437
  %v5520 = vunpack.c.h.b16 %v5437
  %v5521 = vunpack.c.l.b16 %v5438
  %v5522 = vunpack.c.h.b16 %v5438
  %v5523 = vunpack.c.l.b16 %v5439
  %v5524 = vunpack.c.h.b16 %v5439
  %v5525 = vunpack.c.l.b16 %v5440
  %v5526 = vunpack.c.h.b16 %v5440
  %v5527 = vunpack.c.l.b16 %v5441
  %v5528 = vunpack.c.h.b16 %v5441
  %v5529 = vunpack.c.l.b16 %v5442
  %v5530 = vunpack.c.h.b16 %v5442
  %v5531 = vunpack.c.l.b16 %v5443
  %v5532 = vunpack.c.h.b16 %v5443
  %v5533 = vunpack.c.l.b16 %v5444
  %v5534 = vunpack.c.h.b16 %v5444
  %v5535 = vunpack.c.l.b16 %v5445
  %v5536 = vunpack.c.h.b16 %v5445
  %v5537 = vunpack.c.l.b16 %v5446
  %v5538 = vunpack.c.h.b16 %v5446
  %v5539 = vunpack.c.l.b16 %v5447
  %v5540 = vunpack.c.h.b16 %v5447
  %v5541 = vunpack.c.l.b16 %v5448
  %v5542 = vunpack.c.h.b16 %v5448
  %v5543 = vunpack.c.l.b16 %v5449
  %v5544 = vunpack.c.h.b16 %v5449
  %v5545 = vunpack.c.l.b16 %v5450
  %v5546 = vunpack.c.h.b16 %v5450
  %v5547 = vpack.c.b16 %v5485, %v5483
  %v5548 = vpack.c.b16 %v5486, %v5484
  %v5549 = vpack.c.b16 %v5489, %v5487
  %v5550 = vpack.c.b16 %v5490, %v5488
  %v5551 = vpack.c.b16 %v5493, %v5491
  %v5552 = vpack.c.b16 %v5494, %v5492
  %v5553 = vpack.c.b16 %v5497, %v5495
  %v5554 = vpack.c.b16 %v5498, %v5496
  %v5555 = vpack.c.b16 %v5501, %v5499
  %v5556 = vpack.c.b16 %v5502, %v5500
  %v5557 = vpack.c.b16 %v5505, %v5503
  %v5558 = vpack.c.b16 %v5506, %v5504
  %v5559 = vpack.c.b16 %v5509, %v5507
  %v5560 = vpack.c.b16 %v5510, %v5508
  %v5561 = vpack.c.b16 %v5513, %v5511
  %v5562 = vpack.c.b16 %v5514, %v5512
  %v5563 = vpack.c.b16 %v5517, %v5515
  %v5564 = vpack.c.b16 %v5518, %v5516
  %v5565 = vpack.c.b16 %v5521, %v5519
  %v5566 = vpack.c.b16 %v5522, %v5520
  %v5567 = vpack.c.b16 %v5525, %v5523
  %v5568 = vpack.c.b16 %v5526, %v5524
  %v5569 = vpack.c.b16 %v5529, %v5527
  %v5570 = vpack.c.b16 %v5530, %v5528
  %v5571 = vpack.c.b16 %v5533, %v5531
  %v5572 = vpack.c.b16 %v5534, %v5532
  %v5573 = vpack.c.b16 %v5537, %v5535
  %v5574 = vpack.c.b16 %v5538, %v5536
  %v5575 = vpack.c.b16 %v5541, %v5539
  %v5576 = vpack.c.b16 %v5542, %v5540
  %v5577 = vpack.c.b16 %v5545, %v5543
  %v5578 = vpack.c.b16 %v5546, %v5544
  %5611 = vmatprep.subr.bf16.mxu0 %v5562
  %5612 = vmatpush1.bf16.msra.mxu0 %v5561
  %5613 = vmatprep.subr.bf16.mxu0 %v5560
  %5614 = vmatpush1.bf16.msra.mxu0 %v5559
  %5615 = vmatprep.subr.bf16.mxu0 %v5558
  %5616 = vmatpush1.bf16.msra.mxu0 %v5557
  %5617 = vmatprep.subr.bf16.mxu0 %v5556
  %5618 = vmatpush1.bf16.msra.mxu0 %v5555
  %5619 = vmatprep.subr.bf16.mxu0 %v5554
  %5620 = vmatpush1.bf16.msra.mxu0 %v5553
  %5621 = vmatprep.subr.bf16.mxu0 %v5552
  %5622 = vmatpush1.bf16.msra.mxu0 %v5551
  %5623 = vmatprep.subr.bf16.mxu0 %v5550
  %5624 = vmatpush1.bf16.msra.mxu0 %v5549
  %5625 = vmatprep.subr.bf16.mxu0 %v5548
  %5626 = vmatpush1.bf16.msra.mxu0 %v5547
  %5627 = vmatprep.subr.bf16.mxu0 %v5578
  %5628 = vmatpush2.bf16.msra.mxu0 %v5577
  %5629 = vmatprep.subr.bf16.mxu0 %v5576
  %5630 = vmatpush2.bf16.msra.mxu0 %v5575
  %5631 = vmatprep.subr.bf16.mxu0 %v5574
  %5632 = vmatpush2.bf16.msra.mxu0 %v5573
  %5633 = vmatprep.subr.bf16.mxu0 %v5572
  %5634 = vmatpush2.bf16.msra.mxu0 %v5571
  %5635 = vmatprep.subr.bf16.mxu0 %v5570
  %5636 = vmatpush2.bf16.msra.mxu0 %v5569
  %5637 = vmatprep.subr.bf16.mxu0 %v5568
  %5638 = vmatpush2.bf16.msra.mxu0 %v5567
  %5639 = vmatprep.subr.bf16.mxu0 %v5566
  %5640 = vmatpush2.bf16.msra.mxu0 %v5565
  %5641 = vmatprep.subr.bf16.mxu0 %v5564
  %5642 = vmatpush2.bf16.msra.mxu0 %v5563
  %5643 = vmatprep.mubr.bf16.mxu0 %v5416
  %5644 = vmatmul.mubr.bf16.gmra.mxu0 %v5415
  %v5645 = vpop.f32.mrf.mxu0
  %v5646 = vadd.f32 0.0, %v5645
  %v5647 = vpop.f32.mrf.mxu0
  %v5648 = vadd.f32 0.0, %v5647
  %v5649 = vpop.f32.mrf.mxu0
  %v5650 = vadd.f32 0.0, %v5649
  %v5651 = vpop.f32.mrf.mxu0
  %v5652 = vadd.f32 0.0, %v5651
  %5653 = vmatprep.mubr.bf16.mxu0 %v5418
  %5654 = vmatmul.mubr.bf16.gmra.mxu0 %v5417
  %v5655 = vpop.f32.mrf.mxu0
  %v5656 = vadd.f32 0.0, %v5655
  %v5657 = vpop.f32.mrf.mxu0
  %v5658 = vadd.f32 0.0, %v5657
  %v5659 = vpop.f32.mrf.mxu0
  %v5660 = vadd.f32 0.0, %v5659
  %v5661 = vpop.f32.mrf.mxu0
  %v5662 = vadd.f32 0.0, %v5661
  %5663 = vdwg.mxu0
  %v5664 = vadd.f32 %v5333, %v5646
  %v5665 = vadd.f32 %v5334, %v5648
  %v5666 = vadd.f32 %v5335, %v5650
  %v5667 = vadd.f32 %v5336, %v5652
  %v5668 = vadd.f32 %v5337, %v5656
  %v5669 = vadd.f32 %v5338, %v5658
  %v5670 = vadd.f32 %v5339, %v5660
  %v5671 = vadd.f32 %v5340, %v5662
  %s5672 = scalar_lea.vmem %s3, 16
  %v5673 = vld [vmem:[%s5672] ss:$8 sm:$0x3]
  %v5675 = vlaneseq
  %v5676 = vshrl.u32 %v5675, 7
  %v5677 = vsub.s32 0, %v5676
  %v5678 = vrot.slane %v5673, %v5677
  %v5679 = vlaneseq
  %v5680 = vshrl.u32 %v5679, 7
  %v5681 = vsub.s32 1, %v5680
  %v5682 = vrot.slane %v5673, %v5681
  %v5685 = vadd.f32 %v5664, %v5678
  %v5686 = vadd.f32 %v5665, %v5682
  %v5687 = vadd.f32 %v5666, %v5678
  %v5688 = vadd.f32 %v5667, %v5682
  %v5689 = vadd.f32 %v5668, %v5678
  %v5690 = vadd.f32 %v5669, %v5682
  %v5691 = vadd.f32 %v5670, %v5678
  %v5692 = vadd.f32 %v5671, %v5682
  %s5693 = scalar_lea.vmem %s3, 17
  %v5694 = vld [vmem:[%s5693] ss:$8 sm:$0x3]
  %s5695 = scalar_lea.vmem %s3, 18
  %v5696 = vld [vmem:[%s5695] ss:$8 sm:$0x3]
  %v5697 = vpack.c.bf16 %v5687, %v5685
  %v5698 = vpack.c.bf16 %v5688, %v5686
  %v5699 = vpack.c.bf16 %v5691, %v5689
  %v5700 = vpack.c.bf16 %v5692, %v5690
  %5701 = vmatprep.subr.bf16.mxu0 0
  %5702 = vmatpush1.bf16.msra.mxu0 0
  %5703 = vmatprep.subr.bf16.mxu0 0
  %5704 = vmatpush1.bf16.msra.mxu0 0
  %5705 = vmatprep.subr.bf16.mxu0 0
  %5706 = vmatpush1.bf16.msra.mxu0 0
  %5707 = vmatprep.subr.bf16.mxu0 0
  %5708 = vmatpush1.bf16.msra.mxu0 0
  %5709 = vmatprep.subr.bf16.mxu0 0
  %5710 = vmatpush1.bf16.msra.mxu0 0
  %5711 = vmatprep.subr.bf16.mxu0 0
  %5712 = vmatpush1.bf16.msra.mxu0 0
  %5713 = vmatprep.subr.bf16.mxu0 %v5700
  %5714 = vmatpush1.bf16.msra.mxu0 %v5699
  %5715 = vmatprep.subr.bf16.mxu0 %v5698
  %5716 = vmatpush1.bf16.msra.mxu0 %v5697
  %5717 = vmatprep.subr.bf16.mxu0 0
  %5718 = vmatpush2.bf16.msra.mxu0 0
  %5719 = vmatprep.subr.bf16.mxu0 0
  %5720 = vmatpush2.bf16.msra.mxu0 0
  %5721 = vmatprep.subr.bf16.mxu0 0
  %5722 = vmatpush2.bf16.msra.mxu0 0
  %5723 = vmatprep.subr.bf16.mxu0 0
  %5724 = vmatpush2.bf16.msra.mxu0 0
  %5725 = vmatprep.subr.bf16.mxu0 0
  %5726 = vmatpush2.bf16.msra.mxu0 0
  %5727 = vmatprep.subr.bf16.mxu0 0
  %5728 = vmatpush2.bf16.msra.mxu0 0
  %5729 = vmatprep.subr.bf16.mxu0 0
  %5730 = vmatpush2.bf16.msra.mxu0 0
  %5731 = vmatprep.subr.bf16.mxu0 0
  %5732 = vmatpush2.bf16.msra.mxu0 0
  %5733 = vmatprep.mubr.bf16.mxu0 0
  %5734 = vmatmul.mubr.bf16.gmra.mxu0 %v2247
  %v5735 = vpop.f32.mrf.mxu0
  %v5736 = vadd.f32 0.0, %v5735
  %v5737 = vpop.f32.mrf.mxu0
  %v5738 = vadd.f32 0.0, %v5737
  %v5739 = vpop.f32.mrf.mxu0
  %v5740 = vadd.f32 0.0, %v5739
  %v5741 = vpop.f32.mrf.mxu0
  %v5742 = vadd.f32 0.0, %v5741
  %5743 = vmatprep.mubr.bf16.mxu0 0
  %5744 = vmatmul.mubr.bf16.gmra.mxu0 %v2250
  %v5745 = vpop.f32.mrf.mxu0
  %v5746 = vadd.f32 0.0, %v5745
  %v5747 = vpop.f32.mrf.mxu0
  %v5748 = vadd.f32 0.0, %v5747
  %v5749 = vpop.f32.mrf.mxu0
  %v5750 = vadd.f32 0.0, %v5749
  %v5751 = vpop.f32.mrf.mxu0
  %v5752 = vadd.f32 0.0, %v5751
  %5753 = vdwg.mxu0
  %v5754 = vpack.c.bf16 %v5740, %v5736
  %v5755 = vpack.c.bf16 %v5742, %v5738
  %v5756 = vpack.c.bf16 %v5750, %v5746
  %v5757 = vpack.c.bf16 %v5752, %v5748
  %5758 = vmatprep.subr.bf16.mxu0 %v2420
  %5759 = vmatpush1.bf16.msra.mxu0 %v2419
  %5760 = vmatprep.subr.bf16.mxu0 %v2418
  %5761 = vmatpush1.bf16.msra.mxu0 %v2417
  %5762 = vmatprep.subr.bf16.mxu0 %v2416
  %5763 = vmatpush1.bf16.msra.mxu0 %v2415
  %5764 = vmatprep.subr.bf16.mxu0 %v2414
  %5765 = vmatpush1.bf16.msra.mxu0 %v2413
  %5766 = vmatprep.subr.bf16.mxu0 %v2412
  %5767 = vmatpush1.bf16.msra.mxu0 %v2411
  %5768 = vmatprep.subr.bf16.mxu0 %v2410
  %5769 = vmatpush1.bf16.msra.mxu0 %v2409
  %5770 = vmatprep.subr.bf16.mxu0 %v2408
  %5771 = vmatpush1.bf16.msra.mxu0 %v2407
  %5772 = vmatprep.subr.bf16.mxu0 %v2406
  %5773 = vmatpush1.bf16.msra.mxu0 %v2405
  %5774 = vmatprep.subr.bf16.mxu0 %v2436
  %5775 = vmatpush2.bf16.msra.mxu0 %v2435
  %5776 = vmatprep.subr.bf16.mxu0 %v2434
  %5777 = vmatpush2.bf16.msra.mxu0 %v2433
  %5778 = vmatprep.subr.bf16.mxu0 %v2432
  %5779 = vmatpush2.bf16.msra.mxu0 %v2431
  %5780 = vmatprep.subr.bf16.mxu0 %v2430
  %5781 = vmatpush2.bf16.msra.mxu0 %v2429
  %5782 = vmatprep.subr.bf16.mxu0 %v2428
  %5783 = vmatpush2.bf16.msra.mxu0 %v2427
  %5784 = vmatprep.subr.bf16.mxu0 %v2426
  %5785 = vmatpush2.bf16.msra.mxu0 %v2425
  %5786 = vmatprep.subr.bf16.mxu0 %v2424
  %5787 = vmatpush2.bf16.msra.mxu0 %v2423
  %5788 = vmatprep.subr.bf16.mxu0 %v2422
  %5789 = vmatpush2.bf16.msra.mxu0 %v2421
  %5790 = vmatprep.mubr.bf16.mxu0 %v5755
  %5791 = vmatmul.mubr.bf16.gmra.mxu0 %v5754
  %v5792 = vpop.f32.mrf.mxu0
  %v5793 = vadd.f32 0.0, %v5792
  %v5794 = vpop.f32.mrf.mxu0
  %v5795 = vadd.f32 0.0, %v5794
  %v5796 = vpop.f32.mrf.mxu0
  %v5797 = vadd.f32 0.0, %v5796
  %v5798 = vpop.f32.mrf.mxu0
  %v5799 = vadd.f32 0.0, %v5798
  %5800 = vmatprep.mubr.bf16.mxu0 %v5757
  %5801 = vmatmul.mubr.bf16.gmra.mxu0 %v5756
  %v5802 = vpop.f32.mrf.mxu0
  %v5803 = vadd.f32 0.0, %v5802
  %v5804 = vpop.f32.mrf.mxu0
  %v5805 = vadd.f32 0.0, %v5804
  %v5806 = vpop.f32.mrf.mxu0
  %v5807 = vadd.f32 0.0, %v5806
  %v5808 = vpop.f32.mrf.mxu0
  %v5809 = vadd.f32 0.0, %v5808
  %5810 = vdwg.mxu0
  %v5811 = vsub.f32 %v5685, %v5793
  %v5812 = vsub.f32 %v5686, %v5795
  %v5813 = vsub.f32 %v5687, %v5797
  %v5814 = vsub.f32 %v5688, %v5799
  %v5815 = vsub.f32 %v5689, %v5803
  %v5816 = vsub.f32 %v5690, %v5805
  %v5817 = vsub.f32 %v5691, %v5807
  %v5818 = vsub.f32 %v5692, %v5809
  %v5819 = vmul.f32 %v5811, %v5811
  %v5820 = vmul.f32 %v5812, %v5812
  %v5821 = vmul.f32 %v5813, %v5813
  %v5822 = vmul.f32 %v5814, %v5814
  %v5823 = vmul.f32 %v5815, %v5815
  %v5824 = vmul.f32 %v5816, %v5816
  %v5825 = vmul.f32 %v5817, %v5817
  %v5826 = vmul.f32 %v5818, %v5818
  %v5827 = vpack.c.bf16 %v5821, %v5819
  %v5828 = vpack.c.bf16 %v5822, %v5820
  %v5829 = vpack.c.bf16 %v5825, %v5823
  %v5830 = vpack.c.bf16 %v5826, %v5824
  %5831 = vmatprep.subr.bf16.mxu0 0
  %5832 = vmatpush1.bf16.msra.mxu0 0
  %5833 = vmatprep.subr.bf16.mxu0 0
  %5834 = vmatpush1.bf16.msra.mxu0 0
  %5835 = vmatprep.subr.bf16.mxu0 0
  %5836 = vmatpush1.bf16.msra.mxu0 0
  %5837 = vmatprep.subr.bf16.mxu0 0
  %5838 = vmatpush1.bf16.msra.mxu0 0
  %5839 = vmatprep.subr.bf16.mxu0 0
  %5840 = vmatpush1.bf16.msra.mxu0 0
  %5841 = vmatprep.subr.bf16.mxu0 0
  %5842 = vmatpush1.bf16.msra.mxu0 0
  %5843 = vmatprep.subr.bf16.mxu0 %v5830
  %5844 = vmatpush1.bf16.msra.mxu0 %v5829
  %5845 = vmatprep.subr.bf16.mxu0 %v5828
  %5846 = vmatpush1.bf16.msra.mxu0 %v5827
  %5847 = vmatprep.subr.bf16.mxu0 0
  %5848 = vmatpush2.bf16.msra.mxu0 0
  %5849 = vmatprep.subr.bf16.mxu0 0
  %5850 = vmatpush2.bf16.msra.mxu0 0
  %5851 = vmatprep.subr.bf16.mxu0 0
  %5852 = vmatpush2.bf16.msra.mxu0 0
  %5853 = vmatprep.subr.bf16.mxu0 0
  %5854 = vmatpush2.bf16.msra.mxu0 0
  %5855 = vmatprep.subr.bf16.mxu0 0
  %5856 = vmatpush2.bf16.msra.mxu0 0
  %5857 = vmatprep.subr.bf16.mxu0 0
  %5858 = vmatpush2.bf16.msra.mxu0 0
  %5859 = vmatprep.subr.bf16.mxu0 0
  %5860 = vmatpush2.bf16.msra.mxu0 0
  %5861 = vmatprep.subr.bf16.mxu0 0
  %5862 = vmatpush2.bf16.msra.mxu0 0
  %5863 = vmatprep.mubr.bf16.mxu0 0
  %5864 = vmatmul.mubr.bf16.gmra.mxu0 %v2247
  %v5865 = vpop.f32.mrf.mxu0
  %v5866 = vadd.f32 0.0, %v5865
  %v5867 = vpop.f32.mrf.mxu0
  %v5868 = vadd.f32 0.0, %v5867
  %v5869 = vpop.f32.mrf.mxu0
  %v5870 = vadd.f32 0.0, %v5869
  %v5871 = vpop.f32.mrf.mxu0
  %v5872 = vadd.f32 0.0, %v5871
  %5873 = vmatprep.mubr.bf16.mxu0 0
  %5874 = vmatmul.mubr.bf16.gmra.mxu0 %v2250
  %v5875 = vpop.f32.mrf.mxu0
  %v5876 = vadd.f32 0.0, %v5875
  %v5877 = vpop.f32.mrf.mxu0
  %v5878 = vadd.f32 0.0, %v5877
  %v5879 = vpop.f32.mrf.mxu0
  %v5880 = vadd.f32 0.0, %v5879
  %v5881 = vpop.f32.mrf.mxu0
  %v5882 = vadd.f32 0.0, %v5881
  %5883 = vdwg.mxu0
  %v5884 = vpack.c.bf16 %v5870, %v5866
  %v5885 = vpack.c.bf16 %v5872, %v5868
  %v5886 = vpack.c.bf16 %v5880, %v5876
  %v5887 = vpack.c.bf16 %v5882, %v5878
  %5888 = vmatprep.subr.bf16.mxu0 %v2420
  %5889 = vmatpush1.bf16.msra.mxu0 %v2419
  %5890 = vmatprep.subr.bf16.mxu0 %v2418
  %5891 = vmatpush1.bf16.msra.mxu0 %v2417
  %5892 = vmatprep.subr.bf16.mxu0 %v2416
  %5893 = vmatpush1.bf16.msra.mxu0 %v2415
  %5894 = vmatprep.subr.bf16.mxu0 %v2414
  %5895 = vmatpush1.bf16.msra.mxu0 %v2413
  %5896 = vmatprep.subr.bf16.mxu0 %v2412
  %5897 = vmatpush1.bf16.msra.mxu0 %v2411
  %5898 = vmatprep.subr.bf16.mxu0 %v2410
  %5899 = vmatpush1.bf16.msra.mxu0 %v2409
  %5900 = vmatprep.subr.bf16.mxu0 %v2408
  %5901 = vmatpush1.bf16.msra.mxu0 %v2407
  %5902 = vmatprep.subr.bf16.mxu0 %v2406
  %5903 = vmatpush1.bf16.msra.mxu0 %v2405
  %5904 = vmatprep.subr.bf16.mxu0 %v2436
  %5905 = vmatpush2.bf16.msra.mxu0 %v2435
  %5906 = vmatprep.subr.bf16.mxu0 %v2434
  %5907 = vmatpush2.bf16.msra.mxu0 %v2433
  %5908 = vmatprep.subr.bf16.mxu0 %v2432
  %5909 = vmatpush2.bf16.msra.mxu0 %v2431
  %5910 = vmatprep.subr.bf16.mxu0 %v2430
  %5911 = vmatpush2.bf16.msra.mxu0 %v2429
  %5912 = vmatprep.subr.bf16.mxu0 %v2428
  %5913 = vmatpush2.bf16.msra.mxu0 %v2427
  %5914 = vmatprep.subr.bf16.mxu0 %v2426
  %5915 = vmatpush2.bf16.msra.mxu0 %v2425
  %5916 = vmatprep.subr.bf16.mxu0 %v2424
  %5917 = vmatpush2.bf16.msra.mxu0 %v2423
  %5918 = vmatprep.subr.bf16.mxu0 %v2422
  %5919 = vmatpush2.bf16.msra.mxu0 %v2421
  %5920 = vmatprep.mubr.bf16.mxu0 %v5885
  %5921 = vmatmul.mubr.bf16.gmra.mxu0 %v5884
  %v5922 = vpop.f32.mrf.mxu0
  %v5923 = vadd.f32 1e-05, %v5922
  %v5924 = vpop.f32.mrf.mxu0
  %v5925 = vadd.f32 1e-05, %v5924
  %v5926 = vpop.f32.mrf.mxu0
  %v5927 = vadd.f32 1e-05, %v5926
  %v5928 = vpop.f32.mrf.mxu0
  %v5929 = vadd.f32 1e-05, %v5928
  %5930 = vmatprep.mubr.bf16.mxu0 %v5887
  %5931 = vmatmul.mubr.bf16.gmra.mxu0 %v5886
  %v5932 = vpop.f32.mrf.mxu0
  %v5933 = vadd.f32 1e-05, %v5932
  %v5934 = vpop.f32.mrf.mxu0
  %v5935 = vadd.f32 1e-05, %v5934
  %v5936 = vpop.f32.mrf.mxu0
  %v5937 = vadd.f32 1e-05, %v5936
  %v5938 = vpop.f32.mrf.mxu0
  %v5939 = vadd.f32 1e-05, %v5938
  %5940 = vdwg.mxu0
  %v5941 = vrsqrt.pop %v5923
  %v5942 = vrsqrt.pop %v5925
  %v5943 = vrsqrt.pop %v5927
  %v5944 = vrsqrt.pop %v5929
  %v5945 = vrsqrt.pop %v5933
  %v5946 = vrsqrt.pop %v5935
  %v5947 = vrsqrt.pop %v5937
  %v5948 = vrsqrt.pop %v5939
  %v5949 = vmul.f32 %v5811, %v5941
  %v5950 = vmul.f32 %v5812, %v5942
  %v5951 = vmul.f32 %v5813, %v5943
  %v5952 = vmul.f32 %v5814, %v5944
  %v5953 = vmul.f32 %v5815, %v5945
  %v5954 = vmul.f32 %v5816, %v5946
  %v5955 = vmul.f32 %v5817, %v5947
  %v5956 = vmul.f32 %v5818, %v5948
  %v5958 = vlaneseq
  %v5959 = vshrl.u32 %v5958, 7
  %v5960 = vsub.s32 0, %v5959
  %v5961 = vrot.slane %v5694, %v5960
  %v5962 = vlaneseq
  %v5963 = vshrl.u32 %v5962, 7
  %v5964 = vsub.s32 1, %v5963
  %v5965 = vrot.slane %v5694, %v5964
  %v5968 = vmul.f32 %v5949, %v5961
  %v5969 = vmul.f32 %v5950, %v5965
  %v5970 = vmul.f32 %v5951, %v5961
  %v5971 = vmul.f32 %v5952, %v5965
  %v5972 = vmul.f32 %v5953, %v5961
  %v5973 = vmul.f32 %v5954, %v5965
  %v5974 = vmul.f32 %v5955, %v5961
  %v5975 = vmul.f32 %v5956, %v5965
  %v5977 = vlaneseq
  %v5978 = vshrl.u32 %v5977, 7
  %v5979 = vsub.s32 0, %v5978
  %v5980 = vrot.slane %v5696, %v5979
  %v5981 = vlaneseq
  %v5982 = vshrl.u32 %v5981, 7
  %v5983 = vsub.s32 1, %v5982
  %v5984 = vrot.slane %v5696, %v5983
  %v5987 = vadd.f32 %v5968, %v5980
  %v5988 = vadd.f32 %v5969, %v5984
  %v5989 = vadd.f32 %v5970, %v5980
  %v5990 = vadd.f32 %v5971, %v5984
  %v5991 = vadd.f32 %v5972, %v5980
  %v5992 = vadd.f32 %v5973, %v5984
  %v5993 = vadd.f32 %v5974, %v5980
  %v5994 = vadd.f32 %v5975, %v5984
  %v5995 = vpack.c.bf16 %v5989, %v5987
  %v5996 = vpack.c.bf16 %v5990, %v5988
  %v5997 = vpack.c.bf16 %v5993, %v5991
  %v5998 = vpack.c.bf16 %v5994, %v5992
  %v6003 = vunpack.c.l.b16 %v5995
  %v6004 = vunpack.c.l.b16 %v5996
  %v6005 = vunpack.c.h.b16 %v5995
  %v6006 = vunpack.c.h.b16 %v5996
  %v6007 = vunpack.c.l.b16 %v5997
  %v6008 = vunpack.c.l.b16 %v5998
  %v6009 = vunpack.c.h.b16 %v5997
  %v6010 = vunpack.c.h.b16 %v5998
  %v6011 = vpack.c.b16 %v6004, %v6003
  %v6012 = vpack.c.b16 %v6006, %v6005
  %v6013 = vpack.c.b16 %v6008, %v6007
  %v6014 = vpack.c.b16 %v6010, %v6009
  %6019 = vst [vmem:[%s7] sm:$0xff] %v6011
  %6020 = vst [vmem:[%s7 + $0x8] sm:$0xff] %v6012
  %6021 = vst [vmem:[%s7 + $0x10] sm:$0xff] %v6013
  %6022 = vst [vmem:[%s7 + $0x18] sm:$0xff] %v6014
  // Predicated region
  $region30: #{retinanet_forward.2} parent=0 // pred_check
    _
  $region31: #{retinanet_forward.2} parent=0 // pred_check_branch
    %6024 = sbr.rel (0) target = $region33
  $region32: #{retinanet_forward.2} parent=0 // pred_region
    _
  $region33: #{retinanet_forward.2} parent=0 // pred_fallthru
    _
  // Predicated region
  $region34: #{retinanet_forward.2} parent=0 // pred_check
    _
  $region35: #{retinanet_forward.2} parent=0 // pred_check_branch
    %6026 = sbr.rel (0) target = $region37
  $region36: #{retinanet_forward.2} parent=0 // pred_region
    _
  $region37: #{retinanet_forward.2} parent=0 // pred_fallthru
    _

</llo_original>
